<compile_context>
chip_gen: v7x
topology: tpu7x:2x2x1
jax: 0.10.0
libtpu: 0.0.40
codegen_flags: <defaults>
</compile_context>

<pallas_src>
import functools

import jax
import jax.numpy as jnp
import numpy as np
from jax.experimental import pallas as pl
from jax.experimental.pallas import tpu as pltpu

HALO = 32  # halo block rows: multiple of 8, >= max(k')-1 (=19), divides TILE_T


def _round_up(x, m):
    return (x + m - 1) // m * m


# ----------------------------------------------------------------------------
# Pallas kernels
# ----------------------------------------------------------------------------
def _conv_bn_kernel(*refs, kprime, apply_act, has_res):
    """In-kernel conv (k' tap matmuls) + folded BN (+residual) (+swish)."""
    if has_res:
        x_ref, h_ref, w_ref, sc_ref, sh_ref, r_ref, o_ref = refs
    else:
        x_ref, h_ref, w_ref, sc_ref, sh_ref, o_ref = refs

    tile_t = o_ref.shape[1]
    # (TILE_T + HALO, C_g) bf16: current tile + right halo rows.
    x = jnp.concatenate([x_ref[0], h_ref[0]], axis=0)

    acc = jnp.dot(x[0:tile_t], w_ref[0], preferred_element_type=jnp.float32)
    for tap in range(1, kprime):
        acc = acc + jnp.dot(x[tap:tap + tile_t], w_ref[tap],
                            preferred_element_type=jnp.float32)

    y = acc * sc_ref[...] + sh_ref[...]          # folded BatchNorm (f32)
    if has_res:
        y = y + r_ref[0].astype(jnp.float32)
    if apply_act:                                # Swish: x * sigmoid(x), f32
        y = y * jax.nn.sigmoid(y)
    o_ref[0] = y.astype(o_ref.dtype)


def _avgpool_kernel(x_ref, o_ref, *, pool):
    # x_ref block: (1, TILE_P, pool, C) -> mean over the pool window (f32).
    x = x_ref[0].astype(jnp.float32)
    o_ref[0] = (jnp.sum(x, axis=1) * (1.0 / pool)).astype(o_ref.dtype)


# ----------------------------------------------------------------------------
# Conv1d + BN (+ residual) (+ swish) wrapper
# ----------------------------------------------------------------------------
def conv_bn_act(x, p, *, stride, padding, act, residual=None,
                out_dtype=jnp.bfloat16):
    """Conv1d(no bias) + BatchNorm1d (inference) [+ residual] [+ Swish].

    x: (B, T_in, C_in); returns (B, T_out, C_out) in out_dtype.
    """
    B, T_in, C_in = x.shape
    w = p["w"]                                    # PyTorch layout (C_out, C_in, k)
    C_out, C_in_w, k = w.shape
    assert C_in == C_in_w
    s = stride
    T_out = (T_in + 2 * padding - k) // s + 1

    # Regroup `s` consecutive samples into channels -> stride-1 conv with
    # k' = ceil(k/s) taps over C_g = s*C_in channels.
    kp = _round_up(k, s)
    kprime = kp // s
    C_g = s * C_in

    # Time tiling (multiple of 32 so the 32-row halo block index is exact).
    tile_t = 1024 if C_out <= 128 else 512
    tile_t = min(tile_t, _round_up(T_out, 32))
    num_tiles = pl.cdiv(T_out, tile_t)
    t_pad_out = num_tiles * tile_t

    # Pad + regroup the input so every BlockSpec DMA is fully in-bounds.
    L_g = t_pad_out + HALO                        # regrouped rows
    L_orig = L_g * s
    right_pad = L_orig - padding - T_in
    xp = jnp.pad(x.astype(jnp.bfloat16),
                 ((0, 0), (padding, right_pad), (0, 0)))
    x_g = xp.reshape(B, L_g, C_g)

    # Weights: (C_out, C_in, k) -> (k', s*C_in, C_out), zero-padded taps.
    wt = jnp.transpose(w, (2, 1, 0))              # (k, C_in, C_out)
    wt = jnp.pad(wt, ((0, kp - k), (0, 0), (0, 0)))
    w_g = wt.reshape(kprime, s, C_in, C_out).reshape(kprime, C_g, C_out)
    w_g = w_g.astype(jnp.bfloat16)

    scale = (p["gamma"] / jnp.sqrt(p["var"] + 1e-5)).astype(jnp.float32)
    shift = (p["beta"] - p["mean"] * scale).astype(jnp.float32)
    scale = scale.reshape(1, C_out)
    shift = shift.reshape(1, C_out)

    R = tile_t // HALO                            # halo block stride (static)
    arrays = [x_g, x_g, w_g, scale, shift]
    in_specs = [
        pl.BlockSpec((1, tile_t, C_g), lambda b, j: (b, j, 0)),
        pl.BlockSpec((1, HALO, C_g), lambda b, j: (b, (j + 1) * R, 0)),
        pl.BlockSpec((kprime, C_g, C_out), lambda b, j: (0, 0, 0)),
        pl.BlockSpec((1, C_out), lambda b, j: (0, 0)),
        pl.BlockSpec((1, C_out), lambda b, j: (0, 0)),
    ]

    has_res = residual is not None
    if has_res:
        r = residual.astype(jnp.bfloat16)
        r = jnp.pad(r, ((0, 0), (0, t_pad_out - r.shape[1]), (0, 0)))
        arrays.append(r)
        in_specs.append(pl.BlockSpec((1, tile_t, C_out), lambda b, j: (b, j, 0)))

    kernel = functools.partial(_conv_bn_kernel, kprime=kprime,
                               apply_act=act, has_res=has_res)
    out = pl.pallas_call(
        kernel,
        grid=(B, num_tiles),
        in_specs=in_specs,
        out_specs=pl.BlockSpec((1, tile_t, C_out), lambda b, j: (b, j, 0)),
        out_shape=jax.ShapeDtypeStruct((B, t_pad_out, C_out), out_dtype),
        compiler_params=pltpu.CompilerParams(
            dimension_semantics=("parallel", "parallel"),
            vmem_limit_bytes=48 * 1024 * 1024),
    )(*arrays)
    return out[:, :T_out, :]


def avg_pool1d(x, pool):
    B, T, C = x.shape
    n_out = T // pool
    x = x[:, : n_out * pool, :].reshape(B, n_out, pool, C)

    tile_p = min(256, _round_up(n_out, 8))
    num_tiles = pl.cdiv(n_out, tile_p)
    n_pad = num_tiles * tile_p
    x = jnp.pad(x, ((0, 0), (0, n_pad - n_out), (0, 0), (0, 0)))

    out = pl.pallas_call(
        functools.partial(_avgpool_kernel, pool=pool),
        grid=(B, num_tiles),
        in_specs=[pl.BlockSpec((1, tile_p, pool, C), lambda b, j: (b, j, 0, 0))],
        out_specs=pl.BlockSpec((1, tile_p, C), lambda b, j: (b, j, 0)),
        out_shape=jax.ShapeDtypeStruct((B, n_pad, C), jnp.float32),
        compiler_params=pltpu.CompilerParams(
            dimension_semantics=("parallel", "parallel")),
    )(x)
    return out[:, :n_out, :]


# ----------------------------------------------------------------------------
# Model forward
# ----------------------------------------------------------------------------
def basic_block(x, p):
    residual = x
    out = conv_bn_act(x, p["conv1"], stride=p["stride"], padding=1, act=True)
    if "downsample" in p:
        residual = conv_bn_act(x, p["downsample"], stride=p["stride"],
                               padding=0, act=False)
    # conv2 + bn2 + residual-add + swish fused in one kernel.
    out = conv_bn_act(out, p["conv2"], stride=1, padding=1, act=True,
                      residual=residual)
    return out


def conv1d_resnet_forward(xs_pad, length, params):
    """xs_pad: (B, Tmax) raw waveform; returns ((B, T//640, 512), lengths)."""
    xs_pad = xs_pad[:, :, None]                  # unsqueeze(dim=2) -> (B, T, 1)
    B, T, _ = xs_pad.shape
    x = xs_pad[:, : T // 640 * 640, :].astype(jnp.bfloat16)  # trim to mult. 640
    # (Kernels are channel-last (B, T, C) == PyTorch NCW transposed; the final
    #  transpose(1, 2) of the PyTorch module is therefore already done.)

    x = conv_bn_act(x, params["conv1"], stride=4, padding=38, act=True)
    for name in ("layer1", "layer2", "layer3", "layer4"):
        for blk in params[name]:
            x = basic_block(x, blk)
    x = avg_pool1d(x, pool=20)                   # a_upsample_ratio = 1

    olength = length // 640
    return x, olength


# ----------------------------------------------------------------------------
# Deterministic parameter init (shapes from the PyTorch module __init__)
# ----------------------------------------------------------------------------
def _conv_bn_params(key, c_in, c_out, k):
    k1, k2, k3, k4, k5 = jax.random.split(key, 5)
    return dict(
        w=jax.random.normal(k1, (c_out, c_in, k), jnp.float32)
        * (1.0 / np.sqrt(c_in * k)),
        gamma=1.0 + 0.1 * jax.random.normal(k2, (c_out,), jnp.float32),
        beta=0.1 * jax.random.normal(k3, (c_out,), jnp.float32),
        mean=0.1 * jax.random.normal(k4, (c_out,), jnp.float32),
        var=1.0 + 0.1 * jax.random.uniform(k5, (c_out,), jnp.float32),
    )


def init_params(key):
    keys = iter(jax.random.split(key, 32))
    params = {"conv1": _conv_bn_params(next(keys), 1, 64, 80)}
    inplanes = 64
    for name, planes, stride in (("layer1", 64, 1), ("layer2", 128, 2),
                                 ("layer3", 256, 2), ("layer4", 512, 2)):
        blocks = []
        b0 = {
            "stride": stride,
            "conv1": _conv_bn_params(next(keys), inplanes, planes, 3),
            "conv2": _conv_bn_params(next(keys), planes, planes, 3),
        }
        if stride != 1 or inplanes != planes:
            b0["downsample"] = _conv_bn_params(next(keys), inplanes, planes, 1)
        blocks.append(b0)
        inplanes = planes
        blocks.append({
            "stride": 1,
            "conv1": _conv_bn_params(next(keys), planes, planes, 3),
            "conv2": _conv_bn_params(next(keys), planes, planes, 3),
        })
        params[name] = blocks
    return params


# ----------------------------------------------------------------------------
if __name__ == "__main__":
    root = jax.random.PRNGKey(0)
    pkey, xkey = jax.random.split(root)
    params = init_params(pkey)

    B, T = 2, 1280                               # 1280 = 2 * 640 raw samples
    xs_pad = jax.random.normal(xkey, (B, T), jnp.float32)
    length = jnp.array([1280, 960], dtype=jnp.int32)

    out, olen = conv1d_resnet_forward(xs_pad, length, params)
    out = jax.block_until_ready(out)
    olen = jax.block_until_ready(olen)

    assert out.shape == (B, T // 640, 512), out.shape
    assert bool(jnp.all(jnp.isfinite(out)))
    print("KERNEL_OK")
</pallas_src>

<mosaic_0001>
module attributes {stable_mosaic.version = 11 : i64} {
  func.func @_conv_bn_kernel(%arg0: i32, %arg1: i32, %arg2: memref<1x320x4xbf16, #tpu.memory_space<vmem>>, %arg3: memref<1x32x4xbf16, #tpu.memory_space<vmem>>, %arg4: memref<20x4x64xbf16, #tpu.memory_space<vmem>>, %arg5: memref<1x64xf32, #tpu.memory_space<vmem>>, %arg6: memref<1x64xf32, #tpu.memory_space<vmem>>, %arg7: memref<1x320x64xbf16, #tpu.memory_space<vmem>>) attributes {dimension_semantics = [#tpu.dimension_semantics<parallel>, #tpu.dimension_semantics<parallel>], iteration_bounds = array<i64: 2, 1>, scalar_prefetch = 0 : i64, scratch_operands = 0 : i64, tpu.core_type = #tpu.core_type<tc>, window_params = [{transform_indices = @transform_0, window_bounds = array<i64: 1, 320, 4>}, {transform_indices = @transform_1, window_bounds = array<i64: 1, 32, 4>}, {pipeline_mode = #tpu.pipeline_mode<synchronous>, transform_indices = @transform_2, window_bounds = array<i64: 20, 4, 64>}, {pipeline_mode = #tpu.pipeline_mode<synchronous>, transform_indices = @transform_3, window_bounds = array<i64: 1, 64>}, {pipeline_mode = #tpu.pipeline_mode<synchronous>, transform_indices = @transform_4, window_bounds = array<i64: 1, 64>}, {transform_indices = @transform_5, window_bounds = array<i64: 1, 320, 64>}]} {
    %c0 = arith.constant 0 : index
    %c0_0 = arith.constant 0 : index
    %c0_1 = arith.constant 0 : index
    %0 = vector.load %arg2[%c0, %c0_0, %c0_1] : memref<1x320x4xbf16, #tpu.memory_space<vmem>>, vector<1x320x4xbf16>
    %1 = vector.shape_cast %0 : vector<1x320x4xbf16> to vector<320x4xbf16>
    %c0_2 = arith.constant 0 : index
    %c0_3 = arith.constant 0 : index
    %c0_4 = arith.constant 0 : index
    %2 = vector.load %arg3[%c0_2, %c0_3, %c0_4] : memref<1x32x4xbf16, #tpu.memory_space<vmem>>, vector<1x32x4xbf16>
    %3 = vector.shape_cast %2 : vector<1x32x4xbf16> to vector<32x4xbf16>
    %4 = tpu.concatenate %1, %3 in 0 : vector<320x4xbf16>, vector<32x4xbf16> -> vector<352x4xbf16>
    %5 = vector.extract_strided_slice %4 {offsets = [0, 0], sizes = [320, 4], strides = [1, 1]} : vector<352x4xbf16> to vector<320x4xbf16>
    %c0_5 = arith.constant 0 : index
    %c0_6 = arith.constant 0 : index
    %c0_7 = arith.constant 0 : index
    %6 = vector.load %arg4[%c0_5, %c0_6, %c0_7] : memref<20x4x64xbf16, #tpu.memory_space<vmem>>, vector<1x4x64xbf16>
    %7 = vector.shape_cast %6 : vector<1x4x64xbf16> to vector<4x64xbf16>
    %cst = arith.constant dense<0.000000e+00> : vector<320x64xf32>
    %8 = tpu.matmul %5, %7, %cst {dimension_numbers = #tpu.dot_dimension_numbers<[1], [0], [0], [1], [0, 0, 1, 1], [], []>} : vector<320x4xbf16>, vector<4x64xbf16>, vector<320x64xf32> -> vector<320x64xf32>
    %9 = vector.extract_strided_slice %4 {offsets = [1, 0], sizes = [320, 4], strides = [1, 1]} : vector<352x4xbf16> to vector<320x4xbf16>
    %c1 = arith.constant 1 : index
    %c0_8 = arith.constant 0 : index
    %c0_9 = arith.constant 0 : index
    %10 = vector.load %arg4[%c1, %c0_8, %c0_9] : memref<20x4x64xbf16, #tpu.memory_space<vmem>>, vector<1x4x64xbf16>
    %11 = vector.shape_cast %10 : vector<1x4x64xbf16> to vector<4x64xbf16>
    %cst_10 = arith.constant dense<0.000000e+00> : vector<320x64xf32>
    %12 = tpu.matmul %9, %11, %cst_10 {dimension_numbers = #tpu.dot_dimension_numbers<[1], [0], [0], [1], [0, 0, 1, 1], [], []>} : vector<320x4xbf16>, vector<4x64xbf16>, vector<320x64xf32> -> vector<320x64xf32>
    %13 = arith.addf %8, %12 : vector<320x64xf32>
    %14 = vector.extract_strided_slice %4 {offsets = [2, 0], sizes = [320, 4], strides = [1, 1]} : vector<352x4xbf16> to vector<320x4xbf16>
    %c2 = arith.constant 2 : index
    %c0_11 = arith.constant 0 : index
    %c0_12 = arith.constant 0 : index
    %15 = vector.load %arg4[%c2, %c0_11, %c0_12] : memref<20x4x64xbf16, #tpu.memory_space<vmem>>, vector<1x4x64xbf16>
    %16 = vector.shape_cast %15 : vector<1x4x64xbf16> to vector<4x64xbf16>
    %cst_13 = arith.constant dense<0.000000e+00> : vector<320x64xf32>
    %17 = tpu.matmul %14, %16, %cst_13 {dimension_numbers = #tpu.dot_dimension_numbers<[1], [0], [0], [1], [0, 0, 1, 1], [], []>} : vector<320x4xbf16>, vector<4x64xbf16>, vector<320x64xf32> -> vector<320x64xf32>
    %18 = arith.addf %13, %17 : vector<320x64xf32>
    %19 = vector.extract_strided_slice %4 {offsets = [3, 0], sizes = [320, 4], strides = [1, 1]} : vector<352x4xbf16> to vector<320x4xbf16>
    %c3 = arith.constant 3 : index
    %c0_14 = arith.constant 0 : index
    %c0_15 = arith.constant 0 : index
    %20 = vector.load %arg4[%c3, %c0_14, %c0_15] : memref<20x4x64xbf16, #tpu.memory_space<vmem>>, vector<1x4x64xbf16>
    %21 = vector.shape_cast %20 : vector<1x4x64xbf16> to vector<4x64xbf16>
    %cst_16 = arith.constant dense<0.000000e+00> : vector<320x64xf32>
    %22 = tpu.matmul %19, %21, %cst_16 {dimension_numbers = #tpu.dot_dimension_numbers<[1], [0], [0], [1], [0, 0, 1, 1], [], []>} : vector<320x4xbf16>, vector<4x64xbf16>, vector<320x64xf32> -> vector<320x64xf32>
    %23 = arith.addf %18, %22 : vector<320x64xf32>
    %24 = vector.extract_strided_slice %4 {offsets = [4, 0], sizes = [320, 4], strides = [1, 1]} : vector<352x4xbf16> to vector<320x4xbf16>
    %c4 = arith.constant 4 : index
    %c0_17 = arith.constant 0 : index
    %c0_18 = arith.constant 0 : index
    %25 = vector.load %arg4[%c4, %c0_17, %c0_18] : memref<20x4x64xbf16, #tpu.memory_space<vmem>>, vector<1x4x64xbf16>
    %26 = vector.shape_cast %25 : vector<1x4x64xbf16> to vector<4x64xbf16>
    %cst_19 = arith.constant dense<0.000000e+00> : vector<320x64xf32>
    %27 = tpu.matmul %24, %26, %cst_19 {dimension_numbers = #tpu.dot_dimension_numbers<[1], [0], [0], [1], [0, 0, 1, 1], [], []>} : vector<320x4xbf16>, vector<4x64xbf16>, vector<320x64xf32> -> vector<320x64xf32>
    %28 = arith.addf %23, %27 : vector<320x64xf32>
    %29 = vector.extract_strided_slice %4 {offsets = [5, 0], sizes = [320, 4], strides = [1, 1]} : vector<352x4xbf16> to vector<320x4xbf16>
    %c5 = arith.constant 5 : index
    %c0_20 = arith.constant 0 : index
    %c0_21 = arith.constant 0 : index
    %30 = vector.load %arg4[%c5, %c0_20, %c0_21] : memref<20x4x64xbf16, #tpu.memory_space<vmem>>, vector<1x4x64xbf16>
    %31 = vector.shape_cast %30 : vector<1x4x64xbf16> to vector<4x64xbf16>
    %cst_22 = arith.constant dense<0.000000e+00> : vector<320x64xf32>
    %32 = tpu.matmul %29, %31, %cst_22 {dimension_numbers = #tpu.dot_dimension_numbers<[1], [0], [0], [1], [0, 0, 1, 1], [], []>} : vector<320x4xbf16>, vector<4x64xbf16>, vector<320x64xf32> -> vector<320x64xf32>
    %33 = arith.addf %28, %32 : vector<320x64xf32>
    %34 = vector.extract_strided_slice %4 {offsets = [6, 0], sizes = [320, 4], strides = [1, 1]} : vector<352x4xbf16> to vector<320x4xbf16>
    %c6 = arith.constant 6 : index
    %c0_23 = arith.constant 0 : index
    %c0_24 = arith.constant 0 : index
    %35 = vector.load %arg4[%c6, %c0_23, %c0_24] : memref<20x4x64xbf16, #tpu.memory_space<vmem>>, vector<1x4x64xbf16>
    %36 = vector.shape_cast %35 : vector<1x4x64xbf16> to vector<4x64xbf16>
    %cst_25 = arith.constant dense<0.000000e+00> : vector<320x64xf32>
    %37 = tpu.matmul %34, %36, %cst_25 {dimension_numbers = #tpu.dot_dimension_numbers<[1], [0], [0], [1], [0, 0, 1, 1], [], []>} : vector<320x4xbf16>, vector<4x64xbf16>, vector<320x64xf32> -> vector<320x64xf32>
    %38 = arith.addf %33, %37 : vector<320x64xf32>
    %39 = vector.extract_strided_slice %4 {offsets = [7, 0], sizes = [320, 4], strides = [1, 1]} : vector<352x4xbf16> to vector<320x4xbf16>
    %c7 = arith.constant 7 : index
    %c0_26 = arith.constant 0 : index
    %c0_27 = arith.constant 0 : index
    %40 = vector.load %arg4[%c7, %c0_26, %c0_27] : memref<20x4x64xbf16, #tpu.memory_space<vmem>>, vector<1x4x64xbf16>
    %41 = vector.shape_cast %40 : vector<1x4x64xbf16> to vector<4x64xbf16>
    %cst_28 = arith.constant dense<0.000000e+00> : vector<320x64xf32>
    %42 = tpu.matmul %39, %41, %cst_28 {dimension_numbers = #tpu.dot_dimension_numbers<[1], [0], [0], [1], [0, 0, 1, 1], [], []>} : vector<320x4xbf16>, vector<4x64xbf16>, vector<320x64xf32> -> vector<320x64xf32>
    %43 = arith.addf %38, %42 : vector<320x64xf32>
    %44 = vector.extract_strided_slice %4 {offsets = [8, 0], sizes = [320, 4], strides = [1, 1]} : vector<352x4xbf16> to vector<320x4xbf16>
    %c8 = arith.constant 8 : index
    %c0_29 = arith.constant 0 : index
    %c0_30 = arith.constant 0 : index
    %45 = vector.load %arg4[%c8, %c0_29, %c0_30] : memref<20x4x64xbf16, #tpu.memory_space<vmem>>, vector<1x4x64xbf16>
    %46 = vector.shape_cast %45 : vector<1x4x64xbf16> to vector<4x64xbf16>
    %cst_31 = arith.constant dense<0.000000e+00> : vector<320x64xf32>
    %47 = tpu.matmul %44, %46, %cst_31 {dimension_numbers = #tpu.dot_dimension_numbers<[1], [0], [0], [1], [0, 0, 1, 1], [], []>} : vector<320x4xbf16>, vector<4x64xbf16>, vector<320x64xf32> -> vector<320x64xf32>
    %48 = arith.addf %43, %47 : vector<320x64xf32>
    %49 = vector.extract_strided_slice %4 {offsets = [9, 0], sizes = [320, 4], strides = [1, 1]} : vector<352x4xbf16> to vector<320x4xbf16>
    %c9 = arith.constant 9 : index
    %c0_32 = arith.constant 0 : index
    %c0_33 = arith.constant 0 : index
    %50 = vector.load %arg4[%c9, %c0_32, %c0_33] : memref<20x4x64xbf16, #tpu.memory_space<vmem>>, vector<1x4x64xbf16>
    %51 = vector.shape_cast %50 : vector<1x4x64xbf16> to vector<4x64xbf16>
    %cst_34 = arith.constant dense<0.000000e+00> : vector<320x64xf32>
    %52 = tpu.matmul %49, %51, %cst_34 {dimension_numbers = #tpu.dot_dimension_numbers<[1], [0], [0], [1], [0, 0, 1, 1], [], []>} : vector<320x4xbf16>, vector<4x64xbf16>, vector<320x64xf32> -> vector<320x64xf32>
    %53 = arith.addf %48, %52 : vector<320x64xf32>
    %54 = vector.extract_strided_slice %4 {offsets = [10, 0], sizes = [320, 4], strides = [1, 1]} : vector<352x4xbf16> to vector<320x4xbf16>
    %c10 = arith.constant 10 : index
    %c0_35 = arith.constant 0 : index
    %c0_36 = arith.constant 0 : index
    %55 = vector.load %arg4[%c10, %c0_35, %c0_36] : memref<20x4x64xbf16, #tpu.memory_space<vmem>>, vector<1x4x64xbf16>
    %56 = vector.shape_cast %55 : vector<1x4x64xbf16> to vector<4x64xbf16>
    %cst_37 = arith.constant dense<0.000000e+00> : vector<320x64xf32>
    %57 = tpu.matmul %54, %56, %cst_37 {dimension_numbers = #tpu.dot_dimension_numbers<[1], [0], [0], [1], [0, 0, 1, 1], [], []>} : vector<320x4xbf16>, vector<4x64xbf16>, vector<320x64xf32> -> vector<320x64xf32>
    %58 = arith.addf %53, %57 : vector<320x64xf32>
    %59 = vector.extract_strided_slice %4 {offsets = [11, 0], sizes = [320, 4], strides = [1, 1]} : vector<352x4xbf16> to vector<320x4xbf16>
    %c11 = arith.constant 11 : index
    %c0_38 = arith.constant 0 : index
    %c0_39 = arith.constant 0 : index
    %60 = vector.load %arg4[%c11, %c0_38, %c0_39] : memref<20x4x64xbf16, #tpu.memory_space<vmem>>, vector<1x4x64xbf16>
    %61 = vector.shape_cast %60 : vector<1x4x64xbf16> to vector<4x64xbf16>
    %cst_40 = arith.constant dense<0.000000e+00> : vector<320x64xf32>
    %62 = tpu.matmul %59, %61, %cst_40 {dimension_numbers = #tpu.dot_dimension_numbers<[1], [0], [0], [1], [0, 0, 1, 1], [], []>} : vector<320x4xbf16>, vector<4x64xbf16>, vector<320x64xf32> -> vector<320x64xf32>
    %63 = arith.addf %58, %62 : vector<320x64xf32>
    %64 = vector.extract_strided_slice %4 {offsets = [12, 0], sizes = [320, 4], strides = [1, 1]} : vector<352x4xbf16> to vector<320x4xbf16>
    %c12 = arith.constant 12 : index
    %c0_41 = arith.constant 0 : index
    %c0_42 = arith.constant 0 : index
    %65 = vector.load %arg4[%c12, %c0_41, %c0_42] : memref<20x4x64xbf16, #tpu.memory_space<vmem>>, vector<1x4x64xbf16>
    %66 = vector.shape_cast %65 : vector<1x4x64xbf16> to vector<4x64xbf16>
    %cst_43 = arith.constant dense<0.000000e+00> : vector<320x64xf32>
    %67 = tpu.matmul %64, %66, %cst_43 {dimension_numbers = #tpu.dot_dimension_numbers<[1], [0], [0], [1], [0, 0, 1, 1], [], []>} : vector<320x4xbf16>, vector<4x64xbf16>, vector<320x64xf32> -> vector<320x64xf32>
    %68 = arith.addf %63, %67 : vector<320x64xf32>
    %69 = vector.extract_strided_slice %4 {offsets = [13, 0], sizes = [320, 4], strides = [1, 1]} : vector<352x4xbf16> to vector<320x4xbf16>
    %c13 = arith.constant 13 : index
    %c0_44 = arith.constant 0 : index
    %c0_45 = arith.constant 0 : index
    %70 = vector.load %arg4[%c13, %c0_44, %c0_45] : memref<20x4x64xbf16, #tpu.memory_space<vmem>>, vector<1x4x64xbf16>
    %71 = vector.shape_cast %70 : vector<1x4x64xbf16> to vector<4x64xbf16>
    %cst_46 = arith.constant dense<0.000000e+00> : vector<320x64xf32>
    %72 = tpu.matmul %69, %71, %cst_46 {dimension_numbers = #tpu.dot_dimension_numbers<[1], [0], [0], [1], [0, 0, 1, 1], [], []>} : vector<320x4xbf16>, vector<4x64xbf16>, vector<320x64xf32> -> vector<320x64xf32>
    %73 = arith.addf %68, %72 : vector<320x64xf32>
    %74 = vector.extract_strided_slice %4 {offsets = [14, 0], sizes = [320, 4], strides = [1, 1]} : vector<352x4xbf16> to vector<320x4xbf16>
    %c14 = arith.constant 14 : index
    %c0_47 = arith.constant 0 : index
    %c0_48 = arith.constant 0 : index
    %75 = vector.load %arg4[%c14, %c0_47, %c0_48] : memref<20x4x64xbf16, #tpu.memory_space<vmem>>, vector<1x4x64xbf16>
    %76 = vector.shape_cast %75 : vector<1x4x64xbf16> to vector<4x64xbf16>
    %cst_49 = arith.constant dense<0.000000e+00> : vector<320x64xf32>
    %77 = tpu.matmul %74, %76, %cst_49 {dimension_numbers = #tpu.dot_dimension_numbers<[1], [0], [0], [1], [0, 0, 1, 1], [], []>} : vector<320x4xbf16>, vector<4x64xbf16>, vector<320x64xf32> -> vector<320x64xf32>
    %78 = arith.addf %73, %77 : vector<320x64xf32>
    %79 = vector.extract_strided_slice %4 {offsets = [15, 0], sizes = [320, 4], strides = [1, 1]} : vector<352x4xbf16> to vector<320x4xbf16>
    %c15 = arith.constant 15 : index
    %c0_50 = arith.constant 0 : index
    %c0_51 = arith.constant 0 : index
    %80 = vector.load %arg4[%c15, %c0_50, %c0_51] : memref<20x4x64xbf16, #tpu.memory_space<vmem>>, vector<1x4x64xbf16>
    %81 = vector.shape_cast %80 : vector<1x4x64xbf16> to vector<4x64xbf16>
    %cst_52 = arith.constant dense<0.000000e+00> : vector<320x64xf32>
    %82 = tpu.matmul %79, %81, %cst_52 {dimension_numbers = #tpu.dot_dimension_numbers<[1], [0], [0], [1], [0, 0, 1, 1], [], []>} : vector<320x4xbf16>, vector<4x64xbf16>, vector<320x64xf32> -> vector<320x64xf32>
    %83 = arith.addf %78, %82 : vector<320x64xf32>
    %84 = vector.extract_strided_slice %4 {offsets = [16, 0], sizes = [320, 4], strides = [1, 1]} : vector<352x4xbf16> to vector<320x4xbf16>
    %c16 = arith.constant 16 : index
    %c0_53 = arith.constant 0 : index
    %c0_54 = arith.constant 0 : index
    %85 = vector.load %arg4[%c16, %c0_53, %c0_54] : memref<20x4x64xbf16, #tpu.memory_space<vmem>>, vector<1x4x64xbf16>
    %86 = vector.shape_cast %85 : vector<1x4x64xbf16> to vector<4x64xbf16>
    %cst_55 = arith.constant dense<0.000000e+00> : vector<320x64xf32>
    %87 = tpu.matmul %84, %86, %cst_55 {dimension_numbers = #tpu.dot_dimension_numbers<[1], [0], [0], [1], [0, 0, 1, 1], [], []>} : vector<320x4xbf16>, vector<4x64xbf16>, vector<320x64xf32> -> vector<320x64xf32>
    %88 = arith.addf %83, %87 : vector<320x64xf32>
    %89 = vector.extract_strided_slice %4 {offsets = [17, 0], sizes = [320, 4], strides = [1, 1]} : vector<352x4xbf16> to vector<320x4xbf16>
    %c17 = arith.constant 17 : index
    %c0_56 = arith.constant 0 : index
    %c0_57 = arith.constant 0 : index
    %90 = vector.load %arg4[%c17, %c0_56, %c0_57] : memref<20x4x64xbf16, #tpu.memory_space<vmem>>, vector<1x4x64xbf16>
    %91 = vector.shape_cast %90 : vector<1x4x64xbf16> to vector<4x64xbf16>
    %cst_58 = arith.constant dense<0.000000e+00> : vector<320x64xf32>
    %92 = tpu.matmul %89, %91, %cst_58 {dimension_numbers = #tpu.dot_dimension_numbers<[1], [0], [0], [1], [0, 0, 1, 1], [], []>} : vector<320x4xbf16>, vector<4x64xbf16>, vector<320x64xf32> -> vector<320x64xf32>
    %93 = arith.addf %88, %92 : vector<320x64xf32>
    %94 = vector.extract_strided_slice %4 {offsets = [18, 0], sizes = [320, 4], strides = [1, 1]} : vector<352x4xbf16> to vector<320x4xbf16>
    %c18 = arith.constant 18 : index
    %c0_59 = arith.constant 0 : index
    %c0_60 = arith.constant 0 : index
    %95 = vector.load %arg4[%c18, %c0_59, %c0_60] : memref<20x4x64xbf16, #tpu.memory_space<vmem>>, vector<1x4x64xbf16>
    %96 = vector.shape_cast %95 : vector<1x4x64xbf16> to vector<4x64xbf16>
    %cst_61 = arith.constant dense<0.000000e+00> : vector<320x64xf32>
    %97 = tpu.matmul %94, %96, %cst_61 {dimension_numbers = #tpu.dot_dimension_numbers<[1], [0], [0], [1], [0, 0, 1, 1], [], []>} : vector<320x4xbf16>, vector<4x64xbf16>, vector<320x64xf32> -> vector<320x64xf32>
    %98 = arith.addf %93, %97 : vector<320x64xf32>
    %99 = vector.extract_strided_slice %4 {offsets = [19, 0], sizes = [320, 4], strides = [1, 1]} : vector<352x4xbf16> to vector<320x4xbf16>
    %c19 = arith.constant 19 : index
    %c0_62 = arith.constant 0 : index
    %c0_63 = arith.constant 0 : index
    %100 = vector.load %arg4[%c19, %c0_62, %c0_63] : memref<20x4x64xbf16, #tpu.memory_space<vmem>>, vector<1x4x64xbf16>
    %101 = vector.shape_cast %100 : vector<1x4x64xbf16> to vector<4x64xbf16>
    %cst_64 = arith.constant dense<0.000000e+00> : vector<320x64xf32>
    %102 = tpu.matmul %99, %101, %cst_64 {dimension_numbers = #tpu.dot_dimension_numbers<[1], [0], [0], [1], [0, 0, 1, 1], [], []>} : vector<320x4xbf16>, vector<4x64xbf16>, vector<320x64xf32> -> vector<320x64xf32>
    %103 = arith.addf %98, %102 : vector<320x64xf32>
    %c0_65 = arith.constant 0 : index
    %c0_66 = arith.constant 0 : index
    %104 = vector.load %arg5[%c0_65, %c0_66] : memref<1x64xf32, #tpu.memory_space<vmem>>, vector<1x64xf32>
    %105 = vector.broadcast %104 : vector<1x64xf32> to vector<320x64xf32>
    %106 = arith.mulf %103, %105 : vector<320x64xf32>
    %c0_67 = arith.constant 0 : index
    %c0_68 = arith.constant 0 : index
    %107 = vector.load %arg6[%c0_67, %c0_68] : memref<1x64xf32, #tpu.memory_space<vmem>>, vector<1x64xf32>
    %108 = vector.broadcast %107 : vector<1x64xf32> to vector<320x64xf32>
    %109 = arith.addf %106, %108 : vector<320x64xf32>
    %110 = arith.negf %109 : vector<320x64xf32>
    %111 = math.exp %110 : vector<320x64xf32>
    %cst_69 = arith.constant 1.000000e+00 : f32
    %112 = vector.broadcast %cst_69 : f32 to vector<320x64xf32>
    %113 = arith.addf %112, %111 : vector<320x64xf32>
    %114 = arith.divf %112, %113 : vector<320x64xf32>
    %115 = arith.mulf %109, %114 : vector<320x64xf32>
    %116 = arith.truncf %115 : vector<320x64xf32> to vector<320x64xbf16>
    %c0_70 = arith.constant 0 : index
    %c0_71 = arith.constant 0 : index
    %c0_72 = arith.constant 0 : index
    %117 = vector.load %arg7[%c0_70, %c0_71, %c0_72] : memref<1x320x64xbf16, #tpu.memory_space<vmem>>, vector<1x320x64xbf16>
    %118 = vector.shape_cast %117 : vector<1x320x64xbf16> to vector<320x64xbf16>
    %119 = vector.shape_cast %116 : vector<320x64xbf16> to vector<1x320x64xbf16>
    tpu.vector_store %arg7[%c0_70, %c0_71, %c0_72], %119 {strides = array<i32>} : memref<1x320x64xbf16, #tpu.memory_space<vmem>>, vector<1x320x64xbf16>,
    return
  }
  func.func @transform_0(%arg0: i32, %arg1: i32) -> (i32, i32, i32) {
    %c0_i32 = arith.constant 0 : i32
    %c0_i32_0 = arith.constant 0 : i32
    return %arg0, %arg1, %c0_i32 : i32, i32, i32
  }
  func.func @transform_1(%arg0: i32, %arg1: i32) -> (i32, i32, i32) {
    %c1_i32 = arith.constant 1 : i32
    %0 = arith.addi %arg1, %c1_i32 : i32
    %c10_i32 = arith.constant 10 : i32
    %1 = arith.muli %0, %c10_i32 : i32
    %c0_i32 = arith.constant 0 : i32
    %c0_i32_0 = arith.constant 0 : i32
    return %arg0, %1, %c0_i32 : i32, i32, i32
  }
  func.func @transform_2(%arg0: i32, %arg1: i32) -> (i32, i32, i32) {
    %c0_i32 = arith.constant 0 : i32
    %c0_i32_0 = arith.constant 0 : i32
    %c0_i32_1 = arith.constant 0 : i32
    %c0_i32_2 = arith.constant 0 : i32
    return %c0_i32, %c0_i32_0, %c0_i32_1 : i32, i32, i32
  }
  func.func @transform_3(%arg0: i32, %arg1: i32) -> (i32, i32) {
    %c0_i32 = arith.constant 0 : i32
    %c0_i32_0 = arith.constant 0 : i32
    %c0_i32_1 = arith.constant 0 : i32
    return %c0_i32, %c0_i32_0 : i32, i32
  }
  func.func @transform_4(%arg0: i32, %arg1: i32) -> (i32, i32) {
    %c0_i32 = arith.constant 0 : i32
    %c0_i32_0 = arith.constant 0 : i32
    %c0_i32_1 = arith.constant 0 : i32
    return %c0_i32, %c0_i32_0 : i32, i32
  }
  func.func @transform_5(%arg0: i32, %arg1: i32) -> (i32, i32, i32) {
    %c0_i32 = arith.constant 0 : i32
    %c0_i32_0 = arith.constant 0 : i32
    return %arg0, %arg1, %c0_i32 : i32, i32, i32
  }
}

</mosaic_0001>

<llo_original>
// kernel: tpu_custom_call.1
$region0: #{tpu_custom_call.1}
  #allocation0 [shape = 'u32[]', space=smem, size = 0x4, offset = 0x4, fixed_abs, tag = 'smem constant byte address 0x4 - core index']
  #allocation1 [shape = 'u32[144,128]{1,0:T(1,128)}', space=vmem, size = 0x12000, scoped, tag = 'internal scratch']
  %s0 = inlined_call_operand.vmem [shape: bf16[2,352,4], index: 0, kind: input, shape index: {}]
  %s1 = inlined_call_operand.vmem [shape: bf16[2,352,4], index: 1, kind: input, shape index: {}]
  %s2 = inlined_call_operand.vmem [shape: bf16[20,4,64], index: 2, kind: input, shape index: {}]
  %s3 = inlined_call_operand.vmem [shape: f32[1,64], index: 3, kind: input, shape index: {}]
  %s4 = inlined_call_operand.vmem [shape: f32[1,64], index: 4, kind: input, shape index: {}]
  %s5 = inlined_call_operand.vmem [shape: bf16[2,320,64], index: 5, kind: output, shape index: {}]
  %s6 = sld [smem:[#allocation0]]
  $region53: #{tpu_custom_call.1} parent=0
    _
  %s8 = ssub.s32 1, %s6
  %s9 = scalar_select 0, %s8, %s6
  loop: start=0, step=1, limit=4
  $region2: #{tpu_custom_call.1} parent=0 // loop_pre_header
    _
  $region3: #{tpu_custom_call.1} parent=0 // loop_header
    %s11 = sphi 0, %s15
    %p12 = scmp.ge.s32.totalorder %s11, 4
    %s18 = sphi 0, %s30
    %s19 = sphi 0, %s26
    %s20 = sphi 0, %s18
    %s21 = sphi 0, %s19
    %s22 = sphi 0, %s20
    %s23 = sphi 0, %s21
    %s35 = sphi 0, %s37
    %s38 = sphi 0, %s35
    %s39 = sphi 0, %s38
    %s55 = sphi 0, %s39
    %s67 = sphi 0, %s69
    %s70 = sphi 0, %s67
    %s71 = sphi 0, %s70
    %s87 = sphi 0, %s71
    %s91 = sphi 0, %s91
    %s93 = sphi 0, %s91
    %s94 = sphi 0, %s93
    %s108 = sphi 0, %s94
    %s112 = sphi 0, %s112
    %s114 = sphi 0, %s112
    %s115 = sphi 0, %s114
    %s129 = sphi 0, %s115
    %s133 = sphi 0, %s133
    %s135 = sphi 0, %s133
    %s136 = sphi 0, %s135
    %s150 = sphi 0, %s136
    %s158 = sphi 0, %s160
    %s161 = sphi 0, %s158
    %s162 = sphi 0, %s161
    %s178 = sphi 0, %s162
  $region4: #{tpu_custom_call.1} parent=0 // loop_header_branch
    %14 = sbr.rel (%p12) target = $region8
  $region5: #{tpu_custom_call.1} parent=0 // loop_body
    %s16 = ssub.s32 %s11, 1
    %s17 = ssub.s32 %s11, 2
    %s24 = sadd.s32 1, %s19
    %p25 = scmp.ge.s32.totalorder %s24, 1
    %s26 = scalar_select %p25, 0, %s24
    %s27 = sadd.s32 1, %s18
    %s28 = scalar_select %p25, %s27, %s18
    %p29 = scmp.ge.s32.totalorder %s28, 2
    %s30 = scalar_select %p29, 0, %s28
    %s31 = ssub.s32 %s18, %s30
    %s32 = ssub.s32 %s19, %s26
    %s33 = sor.u32 %s31, %s32
    %p34 = scmp.eq.s32.totalorder %s33, 0
    %s36 = sadd.s32 %s35, 1
    %s37 = scalar_select %p34, %s35, %s36
    %p40 = pneg %p34
    %p41 = scmp.eq.s32.totalorder %s11, 1
    %p42 = por %p40, %p41
    %p43 = scmp.ne.s32.totalorder %s35, %s38
    %p44 = scmp.eq.s32.totalorder %s11, 0
    %p45 = por %p43, %p44
    %p46 = scmp.ne.s32.totalorder %s35, %s38
    %p47 = scmp.eq.s32.totalorder %s16, 1
    %p48 = por %p46, %p47
    %p49 = scmp.ne.s32.totalorder %s38, %s39
    %p50 = scmp.eq.s32.totalorder %s16, 0
    %p51 = por %p49, %p50
    %p52 = scmp.ne.s32.totalorder %s38, %s39
    %p53 = scmp.eq.s32.totalorder %s17, 1
    %p54 = por %p52, %p53
    %p56 = scmp.ne.s32.totalorder %s39, %s55
    %p57 = scmp.eq.s32.totalorder %s17, 0
    %p58 = por %p56, %p57
    %s59 = sadd.s32 %s19, 1
    %s60 = smul.u32 %s59, 10
    %s61 = sadd.s32 %s26, 1
    %s62 = smul.u32 %s61, 10
    %s63 = ssub.s32 %s18, %s30
    %s64 = ssub.s32 %s60, %s62
    %s65 = sor.u32 %s63, %s64
    %p66 = scmp.eq.s32.totalorder %s65, 0
    %s68 = sadd.s32 %s67, 1
    %s69 = scalar_select %p66, %s67, %s68
    %p72 = pneg %p66
    %p73 = scmp.eq.s32.totalorder %s11, 1
    %p74 = por %p72, %p73
    %p75 = scmp.ne.s32.totalorder %s67, %s70
    %p76 = scmp.eq.s32.totalorder %s11, 0
    %p77 = por %p75, %p76
    %p78 = scmp.ne.s32.totalorder %s67, %s70
    %p79 = scmp.eq.s32.totalorder %s16, 1
    %p80 = por %p78, %p79
    %p81 = scmp.ne.s32.totalorder %s70, %s71
    %p82 = scmp.eq.s32.totalorder %s16, 0
    %p83 = por %p81, %p82
    %p84 = scmp.ne.s32.totalorder %s70, %s71
    %p85 = scmp.eq.s32.totalorder %s17, 1
    %p86 = por %p84, %p85
    %p88 = scmp.ne.s32.totalorder %s71, %s87
    %p89 = scmp.eq.s32.totalorder %s17, 0
    %p90 = por %p88, %p89
    %s92 = sadd.s32 %s91, 1
    %p95 = scmp.eq.s32.totalorder %s11, 1
    %p96 = scmp.ne.s32.totalorder %s91, %s93
    %p97 = scmp.eq.s32.totalorder %s11, 0
    %p98 = por %p96, %p97
    %p99 = scmp.ne.s32.totalorder %s91, %s93
    %p100 = scmp.eq.s32.totalorder %s16, 1
    %p101 = por %p99, %p100
    %p102 = scmp.ne.s32.totalorder %s93, %s94
    %p103 = scmp.eq.s32.totalorder %s16, 0
    %p104 = por %p102, %p103
    %p105 = scmp.ne.s32.totalorder %s93, %s94
    %p106 = scmp.eq.s32.totalorder %s17, 1
    %p107 = por %p105, %p106
    %p109 = scmp.ne.s32.totalorder %s94, %s108
    %p110 = scmp.eq.s32.totalorder %s17, 0
    %p111 = por %p109, %p110
    %s113 = sadd.s32 %s112, 1
    %p116 = scmp.eq.s32.totalorder %s11, 1
    %p117 = scmp.ne.s32.totalorder %s112, %s114
    %p118 = scmp.eq.s32.totalorder %s11, 0
    %p119 = por %p117, %p118
    %p120 = scmp.ne.s32.totalorder %s112, %s114
    %p121 = scmp.eq.s32.totalorder %s16, 1
    %p122 = por %p120, %p121
    %p123 = scmp.ne.s32.totalorder %s114, %s115
    %p124 = scmp.eq.s32.totalorder %s16, 0
    %p125 = por %p123, %p124
    %p126 = scmp.ne.s32.totalorder %s114, %s115
    %p127 = scmp.eq.s32.totalorder %s17, 1
    %p128 = por %p126, %p127
    %p130 = scmp.ne.s32.totalorder %s115, %s129
    %p131 = scmp.eq.s32.totalorder %s17, 0
    %p132 = por %p130, %p131
    %s134 = sadd.s32 %s133, 1
    %p137 = scmp.eq.s32.totalorder %s11, 1
    %p138 = scmp.ne.s32.totalorder %s133, %s135
    %p139 = scmp.eq.s32.totalorder %s11, 0
    %p140 = por %p138, %p139
    %p141 = scmp.ne.s32.totalorder %s133, %s135
    %p142 = scmp.eq.s32.totalorder %s16, 1
    %p143 = por %p141, %p142
    %p144 = scmp.ne.s32.totalorder %s135, %s136
    %p145 = scmp.eq.s32.totalorder %s16, 0
    %p146 = por %p144, %p145
    %p147 = scmp.ne.s32.totalorder %s135, %s136
    %p148 = scmp.eq.s32.totalorder %s17, 1
    %p149 = por %p147, %p148
    %p151 = scmp.ne.s32.totalorder %s136, %s150
    %p152 = scmp.eq.s32.totalorder %s17, 0
    %p153 = por %p151, %p152
    %s154 = ssub.s32 %s18, %s30
    %s155 = ssub.s32 %s19, %s26
    %s156 = sor.u32 %s154, %s155
    %p157 = scmp.eq.s32.totalorder %s156, 0
    %s159 = sadd.s32 %s158, 1
    %s160 = scalar_select %p157, %s158, %s159
    %p163 = pneg %p157
    %p164 = scmp.eq.s32.totalorder %s11, 1
    %p165 = por %p163, %p164
    %p166 = scmp.ne.s32.totalorder %s158, %s161
    %p167 = scmp.eq.s32.totalorder %s11, 0
    %p168 = por %p166, %p167
    %p169 = scmp.ne.s32.totalorder %s158, %s161
    %p170 = scmp.eq.s32.totalorder %s16, 1
    %p171 = por %p169, %p170
    %p172 = scmp.ne.s32.totalorder %s161, %s162
    %p173 = scmp.eq.s32.totalorder %s16, 0
    %p174 = por %p172, %p173
    %p175 = scmp.ne.s32.totalorder %s161, %s162
    %p176 = scmp.eq.s32.totalorder %s17, 1
    %p177 = por %p175, %p176
    %p179 = scmp.ne.s32.totalorder %s162, %s178
    %p180 = scmp.eq.s32.totalorder %s17, 0
    %p181 = por %p179, %p180
    %p182 = scmp.le.s32.totalorder 1, %s11
    %p183 = scmp.lt.s32.totalorder %s11, 3
    %p184 = pnand %p182, %p183
    %p185 = pneg %p184
    // Predicated region
    $region9: #{tpu_custom_call.1} parent=5 // pred_check
      _
    $region10: #{tpu_custom_call.1} parent=5 // pred_check_branch
      %187 = sbr.rel (%p184) target = $region12
    $region11: #{tpu_custom_call.1} parent=5 // pred_region
      %s188 = ssub.s32 %s11, 1
      // Predicated region
      $region13: #{tpu_custom_call.1} parent=11 // pred_check
        %p189 = pneg %p104
      $region14: #{tpu_custom_call.1} parent=11 // pred_check_branch
        %191 = sbr.rel (%p189) target = $region16
      $region15: #{tpu_custom_call.1} parent=11 // pred_region
        _
      $region16: #{tpu_custom_call.1} parent=11 // pred_fallthru
        _
      // Predicated region
      $region17: #{tpu_custom_call.1} parent=11 // pred_check
        %p192 = pneg %p125
      $region18: #{tpu_custom_call.1} parent=11 // pred_check_branch
        %194 = sbr.rel (%p192) target = $region20
      $region19: #{tpu_custom_call.1} parent=11 // pred_region
        _
      $region20: #{tpu_custom_call.1} parent=11 // pred_fallthru
        _
      // Predicated region
      $region21: #{tpu_custom_call.1} parent=11 // pred_check
        %p195 = pneg %p146
      $region22: #{tpu_custom_call.1} parent=11 // pred_check_branch
        %197 = sbr.rel (%p195) target = $region24
      $region23: #{tpu_custom_call.1} parent=11 // pred_region
        _
      $region24: #{tpu_custom_call.1} parent=11 // pred_fallthru
        _
    $region12: #{tpu_custom_call.1} parent=5 // pred_fallthru
      _
    %p198 = scmp.lt.s32.totalorder %s11, 2
    // Predicated region
    $region25: #{tpu_custom_call.1} parent=5 // pred_check
      %p199 = pneg %p198
    $region26: #{tpu_custom_call.1} parent=5 // pred_check_branch
      %201 = sbr.rel (%p199) target = $region28
    $region27: #{tpu_custom_call.1} parent=5 // pred_region
      // Predicated region
      $region29: #{tpu_custom_call.1} parent=27 // pred_check
        %p202 = pneg %p45
      $region30: #{tpu_custom_call.1} parent=27 // pred_check_branch
        %204 = sbr.rel (%p202) target = $region32
      $region31: #{tpu_custom_call.1} parent=27 // pred_region
        %s205 = smul.u32 40, %s19
        %s206 = ssub.s32 44, %s205
        %p207 = scmp.lt.s32.totalorder %s206, 40
        %s208 = scalar_select %p207, %s206, 40
        %s209 = smul.u32 64, %s208
        %p210 = scmp.lt.s32.totalorder %s18, 1
        %s211 = scalar_select %p210, %s18, 1
        %p212 = scmp.lt.s32.totalorder %s205, 43
        %s213 = scalar_select %p212, %s205, 43
        %s214 = smul.addr %s211, 44
        %s215 = sadd.s32 %s213, %s214
        %s216 = smul.addr %s215, 4
        %s217 = scalar_lea.vmem %s0, %s216
        %s218 = smul.u32 40, %s19
        %s219 = ssub.s32 44, %s218
        %p220 = scmp.lt.s32.totalorder %s219, 40
        %s221 = scalar_select %p220, %s219, 40
        %s222 = smul.u32 64, %s221
      $region32: #{tpu_custom_call.1} parent=27 // pred_fallthru
        _
      // Predicated region
      $region33: #{tpu_custom_call.1} parent=27 // pred_check
        %p223 = pneg %p77
      $region34: #{tpu_custom_call.1} parent=27 // pred_check_branch
        %225 = sbr.rel (%p223) target = $region36
      $region35: #{tpu_custom_call.1} parent=27 // pred_region
        %s226 = sadd.s32 %s19, 1
        %s227 = smul.u32 %s226, 10
        %s228 = smul.u32 4, %s227
        %p229 = scmp.lt.s32.totalorder %s18, 1
        %s230 = scalar_select %p229, %s18, 1
        %p231 = scmp.lt.s32.totalorder %s228, 43
        %s232 = scalar_select %p231, %s228, 43
        %s233 = smul.addr %s230, 44
        %s234 = sadd.s32 %s232, %s233
        %s235 = smul.addr %s234, 4
        %s236 = scalar_lea.vmem %s1, %s235
        %s237 = sadd.s32 %s19, 1
        %s238 = smul.u32 %s237, 10
        %s239 = smul.u32 4, %s238
      $region36: #{tpu_custom_call.1} parent=27 // pred_fallthru
        _
    $region28: #{tpu_custom_call.1} parent=5 // pred_fallthru
      _
    %p240 = scmp.le.s32.totalorder 1, %s11
    %p241 = scmp.lt.s32.totalorder %s11, 3
    %p242 = pnand %p240, %p241
    %p243 = pneg %p242
    // Predicated region
    $region37: #{tpu_custom_call.1} parent=5 // pred_check
      _
    $region38: #{tpu_custom_call.1} parent=5 // pred_check_branch
      %245 = sbr.rel (%p242) target = $region40
    $region39: #{tpu_custom_call.1} parent=5 // pred_region
      %s246 = ssub.s32 %s11, 1
      %s247 = smul.u32 40, %s21
      %s248 = ssub.s32 44, %s247
      %p249 = scmp.lt.s32.totalorder %s248, 40
      %s250 = scalar_select %p249, %s248, 40
      %s251 = smul.u32 64, %s250
      %p252 = scmp.lt.s32.totalorder %s20, 1
      %s253 = scalar_select %p252, %s20, 1
      %p254 = scmp.lt.s32.totalorder %s247, 43
      %s255 = scalar_select %p254, %s247, 43
      %s256 = smul.addr %s253, 44
      %s257 = sadd.s32 %s255, %s256
      %s258 = smul.addr %s257, 4
      %s259 = scalar_lea.vmem %s0, %s258
      %p260 = pneg %p51
      %p261 = pneg %p48
      %s262 = sadd.s32 %s21, 1
      %s263 = smul.u32 %s262, 10
      %s264 = smul.u32 4, %s263
      %p265 = scmp.lt.s32.totalorder %s20, 1
      %s266 = scalar_select %p265, %s20, 1
      %p267 = scmp.lt.s32.totalorder %s264, 43
      %s268 = scalar_select %p267, %s264, 43
      %s269 = smul.addr %s266, 44
      %s270 = sadd.s32 %s268, %s269
      %s271 = smul.addr %s270, 4
      %s272 = scalar_lea.vmem %s1, %s271
      %p273 = pneg %p83
      %p274 = pneg %p80
      %p275 = pneg %p104
      %p276 = pneg %p101
      %p277 = pneg %p125
      %p278 = pneg %p122
      %p279 = pneg %p146
      %p280 = pneg %p143
      %p281 = pneg %p174
      %p282 = pneg %p171
      %s283 = smul.u32 40, %s21
      %p284 = scmp.lt.s32.totalorder %s20, 1
      %s285 = scalar_select %p284, %s20, 1
      %p286 = scmp.lt.s32.totalorder %s283, 39
      %s287 = scalar_select %p286, %s283, 39
      %s288 = smul.addr %s285, 40
      %s289 = sadd.s32 %s287, %s288
      %s290 = smul.addr %s289, 4
      %s291 = scalar_lea.vmem %s5, %s290
      %s292 = smul.u32 40, %s21
      %s293 = ssub.s32 44, %s292
      %p294 = scmp.lt.s32.totalorder %s293, 40
      %s295 = scalar_select %p294, %s293, 40
      %s296 = smul.u32 64, %s295
      %p297 = scmp.lt.s32.totalorder %s20, 1
      %s298 = scalar_select %p297, %s20, 1
      %p299 = scmp.lt.s32.totalorder %s292, 43
      %s300 = scalar_select %p299, %s292, 43
      %s301 = smul.addr %s298, 44
      %s302 = sadd.s32 %s300, %s301
      %s303 = smul.addr %s302, 4
      %s304 = scalar_lea.vmem %s0, %s303
      %s305 = smul.u32 40, %s21
      %s306 = ssub.s32 44, %s305
      %p307 = scmp.lt.s32.totalorder %s306, 40
      %s308 = scalar_select %p307, %s306, 40
      %s309 = smul.u32 64, %s308
      %s310 = sadd.s32 %s21, 1
      %s311 = smul.u32 %s310, 10
      %s312 = smul.u32 4, %s311
      %p313 = scmp.lt.s32.totalorder %s20, 1
      %s314 = scalar_select %p313, %s20, 1
      %p315 = scmp.lt.s32.totalorder %s312, 43
      %s316 = scalar_select %p315, %s312, 43
      %s317 = smul.addr %s314, 44
      %s318 = sadd.s32 %s316, %s317
      %s319 = smul.addr %s318, 4
      %s320 = scalar_lea.vmem %s1, %s319
      %s321 = sadd.s32 %s21, 1
      %s322 = smul.u32 %s321, 10
      %s323 = smul.u32 4, %s322
      %s324 = smul.u32 40, %s21
      %p325 = scmp.lt.s32.totalorder %s20, 1
      %s326 = scalar_select %p325, %s20, 1
      %p327 = scmp.lt.s32.totalorder %s324, 39
      %s328 = scalar_select %p327, %s324, 39
      %s329 = smul.addr %s326, 40
      %s330 = sadd.s32 %s328, %s329
      %s331 = smul.addr %s330, 4
      %s332 = scalar_lea.vmem %s5, %s331
      %s333 = smul.u32 40, %s21
      %v335 = vld [vmem:[%s304] sm:$0xf]
      %v336 = vld [vmem:[%s304 + $0x4] sm:$0xf]
      %v337 = vld [vmem:[%s304 + $0x8] sm:$0xf]
      %v338 = vld [vmem:[%s304 + $0xc] sm:$0xf]
      %v339 = vld [vmem:[%s304 + $0x10] sm:$0xf]
      %v340 = vld [vmem:[%s304 + $0x14] sm:$0xf]
      %v341 = vld [vmem:[%s304 + $0x18] sm:$0xf]
      %v342 = vld [vmem:[%s304 + $0x1c] sm:$0xf]
      %v343 = vld [vmem:[%s304 + $0x20] sm:$0xf]
      %v344 = vld [vmem:[%s304 + $0x24] sm:$0xf]
      %v345 = vld [vmem:[%s304 + $0x28] sm:$0xf]
      %v346 = vld [vmem:[%s304 + $0x2c] sm:$0xf]
      %v347 = vld [vmem:[%s304 + $0x30] sm:$0xf]
      %v348 = vld [vmem:[%s304 + $0x34] sm:$0xf]
      %v349 = vld [vmem:[%s304 + $0x38] sm:$0xf]
      %v350 = vld [vmem:[%s304 + $0x3c] sm:$0xf]
      %v351 = vld [vmem:[%s304 + $0x40] sm:$0xf]
      %v352 = vld [vmem:[%s304 + $0x44] sm:$0xf]
      %v353 = vld [vmem:[%s304 + $0x48] sm:$0xf]
      %v354 = vld [vmem:[%s304 + $0x4c] sm:$0xf]
      %v355 = vld [vmem:[%s304 + $0x50] sm:$0xf]
      %v356 = vld [vmem:[%s304 + $0x54] sm:$0xf]
      %v357 = vld [vmem:[%s304 + $0x58] sm:$0xf]
      %v358 = vld [vmem:[%s304 + $0x5c] sm:$0xf]
      %v359 = vld [vmem:[%s304 + $0x60] sm:$0xf]
      %v360 = vld [vmem:[%s304 + $0x64] sm:$0xf]
      %v361 = vld [vmem:[%s304 + $0x68] sm:$0xf]
      %v362 = vld [vmem:[%s304 + $0x6c] sm:$0xf]
      %v363 = vld [vmem:[%s304 + $0x70] sm:$0xf]
      %v364 = vld [vmem:[%s304 + $0x74] sm:$0xf]
      %v365 = vld [vmem:[%s304 + $0x78] sm:$0xf]
      %v366 = vld [vmem:[%s304 + $0x7c] sm:$0xf]
      %v367 = vld [vmem:[%s304 + $0x80] sm:$0xf]
      %v368 = vld [vmem:[%s304 + $0x84] sm:$0xf]
      %v369 = vld [vmem:[%s304 + $0x88] sm:$0xf]
      %v370 = vld [vmem:[%s304 + $0x8c] sm:$0xf]
      %v371 = vld [vmem:[%s304 + $0x90] sm:$0xf]
      %v372 = vld [vmem:[%s304 + $0x94] sm:$0xf]
      %v373 = vld [vmem:[%s304 + $0x98] sm:$0xf]
      %v374 = vld [vmem:[%s304 + $0x9c] sm:$0xf]
      %v375 = vld [vmem:[%s320] sm:$0xf]
      %v376 = vld [vmem:[%s320 + $0x4] sm:$0xf]
      %v377 = vld [vmem:[%s320 + $0x8] sm:$0xf]
      %v378 = vld [vmem:[%s320 + $0xc] sm:$0xf]
      %v419 = vunpack.c.l.b16 %v335
      %v420 = vunpack.c.l.b16 %v336
      %v421 = vunpack.c.l.b16 %v337
      %v422 = vunpack.c.l.b16 %v338
      %v423 = vunpack.c.l.b16 %v339
      %v424 = vunpack.c.l.b16 %v340
      %v425 = vunpack.c.l.b16 %v341
      %v426 = vunpack.c.l.b16 %v342
      %v427 = vunpack.c.l.b16 %v343
      %v428 = vunpack.c.l.b16 %v344
      %v429 = vunpack.c.l.b16 %v345
      %v430 = vunpack.c.l.b16 %v346
      %v431 = vunpack.c.l.b16 %v347
      %v432 = vunpack.c.l.b16 %v348
      %v433 = vunpack.c.l.b16 %v349
      %v434 = vunpack.c.l.b16 %v350
      %v435 = vunpack.c.l.b16 %v351
      %v436 = vunpack.c.l.b16 %v352
      %v437 = vunpack.c.l.b16 %v353
      %v438 = vunpack.c.l.b16 %v354
      %v439 = vunpack.c.l.b16 %v355
      %v440 = vunpack.c.l.b16 %v356
      %v441 = vunpack.c.l.b16 %v357
      %v442 = vunpack.c.l.b16 %v358
      %v443 = vunpack.c.l.b16 %v359
      %v444 = vunpack.c.l.b16 %v360
      %v445 = vunpack.c.l.b16 %v361
      %v446 = vunpack.c.l.b16 %v362
      %v447 = vunpack.c.l.b16 %v363
      %v448 = vunpack.c.l.b16 %v364
      %v449 = vunpack.c.l.b16 %v365
      %v450 = vunpack.c.l.b16 %v366
      %v451 = vunpack.c.l.b16 %v367
      %v452 = vunpack.c.l.b16 %v368
      %v453 = vunpack.c.l.b16 %v369
      %v454 = vunpack.c.l.b16 %v370
      %v455 = vunpack.c.l.b16 %v371
      %v456 = vunpack.c.l.b16 %v372
      %v457 = vunpack.c.l.b16 %v373
      %v458 = vunpack.c.l.b16 %v374
      %v459 = vpack.c.b16 %v420, %v419
      %v460 = vpack.c.b16 %v422, %v421
      %v461 = vpack.c.b16 %v424, %v423
      %v462 = vpack.c.b16 %v426, %v425
      %v463 = vpack.c.b16 %v428, %v427
      %v464 = vpack.c.b16 %v430, %v429
      %v465 = vpack.c.b16 %v432, %v431
      %v466 = vpack.c.b16 %v434, %v433
      %v467 = vpack.c.b16 %v436, %v435
      %v468 = vpack.c.b16 %v438, %v437
      %v469 = vpack.c.b16 %v440, %v439
      %v470 = vpack.c.b16 %v442, %v441
      %v471 = vpack.c.b16 %v444, %v443
      %v472 = vpack.c.b16 %v446, %v445
      %v473 = vpack.c.b16 %v448, %v447
      %v474 = vpack.c.b16 %v450, %v449
      %v475 = vpack.c.b16 %v452, %v451
      %v476 = vpack.c.b16 %v454, %v453
      %v477 = vpack.c.b16 %v456, %v455
      %v478 = vpack.c.b16 %v458, %v457
      %v483 = vunpack.c.l.b16 %v375
      %v484 = vunpack.c.l.b16 %v376
      %v485 = vunpack.c.l.b16 %v377
      %v486 = vunpack.c.l.b16 %v378
      %v487 = vpack.c.b16 %v484, %v483
      %v488 = vpack.c.b16 %v486, %v485
      %v489 = vld [vmem:[%s2] sm:$0x3]
      %s490 = scalar_lea.vmem %s2, 2
      %v491 = vld [vmem:[%s490] sm:$0x3]
      %vm492 = vsmask.f32 7424
      %v494 = vshrl.u32 %v459, 16
      %v496 = vshll.u32 %v459, 16
      %v498 = vrot.slane %v496, 1
      %v499 = vor.u32 %v494, %v498
      %v501 = vshll.u32 %v460, 16
      %v503 = vrot.slane %v501, 1
      %v504 = vsel %vm492, %v499, %v503
      %v505 = vshrl.u32 %v460, 16
      %v507 = vor.u32 %v505, %v503
      %v509 = vshll.u32 %v461, 16
      %v511 = vrot.slane %v509, 1
      %v512 = vsel %vm492, %v507, %v511
      %v513 = vshrl.u32 %v461, 16
      %v515 = vor.u32 %v513, %v511
      %v517 = vshll.u32 %v462, 16
      %v519 = vrot.slane %v517, 1
      %v520 = vsel %vm492, %v515, %v519
      %v521 = vshrl.u32 %v462, 16
      %v523 = vor.u32 %v521, %v519
      %v525 = vshll.u32 %v463, 16
      %v527 = vrot.slane %v525, 1
      %v528 = vsel %vm492, %v523, %v527
      %v529 = vshrl.u32 %v463, 16
      %v531 = vor.u32 %v529, %v527
      %v533 = vshll.u32 %v464, 16
      %v535 = vrot.slane %v533, 1
      %v536 = vsel %vm492, %v531, %v535
      %v537 = vshrl.u32 %v464, 16
      %v539 = vor.u32 %v537, %v535
      %v541 = vshll.u32 %v465, 16
      %v543 = vrot.slane %v541, 1
      %v544 = vsel %vm492, %v539, %v543
      %v545 = vshrl.u32 %v465, 16
      %v547 = vor.u32 %v545, %v543
      %v549 = vshll.u32 %v466, 16
      %v551 = vrot.slane %v549, 1
      %v552 = vsel %vm492, %v547, %v551
      %v553 = vshrl.u32 %v466, 16
      %v555 = vor.u32 %v553, %v551
      %v557 = vshll.u32 %v467, 16
      %v559 = vrot.slane %v557, 1
      %v560 = vsel %vm492, %v555, %v559
      %v561 = vshrl.u32 %v467, 16
      %v563 = vor.u32 %v561, %v559
      %v565 = vshll.u32 %v468, 16
      %v567 = vrot.slane %v565, 1
      %v568 = vsel %vm492, %v563, %v567
      %v569 = vshrl.u32 %v468, 16
      %v571 = vor.u32 %v569, %v567
      %v573 = vshll.u32 %v469, 16
      %v575 = vrot.slane %v573, 1
      %v576 = vsel %vm492, %v571, %v575
      %v577 = vshrl.u32 %v469, 16
      %v579 = vor.u32 %v577, %v575
      %v581 = vshll.u32 %v470, 16
      %v583 = vrot.slane %v581, 1
      %v584 = vsel %vm492, %v579, %v583
      %v585 = vshrl.u32 %v470, 16
      %v587 = vor.u32 %v585, %v583
      %v589 = vshll.u32 %v471, 16
      %v591 = vrot.slane %v589, 1
      %v592 = vsel %vm492, %v587, %v591
      %v593 = vshrl.u32 %v471, 16
      %v595 = vor.u32 %v593, %v591
      %v597 = vshll.u32 %v472, 16
      %v599 = vrot.slane %v597, 1
      %v600 = vsel %vm492, %v595, %v599
      %v601 = vshrl.u32 %v472, 16
      %v603 = vor.u32 %v601, %v599
      %v605 = vshll.u32 %v473, 16
      %v607 = vrot.slane %v605, 1
      %v608 = vsel %vm492, %v603, %v607
      %v609 = vshrl.u32 %v473, 16
      %v611 = vor.u32 %v609, %v607
      %v613 = vshll.u32 %v474, 16
      %v615 = vrot.slane %v613, 1
      %v616 = vsel %vm492, %v611, %v615
      %v617 = vshrl.u32 %v474, 16
      %v619 = vor.u32 %v617, %v615
      %v621 = vshll.u32 %v475, 16
      %v623 = vrot.slane %v621, 1
      %v624 = vsel %vm492, %v619, %v623
      %v625 = vshrl.u32 %v475, 16
      %v627 = vor.u32 %v625, %v623
      %v629 = vshll.u32 %v476, 16
      %v631 = vrot.slane %v629, 1
      %v632 = vsel %vm492, %v627, %v631
      %v633 = vshrl.u32 %v476, 16
      %v635 = vor.u32 %v633, %v631
      %v637 = vshll.u32 %v477, 16
      %v639 = vrot.slane %v637, 1
      %v640 = vsel %vm492, %v635, %v639
      %v641 = vshrl.u32 %v477, 16
      %v643 = vor.u32 %v641, %v639
      %v645 = vshll.u32 %v478, 16
      %v647 = vrot.slane %v645, 1
      %v648 = vsel %vm492, %v643, %v647
      %v649 = vshrl.u32 %v478, 16
      %v651 = vor.u32 %v649, %v647
      %v653 = vshll.u32 %v487, 16
      %v655 = vrot.slane %v653, 1
      %v656 = vsel %vm492, %v651, %v655
      %vm657 = vcmask 31744
      %v659 = vsel %vm657, %v504, 0
      %v662 = vsel %vm657, %v512, 0
      %v665 = vsel %vm657, %v520, 0
      %v668 = vsel %vm657, %v528, 0
      %v671 = vsel %vm657, %v536, 0
      %v674 = vsel %vm657, %v544, 0
      %v677 = vsel %vm657, %v552, 0
      %v680 = vsel %vm657, %v560, 0
      %v683 = vsel %vm657, %v568, 0
      %v686 = vsel %vm657, %v576, 0
      %v689 = vsel %vm657, %v584, 0
      %v692 = vsel %vm657, %v592, 0
      %v695 = vsel %vm657, %v600, 0
      %v698 = vsel %vm657, %v608, 0
      %v701 = vsel %vm657, %v616, 0
      %v704 = vsel %vm657, %v624, 0
      %v707 = vsel %vm657, %v632, 0
      %v710 = vsel %vm657, %v640, 0
      %v713 = vsel %vm657, %v648, 0
      %v716 = vsel %vm657, %v656, 0
      %vm718 = vcmask 1041408
      %v720 = vsel %vm718, %v491, 0
      %722 = vmatprep.subr.bf16.mxu0 0
      %723 = vmatpush1.bf16.msra.mxu0 %v720
      %724 = vmatprep.subr.bf16.mxu0 0
      %725 = vmatpush1.bf16.msra.mxu0 0
      %726 = vmatprep.subr.bf16.mxu0 0
      %727 = vmatpush1.bf16.msra.mxu0 0
      %728 = vmatprep.subr.bf16.mxu0 0
      %729 = vmatpush1.bf16.msra.mxu0 0
      %730 = vmatprep.subr.bf16.mxu0 0
      %731 = vmatpush1.bf16.msra.mxu0 0
      %732 = vmatprep.subr.bf16.mxu0 0
      %733 = vmatpush1.bf16.msra.mxu0 0
      %734 = vmatprep.subr.bf16.mxu0 0
      %735 = vmatpush1.bf16.msra.mxu0 0
      %736 = vmatprep.subr.bf16.mxu0 0
      %737 = vmatpush1.bf16.msra.mxu0 0
      %738 = vmatprep.subr.bf16.mxu0 0
      %739 = vmatpush1.bf16.msra.mxu0 0
      %740 = vmatprep.subr.bf16.mxu0 0
      %741 = vmatpush1.bf16.msra.mxu0 0
      %742 = vmatprep.subr.bf16.mxu0 0
      %743 = vmatpush1.bf16.msra.mxu0 0
      %744 = vmatprep.subr.bf16.mxu0 0
      %745 = vmatpush1.bf16.msra.mxu0 0
      %746 = vmatprep.subr.bf16.mxu0 0
      %747 = vmatpush1.bf16.msra.mxu0 0
      %748 = vmatprep.subr.bf16.mxu0 0
      %749 = vmatpush1.bf16.msra.mxu0 0
      %750 = vmatprep.subr.bf16.mxu0 0
      %751 = vmatpush1.bf16.msra.mxu0 0
      %752 = vmatprep.subr.bf16.mxu0 0
      %753 = vmatpush1.bf16.msra.mxu0 0
      %754 = vmatprep.mubr.bf16.mxu0 0
      %755 = vmatmul.mubr.bf16.gmra.mrb[0].mxu0 %v659
      %v756 = vpop.f32.mrb[0].mxu0
      %v757 = vadd.f32 0.0, %v756
      %v758 = vpop.f32.mrb[0].mxu0
      %v759 = vpop.f32.mrb[0].mxu0
      %v760 = vadd.f32 0.0, %v759
      %v761 = vpop.f32.mrb[0].mxu0
      %762 = vmatprep.mubr.bf16.mxu0 0
      %763 = vmatmul.mubr.bf16.gmra.mrb[0].mxu0 %v662
      %v764 = vpop.f32.mrb[0].mxu0
      %v765 = vadd.f32 0.0, %v764
      %v766 = vpop.f32.mrb[0].mxu0
      %v767 = vpop.f32.mrb[0].mxu0
      %v768 = vadd.f32 0.0, %v767
      %v769 = vpop.f32.mrb[0].mxu0
      %770 = vmatprep.mubr.bf16.mxu0 0
      %771 = vmatmul.mubr.bf16.gmra.mrb[0].mxu0 %v665
      %v772 = vpop.f32.mrb[0].mxu0
      %v773 = vadd.f32 0.0, %v772
      %v774 = vpop.f32.mrb[0].mxu0
      %v775 = vpop.f32.mrb[0].mxu0
      %v776 = vadd.f32 0.0, %v775
      %v777 = vpop.f32.mrb[0].mxu0
      %778 = vmatprep.mubr.bf16.mxu0 0
      %779 = vmatmul.mubr.bf16.gmra.mrb[0].mxu0 %v668
      %v780 = vpop.f32.mrb[0].mxu0
      %v781 = vadd.f32 0.0, %v780
      %v782 = vpop.f32.mrb[0].mxu0
      %v783 = vpop.f32.mrb[0].mxu0
      %v784 = vadd.f32 0.0, %v783
      %v785 = vpop.f32.mrb[0].mxu0
      %786 = vmatprep.mubr.bf16.mxu0 0
      %787 = vmatmul.mubr.bf16.gmra.mrb[0].mxu0 %v671
      %v788 = vpop.f32.mrb[0].mxu0
      %v789 = vadd.f32 0.0, %v788
      %v790 = vpop.f32.mrb[0].mxu0
      %v791 = vpop.f32.mrb[0].mxu0
      %v792 = vadd.f32 0.0, %v791
      %v793 = vpop.f32.mrb[0].mxu0
      %794 = vmatprep.mubr.bf16.mxu0 0
      %795 = vmatmul.mubr.bf16.gmra.mrb[0].mxu0 %v674
      %v796 = vpop.f32.mrb[0].mxu0
      %v797 = vadd.f32 0.0, %v796
      %v798 = vpop.f32.mrb[0].mxu0
      %v799 = vpop.f32.mrb[0].mxu0
      %v800 = vadd.f32 0.0, %v799
      %v801 = vpop.f32.mrb[0].mxu0
      %802 = vmatprep.mubr.bf16.mxu0 0
      %803 = vmatmul.mubr.bf16.gmra.mrb[0].mxu0 %v677
      %v804 = vpop.f32.mrb[0].mxu0
      %v805 = vadd.f32 0.0, %v804
      %v806 = vpop.f32.mrb[0].mxu0
      %v807 = vpop.f32.mrb[0].mxu0
      %v808 = vadd.f32 0.0, %v807
      %v809 = vpop.f32.mrb[0].mxu0
      %810 = vmatprep.mubr.bf16.mxu0 0
      %811 = vmatmul.mubr.bf16.gmra.mrb[0].mxu0 %v680
      %v812 = vpop.f32.mrb[0].mxu0
      %v813 = vadd.f32 0.0, %v812
      %v814 = vpop.f32.mrb[0].mxu0
      %v815 = vpop.f32.mrb[0].mxu0
      %v816 = vadd.f32 0.0, %v815
      %v817 = vpop.f32.mrb[0].mxu0
      %818 = vmatprep.mubr.bf16.mxu0 0
      %819 = vmatmul.mubr.bf16.gmra.mrb[0].mxu0 %v683
      %v820 = vpop.f32.mrb[0].mxu0
      %v821 = vadd.f32 0.0, %v820
      %v822 = vpop.f32.mrb[0].mxu0
      %v823 = vpop.f32.mrb[0].mxu0
      %v824 = vadd.f32 0.0, %v823
      %v825 = vpop.f32.mrb[0].mxu0
      %826 = vmatprep.mubr.bf16.mxu0 0
      %827 = vmatmul.mubr.bf16.gmra.mrb[0].mxu0 %v686
      %v828 = vpop.f32.mrb[0].mxu0
      %v829 = vadd.f32 0.0, %v828
      %v830 = vpop.f32.mrb[0].mxu0
      %v831 = vpop.f32.mrb[0].mxu0
      %v832 = vadd.f32 0.0, %v831
      %v833 = vpop.f32.mrb[0].mxu0
      %834 = vmatprep.mubr.bf16.mxu0 0
      %835 = vmatmul.mubr.bf16.gmra.mrb[0].mxu0 %v689
      %v836 = vpop.f32.mrb[0].mxu0
      %v837 = vadd.f32 0.0, %v836
      %v838 = vpop.f32.mrb[0].mxu0
      %v839 = vpop.f32.mrb[0].mxu0
      %v840 = vadd.f32 0.0, %v839
      %v841 = vpop.f32.mrb[0].mxu0
      %842 = vmatprep.mubr.bf16.mxu0 0
      %843 = vmatmul.mubr.bf16.gmra.mrb[0].mxu0 %v692
      %v844 = vpop.f32.mrb[0].mxu0
      %v845 = vadd.f32 0.0, %v844
      %v846 = vpop.f32.mrb[0].mxu0
      %v847 = vpop.f32.mrb[0].mxu0
      %v848 = vadd.f32 0.0, %v847
      %v849 = vpop.f32.mrb[0].mxu0
      %850 = vmatprep.mubr.bf16.mxu0 0
      %851 = vmatmul.mubr.bf16.gmra.mrb[0].mxu0 %v695
      %v852 = vpop.f32.mrb[0].mxu0
      %v853 = vadd.f32 0.0, %v852
      %v854 = vpop.f32.mrb[0].mxu0
      %v855 = vpop.f32.mrb[0].mxu0
      %v856 = vadd.f32 0.0, %v855
      %v857 = vpop.f32.mrb[0].mxu0
      %858 = vmatprep.mubr.bf16.mxu0 0
      %859 = vmatmul.mubr.bf16.gmra.mrb[0].mxu0 %v698
      %v860 = vpop.f32.mrb[0].mxu0
      %v861 = vadd.f32 0.0, %v860
      %v862 = vpop.f32.mrb[0].mxu0
      %v863 = vpop.f32.mrb[0].mxu0
      %v864 = vadd.f32 0.0, %v863
      %v865 = vpop.f32.mrb[0].mxu0
      %866 = vmatprep.mubr.bf16.mxu0 0
      %867 = vmatmul.mubr.bf16.gmra.mrb[0].mxu0 %v701
      %v868 = vpop.f32.mrb[0].mxu0
      %v869 = vadd.f32 0.0, %v868
      %v870 = vpop.f32.mrb[0].mxu0
      %v871 = vpop.f32.mrb[0].mxu0
      %v872 = vadd.f32 0.0, %v871
      %v873 = vpop.f32.mrb[0].mxu0
      %874 = vmatprep.mubr.bf16.mxu0 0
      %875 = vmatmul.mubr.bf16.gmra.mrb[0].mxu0 %v704
      %v876 = vpop.f32.mrb[0].mxu0
      %v877 = vadd.f32 0.0, %v876
      %v878 = vpop.f32.mrb[0].mxu0
      %v879 = vpop.f32.mrb[0].mxu0
      %v880 = vadd.f32 0.0, %v879
      %v881 = vpop.f32.mrb[0].mxu0
      %882 = vmatprep.mubr.bf16.mxu0 0
      %883 = vmatmul.mubr.bf16.gmra.mrb[0].mxu0 %v707
      %v884 = vpop.f32.mrb[0].mxu0
      %v885 = vadd.f32 0.0, %v884
      %v886 = vpop.f32.mrb[0].mxu0
      %v887 = vpop.f32.mrb[0].mxu0
      %v888 = vadd.f32 0.0, %v887
      %v889 = vpop.f32.mrb[0].mxu0
      %890 = vmatprep.mubr.bf16.mxu0 0
      %891 = vmatmul.mubr.bf16.gmra.mrb[0].mxu0 %v710
      %v892 = vpop.f32.mrb[0].mxu0
      %v893 = vadd.f32 0.0, %v892
      %v894 = vpop.f32.mrb[0].mxu0
      %v895 = vpop.f32.mrb[0].mxu0
      %v896 = vadd.f32 0.0, %v895
      %v897 = vpop.f32.mrb[0].mxu0
      %898 = vmatprep.mubr.bf16.mxu0 0
      %899 = vmatmul.mubr.bf16.gmra.mrb[0].mxu0 %v713
      %v900 = vpop.f32.mrb[0].mxu0
      %v901 = vadd.f32 0.0, %v900
      %v902 = vpop.f32.mrb[0].mxu0
      %v903 = vpop.f32.mrb[0].mxu0
      %v904 = vadd.f32 0.0, %v903
      %v905 = vpop.f32.mrb[0].mxu0
      %906 = vmatprep.mubr.bf16.mxu0 0
      %907 = vmatmul.mubr.bf16.gmra.mrb[0].mxu0 %v716
      %v908 = vpop.f32.mrb[0].mxu0
      %v909 = vadd.f32 0.0, %v908
      %v910 = vpop.f32.mrb[0].mxu0
      %v911 = vpop.f32.mrb[0].mxu0
      %v912 = vadd.f32 0.0, %v911
      %v913 = vpop.f32.mrb[0].mxu0
      %914 = vdwg.mxu0
      %v915 = vsel %vm657, %v459, 0
      %v917 = vsel %vm657, %v460, 0
      %v919 = vsel %vm657, %v461, 0
      %v921 = vsel %vm657, %v462, 0
      %v923 = vsel %vm657, %v463, 0
      %v925 = vsel %vm657, %v464, 0
      %v927 = vsel %vm657, %v465, 0
      %v929 = vsel %vm657, %v466, 0
      %v931 = vsel %vm657, %v467, 0
      %v933 = vsel %vm657, %v468, 0
      %v935 = vsel %vm657, %v469, 0
      %v937 = vsel %vm657, %v470, 0
      %v939 = vsel %vm657, %v471, 0
      %v941 = vsel %vm657, %v472, 0
      %v943 = vsel %vm657, %v473, 0
      %v945 = vsel %vm657, %v474, 0
      %v947 = vsel %vm657, %v475, 0
      %v949 = vsel %vm657, %v476, 0
      %v951 = vsel %vm657, %v477, 0
      %v953 = vsel %vm657, %v478, 0
      %v956 = vsel %vm718, %v489, 0
      %958 = vmatprep.subr.bf16.mxu0 0
      %959 = vmatpush1.bf16.msra.mxu0 %v956
      %960 = vmatprep.subr.bf16.mxu0 0
      %961 = vmatpush1.bf16.msra.mxu0 0
      %962 = vmatprep.subr.bf16.mxu0 0
      %963 = vmatpush1.bf16.msra.mxu0 0
      %964 = vmatprep.subr.bf16.mxu0 0
      %965 = vmatpush1.bf16.msra.mxu0 0
      %966 = vmatprep.subr.bf16.mxu0 0
      %967 = vmatpush1.bf16.msra.mxu0 0
      %968 = vmatprep.subr.bf16.mxu0 0
      %969 = vmatpush1.bf16.msra.mxu0 0
      %970 = vmatprep.subr.bf16.mxu0 0
      %971 = vmatpush1.bf16.msra.mxu0 0
      %972 = vmatprep.subr.bf16.mxu0 0
      %973 = vmatpush1.bf16.msra.mxu0 0
      %974 = vmatprep.subr.bf16.mxu0 0
      %975 = vmatpush1.bf16.msra.mxu0 0
      %976 = vmatprep.subr.bf16.mxu0 0
      %977 = vmatpush1.bf16.msra.mxu0 0
      %978 = vmatprep.subr.bf16.mxu0 0
      %979 = vmatpush1.bf16.msra.mxu0 0
      %980 = vmatprep.subr.bf16.mxu0 0
      %981 = vmatpush1.bf16.msra.mxu0 0
      %982 = vmatprep.subr.bf16.mxu0 0
      %983 = vmatpush1.bf16.msra.mxu0 0
      %984 = vmatprep.subr.bf16.mxu0 0
      %985 = vmatpush1.bf16.msra.mxu0 0
      %986 = vmatprep.subr.bf16.mxu0 0
      %987 = vmatpush1.bf16.msra.mxu0 0
      %988 = vmatprep.subr.bf16.mxu0 0
      %989 = vmatpush1.bf16.msra.mxu0 0
      %990 = vmatprep.mubr.bf16.mxu0 0
      %991 = vmatmul.mubr.bf16.gmra.mrb[0].mxu0 %v915
      %v992 = vpop.f32.mrb[0].mxu0
      %v993 = vadd.f32 %v757, %v992
      %v994 = vpop.f32.mrb[0].mxu0
      %v995 = vpop.f32.mrb[0].mxu0
      %v996 = vadd.f32 %v760, %v995
      %v997 = vpop.f32.mrb[0].mxu0
      %998 = vmatprep.mubr.bf16.mxu0 0
      %999 = vmatmul.mubr.bf16.gmra.mrb[0].mxu0 %v917
      %v1000 = vpop.f32.mrb[0].mxu0
      %v1001 = vadd.f32 %v765, %v1000
      %v1002 = vpop.f32.mrb[0].mxu0
      %v1003 = vpop.f32.mrb[0].mxu0
      %v1004 = vadd.f32 %v768, %v1003
      %v1005 = vpop.f32.mrb[0].mxu0
      %1006 = vmatprep.mubr.bf16.mxu0 0
      %1007 = vmatmul.mubr.bf16.gmra.mrb[0].mxu0 %v919
      %v1008 = vpop.f32.mrb[0].mxu0
      %v1009 = vadd.f32 %v773, %v1008
      %v1010 = vpop.f32.mrb[0].mxu0
      %v1011 = vpop.f32.mrb[0].mxu0
      %v1012 = vadd.f32 %v776, %v1011
      %v1013 = vpop.f32.mrb[0].mxu0
      %1014 = vmatprep.mubr.bf16.mxu0 0
      %1015 = vmatmul.mubr.bf16.gmra.mrb[0].mxu0 %v921
      %v1016 = vpop.f32.mrb[0].mxu0
      %v1017 = vadd.f32 %v781, %v1016
      %v1018 = vpop.f32.mrb[0].mxu0
      %v1019 = vpop.f32.mrb[0].mxu0
      %v1020 = vadd.f32 %v784, %v1019
      %v1021 = vpop.f32.mrb[0].mxu0
      %1022 = vmatprep.mubr.bf16.mxu0 0
      %1023 = vmatmul.mubr.bf16.gmra.mrb[0].mxu0 %v923
      %v1024 = vpop.f32.mrb[0].mxu0
      %v1025 = vadd.f32 %v789, %v1024
      %v1026 = vpop.f32.mrb[0].mxu0
      %v1027 = vpop.f32.mrb[0].mxu0
      %v1028 = vadd.f32 %v792, %v1027
      %v1029 = vpop.f32.mrb[0].mxu0
      %1030 = vmatprep.mubr.bf16.mxu0 0
      %1031 = vmatmul.mubr.bf16.gmra.mrb[0].mxu0 %v925
      %v1032 = vpop.f32.mrb[0].mxu0
      %v1033 = vadd.f32 %v797, %v1032
      %v1034 = vpop.f32.mrb[0].mxu0
      %v1035 = vpop.f32.mrb[0].mxu0
      %v1036 = vadd.f32 %v800, %v1035
      %v1037 = vpop.f32.mrb[0].mxu0
      %1038 = vmatprep.mubr.bf16.mxu0 0
      %1039 = vmatmul.mubr.bf16.gmra.mrb[0].mxu0 %v927
      %v1040 = vpop.f32.mrb[0].mxu0
      %v1041 = vadd.f32 %v805, %v1040
      %v1042 = vpop.f32.mrb[0].mxu0
      %v1043 = vpop.f32.mrb[0].mxu0
      %v1044 = vadd.f32 %v808, %v1043
      %v1045 = vpop.f32.mrb[0].mxu0
      %1046 = vmatprep.mubr.bf16.mxu0 0
      %1047 = vmatmul.mubr.bf16.gmra.mrb[0].mxu0 %v929
      %v1048 = vpop.f32.mrb[0].mxu0
      %v1049 = vadd.f32 %v813, %v1048
      %v1050 = vpop.f32.mrb[0].mxu0
      %v1051 = vpop.f32.mrb[0].mxu0
      %v1052 = vadd.f32 %v816, %v1051
      %v1053 = vpop.f32.mrb[0].mxu0
      %1054 = vmatprep.mubr.bf16.mxu0 0
      %1055 = vmatmul.mubr.bf16.gmra.mrb[0].mxu0 %v931
      %v1056 = vpop.f32.mrb[0].mxu0
      %v1057 = vadd.f32 %v821, %v1056
      %v1058 = vpop.f32.mrb[0].mxu0
      %v1059 = vpop.f32.mrb[0].mxu0
      %v1060 = vadd.f32 %v824, %v1059
      %v1061 = vpop.f32.mrb[0].mxu0
      %1062 = vmatprep.mubr.bf16.mxu0 0
      %1063 = vmatmul.mubr.bf16.gmra.mrb[0].mxu0 %v933
      %v1064 = vpop.f32.mrb[0].mxu0
      %v1065 = vadd.f32 %v829, %v1064
      %v1066 = vpop.f32.mrb[0].mxu0
      %v1067 = vpop.f32.mrb[0].mxu0
      %v1068 = vadd.f32 %v832, %v1067
      %v1069 = vpop.f32.mrb[0].mxu0
      %1070 = vmatprep.mubr.bf16.mxu0 0
      %1071 = vmatmul.mubr.bf16.gmra.mrb[0].mxu0 %v935
      %v1072 = vpop.f32.mrb[0].mxu0
      %v1073 = vadd.f32 %v837, %v1072
      %v1074 = vpop.f32.mrb[0].mxu0
      %v1075 = vpop.f32.mrb[0].mxu0
      %v1076 = vadd.f32 %v840, %v1075
      %v1077 = vpop.f32.mrb[0].mxu0
      %1078 = vmatprep.mubr.bf16.mxu0 0
      %1079 = vmatmul.mubr.bf16.gmra.mrb[0].mxu0 %v937
      %v1080 = vpop.f32.mrb[0].mxu0
      %v1081 = vadd.f32 %v845, %v1080
      %v1082 = vpop.f32.mrb[0].mxu0
      %v1083 = vpop.f32.mrb[0].mxu0
      %v1084 = vadd.f32 %v848, %v1083
      %v1085 = vpop.f32.mrb[0].mxu0
      %1086 = vmatprep.mubr.bf16.mxu0 0
      %1087 = vmatmul.mubr.bf16.gmra.mrb[0].mxu0 %v939
      %v1088 = vpop.f32.mrb[0].mxu0
      %v1089 = vadd.f32 %v853, %v1088
      %v1090 = vpop.f32.mrb[0].mxu0
      %v1091 = vpop.f32.mrb[0].mxu0
      %v1092 = vadd.f32 %v856, %v1091
      %v1093 = vpop.f32.mrb[0].mxu0
      %1094 = vmatprep.mubr.bf16.mxu0 0
      %1095 = vmatmul.mubr.bf16.gmra.mrb[0].mxu0 %v941
      %v1096 = vpop.f32.mrb[0].mxu0
      %v1097 = vadd.f32 %v861, %v1096
      %v1098 = vpop.f32.mrb[0].mxu0
      %v1099 = vpop.f32.mrb[0].mxu0
      %v1100 = vadd.f32 %v864, %v1099
      %v1101 = vpop.f32.mrb[0].mxu0
      %1102 = vmatprep.mubr.bf16.mxu0 0
      %1103 = vmatmul.mubr.bf16.gmra.mrb[0].mxu0 %v943
      %v1104 = vpop.f32.mrb[0].mxu0
      %v1105 = vadd.f32 %v869, %v1104
      %v1106 = vpop.f32.mrb[0].mxu0
      %v1107 = vpop.f32.mrb[0].mxu0
      %v1108 = vadd.f32 %v872, %v1107
      %v1109 = vpop.f32.mrb[0].mxu0
      %1110 = vmatprep.mubr.bf16.mxu0 0
      %1111 = vmatmul.mubr.bf16.gmra.mrb[0].mxu0 %v945
      %v1112 = vpop.f32.mrb[0].mxu0
      %v1113 = vadd.f32 %v877, %v1112
      %v1114 = vpop.f32.mrb[0].mxu0
      %v1115 = vpop.f32.mrb[0].mxu0
      %v1116 = vadd.f32 %v880, %v1115
      %v1117 = vpop.f32.mrb[0].mxu0
      %1118 = vmatprep.mubr.bf16.mxu0 0
      %1119 = vmatmul.mubr.bf16.gmra.mrb[0].mxu0 %v947
      %v1120 = vpop.f32.mrb[0].mxu0
      %v1121 = vadd.f32 %v885, %v1120
      %v1122 = vpop.f32.mrb[0].mxu0
      %v1123 = vpop.f32.mrb[0].mxu0
      %v1124 = vadd.f32 %v888, %v1123
      %v1125 = vpop.f32.mrb[0].mxu0
      %1126 = vmatprep.mubr.bf16.mxu0 0
      %1127 = vmatmul.mubr.bf16.gmra.mrb[0].mxu0 %v949
      %v1128 = vpop.f32.mrb[0].mxu0
      %v1129 = vadd.f32 %v893, %v1128
      %v1130 = vpop.f32.mrb[0].mxu0
      %v1131 = vpop.f32.mrb[0].mxu0
      %v1132 = vadd.f32 %v896, %v1131
      %v1133 = vpop.f32.mrb[0].mxu0
      %1134 = vmatprep.mubr.bf16.mxu0 0
      %1135 = vmatmul.mubr.bf16.gmra.mrb[0].mxu0 %v951
      %v1136 = vpop.f32.mrb[0].mxu0
      %v1137 = vadd.f32 %v901, %v1136
      %v1138 = vpop.f32.mrb[0].mxu0
      %v1139 = vpop.f32.mrb[0].mxu0
      %v1140 = vadd.f32 %v904, %v1139
      %v1141 = vpop.f32.mrb[0].mxu0
      %1142 = vmatprep.mubr.bf16.mxu0 0
      %1143 = vmatmul.mubr.bf16.gmra.mrb[0].mxu0 %v953
      %v1144 = vpop.f32.mrb[0].mxu0
      %v1145 = vadd.f32 %v909, %v1144
      %v1146 = vpop.f32.mrb[0].mxu0
      %v1147 = vpop.f32.mrb[0].mxu0
      %v1148 = vadd.f32 %v912, %v1147
      %v1149 = vpop.f32.mrb[0].mxu0
      %1150 = vdwg.mxu0
      %s1151 = scalar_lea.vmem %s2, 4
      %v1152 = vld [vmem:[%s1151] sm:$0x3]
      %vm1153 = vcmask 1046528
      %v1154 = vrot.slane %v459, 1
      %v1155 = vrot.slane %v460, 1
      %v1156 = vsel %vm1153, %v1154, %v1155
      %v1157 = vrot.slane %v461, 1
      %v1158 = vsel %vm1153, %v1155, %v1157
      %v1159 = vrot.slane %v462, 1
      %v1160 = vsel %vm1153, %v1157, %v1159
      %v1161 = vrot.slane %v463, 1
      %v1162 = vsel %vm1153, %v1159, %v1161
      %v1163 = vrot.slane %v464, 1
      %v1164 = vsel %vm1153, %v1161, %v1163
      %v1165 = vrot.slane %v465, 1
      %v1166 = vsel %vm1153, %v1163, %v1165
      %v1167 = vrot.slane %v466, 1
      %v1168 = vsel %vm1153, %v1165, %v1167
      %v1169 = vrot.slane %v467, 1
      %v1170 = vsel %vm1153, %v1167, %v1169
      %v1171 = vrot.slane %v468, 1
      %v1172 = vsel %vm1153, %v1169, %v1171
      %v1173 = vrot.slane %v469, 1
      %v1174 = vsel %vm1153, %v1171, %v1173
      %v1175 = vrot.slane %v470, 1
      %v1176 = vsel %vm1153, %v1173, %v1175
      %v1177 = vrot.slane %v471, 1
      %v1178 = vsel %vm1153, %v1175, %v1177
      %v1179 = vrot.slane %v472, 1
      %v1180 = vsel %vm1153, %v1177, %v1179
      %v1181 = vrot.slane %v473, 1
      %v1182 = vsel %vm1153, %v1179, %v1181
      %v1183 = vrot.slane %v474, 1
      %v1184 = vsel %vm1153, %v1181, %v1183
      %v1185 = vrot.slane %v475, 1
      %v1186 = vsel %vm1153, %v1183, %v1185
      %v1187 = vrot.slane %v476, 1
      %v1188 = vsel %vm1153, %v1185, %v1187
      %v1189 = vrot.slane %v477, 1
      %v1190 = vsel %vm1153, %v1187, %v1189
      %v1191 = vrot.slane %v478, 1
      %v1192 = vsel %vm1153, %v1189, %v1191
      %v1193 = vrot.slane %v487, 1
      %v1194 = vsel %vm1153, %v1191, %v1193
      %v1196 = vsel %vm657, %v1156, 0
      %v1199 = vsel %vm657, %v1158, 0
      %v1202 = vsel %vm657, %v1160, 0
      %v1205 = vsel %vm657, %v1162, 0
      %v1208 = vsel %vm657, %v1164, 0
      %v1211 = vsel %vm657, %v1166, 0
      %v1214 = vsel %vm657, %v1168, 0
      %v1217 = vsel %vm657, %v1170, 0
      %v1220 = vsel %vm657, %v1172, 0
      %v1223 = vsel %vm657, %v1174, 0
      %v1226 = vsel %vm657, %v1176, 0
      %v1229 = vsel %vm657, %v1178, 0
      %v1232 = vsel %vm657, %v1180, 0
      %v1235 = vsel %vm657, %v1182, 0
      %v1238 = vsel %vm657, %v1184, 0
      %v1241 = vsel %vm657, %v1186, 0
      %v1244 = vsel %vm657, %v1188, 0
      %v1247 = vsel %vm657, %v1190, 0
      %v1250 = vsel %vm657, %v1192, 0
      %v1253 = vsel %vm657, %v1194, 0
      %v1256 = vsel %vm718, %v1152, 0
      %1258 = vmatprep.subr.bf16.mxu0 0
      %1259 = vmatpush1.bf16.msra.mxu0 %v1256
      %1260 = vmatprep.subr.bf16.mxu0 0
      %1261 = vmatpush1.bf16.msra.mxu0 0
      %1262 = vmatprep.subr.bf16.mxu0 0
      %1263 = vmatpush1.bf16.msra.mxu0 0
      %1264 = vmatprep.subr.bf16.mxu0 0
      %1265 = vmatpush1.bf16.msra.mxu0 0
      %1266 = vmatprep.subr.bf16.mxu0 0
      %1267 = vmatpush1.bf16.msra.mxu0 0
      %1268 = vmatprep.subr.bf16.mxu0 0
      %1269 = vmatpush1.bf16.msra.mxu0 0
      %1270 = vmatprep.subr.bf16.mxu0 0
      %1271 = vmatpush1.bf16.msra.mxu0 0
      %1272 = vmatprep.subr.bf16.mxu0 0
      %1273 = vmatpush1.bf16.msra.mxu0 0
      %1274 = vmatprep.subr.bf16.mxu0 0
      %1275 = vmatpush1.bf16.msra.mxu0 0
      %1276 = vmatprep.subr.bf16.mxu0 0
      %1277 = vmatpush1.bf16.msra.mxu0 0
      %1278 = vmatprep.subr.bf16.mxu0 0
      %1279 = vmatpush1.bf16.msra.mxu0 0
      %1280 = vmatprep.subr.bf16.mxu0 0
      %1281 = vmatpush1.bf16.msra.mxu0 0
      %1282 = vmatprep.subr.bf16.mxu0 0
      %1283 = vmatpush1.bf16.msra.mxu0 0
      %1284 = vmatprep.subr.bf16.mxu0 0
      %1285 = vmatpush1.bf16.msra.mxu0 0
      %1286 = vmatprep.subr.bf16.mxu0 0
      %1287 = vmatpush1.bf16.msra.mxu0 0
      %1288 = vmatprep.subr.bf16.mxu0 0
      %1289 = vmatpush1.bf16.msra.mxu0 0
      %1290 = vmatprep.mubr.bf16.mxu0 0
      %1291 = vmatmul.mubr.bf16.gmra.mrb[0].mxu0 %v1196
      %v1292 = vpop.f32.mrb[0].mxu0
      %v1293 = vadd.f32 0.0, %v1292
      %v1294 = vpop.f32.mrb[0].mxu0
      %v1295 = vpop.f32.mrb[0].mxu0
      %v1296 = vadd.f32 0.0, %v1295
      %v1297 = vpop.f32.mrb[0].mxu0
      %1298 = vmatprep.mubr.bf16.mxu0 0
      %1299 = vmatmul.mubr.bf16.gmra.mrb[0].mxu0 %v1199
      %v1300 = vpop.f32.mrb[0].mxu0
      %v1301 = vadd.f32 0.0, %v1300
      %v1302 = vpop.f32.mrb[0].mxu0
      %v1303 = vpop.f32.mrb[0].mxu0
      %v1304 = vadd.f32 0.0, %v1303
      %v1305 = vpop.f32.mrb[0].mxu0
      %1306 = vmatprep.mubr.bf16.mxu0 0
      %1307 = vmatmul.mubr.bf16.gmra.mrb[0].mxu0 %v1202
      %v1308 = vpop.f32.mrb[0].mxu0
      %v1309 = vadd.f32 0.0, %v1308
      %v1310 = vpop.f32.mrb[0].mxu0
      %v1311 = vpop.f32.mrb[0].mxu0
      %v1312 = vadd.f32 0.0, %v1311
      %v1313 = vpop.f32.mrb[0].mxu0
      %1314 = vmatprep.mubr.bf16.mxu0 0
      %1315 = vmatmul.mubr.bf16.gmra.mrb[0].mxu0 %v1205
      %v1316 = vpop.f32.mrb[0].mxu0
      %v1317 = vadd.f32 0.0, %v1316
      %v1318 = vpop.f32.mrb[0].mxu0
      %v1319 = vpop.f32.mrb[0].mxu0
      %v1320 = vadd.f32 0.0, %v1319
      %v1321 = vpop.f32.mrb[0].mxu0
      %1322 = vmatprep.mubr.bf16.mxu0 0
      %1323 = vmatmul.mubr.bf16.gmra.mrb[0].mxu0 %v1208
      %v1324 = vpop.f32.mrb[0].mxu0
      %v1325 = vadd.f32 0.0, %v1324
      %v1326 = vpop.f32.mrb[0].mxu0
      %v1327 = vpop.f32.mrb[0].mxu0
      %v1328 = vadd.f32 0.0, %v1327
      %v1329 = vpop.f32.mrb[0].mxu0
      %1330 = vmatprep.mubr.bf16.mxu0 0
      %1331 = vmatmul.mubr.bf16.gmra.mrb[0].mxu0 %v1211
      %v1332 = vpop.f32.mrb[0].mxu0
      %v1333 = vadd.f32 0.0, %v1332
      %v1334 = vpop.f32.mrb[0].mxu0
      %v1335 = vpop.f32.mrb[0].mxu0
      %v1336 = vadd.f32 0.0, %v1335
      %v1337 = vpop.f32.mrb[0].mxu0
      %1338 = vmatprep.mubr.bf16.mxu0 0
      %1339 = vmatmul.mubr.bf16.gmra.mrb[0].mxu0 %v1214
      %v1340 = vpop.f32.mrb[0].mxu0
      %v1341 = vadd.f32 0.0, %v1340
      %v1342 = vpop.f32.mrb[0].mxu0
      %v1343 = vpop.f32.mrb[0].mxu0
      %v1344 = vadd.f32 0.0, %v1343
      %v1345 = vpop.f32.mrb[0].mxu0
      %1346 = vmatprep.mubr.bf16.mxu0 0
      %1347 = vmatmul.mubr.bf16.gmra.mrb[0].mxu0 %v1217
      %v1348 = vpop.f32.mrb[0].mxu0
      %v1349 = vadd.f32 0.0, %v1348
      %v1350 = vpop.f32.mrb[0].mxu0
      %v1351 = vpop.f32.mrb[0].mxu0
      %v1352 = vadd.f32 0.0, %v1351
      %v1353 = vpop.f32.mrb[0].mxu0
      %1354 = vmatprep.mubr.bf16.mxu0 0
      %1355 = vmatmul.mubr.bf16.gmra.mrb[0].mxu0 %v1220
      %v1356 = vpop.f32.mrb[0].mxu0
      %v1357 = vadd.f32 0.0, %v1356
      %v1358 = vpop.f32.mrb[0].mxu0
      %v1359 = vpop.f32.mrb[0].mxu0
      %v1360 = vadd.f32 0.0, %v1359
      %v1361 = vpop.f32.mrb[0].mxu0
      %1362 = vmatprep.mubr.bf16.mxu0 0
      %1363 = vmatmul.mubr.bf16.gmra.mrb[0].mxu0 %v1223
      %v1364 = vpop.f32.mrb[0].mxu0
      %v1365 = vadd.f32 0.0, %v1364
      %v1366 = vpop.f32.mrb[0].mxu0
      %v1367 = vpop.f32.mrb[0].mxu0
      %v1368 = vadd.f32 0.0, %v1367
      %v1369 = vpop.f32.mrb[0].mxu0
      %1370 = vmatprep.mubr.bf16.mxu0 0
      %1371 = vmatmul.mubr.bf16.gmra.mrb[0].mxu0 %v1226
      %v1372 = vpop.f32.mrb[0].mxu0
      %v1373 = vadd.f32 0.0, %v1372
      %v1374 = vpop.f32.mrb[0].mxu0
      %v1375 = vpop.f32.mrb[0].mxu0
      %v1376 = vadd.f32 0.0, %v1375
      %v1377 = vpop.f32.mrb[0].mxu0
      %1378 = vmatprep.mubr.bf16.mxu0 0
      %1379 = vmatmul.mubr.bf16.gmra.mrb[0].mxu0 %v1229
      %v1380 = vpop.f32.mrb[0].mxu0
      %v1381 = vadd.f32 0.0, %v1380
      %v1382 = vpop.f32.mrb[0].mxu0
      %v1383 = vpop.f32.mrb[0].mxu0
      %v1384 = vadd.f32 0.0, %v1383
      %v1385 = vpop.f32.mrb[0].mxu0
      %1386 = vmatprep.mubr.bf16.mxu0 0
      %1387 = vmatmul.mubr.bf16.gmra.mrb[0].mxu0 %v1232
      %v1388 = vpop.f32.mrb[0].mxu0
      %v1389 = vadd.f32 0.0, %v1388
      %v1390 = vpop.f32.mrb[0].mxu0
      %v1391 = vpop.f32.mrb[0].mxu0
      %v1392 = vadd.f32 0.0, %v1391
      %v1393 = vpop.f32.mrb[0].mxu0
      %1394 = vmatprep.mubr.bf16.mxu0 0
      %1395 = vmatmul.mubr.bf16.gmra.mrb[0].mxu0 %v1235
      %v1396 = vpop.f32.mrb[0].mxu0
      %v1397 = vadd.f32 0.0, %v1396
      %v1398 = vpop.f32.mrb[0].mxu0
      %v1399 = vpop.f32.mrb[0].mxu0
      %v1400 = vadd.f32 0.0, %v1399
      %v1401 = vpop.f32.mrb[0].mxu0
      %1402 = vmatprep.mubr.bf16.mxu0 0
      %1403 = vmatmul.mubr.bf16.gmra.mrb[0].mxu0 %v1238
      %v1404 = vpop.f32.mrb[0].mxu0
      %v1405 = vadd.f32 0.0, %v1404
      %v1406 = vpop.f32.mrb[0].mxu0
      %v1407 = vpop.f32.mrb[0].mxu0
      %v1408 = vadd.f32 0.0, %v1407
      %v1409 = vpop.f32.mrb[0].mxu0
      %1410 = vmatprep.mubr.bf16.mxu0 0
      %1411 = vmatmul.mubr.bf16.gmra.mrb[0].mxu0 %v1241
      %v1412 = vpop.f32.mrb[0].mxu0
      %v1413 = vadd.f32 0.0, %v1412
      %v1414 = vpop.f32.mrb[0].mxu0
      %v1415 = vpop.f32.mrb[0].mxu0
      %v1416 = vadd.f32 0.0, %v1415
      %v1417 = vpop.f32.mrb[0].mxu0
      %1418 = vmatprep.mubr.bf16.mxu0 0
      %1419 = vmatmul.mubr.bf16.gmra.mrb[0].mxu0 %v1244
      %v1420 = vpop.f32.mrb[0].mxu0
      %v1421 = vadd.f32 0.0, %v1420
      %v1422 = vpop.f32.mrb[0].mxu0
      %v1423 = vpop.f32.mrb[0].mxu0
      %v1424 = vadd.f32 0.0, %v1423
      %v1425 = vpop.f32.mrb[0].mxu0
      %1426 = vmatprep.mubr.bf16.mxu0 0
      %1427 = vmatmul.mubr.bf16.gmra.mrb[0].mxu0 %v1247
      %v1428 = vpop.f32.mrb[0].mxu0
      %v1429 = vadd.f32 0.0, %v1428
      %v1430 = vpop.f32.mrb[0].mxu0
      %v1431 = vpop.f32.mrb[0].mxu0
      %v1432 = vadd.f32 0.0, %v1431
      %v1433 = vpop.f32.mrb[0].mxu0
      %1434 = vmatprep.mubr.bf16.mxu0 0
      %1435 = vmatmul.mubr.bf16.gmra.mrb[0].mxu0 %v1250
      %v1436 = vpop.f32.mrb[0].mxu0
      %v1437 = vadd.f32 0.0, %v1436
      %v1438 = vpop.f32.mrb[0].mxu0
      %v1439 = vpop.f32.mrb[0].mxu0
      %v1440 = vadd.f32 0.0, %v1439
      %v1441 = vpop.f32.mrb[0].mxu0
      %1442 = vmatprep.mubr.bf16.mxu0 0
      %1443 = vmatmul.mubr.bf16.gmra.mrb[0].mxu0 %v1253
      %v1444 = vpop.f32.mrb[0].mxu0
      %v1445 = vadd.f32 0.0, %v1444
      %v1446 = vpop.f32.mrb[0].mxu0
      %v1447 = vpop.f32.mrb[0].mxu0
      %v1448 = vadd.f32 0.0, %v1447
      %v1449 = vpop.f32.mrb[0].mxu0
      %1450 = vdwg.mxu0
      %v1451 = vadd.f32 %v993, %v1293
      %v1452 = vadd.f32 %v996, %v1296
      %v1453 = vadd.f32 %v1001, %v1301
      %v1454 = vadd.f32 %v1004, %v1304
      %v1455 = vadd.f32 %v1009, %v1309
      %v1456 = vadd.f32 %v1012, %v1312
      %v1457 = vadd.f32 %v1017, %v1317
      %v1458 = vadd.f32 %v1020, %v1320
      %v1459 = vadd.f32 %v1025, %v1325
      %v1460 = vadd.f32 %v1028, %v1328
      %v1461 = vadd.f32 %v1033, %v1333
      %v1462 = vadd.f32 %v1036, %v1336
      %v1463 = vadd.f32 %v1041, %v1341
      %v1464 = vadd.f32 %v1044, %v1344
      %v1465 = vadd.f32 %v1049, %v1349
      %v1466 = vadd.f32 %v1052, %v1352
      %v1467 = vadd.f32 %v1057, %v1357
      %v1468 = vadd.f32 %v1060, %v1360
      %v1469 = vadd.f32 %v1065, %v1365
      %v1470 = vadd.f32 %v1068, %v1368
      %v1471 = vadd.f32 %v1073, %v1373
      %v1472 = vadd.f32 %v1076, %v1376
      %v1473 = vadd.f32 %v1081, %v1381
      %v1474 = vadd.f32 %v1084, %v1384
      %v1475 = vadd.f32 %v1089, %v1389
      %v1476 = vadd.f32 %v1092, %v1392
      %v1477 = vadd.f32 %v1097, %v1397
      %v1478 = vadd.f32 %v1100, %v1400
      %v1479 = vadd.f32 %v1105, %v1405
      %v1480 = vadd.f32 %v1108, %v1408
      %v1481 = vadd.f32 %v1113, %v1413
      %v1482 = vadd.f32 %v1116, %v1416
      %v1483 = vadd.f32 %v1121, %v1421
      %v1484 = vadd.f32 %v1124, %v1424
      %v1485 = vadd.f32 %v1129, %v1429
      %v1486 = vadd.f32 %v1132, %v1432
      %v1487 = vadd.f32 %v1137, %v1437
      %v1488 = vadd.f32 %v1140, %v1440
      %v1489 = vadd.f32 %v1145, %v1445
      %v1490 = vadd.f32 %v1148, %v1448
      %s1491 = scalar_lea.vmem %s2, 6
      %v1492 = vld [vmem:[%s1491] sm:$0x3]
      %vm1493 = vsmask.f32 6400
      %v1494 = vrot.slane %v494, 1
      %v1495 = vrot.slane %v496, 2
      %v1496 = vor.u32 %v1494, %v1495
      %v1497 = vrot.slane %v505, 1
      %v1498 = vrot.slane %v501, 2
      %v1499 = vor.u32 %v1497, %v1498
      %v1500 = vsel %vm1493, %v1496, %v1499
      %v1501 = vrot.slane %v513, 1
      %v1502 = vrot.slane %v509, 2
      %v1503 = vor.u32 %v1501, %v1502
      %v1504 = vsel %vm1493, %v1499, %v1503
      %v1505 = vrot.slane %v521, 1
      %v1506 = vrot.slane %v517, 2
      %v1507 = vor.u32 %v1505, %v1506
      %v1508 = vsel %vm1493, %v1503, %v1507
      %v1509 = vrot.slane %v529, 1
      %v1510 = vrot.slane %v525, 2
      %v1511 = vor.u32 %v1509, %v1510
      %v1512 = vsel %vm1493, %v1507, %v1511
      %v1513 = vrot.slane %v537, 1
      %v1514 = vrot.slane %v533, 2
      %v1515 = vor.u32 %v1513, %v1514
      %v1516 = vsel %vm1493, %v1511, %v1515
      %v1517 = vrot.slane %v545, 1
      %v1518 = vrot.slane %v541, 2
      %v1519 = vor.u32 %v1517, %v1518
      %v1520 = vsel %vm1493, %v1515, %v1519
      %v1521 = vrot.slane %v553, 1
      %v1522 = vrot.slane %v549, 2
      %v1523 = vor.u32 %v1521, %v1522
      %v1524 = vsel %vm1493, %v1519, %v1523
      %v1525 = vrot.slane %v561, 1
      %v1526 = vrot.slane %v557, 2
      %v1527 = vor.u32 %v1525, %v1526
      %v1528 = vsel %vm1493, %v1523, %v1527
      %v1529 = vrot.slane %v569, 1
      %v1530 = vrot.slane %v565, 2
      %v1531 = vor.u32 %v1529, %v1530
      %v1532 = vsel %vm1493, %v1527, %v1531
      %v1533 = vrot.slane %v577, 1
      %v1534 = vrot.slane %v573, 2
      %v1535 = vor.u32 %v1533, %v1534
      %v1536 = vsel %vm1493, %v1531, %v1535
      %v1537 = vrot.slane %v585, 1
      %v1538 = vrot.slane %v581, 2
      %v1539 = vor.u32 %v1537, %v1538
      %v1540 = vsel %vm1493, %v1535, %v1539
      %v1541 = vrot.slane %v593, 1
      %v1542 = vrot.slane %v589, 2
      %v1543 = vor.u32 %v1541, %v1542
      %v1544 = vsel %vm1493, %v1539, %v1543
      %v1545 = vrot.slane %v601, 1
      %v1546 = vrot.slane %v597, 2
      %v1547 = vor.u32 %v1545, %v1546
      %v1548 = vsel %vm1493, %v1543, %v1547
      %v1549 = vrot.slane %v609, 1
      %v1550 = vrot.slane %v605, 2
      %v1551 = vor.u32 %v1549, %v1550
      %v1552 = vsel %vm1493, %v1547, %v1551
      %v1553 = vrot.slane %v617, 1
      %v1554 = vrot.slane %v613, 2
      %v1555 = vor.u32 %v1553, %v1554
      %v1556 = vsel %vm1493, %v1551, %v1555
      %v1557 = vrot.slane %v625, 1
      %v1558 = vrot.slane %v621, 2
      %v1559 = vor.u32 %v1557, %v1558
      %v1560 = vsel %vm1493, %v1555, %v1559
      %v1561 = vrot.slane %v633, 1
      %v1562 = vrot.slane %v629, 2
      %v1563 = vor.u32 %v1561, %v1562
      %v1564 = vsel %vm1493, %v1559, %v1563
      %v1565 = vrot.slane %v641, 1
      %v1566 = vrot.slane %v637, 2
      %v1567 = vor.u32 %v1565, %v1566
      %v1568 = vsel %vm1493, %v1563, %v1567
      %v1569 = vrot.slane %v649, 1
      %v1570 = vrot.slane %v645, 2
      %v1571 = vor.u32 %v1569, %v1570
      %v1572 = vsel %vm1493, %v1567, %v1571
      %v1573 = vshrl.u32 %v487, 16
      %v1575 = vrot.slane %v1573, 1
      %v1576 = vrot.slane %v653, 2
      %v1577 = vor.u32 %v1575, %v1576
      %v1578 = vsel %vm1493, %v1571, %v1577
      %v1580 = vsel %vm657, %v1500, 0
      %v1583 = vsel %vm657, %v1504, 0
      %v1586 = vsel %vm657, %v1508, 0
      %v1589 = vsel %vm657, %v1512, 0
      %v1592 = vsel %vm657, %v1516, 0
      %v1595 = vsel %vm657, %v1520, 0
      %v1598 = vsel %vm657, %v1524, 0
      %v1601 = vsel %vm657, %v1528, 0
      %v1604 = vsel %vm657, %v1532, 0
      %v1607 = vsel %vm657, %v1536, 0
      %v1610 = vsel %vm657, %v1540, 0
      %v1613 = vsel %vm657, %v1544, 0
      %v1616 = vsel %vm657, %v1548, 0
      %v1619 = vsel %vm657, %v1552, 0
      %v1622 = vsel %vm657, %v1556, 0
      %v1625 = vsel %vm657, %v1560, 0
      %v1628 = vsel %vm657, %v1564, 0
      %v1631 = vsel %vm657, %v1568, 0
      %v1634 = vsel %vm657, %v1572, 0
      %v1637 = vsel %vm657, %v1578, 0
      %v1640 = vsel %vm718, %v1492, 0
      %1642 = vmatprep.subr.bf16.mxu0 0
      %1643 = vmatpush1.bf16.msra.mxu0 %v1640
      %1644 = vmatprep.subr.bf16.mxu0 0
      %1645 = vmatpush1.bf16.msra.mxu0 0
      %1646 = vmatprep.subr.bf16.mxu0 0
      %1647 = vmatpush1.bf16.msra.mxu0 0
      %1648 = vmatprep.subr.bf16.mxu0 0
      %1649 = vmatpush1.bf16.msra.mxu0 0
      %1650 = vmatprep.subr.bf16.mxu0 0
      %1651 = vmatpush1.bf16.msra.mxu0 0
      %1652 = vmatprep.subr.bf16.mxu0 0
      %1653 = vmatpush1.bf16.msra.mxu0 0
      %1654 = vmatprep.subr.bf16.mxu0 0
      %1655 = vmatpush1.bf16.msra.mxu0 0
      %1656 = vmatprep.subr.bf16.mxu0 0
      %1657 = vmatpush1.bf16.msra.mxu0 0
      %1658 = vmatprep.subr.bf16.mxu0 0
      %1659 = vmatpush1.bf16.msra.mxu0 0
      %1660 = vmatprep.subr.bf16.mxu0 0
      %1661 = vmatpush1.bf16.msra.mxu0 0
      %1662 = vmatprep.subr.bf16.mxu0 0
      %1663 = vmatpush1.bf16.msra.mxu0 0
      %1664 = vmatprep.subr.bf16.mxu0 0
      %1665 = vmatpush1.bf16.msra.mxu0 0
      %1666 = vmatprep.subr.bf16.mxu0 0
      %1667 = vmatpush1.bf16.msra.mxu0 0
      %1668 = vmatprep.subr.bf16.mxu0 0
      %1669 = vmatpush1.bf16.msra.mxu0 0
      %1670 = vmatprep.subr.bf16.mxu0 0
      %1671 = vmatpush1.bf16.msra.mxu0 0
      %1672 = vmatprep.subr.bf16.mxu0 0
      %1673 = vmatpush1.bf16.msra.mxu0 0
      %1674 = vmatprep.mubr.bf16.mxu0 0
      %1675 = vmatmul.mubr.bf16.gmra.mrb[0].mxu0 %v1580
      %v1676 = vpop.f32.mrb[0].mxu0
      %v1677 = vadd.f32 0.0, %v1676
      %v1678 = vpop.f32.mrb[0].mxu0
      %v1679 = vpop.f32.mrb[0].mxu0
      %v1680 = vadd.f32 0.0, %v1679
      %v1681 = vpop.f32.mrb[0].mxu0
      %1682 = vmatprep.mubr.bf16.mxu0 0
      %1683 = vmatmul.mubr.bf16.gmra.mrb[0].mxu0 %v1583
      %v1684 = vpop.f32.mrb[0].mxu0
      %v1685 = vadd.f32 0.0, %v1684
      %v1686 = vpop.f32.mrb[0].mxu0
      %v1687 = vpop.f32.mrb[0].mxu0
      %v1688 = vadd.f32 0.0, %v1687
      %v1689 = vpop.f32.mrb[0].mxu0
      %1690 = vmatprep.mubr.bf16.mxu0 0
      %1691 = vmatmul.mubr.bf16.gmra.mrb[0].mxu0 %v1586
      %v1692 = vpop.f32.mrb[0].mxu0
      %v1693 = vadd.f32 0.0, %v1692
      %v1694 = vpop.f32.mrb[0].mxu0
      %v1695 = vpop.f32.mrb[0].mxu0
      %v1696 = vadd.f32 0.0, %v1695
      %v1697 = vpop.f32.mrb[0].mxu0
      %1698 = vmatprep.mubr.bf16.mxu0 0
      %1699 = vmatmul.mubr.bf16.gmra.mrb[0].mxu0 %v1589
      %v1700 = vpop.f32.mrb[0].mxu0
      %v1701 = vadd.f32 0.0, %v1700
      %v1702 = vpop.f32.mrb[0].mxu0
      %v1703 = vpop.f32.mrb[0].mxu0
      %v1704 = vadd.f32 0.0, %v1703
      %v1705 = vpop.f32.mrb[0].mxu0
      %1706 = vmatprep.mubr.bf16.mxu0 0
      %1707 = vmatmul.mubr.bf16.gmra.mrb[0].mxu0 %v1592
      %v1708 = vpop.f32.mrb[0].mxu0
      %v1709 = vadd.f32 0.0, %v1708
      %v1710 = vpop.f32.mrb[0].mxu0
      %v1711 = vpop.f32.mrb[0].mxu0
      %v1712 = vadd.f32 0.0, %v1711
      %v1713 = vpop.f32.mrb[0].mxu0
      %1714 = vmatprep.mubr.bf16.mxu0 0
      %1715 = vmatmul.mubr.bf16.gmra.mrb[0].mxu0 %v1595
      %v1716 = vpop.f32.mrb[0].mxu0
      %v1717 = vadd.f32 0.0, %v1716
      %v1718 = vpop.f32.mrb[0].mxu0
      %v1719 = vpop.f32.mrb[0].mxu0
      %v1720 = vadd.f32 0.0, %v1719
      %v1721 = vpop.f32.mrb[0].mxu0
      %1722 = vmatprep.mubr.bf16.mxu0 0
      %1723 = vmatmul.mubr.bf16.gmra.mrb[0].mxu0 %v1598
      %v1724 = vpop.f32.mrb[0].mxu0
      %v1725 = vadd.f32 0.0, %v1724
      %v1726 = vpop.f32.mrb[0].mxu0
      %v1727 = vpop.f32.mrb[0].mxu0
      %v1728 = vadd.f32 0.0, %v1727
      %v1729 = vpop.f32.mrb[0].mxu0
      %1730 = vmatprep.mubr.bf16.mxu0 0
      %1731 = vmatmul.mubr.bf16.gmra.mrb[0].mxu0 %v1601
      %v1732 = vpop.f32.mrb[0].mxu0
      %v1733 = vadd.f32 0.0, %v1732
      %v1734 = vpop.f32.mrb[0].mxu0
      %v1735 = vpop.f32.mrb[0].mxu0
      %v1736 = vadd.f32 0.0, %v1735
      %v1737 = vpop.f32.mrb[0].mxu0
      %1738 = vmatprep.mubr.bf16.mxu0 0
      %1739 = vmatmul.mubr.bf16.gmra.mrb[0].mxu0 %v1604
      %v1740 = vpop.f32.mrb[0].mxu0
      %v1741 = vadd.f32 0.0, %v1740
      %v1742 = vpop.f32.mrb[0].mxu0
      %v1743 = vpop.f32.mrb[0].mxu0
      %v1744 = vadd.f32 0.0, %v1743
      %v1745 = vpop.f32.mrb[0].mxu0
      %1746 = vmatprep.mubr.bf16.mxu0 0
      %1747 = vmatmul.mubr.bf16.gmra.mrb[0].mxu0 %v1607
      %v1748 = vpop.f32.mrb[0].mxu0
      %v1749 = vadd.f32 0.0, %v1748
      %v1750 = vpop.f32.mrb[0].mxu0
      %v1751 = vpop.f32.mrb[0].mxu0
      %v1752 = vadd.f32 0.0, %v1751
      %v1753 = vpop.f32.mrb[0].mxu0
      %1754 = vmatprep.mubr.bf16.mxu0 0
      %1755 = vmatmul.mubr.bf16.gmra.mrb[0].mxu0 %v1610
      %v1756 = vpop.f32.mrb[0].mxu0
      %v1757 = vadd.f32 0.0, %v1756
      %v1758 = vpop.f32.mrb[0].mxu0
      %v1759 = vpop.f32.mrb[0].mxu0
      %v1760 = vadd.f32 0.0, %v1759
      %v1761 = vpop.f32.mrb[0].mxu0
      %1762 = vmatprep.mubr.bf16.mxu0 0
      %1763 = vmatmul.mubr.bf16.gmra.mrb[0].mxu0 %v1613
      %v1764 = vpop.f32.mrb[0].mxu0
      %v1765 = vadd.f32 0.0, %v1764
      %v1766 = vpop.f32.mrb[0].mxu0
      %v1767 = vpop.f32.mrb[0].mxu0
      %v1768 = vadd.f32 0.0, %v1767
      %v1769 = vpop.f32.mrb[0].mxu0
      %1770 = vmatprep.mubr.bf16.mxu0 0
      %1771 = vmatmul.mubr.bf16.gmra.mrb[0].mxu0 %v1616
      %v1772 = vpop.f32.mrb[0].mxu0
      %v1773 = vadd.f32 0.0, %v1772
      %v1774 = vpop.f32.mrb[0].mxu0
      %v1775 = vpop.f32.mrb[0].mxu0
      %v1776 = vadd.f32 0.0, %v1775
      %v1777 = vpop.f32.mrb[0].mxu0
      %1778 = vmatprep.mubr.bf16.mxu0 0
      %1779 = vmatmul.mubr.bf16.gmra.mrb[0].mxu0 %v1619
      %v1780 = vpop.f32.mrb[0].mxu0
      %v1781 = vadd.f32 0.0, %v1780
      %v1782 = vpop.f32.mrb[0].mxu0
      %v1783 = vpop.f32.mrb[0].mxu0
      %v1784 = vadd.f32 0.0, %v1783
      %v1785 = vpop.f32.mrb[0].mxu0
      %1786 = vmatprep.mubr.bf16.mxu0 0
      %1787 = vmatmul.mubr.bf16.gmra.mrb[0].mxu0 %v1622
      %v1788 = vpop.f32.mrb[0].mxu0
      %v1789 = vadd.f32 0.0, %v1788
      %v1790 = vpop.f32.mrb[0].mxu0
      %v1791 = vpop.f32.mrb[0].mxu0
      %v1792 = vadd.f32 0.0, %v1791
      %v1793 = vpop.f32.mrb[0].mxu0
      %1794 = vmatprep.mubr.bf16.mxu0 0
      %1795 = vmatmul.mubr.bf16.gmra.mrb[0].mxu0 %v1625
      %v1796 = vpop.f32.mrb[0].mxu0
      %v1797 = vadd.f32 0.0, %v1796
      %v1798 = vpop.f32.mrb[0].mxu0
      %v1799 = vpop.f32.mrb[0].mxu0
      %v1800 = vadd.f32 0.0, %v1799
      %v1801 = vpop.f32.mrb[0].mxu0
      %1802 = vmatprep.mubr.bf16.mxu0 0
      %1803 = vmatmul.mubr.bf16.gmra.mrb[0].mxu0 %v1628
      %v1804 = vpop.f32.mrb[0].mxu0
      %v1805 = vadd.f32 0.0, %v1804
      %v1806 = vpop.f32.mrb[0].mxu0
      %v1807 = vpop.f32.mrb[0].mxu0
      %v1808 = vadd.f32 0.0, %v1807
      %v1809 = vpop.f32.mrb[0].mxu0
      %1810 = vmatprep.mubr.bf16.mxu0 0
      %1811 = vmatmul.mubr.bf16.gmra.mrb[0].mxu0 %v1631
      %v1812 = vpop.f32.mrb[0].mxu0
      %v1813 = vadd.f32 0.0, %v1812
      %v1814 = vpop.f32.mrb[0].mxu0
      %v1815 = vpop.f32.mrb[0].mxu0
      %v1816 = vadd.f32 0.0, %v1815
      %v1817 = vpop.f32.mrb[0].mxu0
      %1818 = vmatprep.mubr.bf16.mxu0 0
      %1819 = vmatmul.mubr.bf16.gmra.mrb[0].mxu0 %v1634
      %v1820 = vpop.f32.mrb[0].mxu0
      %v1821 = vadd.f32 0.0, %v1820
      %v1822 = vpop.f32.mrb[0].mxu0
      %v1823 = vpop.f32.mrb[0].mxu0
      %v1824 = vadd.f32 0.0, %v1823
      %v1825 = vpop.f32.mrb[0].mxu0
      %1826 = vmatprep.mubr.bf16.mxu0 0
      %1827 = vmatmul.mubr.bf16.gmra.mrb[0].mxu0 %v1637
      %v1828 = vpop.f32.mrb[0].mxu0
      %v1829 = vadd.f32 0.0, %v1828
      %v1830 = vpop.f32.mrb[0].mxu0
      %v1831 = vpop.f32.mrb[0].mxu0
      %v1832 = vadd.f32 0.0, %v1831
      %v1833 = vpop.f32.mrb[0].mxu0
      %1834 = vdwg.mxu0
      %v1835 = vadd.f32 %v1451, %v1677
      %v1836 = vadd.f32 %v1452, %v1680
      %v1837 = vadd.f32 %v1453, %v1685
      %v1838 = vadd.f32 %v1454, %v1688
      %v1839 = vadd.f32 %v1455, %v1693
      %v1840 = vadd.f32 %v1456, %v1696
      %v1841 = vadd.f32 %v1457, %v1701
      %v1842 = vadd.f32 %v1458, %v1704
      %v1843 = vadd.f32 %v1459, %v1709
      %v1844 = vadd.f32 %v1460, %v1712
      %v1845 = vadd.f32 %v1461, %v1717
      %v1846 = vadd.f32 %v1462, %v1720
      %v1847 = vadd.f32 %v1463, %v1725
      %v1848 = vadd.f32 %v1464, %v1728
      %v1849 = vadd.f32 %v1465, %v1733
      %v1850 = vadd.f32 %v1466, %v1736
      %v1851 = vadd.f32 %v1467, %v1741
      %v1852 = vadd.f32 %v1468, %v1744
      %v1853 = vadd.f32 %v1469, %v1749
      %v1854 = vadd.f32 %v1470, %v1752
      %v1855 = vadd.f32 %v1471, %v1757
      %v1856 = vadd.f32 %v1472, %v1760
      %v1857 = vadd.f32 %v1473, %v1765
      %v1858 = vadd.f32 %v1474, %v1768
      %v1859 = vadd.f32 %v1475, %v1773
      %v1860 = vadd.f32 %v1476, %v1776
      %v1861 = vadd.f32 %v1477, %v1781
      %v1862 = vadd.f32 %v1478, %v1784
      %v1863 = vadd.f32 %v1479, %v1789
      %v1864 = vadd.f32 %v1480, %v1792
      %v1865 = vadd.f32 %v1481, %v1797
      %v1866 = vadd.f32 %v1482, %v1800
      %v1867 = vadd.f32 %v1483, %v1805
      %v1868 = vadd.f32 %v1484, %v1808
      %v1869 = vadd.f32 %v1485, %v1813
      %v1870 = vadd.f32 %v1486, %v1816
      %v1871 = vadd.f32 %v1487, %v1821
      %v1872 = vadd.f32 %v1488, %v1824
      %v1873 = vadd.f32 %v1489, %v1829
      %v1874 = vadd.f32 %v1490, %v1832
      %s1875 = scalar_lea.vmem %s2, 8
      %v1876 = vld [vmem:[%s1875] sm:$0x3]
      %vm1877 = vcmask 1045504
      %v1878 = vrot.slane %v459, 2
      %v1879 = vrot.slane %v460, 2
      %v1880 = vsel %vm1877, %v1878, %v1879
      %v1881 = vrot.slane %v461, 2
      %v1882 = vsel %vm1877, %v1879, %v1881
      %v1883 = vrot.slane %v462, 2
      %v1884 = vsel %vm1877, %v1881, %v1883
      %v1885 = vrot.slane %v463, 2
      %v1886 = vsel %vm1877, %v1883, %v1885
      %v1887 = vrot.slane %v464, 2
      %v1888 = vsel %vm1877, %v1885, %v1887
      %v1889 = vrot.slane %v465, 2
      %v1890 = vsel %vm1877, %v1887, %v1889
      %v1891 = vrot.slane %v466, 2
      %v1892 = vsel %vm1877, %v1889, %v1891
      %v1893 = vrot.slane %v467, 2
      %v1894 = vsel %vm1877, %v1891, %v1893
      %v1895 = vrot.slane %v468, 2
      %v1896 = vsel %vm1877, %v1893, %v1895
      %v1897 = vrot.slane %v469, 2
      %v1898 = vsel %vm1877, %v1895, %v1897
      %v1899 = vrot.slane %v470, 2
      %v1900 = vsel %vm1877, %v1897, %v1899
      %v1901 = vrot.slane %v471, 2
      %v1902 = vsel %vm1877, %v1899, %v1901
      %v1903 = vrot.slane %v472, 2
      %v1904 = vsel %vm1877, %v1901, %v1903
      %v1905 = vrot.slane %v473, 2
      %v1906 = vsel %vm1877, %v1903, %v1905
      %v1907 = vrot.slane %v474, 2
      %v1908 = vsel %vm1877, %v1905, %v1907
      %v1909 = vrot.slane %v475, 2
      %v1910 = vsel %vm1877, %v1907, %v1909
      %v1911 = vrot.slane %v476, 2
      %v1912 = vsel %vm1877, %v1909, %v1911
      %v1913 = vrot.slane %v477, 2
      %v1914 = vsel %vm1877, %v1911, %v1913
      %v1915 = vrot.slane %v478, 2
      %v1916 = vsel %vm1877, %v1913, %v1915
      %v1917 = vrot.slane %v487, 2
      %v1918 = vsel %vm1877, %v1915, %v1917
      %v1920 = vsel %vm657, %v1880, 0
      %v1923 = vsel %vm657, %v1882, 0
      %v1926 = vsel %vm657, %v1884, 0
      %v1929 = vsel %vm657, %v1886, 0
      %v1932 = vsel %vm657, %v1888, 0
      %v1935 = vsel %vm657, %v1890, 0
      %v1938 = vsel %vm657, %v1892, 0
      %v1941 = vsel %vm657, %v1894, 0
      %v1944 = vsel %vm657, %v1896, 0
      %v1947 = vsel %vm657, %v1898, 0
      %v1950 = vsel %vm657, %v1900, 0
      %v1953 = vsel %vm657, %v1902, 0
      %v1956 = vsel %vm657, %v1904, 0
      %v1959 = vsel %vm657, %v1906, 0
      %v1962 = vsel %vm657, %v1908, 0
      %v1965 = vsel %vm657, %v1910, 0
      %v1968 = vsel %vm657, %v1912, 0
      %v1971 = vsel %vm657, %v1914, 0
      %v1974 = vsel %vm657, %v1916, 0
      %v1977 = vsel %vm657, %v1918, 0
      %v1980 = vsel %vm718, %v1876, 0
      %1982 = vmatprep.subr.bf16.mxu0 0
      %1983 = vmatpush1.bf16.msra.mxu0 %v1980
      %1984 = vmatprep.subr.bf16.mxu0 0
      %1985 = vmatpush1.bf16.msra.mxu0 0
      %1986 = vmatprep.subr.bf16.mxu0 0
      %1987 = vmatpush1.bf16.msra.mxu0 0
      %1988 = vmatprep.subr.bf16.mxu0 0
      %1989 = vmatpush1.bf16.msra.mxu0 0
      %1990 = vmatprep.subr.bf16.mxu0 0
      %1991 = vmatpush1.bf16.msra.mxu0 0
      %1992 = vmatprep.subr.bf16.mxu0 0
      %1993 = vmatpush1.bf16.msra.mxu0 0
      %1994 = vmatprep.subr.bf16.mxu0 0
      %1995 = vmatpush1.bf16.msra.mxu0 0
      %1996 = vmatprep.subr.bf16.mxu0 0
      %1997 = vmatpush1.bf16.msra.mxu0 0
      %1998 = vmatprep.subr.bf16.mxu0 0
      %1999 = vmatpush1.bf16.msra.mxu0 0
      %2000 = vmatprep.subr.bf16.mxu0 0
      %2001 = vmatpush1.bf16.msra.mxu0 0
      %2002 = vmatprep.subr.bf16.mxu0 0
      %2003 = vmatpush1.bf16.msra.mxu0 0
      %2004 = vmatprep.subr.bf16.mxu0 0
      %2005 = vmatpush1.bf16.msra.mxu0 0
      %2006 = vmatprep.subr.bf16.mxu0 0
      %2007 = vmatpush1.bf16.msra.mxu0 0
      %2008 = vmatprep.subr.bf16.mxu0 0
      %2009 = vmatpush1.bf16.msra.mxu0 0
      %2010 = vmatprep.subr.bf16.mxu0 0
      %2011 = vmatpush1.bf16.msra.mxu0 0
      %2012 = vmatprep.subr.bf16.mxu0 0
      %2013 = vmatpush1.bf16.msra.mxu0 0
      %2014 = vmatprep.mubr.bf16.mxu0 0
      %2015 = vmatmul.mubr.bf16.gmra.mrb[0].mxu0 %v1920
      %v2016 = vpop.f32.mrb[0].mxu0
      %v2017 = vadd.f32 0.0, %v2016
      %v2018 = vpop.f32.mrb[0].mxu0
      %v2019 = vpop.f32.mrb[0].mxu0
      %v2020 = vadd.f32 0.0, %v2019
      %v2021 = vpop.f32.mrb[0].mxu0
      %2022 = vmatprep.mubr.bf16.mxu0 0
      %2023 = vmatmul.mubr.bf16.gmra.mrb[0].mxu0 %v1923
      %v2024 = vpop.f32.mrb[0].mxu0
      %v2025 = vadd.f32 0.0, %v2024
      %v2026 = vpop.f32.mrb[0].mxu0
      %v2027 = vpop.f32.mrb[0].mxu0
      %v2028 = vadd.f32 0.0, %v2027
      %v2029 = vpop.f32.mrb[0].mxu0
      %2030 = vmatprep.mubr.bf16.mxu0 0
      %2031 = vmatmul.mubr.bf16.gmra.mrb[0].mxu0 %v1926
      %v2032 = vpop.f32.mrb[0].mxu0
      %v2033 = vadd.f32 0.0, %v2032
      %v2034 = vpop.f32.mrb[0].mxu0
      %v2035 = vpop.f32.mrb[0].mxu0
      %v2036 = vadd.f32 0.0, %v2035
      %v2037 = vpop.f32.mrb[0].mxu0
      %2038 = vmatprep.mubr.bf16.mxu0 0
      %2039 = vmatmul.mubr.bf16.gmra.mrb[0].mxu0 %v1929
      %v2040 = vpop.f32.mrb[0].mxu0
      %v2041 = vadd.f32 0.0, %v2040
      %v2042 = vpop.f32.mrb[0].mxu0
      %v2043 = vpop.f32.mrb[0].mxu0
      %v2044 = vadd.f32 0.0, %v2043
      %v2045 = vpop.f32.mrb[0].mxu0
      %2046 = vmatprep.mubr.bf16.mxu0 0
      %2047 = vmatmul.mubr.bf16.gmra.mrb[0].mxu0 %v1932
      %v2048 = vpop.f32.mrb[0].mxu0
      %v2049 = vadd.f32 0.0, %v2048
      %v2050 = vpop.f32.mrb[0].mxu0
      %v2051 = vpop.f32.mrb[0].mxu0
      %v2052 = vadd.f32 0.0, %v2051
      %v2053 = vpop.f32.mrb[0].mxu0
      %2054 = vmatprep.mubr.bf16.mxu0 0
      %2055 = vmatmul.mubr.bf16.gmra.mrb[0].mxu0 %v1935
      %v2056 = vpop.f32.mrb[0].mxu0
      %v2057 = vadd.f32 0.0, %v2056
      %v2058 = vpop.f32.mrb[0].mxu0
      %v2059 = vpop.f32.mrb[0].mxu0
      %v2060 = vadd.f32 0.0, %v2059
      %v2061 = vpop.f32.mrb[0].mxu0
      %2062 = vmatprep.mubr.bf16.mxu0 0
      %2063 = vmatmul.mubr.bf16.gmra.mrb[0].mxu0 %v1938
      %v2064 = vpop.f32.mrb[0].mxu0
      %v2065 = vadd.f32 0.0, %v2064
      %v2066 = vpop.f32.mrb[0].mxu0
      %v2067 = vpop.f32.mrb[0].mxu0
      %v2068 = vadd.f32 0.0, %v2067
      %v2069 = vpop.f32.mrb[0].mxu0
      %2070 = vmatprep.mubr.bf16.mxu0 0
      %2071 = vmatmul.mubr.bf16.gmra.mrb[0].mxu0 %v1941
      %v2072 = vpop.f32.mrb[0].mxu0
      %v2073 = vadd.f32 0.0, %v2072
      %v2074 = vpop.f32.mrb[0].mxu0
      %v2075 = vpop.f32.mrb[0].mxu0
      %v2076 = vadd.f32 0.0, %v2075
      %v2077 = vpop.f32.mrb[0].mxu0
      %2078 = vmatprep.mubr.bf16.mxu0 0
      %2079 = vmatmul.mubr.bf16.gmra.mrb[0].mxu0 %v1944
      %v2080 = vpop.f32.mrb[0].mxu0
      %v2081 = vadd.f32 0.0, %v2080
      %v2082 = vpop.f32.mrb[0].mxu0
      %v2083 = vpop.f32.mrb[0].mxu0
      %v2084 = vadd.f32 0.0, %v2083
      %v2085 = vpop.f32.mrb[0].mxu0
      %2086 = vmatprep.mubr.bf16.mxu0 0
      %2087 = vmatmul.mubr.bf16.gmra.mrb[0].mxu0 %v1947
      %v2088 = vpop.f32.mrb[0].mxu0
      %v2089 = vadd.f32 0.0, %v2088
      %v2090 = vpop.f32.mrb[0].mxu0
      %v2091 = vpop.f32.mrb[0].mxu0
      %v2092 = vadd.f32 0.0, %v2091
      %v2093 = vpop.f32.mrb[0].mxu0
      %2094 = vmatprep.mubr.bf16.mxu0 0
      %2095 = vmatmul.mubr.bf16.gmra.mrb[0].mxu0 %v1950
      %v2096 = vpop.f32.mrb[0].mxu0
      %v2097 = vadd.f32 0.0, %v2096
      %v2098 = vpop.f32.mrb[0].mxu0
      %v2099 = vpop.f32.mrb[0].mxu0
      %v2100 = vadd.f32 0.0, %v2099
      %v2101 = vpop.f32.mrb[0].mxu0
      %2102 = vmatprep.mubr.bf16.mxu0 0
      %2103 = vmatmul.mubr.bf16.gmra.mrb[0].mxu0 %v1953
      %v2104 = vpop.f32.mrb[0].mxu0
      %v2105 = vadd.f32 0.0, %v2104
      %v2106 = vpop.f32.mrb[0].mxu0
      %v2107 = vpop.f32.mrb[0].mxu0
      %v2108 = vadd.f32 0.0, %v2107
      %v2109 = vpop.f32.mrb[0].mxu0
      %2110 = vmatprep.mubr.bf16.mxu0 0
      %2111 = vmatmul.mubr.bf16.gmra.mrb[0].mxu0 %v1956
      %v2112 = vpop.f32.mrb[0].mxu0
      %v2113 = vadd.f32 0.0, %v2112
      %v2114 = vpop.f32.mrb[0].mxu0
      %v2115 = vpop.f32.mrb[0].mxu0
      %v2116 = vadd.f32 0.0, %v2115
      %v2117 = vpop.f32.mrb[0].mxu0
      %2118 = vmatprep.mubr.bf16.mxu0 0
      %2119 = vmatmul.mubr.bf16.gmra.mrb[0].mxu0 %v1959
      %v2120 = vpop.f32.mrb[0].mxu0
      %v2121 = vadd.f32 0.0, %v2120
      %v2122 = vpop.f32.mrb[0].mxu0
      %v2123 = vpop.f32.mrb[0].mxu0
      %v2124 = vadd.f32 0.0, %v2123
      %v2125 = vpop.f32.mrb[0].mxu0
      %2126 = vmatprep.mubr.bf16.mxu0 0
      %2127 = vmatmul.mubr.bf16.gmra.mrb[0].mxu0 %v1962
      %v2128 = vpop.f32.mrb[0].mxu0
      %v2129 = vadd.f32 0.0, %v2128
      %v2130 = vpop.f32.mrb[0].mxu0
      %v2131 = vpop.f32.mrb[0].mxu0
      %v2132 = vadd.f32 0.0, %v2131
      %v2133 = vpop.f32.mrb[0].mxu0
      %2134 = vmatprep.mubr.bf16.mxu0 0
      %2135 = vmatmul.mubr.bf16.gmra.mrb[0].mxu0 %v1965
      %v2136 = vpop.f32.mrb[0].mxu0
      %v2137 = vadd.f32 0.0, %v2136
      %v2138 = vpop.f32.mrb[0].mxu0
      %v2139 = vpop.f32.mrb[0].mxu0
      %v2140 = vadd.f32 0.0, %v2139
      %v2141 = vpop.f32.mrb[0].mxu0
      %2142 = vmatprep.mubr.bf16.mxu0 0
      %2143 = vmatmul.mubr.bf16.gmra.mrb[0].mxu0 %v1968
      %v2144 = vpop.f32.mrb[0].mxu0
      %v2145 = vadd.f32 0.0, %v2144
      %v2146 = vpop.f32.mrb[0].mxu0
      %v2147 = vpop.f32.mrb[0].mxu0
      %v2148 = vadd.f32 0.0, %v2147
      %v2149 = vpop.f32.mrb[0].mxu0
      %2150 = vmatprep.mubr.bf16.mxu0 0
      %2151 = vmatmul.mubr.bf16.gmra.mrb[0].mxu0 %v1971
      %v2152 = vpop.f32.mrb[0].mxu0
      %v2153 = vadd.f32 0.0, %v2152
      %v2154 = vpop.f32.mrb[0].mxu0
      %v2155 = vpop.f32.mrb[0].mxu0
      %v2156 = vadd.f32 0.0, %v2155
      %v2157 = vpop.f32.mrb[0].mxu0
      %2158 = vmatprep.mubr.bf16.mxu0 0
      %2159 = vmatmul.mubr.bf16.gmra.mrb[0].mxu0 %v1974
      %v2160 = vpop.f32.mrb[0].mxu0
      %v2161 = vadd.f32 0.0, %v2160
      %v2162 = vpop.f32.mrb[0].mxu0
      %v2163 = vpop.f32.mrb[0].mxu0
      %v2164 = vadd.f32 0.0, %v2163
      %v2165 = vpop.f32.mrb[0].mxu0
      %2166 = vmatprep.mubr.bf16.mxu0 0
      %2167 = vmatmul.mubr.bf16.gmra.mrb[0].mxu0 %v1977
      %v2168 = vpop.f32.mrb[0].mxu0
      %v2169 = vadd.f32 0.0, %v2168
      %v2170 = vpop.f32.mrb[0].mxu0
      %v2171 = vpop.f32.mrb[0].mxu0
      %v2172 = vadd.f32 0.0, %v2171
      %v2173 = vpop.f32.mrb[0].mxu0
      %2174 = vdwg.mxu0
      %v2175 = vadd.f32 %v1835, %v2017
      %v2176 = vadd.f32 %v1836, %v2020
      %v2177 = vadd.f32 %v1837, %v2025
      %v2178 = vadd.f32 %v1838, %v2028
      %v2179 = vadd.f32 %v1839, %v2033
      %v2180 = vadd.f32 %v1840, %v2036
      %v2181 = vadd.f32 %v1841, %v2041
      %v2182 = vadd.f32 %v1842, %v2044
      %v2183 = vadd.f32 %v1843, %v2049
      %v2184 = vadd.f32 %v1844, %v2052
      %v2185 = vadd.f32 %v1845, %v2057
      %v2186 = vadd.f32 %v1846, %v2060
      %v2187 = vadd.f32 %v1847, %v2065
      %v2188 = vadd.f32 %v1848, %v2068
      %v2189 = vadd.f32 %v1849, %v2073
      %v2190 = vadd.f32 %v1850, %v2076
      %v2191 = vadd.f32 %v1851, %v2081
      %v2192 = vadd.f32 %v1852, %v2084
      %v2193 = vadd.f32 %v1853, %v2089
      %v2194 = vadd.f32 %v1854, %v2092
      %v2195 = vadd.f32 %v1855, %v2097
      %v2196 = vadd.f32 %v1856, %v2100
      %v2197 = vadd.f32 %v1857, %v2105
      %v2198 = vadd.f32 %v1858, %v2108
      %v2199 = vadd.f32 %v1859, %v2113
      %v2200 = vadd.f32 %v1860, %v2116
      %v2201 = vadd.f32 %v1861, %v2121
      %v2202 = vadd.f32 %v1862, %v2124
      %v2203 = vadd.f32 %v1863, %v2129
      %v2204 = vadd.f32 %v1864, %v2132
      %v2205 = vadd.f32 %v1865, %v2137
      %v2206 = vadd.f32 %v1866, %v2140
      %v2207 = vadd.f32 %v1867, %v2145
      %v2208 = vadd.f32 %v1868, %v2148
      %v2209 = vadd.f32 %v1869, %v2153
      %v2210 = vadd.f32 %v1870, %v2156
      %v2211 = vadd.f32 %v1871, %v2161
      %v2212 = vadd.f32 %v1872, %v2164
      %v2213 = vadd.f32 %v1873, %v2169
      %v2214 = vadd.f32 %v1874, %v2172
      %s2215 = scalar_lea.vmem %s2, 10
      %v2216 = vld [vmem:[%s2215] sm:$0x3]
      %vm2217 = vsmask.f32 5376
      %v2218 = vrot.slane %v494, 2
      %v2219 = vrot.slane %v496, 3
      %v2220 = vor.u32 %v2218, %v2219
      %v2221 = vrot.slane %v505, 2
      %v2222 = vrot.slane %v501, 3
      %v2223 = vor.u32 %v2221, %v2222
      %v2224 = vsel %vm2217, %v2220, %v2223
      %v2225 = vrot.slane %v513, 2
      %v2226 = vrot.slane %v509, 3
      %v2227 = vor.u32 %v2225, %v2226
      %v2228 = vsel %vm2217, %v2223, %v2227
      %v2229 = vrot.slane %v521, 2
      %v2230 = vrot.slane %v517, 3
      %v2231 = vor.u32 %v2229, %v2230
      %v2232 = vsel %vm2217, %v2227, %v2231
      %v2233 = vrot.slane %v529, 2
      %v2234 = vrot.slane %v525, 3
      %v2235 = vor.u32 %v2233, %v2234
      %v2236 = vsel %vm2217, %v2231, %v2235
      %v2237 = vrot.slane %v537, 2
      %v2238 = vrot.slane %v533, 3
      %v2239 = vor.u32 %v2237, %v2238
      %v2240 = vsel %vm2217, %v2235, %v2239
      %v2241 = vrot.slane %v545, 2
      %v2242 = vrot.slane %v541, 3
      %v2243 = vor.u32 %v2241, %v2242
      %v2244 = vsel %vm2217, %v2239, %v2243
      %v2245 = vrot.slane %v553, 2
      %v2246 = vrot.slane %v549, 3
      %v2247 = vor.u32 %v2245, %v2246
      %v2248 = vsel %vm2217, %v2243, %v2247
      %v2249 = vrot.slane %v561, 2
      %v2250 = vrot.slane %v557, 3
      %v2251 = vor.u32 %v2249, %v2250
      %v2252 = vsel %vm2217, %v2247, %v2251
      %v2253 = vrot.slane %v569, 2
      %v2254 = vrot.slane %v565, 3
      %v2255 = vor.u32 %v2253, %v2254
      %v2256 = vsel %vm2217, %v2251, %v2255
      %v2257 = vrot.slane %v577, 2
      %v2258 = vrot.slane %v573, 3
      %v2259 = vor.u32 %v2257, %v2258
      %v2260 = vsel %vm2217, %v2255, %v2259
      %v2261 = vrot.slane %v585, 2
      %v2262 = vrot.slane %v581, 3
      %v2263 = vor.u32 %v2261, %v2262
      %v2264 = vsel %vm2217, %v2259, %v2263
      %v2265 = vrot.slane %v593, 2
      %v2266 = vrot.slane %v589, 3
      %v2267 = vor.u32 %v2265, %v2266
      %v2268 = vsel %vm2217, %v2263, %v2267
      %v2269 = vrot.slane %v601, 2
      %v2270 = vrot.slane %v597, 3
      %v2271 = vor.u32 %v2269, %v2270
      %v2272 = vsel %vm2217, %v2267, %v2271
      %v2273 = vrot.slane %v609, 2
      %v2274 = vrot.slane %v605, 3
      %v2275 = vor.u32 %v2273, %v2274
      %v2276 = vsel %vm2217, %v2271, %v2275
      %v2277 = vrot.slane %v617, 2
      %v2278 = vrot.slane %v613, 3
      %v2279 = vor.u32 %v2277, %v2278
      %v2280 = vsel %vm2217, %v2275, %v2279
      %v2281 = vrot.slane %v625, 2
      %v2282 = vrot.slane %v621, 3
      %v2283 = vor.u32 %v2281, %v2282
      %v2284 = vsel %vm2217, %v2279, %v2283
      %v2285 = vrot.slane %v633, 2
      %v2286 = vrot.slane %v629, 3
      %v2287 = vor.u32 %v2285, %v2286
      %v2288 = vsel %vm2217, %v2283, %v2287
      %v2289 = vrot.slane %v641, 2
      %v2290 = vrot.slane %v637, 3
      %v2291 = vor.u32 %v2289, %v2290
      %v2292 = vsel %vm2217, %v2287, %v2291
      %v2293 = vrot.slane %v649, 2
      %v2294 = vrot.slane %v645, 3
      %v2295 = vor.u32 %v2293, %v2294
      %v2296 = vsel %vm2217, %v2291, %v2295
      %v2297 = vrot.slane %v1573, 2
      %v2298 = vrot.slane %v653, 3
      %v2299 = vor.u32 %v2297, %v2298
      %v2300 = vsel %vm2217, %v2295, %v2299
      %v2302 = vsel %vm657, %v2224, 0
      %v2305 = vsel %vm657, %v2228, 0
      %v2308 = vsel %vm657, %v2232, 0
      %v2311 = vsel %vm657, %v2236, 0
      %v2314 = vsel %vm657, %v2240, 0
      %v2317 = vsel %vm657, %v2244, 0
      %v2320 = vsel %vm657, %v2248, 0
      %v2323 = vsel %vm657, %v2252, 0
      %v2326 = vsel %vm657, %v2256, 0
      %v2329 = vsel %vm657, %v2260, 0
      %v2332 = vsel %vm657, %v2264, 0
      %v2335 = vsel %vm657, %v2268, 0
      %v2338 = vsel %vm657, %v2272, 0
      %v2341 = vsel %vm657, %v2276, 0
      %v2344 = vsel %vm657, %v2280, 0
      %v2347 = vsel %vm657, %v2284, 0
      %v2350 = vsel %vm657, %v2288, 0
      %v2353 = vsel %vm657, %v2292, 0
      %v2356 = vsel %vm657, %v2296, 0
      %v2359 = vsel %vm657, %v2300, 0
      %v2362 = vsel %vm718, %v2216, 0
      %2364 = vmatprep.subr.bf16.mxu0 0
      %2365 = vmatpush1.bf16.msra.mxu0 %v2362
      %2366 = vmatprep.subr.bf16.mxu0 0
      %2367 = vmatpush1.bf16.msra.mxu0 0
      %2368 = vmatprep.subr.bf16.mxu0 0
      %2369 = vmatpush1.bf16.msra.mxu0 0
      %2370 = vmatprep.subr.bf16.mxu0 0
      %2371 = vmatpush1.bf16.msra.mxu0 0
      %2372 = vmatprep.subr.bf16.mxu0 0
      %2373 = vmatpush1.bf16.msra.mxu0 0
      %2374 = vmatprep.subr.bf16.mxu0 0
      %2375 = vmatpush1.bf16.msra.mxu0 0
      %2376 = vmatprep.subr.bf16.mxu0 0
      %2377 = vmatpush1.bf16.msra.mxu0 0
      %2378 = vmatprep.subr.bf16.mxu0 0
      %2379 = vmatpush1.bf16.msra.mxu0 0
      %2380 = vmatprep.subr.bf16.mxu0 0
      %2381 = vmatpush1.bf16.msra.mxu0 0
      %2382 = vmatprep.subr.bf16.mxu0 0
      %2383 = vmatpush1.bf16.msra.mxu0 0
      %2384 = vmatprep.subr.bf16.mxu0 0
      %2385 = vmatpush1.bf16.msra.mxu0 0
      %2386 = vmatprep.subr.bf16.mxu0 0
      %2387 = vmatpush1.bf16.msra.mxu0 0
      %2388 = vmatprep.subr.bf16.mxu0 0
      %2389 = vmatpush1.bf16.msra.mxu0 0
      %2390 = vmatprep.subr.bf16.mxu0 0
      %2391 = vmatpush1.bf16.msra.mxu0 0
      %2392 = vmatprep.subr.bf16.mxu0 0
      %2393 = vmatpush1.bf16.msra.mxu0 0
      %2394 = vmatprep.subr.bf16.mxu0 0
      %2395 = vmatpush1.bf16.msra.mxu0 0
      %2396 = vmatprep.mubr.bf16.mxu0 0
      %2397 = vmatmul.mubr.bf16.gmra.mrb[0].mxu0 %v2302
      %v2398 = vpop.f32.mrb[0].mxu0
      %v2399 = vadd.f32 0.0, %v2398
      %v2400 = vpop.f32.mrb[0].mxu0
      %v2401 = vpop.f32.mrb[0].mxu0
      %v2402 = vadd.f32 0.0, %v2401
      %v2403 = vpop.f32.mrb[0].mxu0
      %2404 = vmatprep.mubr.bf16.mxu0 0
      %2405 = vmatmul.mubr.bf16.gmra.mrb[0].mxu0 %v2305
      %v2406 = vpop.f32.mrb[0].mxu0
      %v2407 = vadd.f32 0.0, %v2406
      %v2408 = vpop.f32.mrb[0].mxu0
      %v2409 = vpop.f32.mrb[0].mxu0
      %v2410 = vadd.f32 0.0, %v2409
      %v2411 = vpop.f32.mrb[0].mxu0
      %2412 = vmatprep.mubr.bf16.mxu0 0
      %2413 = vmatmul.mubr.bf16.gmra.mrb[0].mxu0 %v2308
      %v2414 = vpop.f32.mrb[0].mxu0
      %v2415 = vadd.f32 0.0, %v2414
      %v2416 = vpop.f32.mrb[0].mxu0
      %v2417 = vpop.f32.mrb[0].mxu0
      %v2418 = vadd.f32 0.0, %v2417
      %v2419 = vpop.f32.mrb[0].mxu0
      %2420 = vmatprep.mubr.bf16.mxu0 0
      %2421 = vmatmul.mubr.bf16.gmra.mrb[0].mxu0 %v2311
      %v2422 = vpop.f32.mrb[0].mxu0
      %v2423 = vadd.f32 0.0, %v2422
      %v2424 = vpop.f32.mrb[0].mxu0
      %v2425 = vpop.f32.mrb[0].mxu0
      %v2426 = vadd.f32 0.0, %v2425
      %v2427 = vpop.f32.mrb[0].mxu0
      %2428 = vmatprep.mubr.bf16.mxu0 0
      %2429 = vmatmul.mubr.bf16.gmra.mrb[0].mxu0 %v2314
      %v2430 = vpop.f32.mrb[0].mxu0
      %v2431 = vadd.f32 0.0, %v2430
      %v2432 = vpop.f32.mrb[0].mxu0
      %v2433 = vpop.f32.mrb[0].mxu0
      %v2434 = vadd.f32 0.0, %v2433
      %v2435 = vpop.f32.mrb[0].mxu0
      %2436 = vmatprep.mubr.bf16.mxu0 0
      %2437 = vmatmul.mubr.bf16.gmra.mrb[0].mxu0 %v2317
      %v2438 = vpop.f32.mrb[0].mxu0
      %v2439 = vadd.f32 0.0, %v2438
      %v2440 = vpop.f32.mrb[0].mxu0
      %v2441 = vpop.f32.mrb[0].mxu0
      %v2442 = vadd.f32 0.0, %v2441
      %v2443 = vpop.f32.mrb[0].mxu0
      %2444 = vmatprep.mubr.bf16.mxu0 0
      %2445 = vmatmul.mubr.bf16.gmra.mrb[0].mxu0 %v2320
      %v2446 = vpop.f32.mrb[0].mxu0
      %v2447 = vadd.f32 0.0, %v2446
      %v2448 = vpop.f32.mrb[0].mxu0
      %v2449 = vpop.f32.mrb[0].mxu0
      %v2450 = vadd.f32 0.0, %v2449
      %v2451 = vpop.f32.mrb[0].mxu0
      %2452 = vmatprep.mubr.bf16.mxu0 0
      %2453 = vmatmul.mubr.bf16.gmra.mrb[0].mxu0 %v2323
      %v2454 = vpop.f32.mrb[0].mxu0
      %v2455 = vadd.f32 0.0, %v2454
      %v2456 = vpop.f32.mrb[0].mxu0
      %v2457 = vpop.f32.mrb[0].mxu0
      %v2458 = vadd.f32 0.0, %v2457
      %v2459 = vpop.f32.mrb[0].mxu0
      %2460 = vmatprep.mubr.bf16.mxu0 0
      %2461 = vmatmul.mubr.bf16.gmra.mrb[0].mxu0 %v2326
      %v2462 = vpop.f32.mrb[0].mxu0
      %v2463 = vadd.f32 0.0, %v2462
      %v2464 = vpop.f32.mrb[0].mxu0
      %v2465 = vpop.f32.mrb[0].mxu0
      %v2466 = vadd.f32 0.0, %v2465
      %v2467 = vpop.f32.mrb[0].mxu0
      %2468 = vmatprep.mubr.bf16.mxu0 0
      %2469 = vmatmul.mubr.bf16.gmra.mrb[0].mxu0 %v2329
      %v2470 = vpop.f32.mrb[0].mxu0
      %v2471 = vadd.f32 0.0, %v2470
      %v2472 = vpop.f32.mrb[0].mxu0
      %v2473 = vpop.f32.mrb[0].mxu0
      %v2474 = vadd.f32 0.0, %v2473
      %v2475 = vpop.f32.mrb[0].mxu0
      %2476 = vmatprep.mubr.bf16.mxu0 0
      %2477 = vmatmul.mubr.bf16.gmra.mrb[0].mxu0 %v2332
      %v2478 = vpop.f32.mrb[0].mxu0
      %v2479 = vadd.f32 0.0, %v2478
      %v2480 = vpop.f32.mrb[0].mxu0
      %v2481 = vpop.f32.mrb[0].mxu0
      %v2482 = vadd.f32 0.0, %v2481
      %v2483 = vpop.f32.mrb[0].mxu0
      %2484 = vmatprep.mubr.bf16.mxu0 0
      %2485 = vmatmul.mubr.bf16.gmra.mrb[0].mxu0 %v2335
      %v2486 = vpop.f32.mrb[0].mxu0
      %v2487 = vadd.f32 0.0, %v2486
      %v2488 = vpop.f32.mrb[0].mxu0
      %v2489 = vpop.f32.mrb[0].mxu0
      %v2490 = vadd.f32 0.0, %v2489
      %v2491 = vpop.f32.mrb[0].mxu0
      %2492 = vmatprep.mubr.bf16.mxu0 0
      %2493 = vmatmul.mubr.bf16.gmra.mrb[0].mxu0 %v2338
      %v2494 = vpop.f32.mrb[0].mxu0
      %v2495 = vadd.f32 0.0, %v2494
      %v2496 = vpop.f32.mrb[0].mxu0
      %v2497 = vpop.f32.mrb[0].mxu0
      %v2498 = vadd.f32 0.0, %v2497
      %v2499 = vpop.f32.mrb[0].mxu0
      %2500 = vmatprep.mubr.bf16.mxu0 0
      %2501 = vmatmul.mubr.bf16.gmra.mrb[0].mxu0 %v2341
      %v2502 = vpop.f32.mrb[0].mxu0
      %v2503 = vadd.f32 0.0, %v2502
      %v2504 = vpop.f32.mrb[0].mxu0
      %v2505 = vpop.f32.mrb[0].mxu0
      %v2506 = vadd.f32 0.0, %v2505
      %v2507 = vpop.f32.mrb[0].mxu0
      %2508 = vmatprep.mubr.bf16.mxu0 0
      %2509 = vmatmul.mubr.bf16.gmra.mrb[0].mxu0 %v2344
      %v2510 = vpop.f32.mrb[0].mxu0
      %v2511 = vadd.f32 0.0, %v2510
      %v2512 = vpop.f32.mrb[0].mxu0
      %v2513 = vpop.f32.mrb[0].mxu0
      %v2514 = vadd.f32 0.0, %v2513
      %v2515 = vpop.f32.mrb[0].mxu0
      %2516 = vmatprep.mubr.bf16.mxu0 0
      %2517 = vmatmul.mubr.bf16.gmra.mrb[0].mxu0 %v2347
      %v2518 = vpop.f32.mrb[0].mxu0
      %v2519 = vadd.f32 0.0, %v2518
      %v2520 = vpop.f32.mrb[0].mxu0
      %v2521 = vpop.f32.mrb[0].mxu0
      %v2522 = vadd.f32 0.0, %v2521
      %v2523 = vpop.f32.mrb[0].mxu0
      %2524 = vmatprep.mubr.bf16.mxu0 0
      %2525 = vmatmul.mubr.bf16.gmra.mrb[0].mxu0 %v2350
      %v2526 = vpop.f32.mrb[0].mxu0
      %v2527 = vadd.f32 0.0, %v2526
      %v2528 = vpop.f32.mrb[0].mxu0
      %v2529 = vpop.f32.mrb[0].mxu0
      %v2530 = vadd.f32 0.0, %v2529
      %v2531 = vpop.f32.mrb[0].mxu0
      %2532 = vmatprep.mubr.bf16.mxu0 0
      %2533 = vmatmul.mubr.bf16.gmra.mrb[0].mxu0 %v2353
      %v2534 = vpop.f32.mrb[0].mxu0
      %v2535 = vadd.f32 0.0, %v2534
      %v2536 = vpop.f32.mrb[0].mxu0
      %v2537 = vpop.f32.mrb[0].mxu0
      %v2538 = vadd.f32 0.0, %v2537
      %v2539 = vpop.f32.mrb[0].mxu0
      %2540 = vmatprep.mubr.bf16.mxu0 0
      %2541 = vmatmul.mubr.bf16.gmra.mrb[0].mxu0 %v2356
      %v2542 = vpop.f32.mrb[0].mxu0
      %v2543 = vadd.f32 0.0, %v2542
      %v2544 = vpop.f32.mrb[0].mxu0
      %v2545 = vpop.f32.mrb[0].mxu0
      %v2546 = vadd.f32 0.0, %v2545
      %v2547 = vpop.f32.mrb[0].mxu0
      %2548 = vmatprep.mubr.bf16.mxu0 0
      %2549 = vmatmul.mubr.bf16.gmra.mrb[0].mxu0 %v2359
      %v2550 = vpop.f32.mrb[0].mxu0
      %v2551 = vadd.f32 0.0, %v2550
      %v2552 = vpop.f32.mrb[0].mxu0
      %v2553 = vpop.f32.mrb[0].mxu0
      %v2554 = vadd.f32 0.0, %v2553
      %v2555 = vpop.f32.mrb[0].mxu0
      %2556 = vdwg.mxu0
      %v2557 = vadd.f32 %v2175, %v2399
      %v2558 = vadd.f32 %v2176, %v2402
      %v2559 = vadd.f32 %v2177, %v2407
      %v2560 = vadd.f32 %v2178, %v2410
      %v2561 = vadd.f32 %v2179, %v2415
      %v2562 = vadd.f32 %v2180, %v2418
      %v2563 = vadd.f32 %v2181, %v2423
      %v2564 = vadd.f32 %v2182, %v2426
      %v2565 = vadd.f32 %v2183, %v2431
      %v2566 = vadd.f32 %v2184, %v2434
      %v2567 = vadd.f32 %v2185, %v2439
      %v2568 = vadd.f32 %v2186, %v2442
      %v2569 = vadd.f32 %v2187, %v2447
      %v2570 = vadd.f32 %v2188, %v2450
      %v2571 = vadd.f32 %v2189, %v2455
      %v2572 = vadd.f32 %v2190, %v2458
      %v2573 = vadd.f32 %v2191, %v2463
      %v2574 = vadd.f32 %v2192, %v2466
      %v2575 = vadd.f32 %v2193, %v2471
      %v2576 = vadd.f32 %v2194, %v2474
      %v2577 = vadd.f32 %v2195, %v2479
      %v2578 = vadd.f32 %v2196, %v2482
      %v2579 = vadd.f32 %v2197, %v2487
      %v2580 = vadd.f32 %v2198, %v2490
      %v2581 = vadd.f32 %v2199, %v2495
      %v2582 = vadd.f32 %v2200, %v2498
      %v2583 = vadd.f32 %v2201, %v2503
      %v2584 = vadd.f32 %v2202, %v2506
      %v2585 = vadd.f32 %v2203, %v2511
      %v2586 = vadd.f32 %v2204, %v2514
      %v2587 = vadd.f32 %v2205, %v2519
      %v2588 = vadd.f32 %v2206, %v2522
      %v2589 = vadd.f32 %v2207, %v2527
      %v2590 = vadd.f32 %v2208, %v2530
      %v2591 = vadd.f32 %v2209, %v2535
      %v2592 = vadd.f32 %v2210, %v2538
      %v2593 = vadd.f32 %v2211, %v2543
      %v2594 = vadd.f32 %v2212, %v2546
      %v2595 = vadd.f32 %v2213, %v2551
      %v2596 = vadd.f32 %v2214, %v2554
      %s2597 = scalar_lea.vmem %s2, 12
      %v2598 = vld [vmem:[%s2597] sm:$0x3]
      %vm2599 = vcmask 1044480
      %v2600 = vrot.slane %v459, 3
      %v2601 = vrot.slane %v460, 3
      %v2602 = vsel %vm2599, %v2600, %v2601
      %v2603 = vrot.slane %v461, 3
      %v2604 = vsel %vm2599, %v2601, %v2603
      %v2605 = vrot.slane %v462, 3
      %v2606 = vsel %vm2599, %v2603, %v2605
      %v2607 = vrot.slane %v463, 3
      %v2608 = vsel %vm2599, %v2605, %v2607
      %v2609 = vrot.slane %v464, 3
      %v2610 = vsel %vm2599, %v2607, %v2609
      %v2611 = vrot.slane %v465, 3
      %v2612 = vsel %vm2599, %v2609, %v2611
      %v2613 = vrot.slane %v466, 3
      %v2614 = vsel %vm2599, %v2611, %v2613
      %v2615 = vrot.slane %v467, 3
      %v2616 = vsel %vm2599, %v2613, %v2615
      %v2617 = vrot.slane %v468, 3
      %v2618 = vsel %vm2599, %v2615, %v2617
      %v2619 = vrot.slane %v469, 3
      %v2620 = vsel %vm2599, %v2617, %v2619
      %v2621 = vrot.slane %v470, 3
      %v2622 = vsel %vm2599, %v2619, %v2621
      %v2623 = vrot.slane %v471, 3
      %v2624 = vsel %vm2599, %v2621, %v2623
      %v2625 = vrot.slane %v472, 3
      %v2626 = vsel %vm2599, %v2623, %v2625
      %v2627 = vrot.slane %v473, 3
      %v2628 = vsel %vm2599, %v2625, %v2627
      %v2629 = vrot.slane %v474, 3
      %v2630 = vsel %vm2599, %v2627, %v2629
      %v2631 = vrot.slane %v475, 3
      %v2632 = vsel %vm2599, %v2629, %v2631
      %v2633 = vrot.slane %v476, 3
      %v2634 = vsel %vm2599, %v2631, %v2633
      %v2635 = vrot.slane %v477, 3
      %v2636 = vsel %vm2599, %v2633, %v2635
      %v2637 = vrot.slane %v478, 3
      %v2638 = vsel %vm2599, %v2635, %v2637
      %v2639 = vrot.slane %v487, 3
      %v2640 = vsel %vm2599, %v2637, %v2639
      %v2642 = vsel %vm657, %v2602, 0
      %v2645 = vsel %vm657, %v2604, 0
      %v2648 = vsel %vm657, %v2606, 0
      %v2651 = vsel %vm657, %v2608, 0
      %v2654 = vsel %vm657, %v2610, 0
      %v2657 = vsel %vm657, %v2612, 0
      %v2660 = vsel %vm657, %v2614, 0
      %v2663 = vsel %vm657, %v2616, 0
      %v2666 = vsel %vm657, %v2618, 0
      %v2669 = vsel %vm657, %v2620, 0
      %v2672 = vsel %vm657, %v2622, 0
      %v2675 = vsel %vm657, %v2624, 0
      %v2678 = vsel %vm657, %v2626, 0
      %v2681 = vsel %vm657, %v2628, 0
      %v2684 = vsel %vm657, %v2630, 0
      %v2687 = vsel %vm657, %v2632, 0
      %v2690 = vsel %vm657, %v2634, 0
      %v2693 = vsel %vm657, %v2636, 0
      %v2696 = vsel %vm657, %v2638, 0
      %v2699 = vsel %vm657, %v2640, 0
      %v2702 = vsel %vm718, %v2598, 0
      %2704 = vmatprep.subr.bf16.mxu0 0
      %2705 = vmatpush1.bf16.msra.mxu0 %v2702
      %2706 = vmatprep.subr.bf16.mxu0 0
      %2707 = vmatpush1.bf16.msra.mxu0 0
      %2708 = vmatprep.subr.bf16.mxu0 0
      %2709 = vmatpush1.bf16.msra.mxu0 0
      %2710 = vmatprep.subr.bf16.mxu0 0
      %2711 = vmatpush1.bf16.msra.mxu0 0
      %2712 = vmatprep.subr.bf16.mxu0 0
      %2713 = vmatpush1.bf16.msra.mxu0 0
      %2714 = vmatprep.subr.bf16.mxu0 0
      %2715 = vmatpush1.bf16.msra.mxu0 0
      %2716 = vmatprep.subr.bf16.mxu0 0
      %2717 = vmatpush1.bf16.msra.mxu0 0
      %2718 = vmatprep.subr.bf16.mxu0 0
      %2719 = vmatpush1.bf16.msra.mxu0 0
      %2720 = vmatprep.subr.bf16.mxu0 0
      %2721 = vmatpush1.bf16.msra.mxu0 0
      %2722 = vmatprep.subr.bf16.mxu0 0
      %2723 = vmatpush1.bf16.msra.mxu0 0
      %2724 = vmatprep.subr.bf16.mxu0 0
      %2725 = vmatpush1.bf16.msra.mxu0 0
      %2726 = vmatprep.subr.bf16.mxu0 0
      %2727 = vmatpush1.bf16.msra.mxu0 0
      %2728 = vmatprep.subr.bf16.mxu0 0
      %2729 = vmatpush1.bf16.msra.mxu0 0
      %2730 = vmatprep.subr.bf16.mxu0 0
      %2731 = vmatpush1.bf16.msra.mxu0 0
      %2732 = vmatprep.subr.bf16.mxu0 0
      %2733 = vmatpush1.bf16.msra.mxu0 0
      %2734 = vmatprep.subr.bf16.mxu0 0
      %2735 = vmatpush1.bf16.msra.mxu0 0
      %2736 = vmatprep.mubr.bf16.mxu0 0
      %2737 = vmatmul.mubr.bf16.gmra.mrb[0].mxu0 %v2642
      %v2738 = vpop.f32.mrb[0].mxu0
      %v2739 = vadd.f32 0.0, %v2738
      %v2740 = vpop.f32.mrb[0].mxu0
      %v2741 = vpop.f32.mrb[0].mxu0
      %v2742 = vadd.f32 0.0, %v2741
      %v2743 = vpop.f32.mrb[0].mxu0
      %2744 = vmatprep.mubr.bf16.mxu0 0
      %2745 = vmatmul.mubr.bf16.gmra.mrb[0].mxu0 %v2645
      %v2746 = vpop.f32.mrb[0].mxu0
      %v2747 = vadd.f32 0.0, %v2746
      %v2748 = vpop.f32.mrb[0].mxu0
      %v2749 = vpop.f32.mrb[0].mxu0
      %v2750 = vadd.f32 0.0, %v2749
      %v2751 = vpop.f32.mrb[0].mxu0
      %2752 = vmatprep.mubr.bf16.mxu0 0
      %2753 = vmatmul.mubr.bf16.gmra.mrb[0].mxu0 %v2648
      %v2754 = vpop.f32.mrb[0].mxu0
      %v2755 = vadd.f32 0.0, %v2754
      %v2756 = vpop.f32.mrb[0].mxu0
      %v2757 = vpop.f32.mrb[0].mxu0
      %v2758 = vadd.f32 0.0, %v2757
      %v2759 = vpop.f32.mrb[0].mxu0
      %2760 = vmatprep.mubr.bf16.mxu0 0
      %2761 = vmatmul.mubr.bf16.gmra.mrb[0].mxu0 %v2651
      %v2762 = vpop.f32.mrb[0].mxu0
      %v2763 = vadd.f32 0.0, %v2762
      %v2764 = vpop.f32.mrb[0].mxu0
      %v2765 = vpop.f32.mrb[0].mxu0
      %v2766 = vadd.f32 0.0, %v2765
      %v2767 = vpop.f32.mrb[0].mxu0
      %2768 = vmatprep.mubr.bf16.mxu0 0
      %2769 = vmatmul.mubr.bf16.gmra.mrb[0].mxu0 %v2654
      %v2770 = vpop.f32.mrb[0].mxu0
      %v2771 = vadd.f32 0.0, %v2770
      %v2772 = vpop.f32.mrb[0].mxu0
      %v2773 = vpop.f32.mrb[0].mxu0
      %v2774 = vadd.f32 0.0, %v2773
      %v2775 = vpop.f32.mrb[0].mxu0
      %2776 = vmatprep.mubr.bf16.mxu0 0
      %2777 = vmatmul.mubr.bf16.gmra.mrb[0].mxu0 %v2657
      %v2778 = vpop.f32.mrb[0].mxu0
      %v2779 = vadd.f32 0.0, %v2778
      %v2780 = vpop.f32.mrb[0].mxu0
      %v2781 = vpop.f32.mrb[0].mxu0
      %v2782 = vadd.f32 0.0, %v2781
      %v2783 = vpop.f32.mrb[0].mxu0
      %2784 = vmatprep.mubr.bf16.mxu0 0
      %2785 = vmatmul.mubr.bf16.gmra.mrb[0].mxu0 %v2660
      %v2786 = vpop.f32.mrb[0].mxu0
      %v2787 = vadd.f32 0.0, %v2786
      %v2788 = vpop.f32.mrb[0].mxu0
      %v2789 = vpop.f32.mrb[0].mxu0
      %v2790 = vadd.f32 0.0, %v2789
      %v2791 = vpop.f32.mrb[0].mxu0
      %2792 = vmatprep.mubr.bf16.mxu0 0
      %2793 = vmatmul.mubr.bf16.gmra.mrb[0].mxu0 %v2663
      %v2794 = vpop.f32.mrb[0].mxu0
      %v2795 = vadd.f32 0.0, %v2794
      %v2796 = vpop.f32.mrb[0].mxu0
      %v2797 = vpop.f32.mrb[0].mxu0
      %v2798 = vadd.f32 0.0, %v2797
      %v2799 = vpop.f32.mrb[0].mxu0
      %2800 = vmatprep.mubr.bf16.mxu0 0
      %2801 = vmatmul.mubr.bf16.gmra.mrb[0].mxu0 %v2666
      %v2802 = vpop.f32.mrb[0].mxu0
      %v2803 = vadd.f32 0.0, %v2802
      %v2804 = vpop.f32.mrb[0].mxu0
      %v2805 = vpop.f32.mrb[0].mxu0
      %v2806 = vadd.f32 0.0, %v2805
      %v2807 = vpop.f32.mrb[0].mxu0
      %2808 = vmatprep.mubr.bf16.mxu0 0
      %2809 = vmatmul.mubr.bf16.gmra.mrb[0].mxu0 %v2669
      %v2810 = vpop.f32.mrb[0].mxu0
      %v2811 = vadd.f32 0.0, %v2810
      %v2812 = vpop.f32.mrb[0].mxu0
      %v2813 = vpop.f32.mrb[0].mxu0
      %v2814 = vadd.f32 0.0, %v2813
      %v2815 = vpop.f32.mrb[0].mxu0
      %2816 = vmatprep.mubr.bf16.mxu0 0
      %2817 = vmatmul.mubr.bf16.gmra.mrb[0].mxu0 %v2672
      %v2818 = vpop.f32.mrb[0].mxu0
      %v2819 = vadd.f32 0.0, %v2818
      %v2820 = vpop.f32.mrb[0].mxu0
      %v2821 = vpop.f32.mrb[0].mxu0
      %v2822 = vadd.f32 0.0, %v2821
      %v2823 = vpop.f32.mrb[0].mxu0
      %2824 = vmatprep.mubr.bf16.mxu0 0
      %2825 = vmatmul.mubr.bf16.gmra.mrb[0].mxu0 %v2675
      %v2826 = vpop.f32.mrb[0].mxu0
      %v2827 = vadd.f32 0.0, %v2826
      %v2828 = vpop.f32.mrb[0].mxu0
      %v2829 = vpop.f32.mrb[0].mxu0
      %v2830 = vadd.f32 0.0, %v2829
      %v2831 = vpop.f32.mrb[0].mxu0
      %2832 = vmatprep.mubr.bf16.mxu0 0
      %2833 = vmatmul.mubr.bf16.gmra.mrb[0].mxu0 %v2678
      %v2834 = vpop.f32.mrb[0].mxu0
      %v2835 = vadd.f32 0.0, %v2834
      %v2836 = vpop.f32.mrb[0].mxu0
      %v2837 = vpop.f32.mrb[0].mxu0
      %v2838 = vadd.f32 0.0, %v2837
      %v2839 = vpop.f32.mrb[0].mxu0
      %2840 = vmatprep.mubr.bf16.mxu0 0
      %2841 = vmatmul.mubr.bf16.gmra.mrb[0].mxu0 %v2681
      %v2842 = vpop.f32.mrb[0].mxu0
      %v2843 = vadd.f32 0.0, %v2842
      %v2844 = vpop.f32.mrb[0].mxu0
      %v2845 = vpop.f32.mrb[0].mxu0
      %v2846 = vadd.f32 0.0, %v2845
      %v2847 = vpop.f32.mrb[0].mxu0
      %2848 = vmatprep.mubr.bf16.mxu0 0
      %2849 = vmatmul.mubr.bf16.gmra.mrb[0].mxu0 %v2684
      %v2850 = vpop.f32.mrb[0].mxu0
      %v2851 = vadd.f32 0.0, %v2850
      %v2852 = vpop.f32.mrb[0].mxu0
      %v2853 = vpop.f32.mrb[0].mxu0
      %v2854 = vadd.f32 0.0, %v2853
      %v2855 = vpop.f32.mrb[0].mxu0
      %2856 = vmatprep.mubr.bf16.mxu0 0
      %2857 = vmatmul.mubr.bf16.gmra.mrb[0].mxu0 %v2687
      %v2858 = vpop.f32.mrb[0].mxu0
      %v2859 = vadd.f32 0.0, %v2858
      %v2860 = vpop.f32.mrb[0].mxu0
      %v2861 = vpop.f32.mrb[0].mxu0
      %v2862 = vadd.f32 0.0, %v2861
      %v2863 = vpop.f32.mrb[0].mxu0
      %2864 = vmatprep.mubr.bf16.mxu0 0
      %2865 = vmatmul.mubr.bf16.gmra.mrb[0].mxu0 %v2690
      %v2866 = vpop.f32.mrb[0].mxu0
      %v2867 = vadd.f32 0.0, %v2866
      %v2868 = vpop.f32.mrb[0].mxu0
      %v2869 = vpop.f32.mrb[0].mxu0
      %v2870 = vadd.f32 0.0, %v2869
      %v2871 = vpop.f32.mrb[0].mxu0
      %2872 = vmatprep.mubr.bf16.mxu0 0
      %2873 = vmatmul.mubr.bf16.gmra.mrb[0].mxu0 %v2693
      %v2874 = vpop.f32.mrb[0].mxu0
      %v2875 = vadd.f32 0.0, %v2874
      %v2876 = vpop.f32.mrb[0].mxu0
      %v2877 = vpop.f32.mrb[0].mxu0
      %v2878 = vadd.f32 0.0, %v2877
      %v2879 = vpop.f32.mrb[0].mxu0
      %2880 = vmatprep.mubr.bf16.mxu0 0
      %2881 = vmatmul.mubr.bf16.gmra.mrb[0].mxu0 %v2696
      %v2882 = vpop.f32.mrb[0].mxu0
      %v2883 = vadd.f32 0.0, %v2882
      %v2884 = vpop.f32.mrb[0].mxu0
      %v2885 = vpop.f32.mrb[0].mxu0
      %v2886 = vadd.f32 0.0, %v2885
      %v2887 = vpop.f32.mrb[0].mxu0
      %2888 = vmatprep.mubr.bf16.mxu0 0
      %2889 = vmatmul.mubr.bf16.gmra.mrb[0].mxu0 %v2699
      %v2890 = vpop.f32.mrb[0].mxu0
      %v2891 = vadd.f32 0.0, %v2890
      %v2892 = vpop.f32.mrb[0].mxu0
      %v2893 = vpop.f32.mrb[0].mxu0
      %v2894 = vadd.f32 0.0, %v2893
      %v2895 = vpop.f32.mrb[0].mxu0
      %2896 = vdwg.mxu0
      %v2897 = vadd.f32 %v2557, %v2739
      %v2898 = vadd.f32 %v2558, %v2742
      %v2899 = vadd.f32 %v2559, %v2747
      %v2900 = vadd.f32 %v2560, %v2750
      %v2901 = vadd.f32 %v2561, %v2755
      %v2902 = vadd.f32 %v2562, %v2758
      %v2903 = vadd.f32 %v2563, %v2763
      %v2904 = vadd.f32 %v2564, %v2766
      %v2905 = vadd.f32 %v2565, %v2771
      %v2906 = vadd.f32 %v2566, %v2774
      %v2907 = vadd.f32 %v2567, %v2779
      %v2908 = vadd.f32 %v2568, %v2782
      %v2909 = vadd.f32 %v2569, %v2787
      %v2910 = vadd.f32 %v2570, %v2790
      %v2911 = vadd.f32 %v2571, %v2795
      %v2912 = vadd.f32 %v2572, %v2798
      %v2913 = vadd.f32 %v2573, %v2803
      %v2914 = vadd.f32 %v2574, %v2806
      %v2915 = vadd.f32 %v2575, %v2811
      %v2916 = vadd.f32 %v2576, %v2814
      %v2917 = vadd.f32 %v2577, %v2819
      %v2918 = vadd.f32 %v2578, %v2822
      %v2919 = vadd.f32 %v2579, %v2827
      %v2920 = vadd.f32 %v2580, %v2830
      %v2921 = vadd.f32 %v2581, %v2835
      %v2922 = vadd.f32 %v2582, %v2838
      %v2923 = vadd.f32 %v2583, %v2843
      %v2924 = vadd.f32 %v2584, %v2846
      %v2925 = vadd.f32 %v2585, %v2851
      %v2926 = vadd.f32 %v2586, %v2854
      %v2927 = vadd.f32 %v2587, %v2859
      %v2928 = vadd.f32 %v2588, %v2862
      %v2929 = vadd.f32 %v2589, %v2867
      %v2930 = vadd.f32 %v2590, %v2870
      %v2931 = vadd.f32 %v2591, %v2875
      %v2932 = vadd.f32 %v2592, %v2878
      %v2933 = vadd.f32 %v2593, %v2883
      %v2934 = vadd.f32 %v2594, %v2886
      %v2935 = vadd.f32 %v2595, %v2891
      %v2936 = vadd.f32 %v2596, %v2894
      %s2937 = scalar_lea.vmem %s2, 14
      %v2938 = vld [vmem:[%s2937] sm:$0x3]
      %vm2939 = vsmask.f32 4352
      %v2940 = vrot.slane %v494, 3
      %v2941 = vrot.slane %v496, 4
      %v2942 = vor.u32 %v2940, %v2941
      %v2943 = vrot.slane %v505, 3
      %v2944 = vrot.slane %v501, 4
      %v2945 = vor.u32 %v2943, %v2944
      %v2946 = vsel %vm2939, %v2942, %v2945
      %v2947 = vrot.slane %v513, 3
      %v2948 = vrot.slane %v509, 4
      %v2949 = vor.u32 %v2947, %v2948
      %v2950 = vsel %vm2939, %v2945, %v2949
      %v2951 = vrot.slane %v521, 3
      %v2952 = vrot.slane %v517, 4
      %v2953 = vor.u32 %v2951, %v2952
      %v2954 = vsel %vm2939, %v2949, %v2953
      %v2955 = vrot.slane %v529, 3
      %v2956 = vrot.slane %v525, 4
      %v2957 = vor.u32 %v2955, %v2956
      %v2958 = vsel %vm2939, %v2953, %v2957
      %v2959 = vrot.slane %v537, 3
      %v2960 = vrot.slane %v533, 4
      %v2961 = vor.u32 %v2959, %v2960
      %v2962 = vsel %vm2939, %v2957, %v2961
      %v2963 = vrot.slane %v545, 3
      %v2964 = vrot.slane %v541, 4
      %v2965 = vor.u32 %v2963, %v2964
      %v2966 = vsel %vm2939, %v2961, %v2965
      %v2967 = vrot.slane %v553, 3
      %v2968 = vrot.slane %v549, 4
      %v2969 = vor.u32 %v2967, %v2968
      %v2970 = vsel %vm2939, %v2965, %v2969
      %v2971 = vrot.slane %v561, 3
      %v2972 = vrot.slane %v557, 4
      %v2973 = vor.u32 %v2971, %v2972
      %v2974 = vsel %vm2939, %v2969, %v2973
      %v2975 = vrot.slane %v569, 3
      %v2976 = vrot.slane %v565, 4
      %v2977 = vor.u32 %v2975, %v2976
      %v2978 = vsel %vm2939, %v2973, %v2977
      %v2979 = vrot.slane %v577, 3
      %v2980 = vrot.slane %v573, 4
      %v2981 = vor.u32 %v2979, %v2980
      %v2982 = vsel %vm2939, %v2977, %v2981
      %v2983 = vrot.slane %v585, 3
      %v2984 = vrot.slane %v581, 4
      %v2985 = vor.u32 %v2983, %v2984
      %v2986 = vsel %vm2939, %v2981, %v2985
      %v2987 = vrot.slane %v593, 3
      %v2988 = vrot.slane %v589, 4
      %v2989 = vor.u32 %v2987, %v2988
      %v2990 = vsel %vm2939, %v2985, %v2989
      %v2991 = vrot.slane %v601, 3
      %v2992 = vrot.slane %v597, 4
      %v2993 = vor.u32 %v2991, %v2992
      %v2994 = vsel %vm2939, %v2989, %v2993
      %v2995 = vrot.slane %v609, 3
      %v2996 = vrot.slane %v605, 4
      %v2997 = vor.u32 %v2995, %v2996
      %v2998 = vsel %vm2939, %v2993, %v2997
      %v2999 = vrot.slane %v617, 3
      %v3000 = vrot.slane %v613, 4
      %v3001 = vor.u32 %v2999, %v3000
      %v3002 = vsel %vm2939, %v2997, %v3001
      %v3003 = vrot.slane %v625, 3
      %v3004 = vrot.slane %v621, 4
      %v3005 = vor.u32 %v3003, %v3004
      %v3006 = vsel %vm2939, %v3001, %v3005
      %v3007 = vrot.slane %v633, 3
      %v3008 = vrot.slane %v629, 4
      %v3009 = vor.u32 %v3007, %v3008
      %v3010 = vsel %vm2939, %v3005, %v3009
      %v3011 = vrot.slane %v641, 3
      %v3012 = vrot.slane %v637, 4
      %v3013 = vor.u32 %v3011, %v3012
      %v3014 = vsel %vm2939, %v3009, %v3013
      %v3015 = vrot.slane %v649, 3
      %v3016 = vrot.slane %v645, 4
      %v3017 = vor.u32 %v3015, %v3016
      %v3018 = vsel %vm2939, %v3013, %v3017
      %v3019 = vrot.slane %v1573, 3
      %v3020 = vrot.slane %v653, 4
      %v3021 = vor.u32 %v3019, %v3020
      %v3022 = vsel %vm2939, %v3017, %v3021
      %v3024 = vsel %vm657, %v2946, 0
      %v3027 = vsel %vm657, %v2950, 0
      %v3030 = vsel %vm657, %v2954, 0
      %v3033 = vsel %vm657, %v2958, 0
      %v3036 = vsel %vm657, %v2962, 0
      %v3039 = vsel %vm657, %v2966, 0
      %v3042 = vsel %vm657, %v2970, 0
      %v3045 = vsel %vm657, %v2974, 0
      %v3048 = vsel %vm657, %v2978, 0
      %v3051 = vsel %vm657, %v2982, 0
      %v3054 = vsel %vm657, %v2986, 0
      %v3057 = vsel %vm657, %v2990, 0
      %v3060 = vsel %vm657, %v2994, 0
      %v3063 = vsel %vm657, %v2998, 0
      %v3066 = vsel %vm657, %v3002, 0
      %v3069 = vsel %vm657, %v3006, 0
      %v3072 = vsel %vm657, %v3010, 0
      %v3075 = vsel %vm657, %v3014, 0
      %v3078 = vsel %vm657, %v3018, 0
      %v3081 = vsel %vm657, %v3022, 0
      %v3084 = vsel %vm718, %v2938, 0
      %3086 = vmatprep.subr.bf16.mxu0 0
      %3087 = vmatpush1.bf16.msra.mxu0 %v3084
      %3088 = vmatprep.subr.bf16.mxu0 0
      %3089 = vmatpush1.bf16.msra.mxu0 0
      %3090 = vmatprep.subr.bf16.mxu0 0
      %3091 = vmatpush1.bf16.msra.mxu0 0
      %3092 = vmatprep.subr.bf16.mxu0 0
      %3093 = vmatpush1.bf16.msra.mxu0 0
      %3094 = vmatprep.subr.bf16.mxu0 0
      %3095 = vmatpush1.bf16.msra.mxu0 0
      %3096 = vmatprep.subr.bf16.mxu0 0
      %3097 = vmatpush1.bf16.msra.mxu0 0
      %3098 = vmatprep.subr.bf16.mxu0 0
      %3099 = vmatpush1.bf16.msra.mxu0 0
      %3100 = vmatprep.subr.bf16.mxu0 0
      %3101 = vmatpush1.bf16.msra.mxu0 0
      %3102 = vmatprep.subr.bf16.mxu0 0
      %3103 = vmatpush1.bf16.msra.mxu0 0
      %3104 = vmatprep.subr.bf16.mxu0 0
      %3105 = vmatpush1.bf16.msra.mxu0 0
      %3106 = vmatprep.subr.bf16.mxu0 0
      %3107 = vmatpush1.bf16.msra.mxu0 0
      %3108 = vmatprep.subr.bf16.mxu0 0
      %3109 = vmatpush1.bf16.msra.mxu0 0
      %3110 = vmatprep.subr.bf16.mxu0 0
      %3111 = vmatpush1.bf16.msra.mxu0 0
      %3112 = vmatprep.subr.bf16.mxu0 0
      %3113 = vmatpush1.bf16.msra.mxu0 0
      %3114 = vmatprep.subr.bf16.mxu0 0
      %3115 = vmatpush1.bf16.msra.mxu0 0
      %3116 = vmatprep.subr.bf16.mxu0 0
      %3117 = vmatpush1.bf16.msra.mxu0 0
      %3118 = vmatprep.mubr.bf16.mxu0 0
      %3119 = vmatmul.mubr.bf16.gmra.mrb[0].mxu0 %v3024
      %v3120 = vpop.f32.mrb[0].mxu0
      %v3121 = vadd.f32 0.0, %v3120
      %v3122 = vpop.f32.mrb[0].mxu0
      %v3123 = vpop.f32.mrb[0].mxu0
      %v3124 = vadd.f32 0.0, %v3123
      %v3125 = vpop.f32.mrb[0].mxu0
      %3126 = vmatprep.mubr.bf16.mxu0 0
      %3127 = vmatmul.mubr.bf16.gmra.mrb[0].mxu0 %v3027
      %v3128 = vpop.f32.mrb[0].mxu0
      %v3129 = vadd.f32 0.0, %v3128
      %v3130 = vpop.f32.mrb[0].mxu0
      %v3131 = vpop.f32.mrb[0].mxu0
      %v3132 = vadd.f32 0.0, %v3131
      %v3133 = vpop.f32.mrb[0].mxu0
      %3134 = vmatprep.mubr.bf16.mxu0 0
      %3135 = vmatmul.mubr.bf16.gmra.mrb[0].mxu0 %v3030
      %v3136 = vpop.f32.mrb[0].mxu0
      %v3137 = vadd.f32 0.0, %v3136
      %v3138 = vpop.f32.mrb[0].mxu0
      %v3139 = vpop.f32.mrb[0].mxu0
      %v3140 = vadd.f32 0.0, %v3139
      %v3141 = vpop.f32.mrb[0].mxu0
      %3142 = vmatprep.mubr.bf16.mxu0 0
      %3143 = vmatmul.mubr.bf16.gmra.mrb[0].mxu0 %v3033
      %v3144 = vpop.f32.mrb[0].mxu0
      %v3145 = vadd.f32 0.0, %v3144
      %v3146 = vpop.f32.mrb[0].mxu0
      %v3147 = vpop.f32.mrb[0].mxu0
      %v3148 = vadd.f32 0.0, %v3147
      %v3149 = vpop.f32.mrb[0].mxu0
      %3150 = vmatprep.mubr.bf16.mxu0 0
      %3151 = vmatmul.mubr.bf16.gmra.mrb[0].mxu0 %v3036
      %v3152 = vpop.f32.mrb[0].mxu0
      %v3153 = vadd.f32 0.0, %v3152
      %v3154 = vpop.f32.mrb[0].mxu0
      %v3155 = vpop.f32.mrb[0].mxu0
      %v3156 = vadd.f32 0.0, %v3155
      %v3157 = vpop.f32.mrb[0].mxu0
      %3158 = vmatprep.mubr.bf16.mxu0 0
      %3159 = vmatmul.mubr.bf16.gmra.mrb[0].mxu0 %v3039
      %v3160 = vpop.f32.mrb[0].mxu0
      %v3161 = vadd.f32 0.0, %v3160
      %v3162 = vpop.f32.mrb[0].mxu0
      %v3163 = vpop.f32.mrb[0].mxu0
      %v3164 = vadd.f32 0.0, %v3163
      %v3165 = vpop.f32.mrb[0].mxu0
      %3166 = vmatprep.mubr.bf16.mxu0 0
      %3167 = vmatmul.mubr.bf16.gmra.mrb[0].mxu0 %v3042
      %v3168 = vpop.f32.mrb[0].mxu0
      %v3169 = vadd.f32 0.0, %v3168
      %v3170 = vpop.f32.mrb[0].mxu0
      %v3171 = vpop.f32.mrb[0].mxu0
      %v3172 = vadd.f32 0.0, %v3171
      %v3173 = vpop.f32.mrb[0].mxu0
      %3174 = vmatprep.mubr.bf16.mxu0 0
      %3175 = vmatmul.mubr.bf16.gmra.mrb[0].mxu0 %v3045
      %v3176 = vpop.f32.mrb[0].mxu0
      %v3177 = vadd.f32 0.0, %v3176
      %v3178 = vpop.f32.mrb[0].mxu0
      %v3179 = vpop.f32.mrb[0].mxu0
      %v3180 = vadd.f32 0.0, %v3179
      %v3181 = vpop.f32.mrb[0].mxu0
      %3182 = vmatprep.mubr.bf16.mxu0 0
      %3183 = vmatmul.mubr.bf16.gmra.mrb[0].mxu0 %v3048
      %v3184 = vpop.f32.mrb[0].mxu0
      %v3185 = vadd.f32 0.0, %v3184
      %v3186 = vpop.f32.mrb[0].mxu0
      %v3187 = vpop.f32.mrb[0].mxu0
      %v3188 = vadd.f32 0.0, %v3187
      %v3189 = vpop.f32.mrb[0].mxu0
      %3190 = vmatprep.mubr.bf16.mxu0 0
      %3191 = vmatmul.mubr.bf16.gmra.mrb[0].mxu0 %v3051
      %v3192 = vpop.f32.mrb[0].mxu0
      %v3193 = vadd.f32 0.0, %v3192
      %v3194 = vpop.f32.mrb[0].mxu0
      %v3195 = vpop.f32.mrb[0].mxu0
      %v3196 = vadd.f32 0.0, %v3195
      %v3197 = vpop.f32.mrb[0].mxu0
      %3198 = vmatprep.mubr.bf16.mxu0 0
      %3199 = vmatmul.mubr.bf16.gmra.mrb[0].mxu0 %v3054
      %v3200 = vpop.f32.mrb[0].mxu0
      %v3201 = vadd.f32 0.0, %v3200
      %v3202 = vpop.f32.mrb[0].mxu0
      %v3203 = vpop.f32.mrb[0].mxu0
      %v3204 = vadd.f32 0.0, %v3203
      %v3205 = vpop.f32.mrb[0].mxu0
      %3206 = vmatprep.mubr.bf16.mxu0 0
      %3207 = vmatmul.mubr.bf16.gmra.mrb[0].mxu0 %v3057
      %v3208 = vpop.f32.mrb[0].mxu0
      %v3209 = vadd.f32 0.0, %v3208
      %v3210 = vpop.f32.mrb[0].mxu0
      %v3211 = vpop.f32.mrb[0].mxu0
      %v3212 = vadd.f32 0.0, %v3211
      %v3213 = vpop.f32.mrb[0].mxu0
      %3214 = vmatprep.mubr.bf16.mxu0 0
      %3215 = vmatmul.mubr.bf16.gmra.mrb[0].mxu0 %v3060
      %v3216 = vpop.f32.mrb[0].mxu0
      %v3217 = vadd.f32 0.0, %v3216
      %v3218 = vpop.f32.mrb[0].mxu0
      %v3219 = vpop.f32.mrb[0].mxu0
      %v3220 = vadd.f32 0.0, %v3219
      %v3221 = vpop.f32.mrb[0].mxu0
      %3222 = vmatprep.mubr.bf16.mxu0 0
      %3223 = vmatmul.mubr.bf16.gmra.mrb[0].mxu0 %v3063
      %v3224 = vpop.f32.mrb[0].mxu0
      %v3225 = vadd.f32 0.0, %v3224
      %v3226 = vpop.f32.mrb[0].mxu0
      %v3227 = vpop.f32.mrb[0].mxu0
      %v3228 = vadd.f32 0.0, %v3227
      %v3229 = vpop.f32.mrb[0].mxu0
      %3230 = vmatprep.mubr.bf16.mxu0 0
      %3231 = vmatmul.mubr.bf16.gmra.mrb[0].mxu0 %v3066
      %v3232 = vpop.f32.mrb[0].mxu0
      %v3233 = vadd.f32 0.0, %v3232
      %v3234 = vpop.f32.mrb[0].mxu0
      %v3235 = vpop.f32.mrb[0].mxu0
      %v3236 = vadd.f32 0.0, %v3235
      %v3237 = vpop.f32.mrb[0].mxu0
      %3238 = vmatprep.mubr.bf16.mxu0 0
      %3239 = vmatmul.mubr.bf16.gmra.mrb[0].mxu0 %v3069
      %v3240 = vpop.f32.mrb[0].mxu0
      %v3241 = vadd.f32 0.0, %v3240
      %v3242 = vpop.f32.mrb[0].mxu0
      %v3243 = vpop.f32.mrb[0].mxu0
      %v3244 = vadd.f32 0.0, %v3243
      %v3245 = vpop.f32.mrb[0].mxu0
      %3246 = vmatprep.mubr.bf16.mxu0 0
      %3247 = vmatmul.mubr.bf16.gmra.mrb[0].mxu0 %v3072
      %v3248 = vpop.f32.mrb[0].mxu0
      %v3249 = vadd.f32 0.0, %v3248
      %v3250 = vpop.f32.mrb[0].mxu0
      %v3251 = vpop.f32.mrb[0].mxu0
      %v3252 = vadd.f32 0.0, %v3251
      %v3253 = vpop.f32.mrb[0].mxu0
      %3254 = vmatprep.mubr.bf16.mxu0 0
      %3255 = vmatmul.mubr.bf16.gmra.mrb[0].mxu0 %v3075
      %v3256 = vpop.f32.mrb[0].mxu0
      %v3257 = vadd.f32 0.0, %v3256
      %v3258 = vpop.f32.mrb[0].mxu0
      %v3259 = vpop.f32.mrb[0].mxu0
      %v3260 = vadd.f32 0.0, %v3259
      %v3261 = vpop.f32.mrb[0].mxu0
      %3262 = vmatprep.mubr.bf16.mxu0 0
      %3263 = vmatmul.mubr.bf16.gmra.mrb[0].mxu0 %v3078
      %v3264 = vpop.f32.mrb[0].mxu0
      %v3265 = vadd.f32 0.0, %v3264
      %v3266 = vpop.f32.mrb[0].mxu0
      %v3267 = vpop.f32.mrb[0].mxu0
      %v3268 = vadd.f32 0.0, %v3267
      %v3269 = vpop.f32.mrb[0].mxu0
      %3270 = vmatprep.mubr.bf16.mxu0 0
      %3271 = vmatmul.mubr.bf16.gmra.mrb[0].mxu0 %v3081
      %v3272 = vpop.f32.mrb[0].mxu0
      %v3273 = vadd.f32 0.0, %v3272
      %v3274 = vpop.f32.mrb[0].mxu0
      %v3275 = vpop.f32.mrb[0].mxu0
      %v3276 = vadd.f32 0.0, %v3275
      %v3277 = vpop.f32.mrb[0].mxu0
      %3278 = vdwg.mxu0
      %v3279 = vadd.f32 %v2897, %v3121
      %v3280 = vadd.f32 %v2898, %v3124
      %v3281 = vadd.f32 %v2899, %v3129
      %v3282 = vadd.f32 %v2900, %v3132
      %v3283 = vadd.f32 %v2901, %v3137
      %v3284 = vadd.f32 %v2902, %v3140
      %v3285 = vadd.f32 %v2903, %v3145
      %v3286 = vadd.f32 %v2904, %v3148
      %v3287 = vadd.f32 %v2905, %v3153
      %v3288 = vadd.f32 %v2906, %v3156
      %v3289 = vadd.f32 %v2907, %v3161
      %v3290 = vadd.f32 %v2908, %v3164
      %v3291 = vadd.f32 %v2909, %v3169
      %v3292 = vadd.f32 %v2910, %v3172
      %v3293 = vadd.f32 %v2911, %v3177
      %v3294 = vadd.f32 %v2912, %v3180
      %v3295 = vadd.f32 %v2913, %v3185
      %v3296 = vadd.f32 %v2914, %v3188
      %v3297 = vadd.f32 %v2915, %v3193
      %v3298 = vadd.f32 %v2916, %v3196
      %v3299 = vadd.f32 %v2917, %v3201
      %v3300 = vadd.f32 %v2918, %v3204
      %v3301 = vadd.f32 %v2919, %v3209
      %v3302 = vadd.f32 %v2920, %v3212
      %v3303 = vadd.f32 %v2921, %v3217
      %v3304 = vadd.f32 %v2922, %v3220
      %v3305 = vadd.f32 %v2923, %v3225
      %v3306 = vadd.f32 %v2924, %v3228
      %v3307 = vadd.f32 %v2925, %v3233
      %v3308 = vadd.f32 %v2926, %v3236
      %v3309 = vadd.f32 %v2927, %v3241
      %v3310 = vadd.f32 %v2928, %v3244
      %v3311 = vadd.f32 %v2929, %v3249
      %v3312 = vadd.f32 %v2930, %v3252
      %v3313 = vadd.f32 %v2931, %v3257
      %v3314 = vadd.f32 %v2932, %v3260
      %v3315 = vadd.f32 %v2933, %v3265
      %v3316 = vadd.f32 %v2934, %v3268
      %v3317 = vadd.f32 %v2935, %v3273
      %v3318 = vadd.f32 %v2936, %v3276
      %s3319 = scalar_lea.vmem %s2, 16
      %v3320 = vld [vmem:[%s3319] sm:$0x3]
      %vm3321 = vcmask 1043456
      %v3322 = vrot.slane %v459, 4
      %v3323 = vrot.slane %v460, 4
      %v3324 = vsel %vm3321, %v3322, %v3323
      %v3325 = vrot.slane %v461, 4
      %v3326 = vsel %vm3321, %v3323, %v3325
      %v3327 = vrot.slane %v462, 4
      %v3328 = vsel %vm3321, %v3325, %v3327
      %v3329 = vrot.slane %v463, 4
      %v3330 = vsel %vm3321, %v3327, %v3329
      %v3331 = vrot.slane %v464, 4
      %v3332 = vsel %vm3321, %v3329, %v3331
      %v3333 = vrot.slane %v465, 4
      %v3334 = vsel %vm3321, %v3331, %v3333
      %v3335 = vrot.slane %v466, 4
      %v3336 = vsel %vm3321, %v3333, %v3335
      %v3337 = vrot.slane %v467, 4
      %v3338 = vsel %vm3321, %v3335, %v3337
      %v3339 = vrot.slane %v468, 4
      %v3340 = vsel %vm3321, %v3337, %v3339
      %v3341 = vrot.slane %v469, 4
      %v3342 = vsel %vm3321, %v3339, %v3341
      %v3343 = vrot.slane %v470, 4
      %v3344 = vsel %vm3321, %v3341, %v3343
      %v3345 = vrot.slane %v471, 4
      %v3346 = vsel %vm3321, %v3343, %v3345
      %v3347 = vrot.slane %v472, 4
      %v3348 = vsel %vm3321, %v3345, %v3347
      %v3349 = vrot.slane %v473, 4
      %v3350 = vsel %vm3321, %v3347, %v3349
      %v3351 = vrot.slane %v474, 4
      %v3352 = vsel %vm3321, %v3349, %v3351
      %v3353 = vrot.slane %v475, 4
      %v3354 = vsel %vm3321, %v3351, %v3353
      %v3355 = vrot.slane %v476, 4
      %v3356 = vsel %vm3321, %v3353, %v3355
      %v3357 = vrot.slane %v477, 4
      %v3358 = vsel %vm3321, %v3355, %v3357
      %v3359 = vrot.slane %v478, 4
      %v3360 = vsel %vm3321, %v3357, %v3359
      %v3361 = vrot.slane %v487, 4
      %v3362 = vsel %vm3321, %v3359, %v3361
      %v3364 = vsel %vm657, %v3324, 0
      %v3367 = vsel %vm657, %v3326, 0
      %v3370 = vsel %vm657, %v3328, 0
      %v3373 = vsel %vm657, %v3330, 0
      %v3376 = vsel %vm657, %v3332, 0
      %v3379 = vsel %vm657, %v3334, 0
      %v3382 = vsel %vm657, %v3336, 0
      %v3385 = vsel %vm657, %v3338, 0
      %v3388 = vsel %vm657, %v3340, 0
      %v3391 = vsel %vm657, %v3342, 0
      %v3394 = vsel %vm657, %v3344, 0
      %v3397 = vsel %vm657, %v3346, 0
      %v3400 = vsel %vm657, %v3348, 0
      %v3403 = vsel %vm657, %v3350, 0
      %v3406 = vsel %vm657, %v3352, 0
      %v3409 = vsel %vm657, %v3354, 0
      %v3412 = vsel %vm657, %v3356, 0
      %v3415 = vsel %vm657, %v3358, 0
      %v3418 = vsel %vm657, %v3360, 0
      %v3421 = vsel %vm657, %v3362, 0
      %v3424 = vsel %vm718, %v3320, 0
      %3426 = vmatprep.subr.bf16.mxu0 0
      %3427 = vmatpush1.bf16.msra.mxu0 %v3424
      %3428 = vmatprep.subr.bf16.mxu0 0
      %3429 = vmatpush1.bf16.msra.mxu0 0
      %3430 = vmatprep.subr.bf16.mxu0 0
      %3431 = vmatpush1.bf16.msra.mxu0 0
      %3432 = vmatprep.subr.bf16.mxu0 0
      %3433 = vmatpush1.bf16.msra.mxu0 0
      %3434 = vmatprep.subr.bf16.mxu0 0
      %3435 = vmatpush1.bf16.msra.mxu0 0
      %3436 = vmatprep.subr.bf16.mxu0 0
      %3437 = vmatpush1.bf16.msra.mxu0 0
      %3438 = vmatprep.subr.bf16.mxu0 0
      %3439 = vmatpush1.bf16.msra.mxu0 0
      %3440 = vmatprep.subr.bf16.mxu0 0
      %3441 = vmatpush1.bf16.msra.mxu0 0
      %3442 = vmatprep.subr.bf16.mxu0 0
      %3443 = vmatpush1.bf16.msra.mxu0 0
      %3444 = vmatprep.subr.bf16.mxu0 0
      %3445 = vmatpush1.bf16.msra.mxu0 0
      %3446 = vmatprep.subr.bf16.mxu0 0
      %3447 = vmatpush1.bf16.msra.mxu0 0
      %3448 = vmatprep.subr.bf16.mxu0 0
      %3449 = vmatpush1.bf16.msra.mxu0 0
      %3450 = vmatprep.subr.bf16.mxu0 0
      %3451 = vmatpush1.bf16.msra.mxu0 0
      %3452 = vmatprep.subr.bf16.mxu0 0
      %3453 = vmatpush1.bf16.msra.mxu0 0
      %3454 = vmatprep.subr.bf16.mxu0 0
      %3455 = vmatpush1.bf16.msra.mxu0 0
      %3456 = vmatprep.subr.bf16.mxu0 0
      %3457 = vmatpush1.bf16.msra.mxu0 0
      %3458 = vmatprep.mubr.bf16.mxu0 0
      %3459 = vmatmul.mubr.bf16.gmra.mrb[0].mxu0 %v3364
      %v3460 = vpop.f32.mrb[0].mxu0
      %v3461 = vadd.f32 0.0, %v3460
      %v3462 = vpop.f32.mrb[0].mxu0
      %v3463 = vpop.f32.mrb[0].mxu0
      %v3464 = vadd.f32 0.0, %v3463
      %v3465 = vpop.f32.mrb[0].mxu0
      %3466 = vmatprep.mubr.bf16.mxu0 0
      %3467 = vmatmul.mubr.bf16.gmra.mrb[0].mxu0 %v3367
      %v3468 = vpop.f32.mrb[0].mxu0
      %v3469 = vadd.f32 0.0, %v3468
      %v3470 = vpop.f32.mrb[0].mxu0
      %v3471 = vpop.f32.mrb[0].mxu0
      %v3472 = vadd.f32 0.0, %v3471
      %v3473 = vpop.f32.mrb[0].mxu0
      %3474 = vmatprep.mubr.bf16.mxu0 0
      %3475 = vmatmul.mubr.bf16.gmra.mrb[0].mxu0 %v3370
      %v3476 = vpop.f32.mrb[0].mxu0
      %v3477 = vadd.f32 0.0, %v3476
      %v3478 = vpop.f32.mrb[0].mxu0
      %v3479 = vpop.f32.mrb[0].mxu0
      %v3480 = vadd.f32 0.0, %v3479
      %v3481 = vpop.f32.mrb[0].mxu0
      %3482 = vmatprep.mubr.bf16.mxu0 0
      %3483 = vmatmul.mubr.bf16.gmra.mrb[0].mxu0 %v3373
      %v3484 = vpop.f32.mrb[0].mxu0
      %v3485 = vadd.f32 0.0, %v3484
      %v3486 = vpop.f32.mrb[0].mxu0
      %v3487 = vpop.f32.mrb[0].mxu0
      %v3488 = vadd.f32 0.0, %v3487
      %v3489 = vpop.f32.mrb[0].mxu0
      %3490 = vmatprep.mubr.bf16.mxu0 0
      %3491 = vmatmul.mubr.bf16.gmra.mrb[0].mxu0 %v3376
      %v3492 = vpop.f32.mrb[0].mxu0
      %v3493 = vadd.f32 0.0, %v3492
      %v3494 = vpop.f32.mrb[0].mxu0
      %v3495 = vpop.f32.mrb[0].mxu0
      %v3496 = vadd.f32 0.0, %v3495
      %v3497 = vpop.f32.mrb[0].mxu0
      %3498 = vmatprep.mubr.bf16.mxu0 0
      %3499 = vmatmul.mubr.bf16.gmra.mrb[0].mxu0 %v3379
      %v3500 = vpop.f32.mrb[0].mxu0
      %v3501 = vadd.f32 0.0, %v3500
      %v3502 = vpop.f32.mrb[0].mxu0
      %v3503 = vpop.f32.mrb[0].mxu0
      %v3504 = vadd.f32 0.0, %v3503
      %v3505 = vpop.f32.mrb[0].mxu0
      %3506 = vmatprep.mubr.bf16.mxu0 0
      %3507 = vmatmul.mubr.bf16.gmra.mrb[0].mxu0 %v3382
      %v3508 = vpop.f32.mrb[0].mxu0
      %v3509 = vadd.f32 0.0, %v3508
      %v3510 = vpop.f32.mrb[0].mxu0
      %v3511 = vpop.f32.mrb[0].mxu0
      %v3512 = vadd.f32 0.0, %v3511
      %v3513 = vpop.f32.mrb[0].mxu0
      %3514 = vmatprep.mubr.bf16.mxu0 0
      %3515 = vmatmul.mubr.bf16.gmra.mrb[0].mxu0 %v3385
      %v3516 = vpop.f32.mrb[0].mxu0
      %v3517 = vadd.f32 0.0, %v3516
      %v3518 = vpop.f32.mrb[0].mxu0
      %v3519 = vpop.f32.mrb[0].mxu0
      %v3520 = vadd.f32 0.0, %v3519
      %v3521 = vpop.f32.mrb[0].mxu0
      %3522 = vmatprep.mubr.bf16.mxu0 0
      %3523 = vmatmul.mubr.bf16.gmra.mrb[0].mxu0 %v3388
      %v3524 = vpop.f32.mrb[0].mxu0
      %v3525 = vadd.f32 0.0, %v3524
      %v3526 = vpop.f32.mrb[0].mxu0
      %v3527 = vpop.f32.mrb[0].mxu0
      %v3528 = vadd.f32 0.0, %v3527
      %v3529 = vpop.f32.mrb[0].mxu0
      %3530 = vmatprep.mubr.bf16.mxu0 0
      %3531 = vmatmul.mubr.bf16.gmra.mrb[0].mxu0 %v3391
      %v3532 = vpop.f32.mrb[0].mxu0
      %v3533 = vadd.f32 0.0, %v3532
      %v3534 = vpop.f32.mrb[0].mxu0
      %v3535 = vpop.f32.mrb[0].mxu0
      %v3536 = vadd.f32 0.0, %v3535
      %v3537 = vpop.f32.mrb[0].mxu0
      %3538 = vmatprep.mubr.bf16.mxu0 0
      %3539 = vmatmul.mubr.bf16.gmra.mrb[0].mxu0 %v3394
      %v3540 = vpop.f32.mrb[0].mxu0
      %v3541 = vadd.f32 0.0, %v3540
      %v3542 = vpop.f32.mrb[0].mxu0
      %v3543 = vpop.f32.mrb[0].mxu0
      %v3544 = vadd.f32 0.0, %v3543
      %v3545 = vpop.f32.mrb[0].mxu0
      %3546 = vmatprep.mubr.bf16.mxu0 0
      %3547 = vmatmul.mubr.bf16.gmra.mrb[0].mxu0 %v3397
      %v3548 = vpop.f32.mrb[0].mxu0
      %v3549 = vadd.f32 0.0, %v3548
      %v3550 = vpop.f32.mrb[0].mxu0
      %v3551 = vpop.f32.mrb[0].mxu0
      %v3552 = vadd.f32 0.0, %v3551
      %v3553 = vpop.f32.mrb[0].mxu0
      %3554 = vmatprep.mubr.bf16.mxu0 0
      %3555 = vmatmul.mubr.bf16.gmra.mrb[0].mxu0 %v3400
      %v3556 = vpop.f32.mrb[0].mxu0
      %v3557 = vadd.f32 0.0, %v3556
      %v3558 = vpop.f32.mrb[0].mxu0
      %v3559 = vpop.f32.mrb[0].mxu0
      %v3560 = vadd.f32 0.0, %v3559
      %v3561 = vpop.f32.mrb[0].mxu0
      %3562 = vmatprep.mubr.bf16.mxu0 0
      %3563 = vmatmul.mubr.bf16.gmra.mrb[0].mxu0 %v3403
      %v3564 = vpop.f32.mrb[0].mxu0
      %v3565 = vadd.f32 0.0, %v3564
      %v3566 = vpop.f32.mrb[0].mxu0
      %v3567 = vpop.f32.mrb[0].mxu0
      %v3568 = vadd.f32 0.0, %v3567
      %v3569 = vpop.f32.mrb[0].mxu0
      %3570 = vmatprep.mubr.bf16.mxu0 0
      %3571 = vmatmul.mubr.bf16.gmra.mrb[0].mxu0 %v3406
      %v3572 = vpop.f32.mrb[0].mxu0
      %v3573 = vadd.f32 0.0, %v3572
      %v3574 = vpop.f32.mrb[0].mxu0
      %v3575 = vpop.f32.mrb[0].mxu0
      %v3576 = vadd.f32 0.0, %v3575
      %v3577 = vpop.f32.mrb[0].mxu0
      %3578 = vmatprep.mubr.bf16.mxu0 0
      %3579 = vmatmul.mubr.bf16.gmra.mrb[0].mxu0 %v3409
      %v3580 = vpop.f32.mrb[0].mxu0
      %v3581 = vadd.f32 0.0, %v3580
      %v3582 = vpop.f32.mrb[0].mxu0
      %v3583 = vpop.f32.mrb[0].mxu0
      %v3584 = vadd.f32 0.0, %v3583
      %v3585 = vpop.f32.mrb[0].mxu0
      %3586 = vmatprep.mubr.bf16.mxu0 0
      %3587 = vmatmul.mubr.bf16.gmra.mrb[0].mxu0 %v3412
      %v3588 = vpop.f32.mrb[0].mxu0
      %v3589 = vadd.f32 0.0, %v3588
      %v3590 = vpop.f32.mrb[0].mxu0
      %v3591 = vpop.f32.mrb[0].mxu0
      %v3592 = vadd.f32 0.0, %v3591
      %v3593 = vpop.f32.mrb[0].mxu0
      %3594 = vmatprep.mubr.bf16.mxu0 0
      %3595 = vmatmul.mubr.bf16.gmra.mrb[0].mxu0 %v3415
      %v3596 = vpop.f32.mrb[0].mxu0
      %v3597 = vadd.f32 0.0, %v3596
      %v3598 = vpop.f32.mrb[0].mxu0
      %v3599 = vpop.f32.mrb[0].mxu0
      %v3600 = vadd.f32 0.0, %v3599
      %v3601 = vpop.f32.mrb[0].mxu0
      %3602 = vmatprep.mubr.bf16.mxu0 0
      %3603 = vmatmul.mubr.bf16.gmra.mrb[0].mxu0 %v3418
      %v3604 = vpop.f32.mrb[0].mxu0
      %v3605 = vadd.f32 0.0, %v3604
      %v3606 = vpop.f32.mrb[0].mxu0
      %v3607 = vpop.f32.mrb[0].mxu0
      %v3608 = vadd.f32 0.0, %v3607
      %v3609 = vpop.f32.mrb[0].mxu0
      %3610 = vmatprep.mubr.bf16.mxu0 0
      %3611 = vmatmul.mubr.bf16.gmra.mrb[0].mxu0 %v3421
      %v3612 = vpop.f32.mrb[0].mxu0
      %v3613 = vadd.f32 0.0, %v3612
      %v3614 = vpop.f32.mrb[0].mxu0
      %v3615 = vpop.f32.mrb[0].mxu0
      %v3616 = vadd.f32 0.0, %v3615
      %v3617 = vpop.f32.mrb[0].mxu0
      %3618 = vdwg.mxu0
      %v3619 = vadd.f32 %v3279, %v3461
      %v3620 = vadd.f32 %v3280, %v3464
      %v3621 = vadd.f32 %v3281, %v3469
      %v3622 = vadd.f32 %v3282, %v3472
      %v3623 = vadd.f32 %v3283, %v3477
      %v3624 = vadd.f32 %v3284, %v3480
      %v3625 = vadd.f32 %v3285, %v3485
      %v3626 = vadd.f32 %v3286, %v3488
      %v3627 = vadd.f32 %v3287, %v3493
      %v3628 = vadd.f32 %v3288, %v3496
      %v3629 = vadd.f32 %v3289, %v3501
      %v3630 = vadd.f32 %v3290, %v3504
      %v3631 = vadd.f32 %v3291, %v3509
      %v3632 = vadd.f32 %v3292, %v3512
      %v3633 = vadd.f32 %v3293, %v3517
      %v3634 = vadd.f32 %v3294, %v3520
      %v3635 = vadd.f32 %v3295, %v3525
      %v3636 = vadd.f32 %v3296, %v3528
      %v3637 = vadd.f32 %v3297, %v3533
      %v3638 = vadd.f32 %v3298, %v3536
      %v3639 = vadd.f32 %v3299, %v3541
      %v3640 = vadd.f32 %v3300, %v3544
      %v3641 = vadd.f32 %v3301, %v3549
      %v3642 = vadd.f32 %v3302, %v3552
      %v3643 = vadd.f32 %v3303, %v3557
      %v3644 = vadd.f32 %v3304, %v3560
      %v3645 = vadd.f32 %v3305, %v3565
      %v3646 = vadd.f32 %v3306, %v3568
      %v3647 = vadd.f32 %v3307, %v3573
      %v3648 = vadd.f32 %v3308, %v3576
      %v3649 = vadd.f32 %v3309, %v3581
      %v3650 = vadd.f32 %v3310, %v3584
      %v3651 = vadd.f32 %v3311, %v3589
      %v3652 = vadd.f32 %v3312, %v3592
      %v3653 = vadd.f32 %v3313, %v3597
      %v3654 = vadd.f32 %v3314, %v3600
      %v3655 = vadd.f32 %v3315, %v3605
      %v3656 = vadd.f32 %v3316, %v3608
      %v3657 = vadd.f32 %v3317, %v3613
      %v3658 = vadd.f32 %v3318, %v3616
      %s3659 = scalar_lea.vmem %s2, 18
      %v3660 = vld [vmem:[%s3659] sm:$0x3]
      %vm3661 = vsmask.f32 3328
      %v3662 = vrot.slane %v494, 4
      %v3663 = vrot.slane %v496, 5
      %v3664 = vor.u32 %v3662, %v3663
      %v3665 = vrot.slane %v505, 4
      %v3666 = vrot.slane %v501, 5
      %v3667 = vor.u32 %v3665, %v3666
      %v3668 = vsel %vm3661, %v3664, %v3667
      %v3669 = vrot.slane %v513, 4
      %v3670 = vrot.slane %v509, 5
      %v3671 = vor.u32 %v3669, %v3670
      %v3672 = vsel %vm3661, %v3667, %v3671
      %v3673 = vrot.slane %v521, 4
      %v3674 = vrot.slane %v517, 5
      %v3675 = vor.u32 %v3673, %v3674
      %v3676 = vsel %vm3661, %v3671, %v3675
      %v3677 = vrot.slane %v529, 4
      %v3678 = vrot.slane %v525, 5
      %v3679 = vor.u32 %v3677, %v3678
      %v3680 = vsel %vm3661, %v3675, %v3679
      %v3681 = vrot.slane %v537, 4
      %v3682 = vrot.slane %v533, 5
      %v3683 = vor.u32 %v3681, %v3682
      %v3684 = vsel %vm3661, %v3679, %v3683
      %v3685 = vrot.slane %v545, 4
      %v3686 = vrot.slane %v541, 5
      %v3687 = vor.u32 %v3685, %v3686
      %v3688 = vsel %vm3661, %v3683, %v3687
      %v3689 = vrot.slane %v553, 4
      %v3690 = vrot.slane %v549, 5
      %v3691 = vor.u32 %v3689, %v3690
      %v3692 = vsel %vm3661, %v3687, %v3691
      %v3693 = vrot.slane %v561, 4
      %v3694 = vrot.slane %v557, 5
      %v3695 = vor.u32 %v3693, %v3694
      %v3696 = vsel %vm3661, %v3691, %v3695
      %v3697 = vrot.slane %v569, 4
      %v3698 = vrot.slane %v565, 5
      %v3699 = vor.u32 %v3697, %v3698
      %v3700 = vsel %vm3661, %v3695, %v3699
      %v3701 = vrot.slane %v577, 4
      %v3702 = vrot.slane %v573, 5
      %v3703 = vor.u32 %v3701, %v3702
      %v3704 = vsel %vm3661, %v3699, %v3703
      %v3705 = vrot.slane %v585, 4
      %v3706 = vrot.slane %v581, 5
      %v3707 = vor.u32 %v3705, %v3706
      %v3708 = vsel %vm3661, %v3703, %v3707
      %v3709 = vrot.slane %v593, 4
      %v3710 = vrot.slane %v589, 5
      %v3711 = vor.u32 %v3709, %v3710
      %v3712 = vsel %vm3661, %v3707, %v3711
      %v3713 = vrot.slane %v601, 4
      %v3714 = vrot.slane %v597, 5
      %v3715 = vor.u32 %v3713, %v3714
      %v3716 = vsel %vm3661, %v3711, %v3715
      %v3717 = vrot.slane %v609, 4
      %v3718 = vrot.slane %v605, 5
      %v3719 = vor.u32 %v3717, %v3718
      %v3720 = vsel %vm3661, %v3715, %v3719
      %v3721 = vrot.slane %v617, 4
      %v3722 = vrot.slane %v613, 5
      %v3723 = vor.u32 %v3721, %v3722
      %v3724 = vsel %vm3661, %v3719, %v3723
      %v3725 = vrot.slane %v625, 4
      %v3726 = vrot.slane %v621, 5
      %v3727 = vor.u32 %v3725, %v3726
      %v3728 = vsel %vm3661, %v3723, %v3727
      %v3729 = vrot.slane %v633, 4
      %v3730 = vrot.slane %v629, 5
      %v3731 = vor.u32 %v3729, %v3730
      %v3732 = vsel %vm3661, %v3727, %v3731
      %v3733 = vrot.slane %v641, 4
      %v3734 = vrot.slane %v637, 5
      %v3735 = vor.u32 %v3733, %v3734
      %v3736 = vsel %vm3661, %v3731, %v3735
      %v3737 = vrot.slane %v649, 4
      %v3738 = vrot.slane %v645, 5
      %v3739 = vor.u32 %v3737, %v3738
      %v3740 = vsel %vm3661, %v3735, %v3739
      %v3741 = vrot.slane %v1573, 4
      %v3742 = vrot.slane %v653, 5
      %v3743 = vor.u32 %v3741, %v3742
      %v3744 = vsel %vm3661, %v3739, %v3743
      %v3746 = vsel %vm657, %v3668, 0
      %v3749 = vsel %vm657, %v3672, 0
      %v3752 = vsel %vm657, %v3676, 0
      %v3755 = vsel %vm657, %v3680, 0
      %v3758 = vsel %vm657, %v3684, 0
      %v3761 = vsel %vm657, %v3688, 0
      %v3764 = vsel %vm657, %v3692, 0
      %v3767 = vsel %vm657, %v3696, 0
      %v3770 = vsel %vm657, %v3700, 0
      %v3773 = vsel %vm657, %v3704, 0
      %v3776 = vsel %vm657, %v3708, 0
      %v3779 = vsel %vm657, %v3712, 0
      %v3782 = vsel %vm657, %v3716, 0
      %v3785 = vsel %vm657, %v3720, 0
      %v3788 = vsel %vm657, %v3724, 0
      %v3791 = vsel %vm657, %v3728, 0
      %v3794 = vsel %vm657, %v3732, 0
      %v3797 = vsel %vm657, %v3736, 0
      %v3800 = vsel %vm657, %v3740, 0
      %v3803 = vsel %vm657, %v3744, 0
      %v3806 = vsel %vm718, %v3660, 0
      %3808 = vmatprep.subr.bf16.mxu0 0
      %3809 = vmatpush1.bf16.msra.mxu0 %v3806
      %3810 = vmatprep.subr.bf16.mxu0 0
      %3811 = vmatpush1.bf16.msra.mxu0 0
      %3812 = vmatprep.subr.bf16.mxu0 0
      %3813 = vmatpush1.bf16.msra.mxu0 0
      %3814 = vmatprep.subr.bf16.mxu0 0
      %3815 = vmatpush1.bf16.msra.mxu0 0
      %3816 = vmatprep.subr.bf16.mxu0 0
      %3817 = vmatpush1.bf16.msra.mxu0 0
      %3818 = vmatprep.subr.bf16.mxu0 0
      %3819 = vmatpush1.bf16.msra.mxu0 0
      %3820 = vmatprep.subr.bf16.mxu0 0
      %3821 = vmatpush1.bf16.msra.mxu0 0
      %3822 = vmatprep.subr.bf16.mxu0 0
      %3823 = vmatpush1.bf16.msra.mxu0 0
      %3824 = vmatprep.subr.bf16.mxu0 0
      %3825 = vmatpush1.bf16.msra.mxu0 0
      %3826 = vmatprep.subr.bf16.mxu0 0
      %3827 = vmatpush1.bf16.msra.mxu0 0
      %3828 = vmatprep.subr.bf16.mxu0 0
      %3829 = vmatpush1.bf16.msra.mxu0 0
      %3830 = vmatprep.subr.bf16.mxu0 0
      %3831 = vmatpush1.bf16.msra.mxu0 0
      %3832 = vmatprep.subr.bf16.mxu0 0
      %3833 = vmatpush1.bf16.msra.mxu0 0
      %3834 = vmatprep.subr.bf16.mxu0 0
      %3835 = vmatpush1.bf16.msra.mxu0 0
      %3836 = vmatprep.subr.bf16.mxu0 0
      %3837 = vmatpush1.bf16.msra.mxu0 0
      %3838 = vmatprep.subr.bf16.mxu0 0
      %3839 = vmatpush1.bf16.msra.mxu0 0
      %3840 = vmatprep.mubr.bf16.mxu0 0
      %3841 = vmatmul.mubr.bf16.gmra.mrb[0].mxu0 %v3746
      %v3842 = vpop.f32.mrb[0].mxu0
      %v3843 = vadd.f32 0.0, %v3842
      %v3844 = vpop.f32.mrb[0].mxu0
      %v3845 = vpop.f32.mrb[0].mxu0
      %v3846 = vadd.f32 0.0, %v3845
      %v3847 = vpop.f32.mrb[0].mxu0
      %3848 = vmatprep.mubr.bf16.mxu0 0
      %3849 = vmatmul.mubr.bf16.gmra.mrb[0].mxu0 %v3749
      %v3850 = vpop.f32.mrb[0].mxu0
      %v3851 = vadd.f32 0.0, %v3850
      %v3852 = vpop.f32.mrb[0].mxu0
      %v3853 = vpop.f32.mrb[0].mxu0
      %v3854 = vadd.f32 0.0, %v3853
      %v3855 = vpop.f32.mrb[0].mxu0
      %3856 = vmatprep.mubr.bf16.mxu0 0
      %3857 = vmatmul.mubr.bf16.gmra.mrb[0].mxu0 %v3752
      %v3858 = vpop.f32.mrb[0].mxu0
      %v3859 = vadd.f32 0.0, %v3858
      %v3860 = vpop.f32.mrb[0].mxu0
      %v3861 = vpop.f32.mrb[0].mxu0
      %v3862 = vadd.f32 0.0, %v3861
      %v3863 = vpop.f32.mrb[0].mxu0
      %3864 = vmatprep.mubr.bf16.mxu0 0
      %3865 = vmatmul.mubr.bf16.gmra.mrb[0].mxu0 %v3755
      %v3866 = vpop.f32.mrb[0].mxu0
      %v3867 = vadd.f32 0.0, %v3866
      %v3868 = vpop.f32.mrb[0].mxu0
      %v3869 = vpop.f32.mrb[0].mxu0
      %v3870 = vadd.f32 0.0, %v3869
      %v3871 = vpop.f32.mrb[0].mxu0
      %3872 = vmatprep.mubr.bf16.mxu0 0
      %3873 = vmatmul.mubr.bf16.gmra.mrb[0].mxu0 %v3758
      %v3874 = vpop.f32.mrb[0].mxu0
      %v3875 = vadd.f32 0.0, %v3874
      %v3876 = vpop.f32.mrb[0].mxu0
      %v3877 = vpop.f32.mrb[0].mxu0
      %v3878 = vadd.f32 0.0, %v3877
      %v3879 = vpop.f32.mrb[0].mxu0
      %3880 = vmatprep.mubr.bf16.mxu0 0
      %3881 = vmatmul.mubr.bf16.gmra.mrb[0].mxu0 %v3761
      %v3882 = vpop.f32.mrb[0].mxu0
      %v3883 = vadd.f32 0.0, %v3882
      %v3884 = vpop.f32.mrb[0].mxu0
      %v3885 = vpop.f32.mrb[0].mxu0
      %v3886 = vadd.f32 0.0, %v3885
      %v3887 = vpop.f32.mrb[0].mxu0
      %3888 = vmatprep.mubr.bf16.mxu0 0
      %3889 = vmatmul.mubr.bf16.gmra.mrb[0].mxu0 %v3764
      %v3890 = vpop.f32.mrb[0].mxu0
      %v3891 = vadd.f32 0.0, %v3890
      %v3892 = vpop.f32.mrb[0].mxu0
      %v3893 = vpop.f32.mrb[0].mxu0
      %v3894 = vadd.f32 0.0, %v3893
      %v3895 = vpop.f32.mrb[0].mxu0
      %3896 = vmatprep.mubr.bf16.mxu0 0
      %3897 = vmatmul.mubr.bf16.gmra.mrb[0].mxu0 %v3767
      %v3898 = vpop.f32.mrb[0].mxu0
      %v3899 = vadd.f32 0.0, %v3898
      %v3900 = vpop.f32.mrb[0].mxu0
      %v3901 = vpop.f32.mrb[0].mxu0
      %v3902 = vadd.f32 0.0, %v3901
      %v3903 = vpop.f32.mrb[0].mxu0
      %3904 = vmatprep.mubr.bf16.mxu0 0
      %3905 = vmatmul.mubr.bf16.gmra.mrb[0].mxu0 %v3770
      %v3906 = vpop.f32.mrb[0].mxu0
      %v3907 = vadd.f32 0.0, %v3906
      %v3908 = vpop.f32.mrb[0].mxu0
      %v3909 = vpop.f32.mrb[0].mxu0
      %v3910 = vadd.f32 0.0, %v3909
      %v3911 = vpop.f32.mrb[0].mxu0
      %3912 = vmatprep.mubr.bf16.mxu0 0
      %3913 = vmatmul.mubr.bf16.gmra.mrb[0].mxu0 %v3773
      %v3914 = vpop.f32.mrb[0].mxu0
      %v3915 = vadd.f32 0.0, %v3914
      %v3916 = vpop.f32.mrb[0].mxu0
      %v3917 = vpop.f32.mrb[0].mxu0
      %v3918 = vadd.f32 0.0, %v3917
      %v3919 = vpop.f32.mrb[0].mxu0
      %3920 = vmatprep.mubr.bf16.mxu0 0
      %3921 = vmatmul.mubr.bf16.gmra.mrb[0].mxu0 %v3776
      %v3922 = vpop.f32.mrb[0].mxu0
      %v3923 = vadd.f32 0.0, %v3922
      %v3924 = vpop.f32.mrb[0].mxu0
      %v3925 = vpop.f32.mrb[0].mxu0
      %v3926 = vadd.f32 0.0, %v3925
      %v3927 = vpop.f32.mrb[0].mxu0
      %3928 = vmatprep.mubr.bf16.mxu0 0
      %3929 = vmatmul.mubr.bf16.gmra.mrb[0].mxu0 %v3779
      %v3930 = vpop.f32.mrb[0].mxu0
      %v3931 = vadd.f32 0.0, %v3930
      %v3932 = vpop.f32.mrb[0].mxu0
      %v3933 = vpop.f32.mrb[0].mxu0
      %v3934 = vadd.f32 0.0, %v3933
      %v3935 = vpop.f32.mrb[0].mxu0
      %3936 = vmatprep.mubr.bf16.mxu0 0
      %3937 = vmatmul.mubr.bf16.gmra.mrb[0].mxu0 %v3782
      %v3938 = vpop.f32.mrb[0].mxu0
      %v3939 = vadd.f32 0.0, %v3938
      %v3940 = vpop.f32.mrb[0].mxu0
      %v3941 = vpop.f32.mrb[0].mxu0
      %v3942 = vadd.f32 0.0, %v3941
      %v3943 = vpop.f32.mrb[0].mxu0
      %3944 = vmatprep.mubr.bf16.mxu0 0
      %3945 = vmatmul.mubr.bf16.gmra.mrb[0].mxu0 %v3785
      %v3946 = vpop.f32.mrb[0].mxu0
      %v3947 = vadd.f32 0.0, %v3946
      %v3948 = vpop.f32.mrb[0].mxu0
      %v3949 = vpop.f32.mrb[0].mxu0
      %v3950 = vadd.f32 0.0, %v3949
      %v3951 = vpop.f32.mrb[0].mxu0
      %3952 = vmatprep.mubr.bf16.mxu0 0
      %3953 = vmatmul.mubr.bf16.gmra.mrb[0].mxu0 %v3788
      %v3954 = vpop.f32.mrb[0].mxu0
      %v3955 = vadd.f32 0.0, %v3954
      %v3956 = vpop.f32.mrb[0].mxu0
      %v3957 = vpop.f32.mrb[0].mxu0
      %v3958 = vadd.f32 0.0, %v3957
      %v3959 = vpop.f32.mrb[0].mxu0
      %3960 = vmatprep.mubr.bf16.mxu0 0
      %3961 = vmatmul.mubr.bf16.gmra.mrb[0].mxu0 %v3791
      %v3962 = vpop.f32.mrb[0].mxu0
      %v3963 = vadd.f32 0.0, %v3962
      %v3964 = vpop.f32.mrb[0].mxu0
      %v3965 = vpop.f32.mrb[0].mxu0
      %v3966 = vadd.f32 0.0, %v3965
      %v3967 = vpop.f32.mrb[0].mxu0
      %3968 = vmatprep.mubr.bf16.mxu0 0
      %3969 = vmatmul.mubr.bf16.gmra.mrb[0].mxu0 %v3794
      %v3970 = vpop.f32.mrb[0].mxu0
      %v3971 = vadd.f32 0.0, %v3970
      %v3972 = vpop.f32.mrb[0].mxu0
      %v3973 = vpop.f32.mrb[0].mxu0
      %v3974 = vadd.f32 0.0, %v3973
      %v3975 = vpop.f32.mrb[0].mxu0
      %3976 = vmatprep.mubr.bf16.mxu0 0
      %3977 = vmatmul.mubr.bf16.gmra.mrb[0].mxu0 %v3797
      %v3978 = vpop.f32.mrb[0].mxu0
      %v3979 = vadd.f32 0.0, %v3978
      %v3980 = vpop.f32.mrb[0].mxu0
      %v3981 = vpop.f32.mrb[0].mxu0
      %v3982 = vadd.f32 0.0, %v3981
      %v3983 = vpop.f32.mrb[0].mxu0
      %3984 = vmatprep.mubr.bf16.mxu0 0
      %3985 = vmatmul.mubr.bf16.gmra.mrb[0].mxu0 %v3800
      %v3986 = vpop.f32.mrb[0].mxu0
      %v3987 = vadd.f32 0.0, %v3986
      %v3988 = vpop.f32.mrb[0].mxu0
      %v3989 = vpop.f32.mrb[0].mxu0
      %v3990 = vadd.f32 0.0, %v3989
      %v3991 = vpop.f32.mrb[0].mxu0
      %3992 = vmatprep.mubr.bf16.mxu0 0
      %3993 = vmatmul.mubr.bf16.gmra.mrb[0].mxu0 %v3803
      %v3994 = vpop.f32.mrb[0].mxu0
      %v3995 = vadd.f32 0.0, %v3994
      %v3996 = vpop.f32.mrb[0].mxu0
      %v3997 = vpop.f32.mrb[0].mxu0
      %v3998 = vadd.f32 0.0, %v3997
      %v3999 = vpop.f32.mrb[0].mxu0
      %4000 = vdwg.mxu0
      %v4001 = vadd.f32 %v3619, %v3843
      %v4002 = vadd.f32 %v3620, %v3846
      %v4003 = vadd.f32 %v3621, %v3851
      %v4004 = vadd.f32 %v3622, %v3854
      %v4005 = vadd.f32 %v3623, %v3859
      %v4006 = vadd.f32 %v3624, %v3862
      %v4007 = vadd.f32 %v3625, %v3867
      %v4008 = vadd.f32 %v3626, %v3870
      %v4009 = vadd.f32 %v3627, %v3875
      %v4010 = vadd.f32 %v3628, %v3878
      %v4011 = vadd.f32 %v3629, %v3883
      %v4012 = vadd.f32 %v3630, %v3886
      %v4013 = vadd.f32 %v3631, %v3891
      %v4014 = vadd.f32 %v3632, %v3894
      %v4015 = vadd.f32 %v3633, %v3899
      %v4016 = vadd.f32 %v3634, %v3902
      %v4017 = vadd.f32 %v3635, %v3907
      %v4018 = vadd.f32 %v3636, %v3910
      %v4019 = vadd.f32 %v3637, %v3915
      %v4020 = vadd.f32 %v3638, %v3918
      %v4021 = vadd.f32 %v3639, %v3923
      %v4022 = vadd.f32 %v3640, %v3926
      %v4023 = vadd.f32 %v3641, %v3931
      %v4024 = vadd.f32 %v3642, %v3934
      %v4025 = vadd.f32 %v3643, %v3939
      %v4026 = vadd.f32 %v3644, %v3942
      %v4027 = vadd.f32 %v3645, %v3947
      %v4028 = vadd.f32 %v3646, %v3950
      %v4029 = vadd.f32 %v3647, %v3955
      %v4030 = vadd.f32 %v3648, %v3958
      %v4031 = vadd.f32 %v3649, %v3963
      %v4032 = vadd.f32 %v3650, %v3966
      %v4033 = vadd.f32 %v3651, %v3971
      %v4034 = vadd.f32 %v3652, %v3974
      %v4035 = vadd.f32 %v3653, %v3979
      %v4036 = vadd.f32 %v3654, %v3982
      %v4037 = vadd.f32 %v3655, %v3987
      %v4038 = vadd.f32 %v3656, %v3990
      %v4039 = vadd.f32 %v3657, %v3995
      %v4040 = vadd.f32 %v3658, %v3998
      %s4041 = scalar_lea.vmem %s2, 20
      %v4042 = vld [vmem:[%s4041] sm:$0x3]
      %vm4043 = vcmask 1042432
      %v4044 = vrot.slane %v459, 5
      %v4045 = vrot.slane %v460, 5
      %v4046 = vsel %vm4043, %v4044, %v4045
      %v4047 = vrot.slane %v461, 5
      %v4048 = vsel %vm4043, %v4045, %v4047
      %v4049 = vrot.slane %v462, 5
      %v4050 = vsel %vm4043, %v4047, %v4049
      %v4051 = vrot.slane %v463, 5
      %v4052 = vsel %vm4043, %v4049, %v4051
      %v4053 = vrot.slane %v464, 5
      %v4054 = vsel %vm4043, %v4051, %v4053
      %v4055 = vrot.slane %v465, 5
      %v4056 = vsel %vm4043, %v4053, %v4055
      %v4057 = vrot.slane %v466, 5
      %v4058 = vsel %vm4043, %v4055, %v4057
      %v4059 = vrot.slane %v467, 5
      %v4060 = vsel %vm4043, %v4057, %v4059
      %v4061 = vrot.slane %v468, 5
      %v4062 = vsel %vm4043, %v4059, %v4061
      %v4063 = vrot.slane %v469, 5
      %v4064 = vsel %vm4043, %v4061, %v4063
      %v4065 = vrot.slane %v470, 5
      %v4066 = vsel %vm4043, %v4063, %v4065
      %v4067 = vrot.slane %v471, 5
      %v4068 = vsel %vm4043, %v4065, %v4067
      %v4069 = vrot.slane %v472, 5
      %v4070 = vsel %vm4043, %v4067, %v4069
      %v4071 = vrot.slane %v473, 5
      %v4072 = vsel %vm4043, %v4069, %v4071
      %v4073 = vrot.slane %v474, 5
      %v4074 = vsel %vm4043, %v4071, %v4073
      %v4075 = vrot.slane %v475, 5
      %v4076 = vsel %vm4043, %v4073, %v4075
      %v4077 = vrot.slane %v476, 5
      %v4078 = vsel %vm4043, %v4075, %v4077
      %v4079 = vrot.slane %v477, 5
      %v4080 = vsel %vm4043, %v4077, %v4079
      %v4081 = vrot.slane %v478, 5
      %v4082 = vsel %vm4043, %v4079, %v4081
      %v4083 = vrot.slane %v487, 5
      %v4084 = vsel %vm4043, %v4081, %v4083
      %v4086 = vsel %vm657, %v4046, 0
      %v4089 = vsel %vm657, %v4048, 0
      %v4092 = vsel %vm657, %v4050, 0
      %v4095 = vsel %vm657, %v4052, 0
      %v4098 = vsel %vm657, %v4054, 0
      %v4101 = vsel %vm657, %v4056, 0
      %v4104 = vsel %vm657, %v4058, 0
      %v4107 = vsel %vm657, %v4060, 0
      %v4110 = vsel %vm657, %v4062, 0
      %v4113 = vsel %vm657, %v4064, 0
      %v4116 = vsel %vm657, %v4066, 0
      %v4119 = vsel %vm657, %v4068, 0
      %v4122 = vsel %vm657, %v4070, 0
      %v4125 = vsel %vm657, %v4072, 0
      %v4128 = vsel %vm657, %v4074, 0
      %v4131 = vsel %vm657, %v4076, 0
      %v4134 = vsel %vm657, %v4078, 0
      %v4137 = vsel %vm657, %v4080, 0
      %v4140 = vsel %vm657, %v4082, 0
      %v4143 = vsel %vm657, %v4084, 0
      %v4146 = vsel %vm718, %v4042, 0
      %4148 = vmatprep.subr.bf16.mxu0 0
      %4149 = vmatpush1.bf16.msra.mxu0 %v4146
      %4150 = vmatprep.subr.bf16.mxu0 0
      %4151 = vmatpush1.bf16.msra.mxu0 0
      %4152 = vmatprep.subr.bf16.mxu0 0
      %4153 = vmatpush1.bf16.msra.mxu0 0
      %4154 = vmatprep.subr.bf16.mxu0 0
      %4155 = vmatpush1.bf16.msra.mxu0 0
      %4156 = vmatprep.subr.bf16.mxu0 0
      %4157 = vmatpush1.bf16.msra.mxu0 0
      %4158 = vmatprep.subr.bf16.mxu0 0
      %4159 = vmatpush1.bf16.msra.mxu0 0
      %4160 = vmatprep.subr.bf16.mxu0 0
      %4161 = vmatpush1.bf16.msra.mxu0 0
      %4162 = vmatprep.subr.bf16.mxu0 0
      %4163 = vmatpush1.bf16.msra.mxu0 0
      %4164 = vmatprep.subr.bf16.mxu0 0
      %4165 = vmatpush1.bf16.msra.mxu0 0
      %4166 = vmatprep.subr.bf16.mxu0 0
      %4167 = vmatpush1.bf16.msra.mxu0 0
      %4168 = vmatprep.subr.bf16.mxu0 0
      %4169 = vmatpush1.bf16.msra.mxu0 0
      %4170 = vmatprep.subr.bf16.mxu0 0
      %4171 = vmatpush1.bf16.msra.mxu0 0
      %4172 = vmatprep.subr.bf16.mxu0 0
      %4173 = vmatpush1.bf16.msra.mxu0 0
      %4174 = vmatprep.subr.bf16.mxu0 0
      %4175 = vmatpush1.bf16.msra.mxu0 0
      %4176 = vmatprep.subr.bf16.mxu0 0
      %4177 = vmatpush1.bf16.msra.mxu0 0
      %4178 = vmatprep.subr.bf16.mxu0 0
      %4179 = vmatpush1.bf16.msra.mxu0 0
      %4180 = vmatprep.mubr.bf16.mxu0 0
      %4181 = vmatmul.mubr.bf16.gmra.mrb[0].mxu0 %v4086
      %v4182 = vpop.f32.mrb[0].mxu0
      %v4183 = vadd.f32 0.0, %v4182
      %v4184 = vpop.f32.mrb[0].mxu0
      %v4185 = vpop.f32.mrb[0].mxu0
      %v4186 = vadd.f32 0.0, %v4185
      %v4187 = vpop.f32.mrb[0].mxu0
      %4188 = vmatprep.mubr.bf16.mxu0 0
      %4189 = vmatmul.mubr.bf16.gmra.mrb[0].mxu0 %v4089
      %v4190 = vpop.f32.mrb[0].mxu0
      %v4191 = vadd.f32 0.0, %v4190
      %v4192 = vpop.f32.mrb[0].mxu0
      %v4193 = vpop.f32.mrb[0].mxu0
      %v4194 = vadd.f32 0.0, %v4193
      %v4195 = vpop.f32.mrb[0].mxu0
      %4196 = vmatprep.mubr.bf16.mxu0 0
      %4197 = vmatmul.mubr.bf16.gmra.mrb[0].mxu0 %v4092
      %v4198 = vpop.f32.mrb[0].mxu0
      %v4199 = vadd.f32 0.0, %v4198
      %v4200 = vpop.f32.mrb[0].mxu0
      %v4201 = vpop.f32.mrb[0].mxu0
      %v4202 = vadd.f32 0.0, %v4201
      %v4203 = vpop.f32.mrb[0].mxu0
      %4204 = vmatprep.mubr.bf16.mxu0 0
      %4205 = vmatmul.mubr.bf16.gmra.mrb[0].mxu0 %v4095
      %v4206 = vpop.f32.mrb[0].mxu0
      %v4207 = vadd.f32 0.0, %v4206
      %v4208 = vpop.f32.mrb[0].mxu0
      %v4209 = vpop.f32.mrb[0].mxu0
      %v4210 = vadd.f32 0.0, %v4209
      %v4211 = vpop.f32.mrb[0].mxu0
      %4212 = vmatprep.mubr.bf16.mxu0 0
      %4213 = vmatmul.mubr.bf16.gmra.mrb[0].mxu0 %v4098
      %v4214 = vpop.f32.mrb[0].mxu0
      %v4215 = vadd.f32 0.0, %v4214
      %v4216 = vpop.f32.mrb[0].mxu0
      %v4217 = vpop.f32.mrb[0].mxu0
      %v4218 = vadd.f32 0.0, %v4217
      %v4219 = vpop.f32.mrb[0].mxu0
      %4220 = vmatprep.mubr.bf16.mxu0 0
      %4221 = vmatmul.mubr.bf16.gmra.mrb[0].mxu0 %v4101
      %v4222 = vpop.f32.mrb[0].mxu0
      %v4223 = vadd.f32 0.0, %v4222
      %v4224 = vpop.f32.mrb[0].mxu0
      %v4225 = vpop.f32.mrb[0].mxu0
      %v4226 = vadd.f32 0.0, %v4225
      %v4227 = vpop.f32.mrb[0].mxu0
      %4228 = vmatprep.mubr.bf16.mxu0 0
      %4229 = vmatmul.mubr.bf16.gmra.mrb[0].mxu0 %v4104
      %v4230 = vpop.f32.mrb[0].mxu0
      %v4231 = vadd.f32 0.0, %v4230
      %v4232 = vpop.f32.mrb[0].mxu0
      %v4233 = vpop.f32.mrb[0].mxu0
      %v4234 = vadd.f32 0.0, %v4233
      %v4235 = vpop.f32.mrb[0].mxu0
      %4236 = vmatprep.mubr.bf16.mxu0 0
      %4237 = vmatmul.mubr.bf16.gmra.mrb[0].mxu0 %v4107
      %v4238 = vpop.f32.mrb[0].mxu0
      %v4239 = vadd.f32 0.0, %v4238
      %v4240 = vpop.f32.mrb[0].mxu0
      %v4241 = vpop.f32.mrb[0].mxu0
      %v4242 = vadd.f32 0.0, %v4241
      %v4243 = vpop.f32.mrb[0].mxu0
      %4244 = vmatprep.mubr.bf16.mxu0 0
      %4245 = vmatmul.mubr.bf16.gmra.mrb[0].mxu0 %v4110
      %v4246 = vpop.f32.mrb[0].mxu0
      %v4247 = vadd.f32 0.0, %v4246
      %v4248 = vpop.f32.mrb[0].mxu0
      %v4249 = vpop.f32.mrb[0].mxu0
      %v4250 = vadd.f32 0.0, %v4249
      %v4251 = vpop.f32.mrb[0].mxu0
      %4252 = vmatprep.mubr.bf16.mxu0 0
      %4253 = vmatmul.mubr.bf16.gmra.mrb[0].mxu0 %v4113
      %v4254 = vpop.f32.mrb[0].mxu0
      %v4255 = vadd.f32 0.0, %v4254
      %v4256 = vpop.f32.mrb[0].mxu0
      %v4257 = vpop.f32.mrb[0].mxu0
      %v4258 = vadd.f32 0.0, %v4257
      %v4259 = vpop.f32.mrb[0].mxu0
      %4260 = vmatprep.mubr.bf16.mxu0 0
      %4261 = vmatmul.mubr.bf16.gmra.mrb[0].mxu0 %v4116
      %v4262 = vpop.f32.mrb[0].mxu0
      %v4263 = vadd.f32 0.0, %v4262
      %v4264 = vpop.f32.mrb[0].mxu0
      %v4265 = vpop.f32.mrb[0].mxu0
      %v4266 = vadd.f32 0.0, %v4265
      %v4267 = vpop.f32.mrb[0].mxu0
      %4268 = vmatprep.mubr.bf16.mxu0 0
      %4269 = vmatmul.mubr.bf16.gmra.mrb[0].mxu0 %v4119
      %v4270 = vpop.f32.mrb[0].mxu0
      %v4271 = vadd.f32 0.0, %v4270
      %v4272 = vpop.f32.mrb[0].mxu0
      %v4273 = vpop.f32.mrb[0].mxu0
      %v4274 = vadd.f32 0.0, %v4273
      %v4275 = vpop.f32.mrb[0].mxu0
      %4276 = vmatprep.mubr.bf16.mxu0 0
      %4277 = vmatmul.mubr.bf16.gmra.mrb[0].mxu0 %v4122
      %v4278 = vpop.f32.mrb[0].mxu0
      %v4279 = vadd.f32 0.0, %v4278
      %v4280 = vpop.f32.mrb[0].mxu0
      %v4281 = vpop.f32.mrb[0].mxu0
      %v4282 = vadd.f32 0.0, %v4281
      %v4283 = vpop.f32.mrb[0].mxu0
      %4284 = vmatprep.mubr.bf16.mxu0 0
      %4285 = vmatmul.mubr.bf16.gmra.mrb[0].mxu0 %v4125
      %v4286 = vpop.f32.mrb[0].mxu0
      %v4287 = vadd.f32 0.0, %v4286
      %v4288 = vpop.f32.mrb[0].mxu0
      %v4289 = vpop.f32.mrb[0].mxu0
      %v4290 = vadd.f32 0.0, %v4289
      %v4291 = vpop.f32.mrb[0].mxu0
      %4292 = vmatprep.mubr.bf16.mxu0 0
      %4293 = vmatmul.mubr.bf16.gmra.mrb[0].mxu0 %v4128
      %v4294 = vpop.f32.mrb[0].mxu0
      %v4295 = vadd.f32 0.0, %v4294
      %v4296 = vpop.f32.mrb[0].mxu0
      %v4297 = vpop.f32.mrb[0].mxu0
      %v4298 = vadd.f32 0.0, %v4297
      %v4299 = vpop.f32.mrb[0].mxu0
      %4300 = vmatprep.mubr.bf16.mxu0 0
      %4301 = vmatmul.mubr.bf16.gmra.mrb[0].mxu0 %v4131
      %v4302 = vpop.f32.mrb[0].mxu0
      %v4303 = vadd.f32 0.0, %v4302
      %v4304 = vpop.f32.mrb[0].mxu0
      %v4305 = vpop.f32.mrb[0].mxu0
      %v4306 = vadd.f32 0.0, %v4305
      %v4307 = vpop.f32.mrb[0].mxu0
      %4308 = vmatprep.mubr.bf16.mxu0 0
      %4309 = vmatmul.mubr.bf16.gmra.mrb[0].mxu0 %v4134
      %v4310 = vpop.f32.mrb[0].mxu0
      %v4311 = vadd.f32 0.0, %v4310
      %v4312 = vpop.f32.mrb[0].mxu0
      %v4313 = vpop.f32.mrb[0].mxu0
      %v4314 = vadd.f32 0.0, %v4313
      %v4315 = vpop.f32.mrb[0].mxu0
      %4316 = vmatprep.mubr.bf16.mxu0 0
      %4317 = vmatmul.mubr.bf16.gmra.mrb[0].mxu0 %v4137
      %v4318 = vpop.f32.mrb[0].mxu0
      %v4319 = vadd.f32 0.0, %v4318
      %v4320 = vpop.f32.mrb[0].mxu0
      %v4321 = vpop.f32.mrb[0].mxu0
      %v4322 = vadd.f32 0.0, %v4321
      %v4323 = vpop.f32.mrb[0].mxu0
      %4324 = vmatprep.mubr.bf16.mxu0 0
      %4325 = vmatmul.mubr.bf16.gmra.mrb[0].mxu0 %v4140
      %v4326 = vpop.f32.mrb[0].mxu0
      %v4327 = vadd.f32 0.0, %v4326
      %v4328 = vpop.f32.mrb[0].mxu0
      %v4329 = vpop.f32.mrb[0].mxu0
      %v4330 = vadd.f32 0.0, %v4329
      %v4331 = vpop.f32.mrb[0].mxu0
      %4332 = vmatprep.mubr.bf16.mxu0 0
      %4333 = vmatmul.mubr.bf16.gmra.mrb[0].mxu0 %v4143
      %v4334 = vpop.f32.mrb[0].mxu0
      %v4335 = vadd.f32 0.0, %v4334
      %v4336 = vpop.f32.mrb[0].mxu0
      %v4337 = vpop.f32.mrb[0].mxu0
      %v4338 = vadd.f32 0.0, %v4337
      %v4339 = vpop.f32.mrb[0].mxu0
      %4340 = vdwg.mxu0
      %v4341 = vadd.f32 %v4001, %v4183
      %v4342 = vadd.f32 %v4002, %v4186
      %v4343 = vadd.f32 %v4003, %v4191
      %v4344 = vadd.f32 %v4004, %v4194
      %v4345 = vadd.f32 %v4005, %v4199
      %v4346 = vadd.f32 %v4006, %v4202
      %v4347 = vadd.f32 %v4007, %v4207
      %v4348 = vadd.f32 %v4008, %v4210
      %v4349 = vadd.f32 %v4009, %v4215
      %v4350 = vadd.f32 %v4010, %v4218
      %v4351 = vadd.f32 %v4011, %v4223
      %v4352 = vadd.f32 %v4012, %v4226
      %v4353 = vadd.f32 %v4013, %v4231
      %v4354 = vadd.f32 %v4014, %v4234
      %v4355 = vadd.f32 %v4015, %v4239
      %v4356 = vadd.f32 %v4016, %v4242
      %v4357 = vadd.f32 %v4017, %v4247
      %v4358 = vadd.f32 %v4018, %v4250
      %v4359 = vadd.f32 %v4019, %v4255
      %v4360 = vadd.f32 %v4020, %v4258
      %v4361 = vadd.f32 %v4021, %v4263
      %v4362 = vadd.f32 %v4022, %v4266
      %v4363 = vadd.f32 %v4023, %v4271
      %v4364 = vadd.f32 %v4024, %v4274
      %v4365 = vadd.f32 %v4025, %v4279
      %v4366 = vadd.f32 %v4026, %v4282
      %v4367 = vadd.f32 %v4027, %v4287
      %v4368 = vadd.f32 %v4028, %v4290
      %v4369 = vadd.f32 %v4029, %v4295
      %v4370 = vadd.f32 %v4030, %v4298
      %v4371 = vadd.f32 %v4031, %v4303
      %v4372 = vadd.f32 %v4032, %v4306
      %v4373 = vadd.f32 %v4033, %v4311
      %v4374 = vadd.f32 %v4034, %v4314
      %v4375 = vadd.f32 %v4035, %v4319
      %v4376 = vadd.f32 %v4036, %v4322
      %v4377 = vadd.f32 %v4037, %v4327
      %v4378 = vadd.f32 %v4038, %v4330
      %v4379 = vadd.f32 %v4039, %v4335
      %v4380 = vadd.f32 %v4040, %v4338
      %s4381 = scalar_lea.vmem %s2, 22
      %v4382 = vld [vmem:[%s4381] sm:$0x3]
      %vm4383 = vsmask.f32 2304
      %v4384 = vrot.slane %v494, 5
      %v4385 = vrot.slane %v496, 6
      %v4386 = vor.u32 %v4384, %v4385
      %v4387 = vrot.slane %v505, 5
      %v4388 = vrot.slane %v501, 6
      %v4389 = vor.u32 %v4387, %v4388
      %v4390 = vsel %vm4383, %v4386, %v4389
      %v4391 = vrot.slane %v513, 5
      %v4392 = vrot.slane %v509, 6
      %v4393 = vor.u32 %v4391, %v4392
      %v4394 = vsel %vm4383, %v4389, %v4393
      %v4395 = vrot.slane %v521, 5
      %v4396 = vrot.slane %v517, 6
      %v4397 = vor.u32 %v4395, %v4396
      %v4398 = vsel %vm4383, %v4393, %v4397
      %v4399 = vrot.slane %v529, 5
      %v4400 = vrot.slane %v525, 6
      %v4401 = vor.u32 %v4399, %v4400
      %v4402 = vsel %vm4383, %v4397, %v4401
      %v4403 = vrot.slane %v537, 5
      %v4404 = vrot.slane %v533, 6
      %v4405 = vor.u32 %v4403, %v4404
      %v4406 = vsel %vm4383, %v4401, %v4405
      %v4407 = vrot.slane %v545, 5
      %v4408 = vrot.slane %v541, 6
      %v4409 = vor.u32 %v4407, %v4408
      %v4410 = vsel %vm4383, %v4405, %v4409
      %v4411 = vrot.slane %v553, 5
      %v4412 = vrot.slane %v549, 6
      %v4413 = vor.u32 %v4411, %v4412
      %v4414 = vsel %vm4383, %v4409, %v4413
      %v4415 = vrot.slane %v561, 5
      %v4416 = vrot.slane %v557, 6
      %v4417 = vor.u32 %v4415, %v4416
      %v4418 = vsel %vm4383, %v4413, %v4417
      %v4419 = vrot.slane %v569, 5
      %v4420 = vrot.slane %v565, 6
      %v4421 = vor.u32 %v4419, %v4420
      %v4422 = vsel %vm4383, %v4417, %v4421
      %v4423 = vrot.slane %v577, 5
      %v4424 = vrot.slane %v573, 6
      %v4425 = vor.u32 %v4423, %v4424
      %v4426 = vsel %vm4383, %v4421, %v4425
      %v4427 = vrot.slane %v585, 5
      %v4428 = vrot.slane %v581, 6
      %v4429 = vor.u32 %v4427, %v4428
      %v4430 = vsel %vm4383, %v4425, %v4429
      %v4431 = vrot.slane %v593, 5
      %v4432 = vrot.slane %v589, 6
      %v4433 = vor.u32 %v4431, %v4432
      %v4434 = vsel %vm4383, %v4429, %v4433
      %v4435 = vrot.slane %v601, 5
      %v4436 = vrot.slane %v597, 6
      %v4437 = vor.u32 %v4435, %v4436
      %v4438 = vsel %vm4383, %v4433, %v4437
      %v4439 = vrot.slane %v609, 5
      %v4440 = vrot.slane %v605, 6
      %v4441 = vor.u32 %v4439, %v4440
      %v4442 = vsel %vm4383, %v4437, %v4441
      %v4443 = vrot.slane %v617, 5
      %v4444 = vrot.slane %v613, 6
      %v4445 = vor.u32 %v4443, %v4444
      %v4446 = vsel %vm4383, %v4441, %v4445
      %v4447 = vrot.slane %v625, 5
      %v4448 = vrot.slane %v621, 6
      %v4449 = vor.u32 %v4447, %v4448
      %v4450 = vsel %vm4383, %v4445, %v4449
      %v4451 = vrot.slane %v633, 5
      %v4452 = vrot.slane %v629, 6
      %v4453 = vor.u32 %v4451, %v4452
      %v4454 = vsel %vm4383, %v4449, %v4453
      %v4455 = vrot.slane %v641, 5
      %v4456 = vrot.slane %v637, 6
      %v4457 = vor.u32 %v4455, %v4456
      %v4458 = vsel %vm4383, %v4453, %v4457
      %v4459 = vrot.slane %v649, 5
      %v4460 = vrot.slane %v645, 6
      %v4461 = vor.u32 %v4459, %v4460
      %v4462 = vsel %vm4383, %v4457, %v4461
      %v4463 = vrot.slane %v1573, 5
      %v4464 = vrot.slane %v653, 6
      %v4465 = vor.u32 %v4463, %v4464
      %v4466 = vsel %vm4383, %v4461, %v4465
      %v4468 = vsel %vm657, %v4390, 0
      %v4471 = vsel %vm657, %v4394, 0
      %v4474 = vsel %vm657, %v4398, 0
      %v4477 = vsel %vm657, %v4402, 0
      %v4480 = vsel %vm657, %v4406, 0
      %v4483 = vsel %vm657, %v4410, 0
      %v4486 = vsel %vm657, %v4414, 0
      %v4489 = vsel %vm657, %v4418, 0
      %v4492 = vsel %vm657, %v4422, 0
      %v4495 = vsel %vm657, %v4426, 0
      %v4498 = vsel %vm657, %v4430, 0
      %v4501 = vsel %vm657, %v4434, 0
      %v4504 = vsel %vm657, %v4438, 0
      %v4507 = vsel %vm657, %v4442, 0
      %v4510 = vsel %vm657, %v4446, 0
      %v4513 = vsel %vm657, %v4450, 0
      %v4516 = vsel %vm657, %v4454, 0
      %v4519 = vsel %vm657, %v4458, 0
      %v4522 = vsel %vm657, %v4462, 0
      %v4525 = vsel %vm657, %v4466, 0
      %v4528 = vsel %vm718, %v4382, 0
      %4530 = vmatprep.subr.bf16.mxu0 0
      %4531 = vmatpush1.bf16.msra.mxu0 %v4528
      %4532 = vmatprep.subr.bf16.mxu0 0
      %4533 = vmatpush1.bf16.msra.mxu0 0
      %4534 = vmatprep.subr.bf16.mxu0 0
      %4535 = vmatpush1.bf16.msra.mxu0 0
      %4536 = vmatprep.subr.bf16.mxu0 0
      %4537 = vmatpush1.bf16.msra.mxu0 0
      %4538 = vmatprep.subr.bf16.mxu0 0
      %4539 = vmatpush1.bf16.msra.mxu0 0
      %4540 = vmatprep.subr.bf16.mxu0 0
      %4541 = vmatpush1.bf16.msra.mxu0 0
      %4542 = vmatprep.subr.bf16.mxu0 0
      %4543 = vmatpush1.bf16.msra.mxu0 0
      %4544 = vmatprep.subr.bf16.mxu0 0
      %4545 = vmatpush1.bf16.msra.mxu0 0
      %4546 = vmatprep.subr.bf16.mxu0 0
      %4547 = vmatpush1.bf16.msra.mxu0 0
      %4548 = vmatprep.subr.bf16.mxu0 0
      %4549 = vmatpush1.bf16.msra.mxu0 0
      %4550 = vmatprep.subr.bf16.mxu0 0
      %4551 = vmatpush1.bf16.msra.mxu0 0
      %4552 = vmatprep.subr.bf16.mxu0 0
      %4553 = vmatpush1.bf16.msra.mxu0 0
      %4554 = vmatprep.subr.bf16.mxu0 0
      %4555 = vmatpush1.bf16.msra.mxu0 0
      %4556 = vmatprep.subr.bf16.mxu0 0
      %4557 = vmatpush1.bf16.msra.mxu0 0
      %4558 = vmatprep.subr.bf16.mxu0 0
      %4559 = vmatpush1.bf16.msra.mxu0 0
      %4560 = vmatprep.subr.bf16.mxu0 0
      %4561 = vmatpush1.bf16.msra.mxu0 0
      %4562 = vmatprep.mubr.bf16.mxu0 0
      %4563 = vmatmul.mubr.bf16.gmra.mrb[0].mxu0 %v4468
      %v4564 = vpop.f32.mrb[0].mxu0
      %v4565 = vadd.f32 0.0, %v4564
      %v4566 = vpop.f32.mrb[0].mxu0
      %v4567 = vpop.f32.mrb[0].mxu0
      %v4568 = vadd.f32 0.0, %v4567
      %v4569 = vpop.f32.mrb[0].mxu0
      %4570 = vmatprep.mubr.bf16.mxu0 0
      %4571 = vmatmul.mubr.bf16.gmra.mrb[0].mxu0 %v4471
      %v4572 = vpop.f32.mrb[0].mxu0
      %v4573 = vadd.f32 0.0, %v4572
      %v4574 = vpop.f32.mrb[0].mxu0
      %v4575 = vpop.f32.mrb[0].mxu0
      %v4576 = vadd.f32 0.0, %v4575
      %v4577 = vpop.f32.mrb[0].mxu0
      %4578 = vmatprep.mubr.bf16.mxu0 0
      %4579 = vmatmul.mubr.bf16.gmra.mrb[0].mxu0 %v4474
      %v4580 = vpop.f32.mrb[0].mxu0
      %v4581 = vadd.f32 0.0, %v4580
      %v4582 = vpop.f32.mrb[0].mxu0
      %v4583 = vpop.f32.mrb[0].mxu0
      %v4584 = vadd.f32 0.0, %v4583
      %v4585 = vpop.f32.mrb[0].mxu0
      %4586 = vmatprep.mubr.bf16.mxu0 0
      %4587 = vmatmul.mubr.bf16.gmra.mrb[0].mxu0 %v4477
      %v4588 = vpop.f32.mrb[0].mxu0
      %v4589 = vadd.f32 0.0, %v4588
      %v4590 = vpop.f32.mrb[0].mxu0
      %v4591 = vpop.f32.mrb[0].mxu0
      %v4592 = vadd.f32 0.0, %v4591
      %v4593 = vpop.f32.mrb[0].mxu0
      %4594 = vmatprep.mubr.bf16.mxu0 0
      %4595 = vmatmul.mubr.bf16.gmra.mrb[0].mxu0 %v4480
      %v4596 = vpop.f32.mrb[0].mxu0
      %v4597 = vadd.f32 0.0, %v4596
      %v4598 = vpop.f32.mrb[0].mxu0
      %v4599 = vpop.f32.mrb[0].mxu0
      %v4600 = vadd.f32 0.0, %v4599
      %v4601 = vpop.f32.mrb[0].mxu0
      %4602 = vmatprep.mubr.bf16.mxu0 0
      %4603 = vmatmul.mubr.bf16.gmra.mrb[0].mxu0 %v4483
      %v4604 = vpop.f32.mrb[0].mxu0
      %v4605 = vadd.f32 0.0, %v4604
      %v4606 = vpop.f32.mrb[0].mxu0
      %v4607 = vpop.f32.mrb[0].mxu0
      %v4608 = vadd.f32 0.0, %v4607
      %v4609 = vpop.f32.mrb[0].mxu0
      %4610 = vmatprep.mubr.bf16.mxu0 0
      %4611 = vmatmul.mubr.bf16.gmra.mrb[0].mxu0 %v4486
      %v4612 = vpop.f32.mrb[0].mxu0
      %v4613 = vadd.f32 0.0, %v4612
      %v4614 = vpop.f32.mrb[0].mxu0
      %v4615 = vpop.f32.mrb[0].mxu0
      %v4616 = vadd.f32 0.0, %v4615
      %v4617 = vpop.f32.mrb[0].mxu0
      %4618 = vmatprep.mubr.bf16.mxu0 0
      %4619 = vmatmul.mubr.bf16.gmra.mrb[0].mxu0 %v4489
      %v4620 = vpop.f32.mrb[0].mxu0
      %v4621 = vadd.f32 0.0, %v4620
      %v4622 = vpop.f32.mrb[0].mxu0
      %v4623 = vpop.f32.mrb[0].mxu0
      %v4624 = vadd.f32 0.0, %v4623
      %v4625 = vpop.f32.mrb[0].mxu0
      %4626 = vmatprep.mubr.bf16.mxu0 0
      %4627 = vmatmul.mubr.bf16.gmra.mrb[0].mxu0 %v4492
      %v4628 = vpop.f32.mrb[0].mxu0
      %v4629 = vadd.f32 0.0, %v4628
      %v4630 = vpop.f32.mrb[0].mxu0
      %v4631 = vpop.f32.mrb[0].mxu0
      %v4632 = vadd.f32 0.0, %v4631
      %v4633 = vpop.f32.mrb[0].mxu0
      %4634 = vmatprep.mubr.bf16.mxu0 0
      %4635 = vmatmul.mubr.bf16.gmra.mrb[0].mxu0 %v4495
      %v4636 = vpop.f32.mrb[0].mxu0
      %v4637 = vadd.f32 0.0, %v4636
      %v4638 = vpop.f32.mrb[0].mxu0
      %v4639 = vpop.f32.mrb[0].mxu0
      %v4640 = vadd.f32 0.0, %v4639
      %v4641 = vpop.f32.mrb[0].mxu0
      %4642 = vmatprep.mubr.bf16.mxu0 0
      %4643 = vmatmul.mubr.bf16.gmra.mrb[0].mxu0 %v4498
      %v4644 = vpop.f32.mrb[0].mxu0
      %v4645 = vadd.f32 0.0, %v4644
      %v4646 = vpop.f32.mrb[0].mxu0
      %v4647 = vpop.f32.mrb[0].mxu0
      %v4648 = vadd.f32 0.0, %v4647
      %v4649 = vpop.f32.mrb[0].mxu0
      %4650 = vmatprep.mubr.bf16.mxu0 0
      %4651 = vmatmul.mubr.bf16.gmra.mrb[0].mxu0 %v4501
      %v4652 = vpop.f32.mrb[0].mxu0
      %v4653 = vadd.f32 0.0, %v4652
      %v4654 = vpop.f32.mrb[0].mxu0
      %v4655 = vpop.f32.mrb[0].mxu0
      %v4656 = vadd.f32 0.0, %v4655
      %v4657 = vpop.f32.mrb[0].mxu0
      %4658 = vmatprep.mubr.bf16.mxu0 0
      %4659 = vmatmul.mubr.bf16.gmra.mrb[0].mxu0 %v4504
      %v4660 = vpop.f32.mrb[0].mxu0
      %v4661 = vadd.f32 0.0, %v4660
      %v4662 = vpop.f32.mrb[0].mxu0
      %v4663 = vpop.f32.mrb[0].mxu0
      %v4664 = vadd.f32 0.0, %v4663
      %v4665 = vpop.f32.mrb[0].mxu0
      %4666 = vmatprep.mubr.bf16.mxu0 0
      %4667 = vmatmul.mubr.bf16.gmra.mrb[0].mxu0 %v4507
      %v4668 = vpop.f32.mrb[0].mxu0
      %v4669 = vadd.f32 0.0, %v4668
      %v4670 = vpop.f32.mrb[0].mxu0
      %v4671 = vpop.f32.mrb[0].mxu0
      %v4672 = vadd.f32 0.0, %v4671
      %v4673 = vpop.f32.mrb[0].mxu0
      %4674 = vmatprep.mubr.bf16.mxu0 0
      %4675 = vmatmul.mubr.bf16.gmra.mrb[0].mxu0 %v4510
      %v4676 = vpop.f32.mrb[0].mxu0
      %v4677 = vadd.f32 0.0, %v4676
      %v4678 = vpop.f32.mrb[0].mxu0
      %v4679 = vpop.f32.mrb[0].mxu0
      %v4680 = vadd.f32 0.0, %v4679
      %v4681 = vpop.f32.mrb[0].mxu0
      %4682 = vmatprep.mubr.bf16.mxu0 0
      %4683 = vmatmul.mubr.bf16.gmra.mrb[0].mxu0 %v4513
      %v4684 = vpop.f32.mrb[0].mxu0
      %v4685 = vadd.f32 0.0, %v4684
      %v4686 = vpop.f32.mrb[0].mxu0
      %v4687 = vpop.f32.mrb[0].mxu0
      %v4688 = vadd.f32 0.0, %v4687
      %v4689 = vpop.f32.mrb[0].mxu0
      %4690 = vmatprep.mubr.bf16.mxu0 0
      %4691 = vmatmul.mubr.bf16.gmra.mrb[0].mxu0 %v4516
      %v4692 = vpop.f32.mrb[0].mxu0
      %v4693 = vadd.f32 0.0, %v4692
      %v4694 = vpop.f32.mrb[0].mxu0
      %v4695 = vpop.f32.mrb[0].mxu0
      %v4696 = vadd.f32 0.0, %v4695
      %v4697 = vpop.f32.mrb[0].mxu0
      %4698 = vmatprep.mubr.bf16.mxu0 0
      %4699 = vmatmul.mubr.bf16.gmra.mrb[0].mxu0 %v4519
      %v4700 = vpop.f32.mrb[0].mxu0
      %v4701 = vadd.f32 0.0, %v4700
      %v4702 = vpop.f32.mrb[0].mxu0
      %v4703 = vpop.f32.mrb[0].mxu0
      %v4704 = vadd.f32 0.0, %v4703
      %v4705 = vpop.f32.mrb[0].mxu0
      %4706 = vmatprep.mubr.bf16.mxu0 0
      %4707 = vmatmul.mubr.bf16.gmra.mrb[0].mxu0 %v4522
      %v4708 = vpop.f32.mrb[0].mxu0
      %v4709 = vadd.f32 0.0, %v4708
      %v4710 = vpop.f32.mrb[0].mxu0
      %v4711 = vpop.f32.mrb[0].mxu0
      %v4712 = vadd.f32 0.0, %v4711
      %v4713 = vpop.f32.mrb[0].mxu0
      %4714 = vmatprep.mubr.bf16.mxu0 0
      %4715 = vmatmul.mubr.bf16.gmra.mrb[0].mxu0 %v4525
      %v4716 = vpop.f32.mrb[0].mxu0
      %v4717 = vadd.f32 0.0, %v4716
      %v4718 = vpop.f32.mrb[0].mxu0
      %v4719 = vpop.f32.mrb[0].mxu0
      %v4720 = vadd.f32 0.0, %v4719
      %v4721 = vpop.f32.mrb[0].mxu0
      %4722 = vdwg.mxu0
      %v4723 = vadd.f32 %v4341, %v4565
      %v4724 = vadd.f32 %v4342, %v4568
      %v4725 = vadd.f32 %v4343, %v4573
      %v4726 = vadd.f32 %v4344, %v4576
      %v4727 = vadd.f32 %v4345, %v4581
      %v4728 = vadd.f32 %v4346, %v4584
      %v4729 = vadd.f32 %v4347, %v4589
      %v4730 = vadd.f32 %v4348, %v4592
      %v4731 = vadd.f32 %v4349, %v4597
      %v4732 = vadd.f32 %v4350, %v4600
      %v4733 = vadd.f32 %v4351, %v4605
      %v4734 = vadd.f32 %v4352, %v4608
      %v4735 = vadd.f32 %v4353, %v4613
      %v4736 = vadd.f32 %v4354, %v4616
      %v4737 = vadd.f32 %v4355, %v4621
      %v4738 = vadd.f32 %v4356, %v4624
      %v4739 = vadd.f32 %v4357, %v4629
      %v4740 = vadd.f32 %v4358, %v4632
      %v4741 = vadd.f32 %v4359, %v4637
      %v4742 = vadd.f32 %v4360, %v4640
      %v4743 = vadd.f32 %v4361, %v4645
      %v4744 = vadd.f32 %v4362, %v4648
      %v4745 = vadd.f32 %v4363, %v4653
      %v4746 = vadd.f32 %v4364, %v4656
      %v4747 = vadd.f32 %v4365, %v4661
      %v4748 = vadd.f32 %v4366, %v4664
      %v4749 = vadd.f32 %v4367, %v4669
      %v4750 = vadd.f32 %v4368, %v4672
      %v4751 = vadd.f32 %v4369, %v4677
      %v4752 = vadd.f32 %v4370, %v4680
      %v4753 = vadd.f32 %v4371, %v4685
      %v4754 = vadd.f32 %v4372, %v4688
      %v4755 = vadd.f32 %v4373, %v4693
      %v4756 = vadd.f32 %v4374, %v4696
      %v4757 = vadd.f32 %v4375, %v4701
      %v4758 = vadd.f32 %v4376, %v4704
      %v4759 = vadd.f32 %v4377, %v4709
      %v4760 = vadd.f32 %v4378, %v4712
      %v4761 = vadd.f32 %v4379, %v4717
      %v4762 = vadd.f32 %v4380, %v4720
      %s4763 = scalar_lea.vmem %s2, 24
      %v4764 = vld [vmem:[%s4763] sm:$0x3]
      %vm4765 = vcmask 1041408
      %v4766 = vrot.slane %v459, 6
      %v4767 = vrot.slane %v460, 6
      %v4768 = vsel %vm4765, %v4766, %v4767
      %v4769 = vrot.slane %v461, 6
      %v4770 = vsel %vm4765, %v4767, %v4769
      %v4771 = vrot.slane %v462, 6
      %v4772 = vsel %vm4765, %v4769, %v4771
      %v4773 = vrot.slane %v463, 6
      %v4774 = vsel %vm4765, %v4771, %v4773
      %v4775 = vrot.slane %v464, 6
      %v4776 = vsel %vm4765, %v4773, %v4775
      %v4777 = vrot.slane %v465, 6
      %v4778 = vsel %vm4765, %v4775, %v4777
      %v4779 = vrot.slane %v466, 6
      %v4780 = vsel %vm4765, %v4777, %v4779
      %v4781 = vrot.slane %v467, 6
      %v4782 = vsel %vm4765, %v4779, %v4781
      %v4783 = vrot.slane %v468, 6
      %v4784 = vsel %vm4765, %v4781, %v4783
      %v4785 = vrot.slane %v469, 6
      %v4786 = vsel %vm4765, %v4783, %v4785
      %v4787 = vrot.slane %v470, 6
      %v4788 = vsel %vm4765, %v4785, %v4787
      %v4789 = vrot.slane %v471, 6
      %v4790 = vsel %vm4765, %v4787, %v4789
      %v4791 = vrot.slane %v472, 6
      %v4792 = vsel %vm4765, %v4789, %v4791
      %v4793 = vrot.slane %v473, 6
      %v4794 = vsel %vm4765, %v4791, %v4793
      %v4795 = vrot.slane %v474, 6
      %v4796 = vsel %vm4765, %v4793, %v4795
      %v4797 = vrot.slane %v475, 6
      %v4798 = vsel %vm4765, %v4795, %v4797
      %v4799 = vrot.slane %v476, 6
      %v4800 = vsel %vm4765, %v4797, %v4799
      %v4801 = vrot.slane %v477, 6
      %v4802 = vsel %vm4765, %v4799, %v4801
      %v4803 = vrot.slane %v478, 6
      %v4804 = vsel %vm4765, %v4801, %v4803
      %v4805 = vrot.slane %v487, 6
      %v4806 = vsel %vm4765, %v4803, %v4805
      %v4808 = vsel %vm657, %v4768, 0
      %v4811 = vsel %vm657, %v4770, 0
      %v4814 = vsel %vm657, %v4772, 0
      %v4817 = vsel %vm657, %v4774, 0
      %v4820 = vsel %vm657, %v4776, 0
      %v4823 = vsel %vm657, %v4778, 0
      %v4826 = vsel %vm657, %v4780, 0
      %v4829 = vsel %vm657, %v4782, 0
      %v4832 = vsel %vm657, %v4784, 0
      %v4835 = vsel %vm657, %v4786, 0
      %v4838 = vsel %vm657, %v4788, 0
      %v4841 = vsel %vm657, %v4790, 0
      %v4844 = vsel %vm657, %v4792, 0
      %v4847 = vsel %vm657, %v4794, 0
      %v4850 = vsel %vm657, %v4796, 0
      %v4853 = vsel %vm657, %v4798, 0
      %v4856 = vsel %vm657, %v4800, 0
      %v4859 = vsel %vm657, %v4802, 0
      %v4862 = vsel %vm657, %v4804, 0
      %v4865 = vsel %vm657, %v4806, 0
      %v4868 = vsel %vm718, %v4764, 0
      %4870 = vmatprep.subr.bf16.mxu0 0
      %4871 = vmatpush1.bf16.msra.mxu0 %v4868
      %4872 = vmatprep.subr.bf16.mxu0 0
      %4873 = vmatpush1.bf16.msra.mxu0 0
      %4874 = vmatprep.subr.bf16.mxu0 0
      %4875 = vmatpush1.bf16.msra.mxu0 0
      %4876 = vmatprep.subr.bf16.mxu0 0
      %4877 = vmatpush1.bf16.msra.mxu0 0
      %4878 = vmatprep.subr.bf16.mxu0 0
      %4879 = vmatpush1.bf16.msra.mxu0 0
      %4880 = vmatprep.subr.bf16.mxu0 0
      %4881 = vmatpush1.bf16.msra.mxu0 0
      %4882 = vmatprep.subr.bf16.mxu0 0
      %4883 = vmatpush1.bf16.msra.mxu0 0
      %4884 = vmatprep.subr.bf16.mxu0 0
      %4885 = vmatpush1.bf16.msra.mxu0 0
      %4886 = vmatprep.subr.bf16.mxu0 0
      %4887 = vmatpush1.bf16.msra.mxu0 0
      %4888 = vmatprep.subr.bf16.mxu0 0
      %4889 = vmatpush1.bf16.msra.mxu0 0
      %4890 = vmatprep.subr.bf16.mxu0 0
      %4891 = vmatpush1.bf16.msra.mxu0 0
      %4892 = vmatprep.subr.bf16.mxu0 0
      %4893 = vmatpush1.bf16.msra.mxu0 0
      %4894 = vmatprep.subr.bf16.mxu0 0
      %4895 = vmatpush1.bf16.msra.mxu0 0
      %4896 = vmatprep.subr.bf16.mxu0 0
      %4897 = vmatpush1.bf16.msra.mxu0 0
      %4898 = vmatprep.subr.bf16.mxu0 0
      %4899 = vmatpush1.bf16.msra.mxu0 0
      %4900 = vmatprep.subr.bf16.mxu0 0
      %4901 = vmatpush1.bf16.msra.mxu0 0
      %4902 = vmatprep.mubr.bf16.mxu0 0
      %4903 = vmatmul.mubr.bf16.gmra.mrb[0].mxu0 %v4808
      %v4904 = vpop.f32.mrb[0].mxu0
      %v4905 = vadd.f32 0.0, %v4904
      %v4906 = vpop.f32.mrb[0].mxu0
      %v4907 = vpop.f32.mrb[0].mxu0
      %v4908 = vadd.f32 0.0, %v4907
      %v4909 = vpop.f32.mrb[0].mxu0
      %4910 = vmatprep.mubr.bf16.mxu0 0
      %4911 = vmatmul.mubr.bf16.gmra.mrb[0].mxu0 %v4811
      %v4912 = vpop.f32.mrb[0].mxu0
      %v4913 = vadd.f32 0.0, %v4912
      %v4914 = vpop.f32.mrb[0].mxu0
      %v4915 = vpop.f32.mrb[0].mxu0
      %v4916 = vadd.f32 0.0, %v4915
      %v4917 = vpop.f32.mrb[0].mxu0
      %4918 = vmatprep.mubr.bf16.mxu0 0
      %4919 = vmatmul.mubr.bf16.gmra.mrb[0].mxu0 %v4814
      %v4920 = vpop.f32.mrb[0].mxu0
      %v4921 = vadd.f32 0.0, %v4920
      %v4922 = vpop.f32.mrb[0].mxu0
      %v4923 = vpop.f32.mrb[0].mxu0
      %v4924 = vadd.f32 0.0, %v4923
      %v4925 = vpop.f32.mrb[0].mxu0
      %4926 = vmatprep.mubr.bf16.mxu0 0
      %4927 = vmatmul.mubr.bf16.gmra.mrb[0].mxu0 %v4817
      %v4928 = vpop.f32.mrb[0].mxu0
      %v4929 = vadd.f32 0.0, %v4928
      %v4930 = vpop.f32.mrb[0].mxu0
      %v4931 = vpop.f32.mrb[0].mxu0
      %v4932 = vadd.f32 0.0, %v4931
      %v4933 = vpop.f32.mrb[0].mxu0
      %4934 = vmatprep.mubr.bf16.mxu0 0
      %4935 = vmatmul.mubr.bf16.gmra.mrb[0].mxu0 %v4820
      %v4936 = vpop.f32.mrb[0].mxu0
      %v4937 = vadd.f32 0.0, %v4936
      %v4938 = vpop.f32.mrb[0].mxu0
      %v4939 = vpop.f32.mrb[0].mxu0
      %v4940 = vadd.f32 0.0, %v4939
      %v4941 = vpop.f32.mrb[0].mxu0
      %4942 = vmatprep.mubr.bf16.mxu0 0
      %4943 = vmatmul.mubr.bf16.gmra.mrb[0].mxu0 %v4823
      %v4944 = vpop.f32.mrb[0].mxu0
      %v4945 = vadd.f32 0.0, %v4944
      %v4946 = vpop.f32.mrb[0].mxu0
      %v4947 = vpop.f32.mrb[0].mxu0
      %v4948 = vadd.f32 0.0, %v4947
      %v4949 = vpop.f32.mrb[0].mxu0
      %4950 = vmatprep.mubr.bf16.mxu0 0
      %4951 = vmatmul.mubr.bf16.gmra.mrb[0].mxu0 %v4826
      %v4952 = vpop.f32.mrb[0].mxu0
      %v4953 = vadd.f32 0.0, %v4952
      %v4954 = vpop.f32.mrb[0].mxu0
      %v4955 = vpop.f32.mrb[0].mxu0
      %v4956 = vadd.f32 0.0, %v4955
      %v4957 = vpop.f32.mrb[0].mxu0
      %4958 = vmatprep.mubr.bf16.mxu0 0
      %4959 = vmatmul.mubr.bf16.gmra.mrb[0].mxu0 %v4829
      %v4960 = vpop.f32.mrb[0].mxu0
      %v4961 = vadd.f32 0.0, %v4960
      %v4962 = vpop.f32.mrb[0].mxu0
      %v4963 = vpop.f32.mrb[0].mxu0
      %v4964 = vadd.f32 0.0, %v4963
      %v4965 = vpop.f32.mrb[0].mxu0
      %4966 = vmatprep.mubr.bf16.mxu0 0
      %4967 = vmatmul.mubr.bf16.gmra.mrb[0].mxu0 %v4832
      %v4968 = vpop.f32.mrb[0].mxu0
      %v4969 = vadd.f32 0.0, %v4968
      %v4970 = vpop.f32.mrb[0].mxu0
      %v4971 = vpop.f32.mrb[0].mxu0
      %v4972 = vadd.f32 0.0, %v4971
      %v4973 = vpop.f32.mrb[0].mxu0
      %4974 = vmatprep.mubr.bf16.mxu0 0
      %4975 = vmatmul.mubr.bf16.gmra.mrb[0].mxu0 %v4835
      %v4976 = vpop.f32.mrb[0].mxu0
      %v4977 = vadd.f32 0.0, %v4976
      %v4978 = vpop.f32.mrb[0].mxu0
      %v4979 = vpop.f32.mrb[0].mxu0
      %v4980 = vadd.f32 0.0, %v4979
      %v4981 = vpop.f32.mrb[0].mxu0
      %4982 = vmatprep.mubr.bf16.mxu0 0
      %4983 = vmatmul.mubr.bf16.gmra.mrb[0].mxu0 %v4838
      %v4984 = vpop.f32.mrb[0].mxu0
      %v4985 = vadd.f32 0.0, %v4984
      %v4986 = vpop.f32.mrb[0].mxu0
      %v4987 = vpop.f32.mrb[0].mxu0
      %v4988 = vadd.f32 0.0, %v4987
      %v4989 = vpop.f32.mrb[0].mxu0
      %4990 = vmatprep.mubr.bf16.mxu0 0
      %4991 = vmatmul.mubr.bf16.gmra.mrb[0].mxu0 %v4841
      %v4992 = vpop.f32.mrb[0].mxu0
      %v4993 = vadd.f32 0.0, %v4992
      %v4994 = vpop.f32.mrb[0].mxu0
      %v4995 = vpop.f32.mrb[0].mxu0
      %v4996 = vadd.f32 0.0, %v4995
      %v4997 = vpop.f32.mrb[0].mxu0
      %4998 = vmatprep.mubr.bf16.mxu0 0
      %4999 = vmatmul.mubr.bf16.gmra.mrb[0].mxu0 %v4844
      %v5000 = vpop.f32.mrb[0].mxu0
      %v5001 = vadd.f32 0.0, %v5000
      %v5002 = vpop.f32.mrb[0].mxu0
      %v5003 = vpop.f32.mrb[0].mxu0
      %v5004 = vadd.f32 0.0, %v5003
      %v5005 = vpop.f32.mrb[0].mxu0
      %5006 = vmatprep.mubr.bf16.mxu0 0
      %5007 = vmatmul.mubr.bf16.gmra.mrb[0].mxu0 %v4847
      %v5008 = vpop.f32.mrb[0].mxu0
      %v5009 = vadd.f32 0.0, %v5008
      %v5010 = vpop.f32.mrb[0].mxu0
      %v5011 = vpop.f32.mrb[0].mxu0
      %v5012 = vadd.f32 0.0, %v5011
      %v5013 = vpop.f32.mrb[0].mxu0
      %5014 = vmatprep.mubr.bf16.mxu0 0
      %5015 = vmatmul.mubr.bf16.gmra.mrb[0].mxu0 %v4850
      %v5016 = vpop.f32.mrb[0].mxu0
      %v5017 = vadd.f32 0.0, %v5016
      %v5018 = vpop.f32.mrb[0].mxu0
      %v5019 = vpop.f32.mrb[0].mxu0
      %v5020 = vadd.f32 0.0, %v5019
      %v5021 = vpop.f32.mrb[0].mxu0
      %5022 = vmatprep.mubr.bf16.mxu0 0
      %5023 = vmatmul.mubr.bf16.gmra.mrb[0].mxu0 %v4853
      %v5024 = vpop.f32.mrb[0].mxu0
      %v5025 = vadd.f32 0.0, %v5024
      %v5026 = vpop.f32.mrb[0].mxu0
      %v5027 = vpop.f32.mrb[0].mxu0
      %v5028 = vadd.f32 0.0, %v5027
      %v5029 = vpop.f32.mrb[0].mxu0
      %5030 = vmatprep.mubr.bf16.mxu0 0
      %5031 = vmatmul.mubr.bf16.gmra.mrb[0].mxu0 %v4856
      %v5032 = vpop.f32.mrb[0].mxu0
      %v5033 = vadd.f32 0.0, %v5032
      %v5034 = vpop.f32.mrb[0].mxu0
      %v5035 = vpop.f32.mrb[0].mxu0
      %v5036 = vadd.f32 0.0, %v5035
      %v5037 = vpop.f32.mrb[0].mxu0
      %5038 = vmatprep.mubr.bf16.mxu0 0
      %5039 = vmatmul.mubr.bf16.gmra.mrb[0].mxu0 %v4859
      %v5040 = vpop.f32.mrb[0].mxu0
      %v5041 = vadd.f32 0.0, %v5040
      %v5042 = vpop.f32.mrb[0].mxu0
      %v5043 = vpop.f32.mrb[0].mxu0
      %v5044 = vadd.f32 0.0, %v5043
      %v5045 = vpop.f32.mrb[0].mxu0
      %5046 = vmatprep.mubr.bf16.mxu0 0
      %5047 = vmatmul.mubr.bf16.gmra.mrb[0].mxu0 %v4862
      %v5048 = vpop.f32.mrb[0].mxu0
      %v5049 = vadd.f32 0.0, %v5048
      %v5050 = vpop.f32.mrb[0].mxu0
      %v5051 = vpop.f32.mrb[0].mxu0
      %v5052 = vadd.f32 0.0, %v5051
      %v5053 = vpop.f32.mrb[0].mxu0
      %5054 = vmatprep.mubr.bf16.mxu0 0
      %5055 = vmatmul.mubr.bf16.gmra.mrb[0].mxu0 %v4865
      %v5056 = vpop.f32.mrb[0].mxu0
      %v5057 = vadd.f32 0.0, %v5056
      %v5058 = vpop.f32.mrb[0].mxu0
      %v5059 = vpop.f32.mrb[0].mxu0
      %v5060 = vadd.f32 0.0, %v5059
      %v5061 = vpop.f32.mrb[0].mxu0
      %5062 = vdwg.mxu0
      %v5063 = vadd.f32 %v4723, %v4905
      %v5064 = vadd.f32 %v4724, %v4908
      %v5065 = vadd.f32 %v4725, %v4913
      %v5066 = vadd.f32 %v4726, %v4916
      %v5067 = vadd.f32 %v4727, %v4921
      %v5068 = vadd.f32 %v4728, %v4924
      %v5069 = vadd.f32 %v4729, %v4929
      %v5070 = vadd.f32 %v4730, %v4932
      %v5071 = vadd.f32 %v4731, %v4937
      %v5072 = vadd.f32 %v4732, %v4940
      %v5073 = vadd.f32 %v4733, %v4945
      %v5074 = vadd.f32 %v4734, %v4948
      %v5075 = vadd.f32 %v4735, %v4953
      %v5076 = vadd.f32 %v4736, %v4956
      %v5077 = vadd.f32 %v4737, %v4961
      %v5078 = vadd.f32 %v4738, %v4964
      %v5079 = vadd.f32 %v4739, %v4969
      %v5080 = vadd.f32 %v4740, %v4972
      %v5081 = vadd.f32 %v4741, %v4977
      %v5082 = vadd.f32 %v4742, %v4980
      %v5083 = vadd.f32 %v4743, %v4985
      %v5084 = vadd.f32 %v4744, %v4988
      %v5085 = vadd.f32 %v4745, %v4993
      %v5086 = vadd.f32 %v4746, %v4996
      %v5087 = vadd.f32 %v4747, %v5001
      %v5088 = vadd.f32 %v4748, %v5004
      %v5089 = vadd.f32 %v4749, %v5009
      %v5090 = vadd.f32 %v4750, %v5012
      %v5091 = vadd.f32 %v4751, %v5017
      %v5092 = vadd.f32 %v4752, %v5020
      %v5093 = vadd.f32 %v4753, %v5025
      %v5094 = vadd.f32 %v4754, %v5028
      %v5095 = vadd.f32 %v4755, %v5033
      %v5096 = vadd.f32 %v4756, %v5036
      %v5097 = vadd.f32 %v4757, %v5041
      %v5098 = vadd.f32 %v4758, %v5044
      %v5099 = vadd.f32 %v4759, %v5049
      %v5100 = vadd.f32 %v4760, %v5052
      %v5101 = vadd.f32 %v4761, %v5057
      %v5102 = vadd.f32 %v4762, %v5060
      %s5103 = scalar_lea.vmem %s2, 26
      %v5104 = vld [vmem:[%s5103] sm:$0x3]
      %vm5105 = vsmask.f32 1280
      %v5106 = vrot.slane %v494, 6
      %v5107 = vrot.slane %v496, 7
      %v5108 = vor.u32 %v5106, %v5107
      %v5109 = vrot.slane %v505, 6
      %v5110 = vrot.slane %v501, 7
      %v5111 = vor.u32 %v5109, %v5110
      %v5112 = vsel %vm5105, %v5108, %v5111
      %v5113 = vrot.slane %v513, 6
      %v5114 = vrot.slane %v509, 7
      %v5115 = vor.u32 %v5113, %v5114
      %v5116 = vsel %vm5105, %v5111, %v5115
      %v5117 = vrot.slane %v521, 6
      %v5118 = vrot.slane %v517, 7
      %v5119 = vor.u32 %v5117, %v5118
      %v5120 = vsel %vm5105, %v5115, %v5119
      %v5121 = vrot.slane %v529, 6
      %v5122 = vrot.slane %v525, 7
      %v5123 = vor.u32 %v5121, %v5122
      %v5124 = vsel %vm5105, %v5119, %v5123
      %v5125 = vrot.slane %v537, 6
      %v5126 = vrot.slane %v533, 7
      %v5127 = vor.u32 %v5125, %v5126
      %v5128 = vsel %vm5105, %v5123, %v5127
      %v5129 = vrot.slane %v545, 6
      %v5130 = vrot.slane %v541, 7
      %v5131 = vor.u32 %v5129, %v5130
      %v5132 = vsel %vm5105, %v5127, %v5131
      %v5133 = vrot.slane %v553, 6
      %v5134 = vrot.slane %v549, 7
      %v5135 = vor.u32 %v5133, %v5134
      %v5136 = vsel %vm5105, %v5131, %v5135
      %v5137 = vrot.slane %v561, 6
      %v5138 = vrot.slane %v557, 7
      %v5139 = vor.u32 %v5137, %v5138
      %v5140 = vsel %vm5105, %v5135, %v5139
      %v5141 = vrot.slane %v569, 6
      %v5142 = vrot.slane %v565, 7
      %v5143 = vor.u32 %v5141, %v5142
      %v5144 = vsel %vm5105, %v5139, %v5143
      %v5145 = vrot.slane %v577, 6
      %v5146 = vrot.slane %v573, 7
      %v5147 = vor.u32 %v5145, %v5146
      %v5148 = vsel %vm5105, %v5143, %v5147
      %v5149 = vrot.slane %v585, 6
      %v5150 = vrot.slane %v581, 7
      %v5151 = vor.u32 %v5149, %v5150
      %v5152 = vsel %vm5105, %v5147, %v5151
      %v5153 = vrot.slane %v593, 6
      %v5154 = vrot.slane %v589, 7
      %v5155 = vor.u32 %v5153, %v5154
      %v5156 = vsel %vm5105, %v5151, %v5155
      %v5157 = vrot.slane %v601, 6
      %v5158 = vrot.slane %v597, 7
      %v5159 = vor.u32 %v5157, %v5158
      %v5160 = vsel %vm5105, %v5155, %v5159
      %v5161 = vrot.slane %v609, 6
      %v5162 = vrot.slane %v605, 7
      %v5163 = vor.u32 %v5161, %v5162
      %v5164 = vsel %vm5105, %v5159, %v5163
      %v5165 = vrot.slane %v617, 6
      %v5166 = vrot.slane %v613, 7
      %v5167 = vor.u32 %v5165, %v5166
      %v5168 = vsel %vm5105, %v5163, %v5167
      %v5169 = vrot.slane %v625, 6
      %v5170 = vrot.slane %v621, 7
      %v5171 = vor.u32 %v5169, %v5170
      %v5172 = vsel %vm5105, %v5167, %v5171
      %v5173 = vrot.slane %v633, 6
      %v5174 = vrot.slane %v629, 7
      %v5175 = vor.u32 %v5173, %v5174
      %v5176 = vsel %vm5105, %v5171, %v5175
      %v5177 = vrot.slane %v641, 6
      %v5178 = vrot.slane %v637, 7
      %v5179 = vor.u32 %v5177, %v5178
      %v5180 = vsel %vm5105, %v5175, %v5179
      %v5181 = vrot.slane %v649, 6
      %v5182 = vrot.slane %v645, 7
      %v5183 = vor.u32 %v5181, %v5182
      %v5184 = vsel %vm5105, %v5179, %v5183
      %v5185 = vrot.slane %v1573, 6
      %v5186 = vrot.slane %v653, 7
      %v5187 = vor.u32 %v5185, %v5186
      %v5188 = vsel %vm5105, %v5183, %v5187
      %v5190 = vsel %vm657, %v5112, 0
      %v5193 = vsel %vm657, %v5116, 0
      %v5196 = vsel %vm657, %v5120, 0
      %v5199 = vsel %vm657, %v5124, 0
      %v5202 = vsel %vm657, %v5128, 0
      %v5205 = vsel %vm657, %v5132, 0
      %v5208 = vsel %vm657, %v5136, 0
      %v5211 = vsel %vm657, %v5140, 0
      %v5214 = vsel %vm657, %v5144, 0
      %v5217 = vsel %vm657, %v5148, 0
      %v5220 = vsel %vm657, %v5152, 0
      %v5223 = vsel %vm657, %v5156, 0
      %v5226 = vsel %vm657, %v5160, 0
      %v5229 = vsel %vm657, %v5164, 0
      %v5232 = vsel %vm657, %v5168, 0
      %v5235 = vsel %vm657, %v5172, 0
      %v5238 = vsel %vm657, %v5176, 0
      %v5241 = vsel %vm657, %v5180, 0
      %v5244 = vsel %vm657, %v5184, 0
      %v5247 = vsel %vm657, %v5188, 0
      %v5250 = vsel %vm718, %v5104, 0
      %5252 = vmatprep.subr.bf16.mxu0 0
      %5253 = vmatpush1.bf16.msra.mxu0 %v5250
      %5254 = vmatprep.subr.bf16.mxu0 0
      %5255 = vmatpush1.bf16.msra.mxu0 0
      %5256 = vmatprep.subr.bf16.mxu0 0
      %5257 = vmatpush1.bf16.msra.mxu0 0
      %5258 = vmatprep.subr.bf16.mxu0 0
      %5259 = vmatpush1.bf16.msra.mxu0 0
      %5260 = vmatprep.subr.bf16.mxu0 0
      %5261 = vmatpush1.bf16.msra.mxu0 0
      %5262 = vmatprep.subr.bf16.mxu0 0
      %5263 = vmatpush1.bf16.msra.mxu0 0
      %5264 = vmatprep.subr.bf16.mxu0 0
      %5265 = vmatpush1.bf16.msra.mxu0 0
      %5266 = vmatprep.subr.bf16.mxu0 0
      %5267 = vmatpush1.bf16.msra.mxu0 0
      %5268 = vmatprep.subr.bf16.mxu0 0
      %5269 = vmatpush1.bf16.msra.mxu0 0
      %5270 = vmatprep.subr.bf16.mxu0 0
      %5271 = vmatpush1.bf16.msra.mxu0 0
      %5272 = vmatprep.subr.bf16.mxu0 0
      %5273 = vmatpush1.bf16.msra.mxu0 0
      %5274 = vmatprep.subr.bf16.mxu0 0
      %5275 = vmatpush1.bf16.msra.mxu0 0
      %5276 = vmatprep.subr.bf16.mxu0 0
      %5277 = vmatpush1.bf16.msra.mxu0 0
      %5278 = vmatprep.subr.bf16.mxu0 0
      %5279 = vmatpush1.bf16.msra.mxu0 0
      %5280 = vmatprep.subr.bf16.mxu0 0
      %5281 = vmatpush1.bf16.msra.mxu0 0
      %5282 = vmatprep.subr.bf16.mxu0 0
      %5283 = vmatpush1.bf16.msra.mxu0 0
      %5284 = vmatprep.mubr.bf16.mxu0 0
      %5285 = vmatmul.mubr.bf16.gmra.mrb[0].mxu0 %v5190
      %v5286 = vpop.f32.mrb[0].mxu0
      %v5287 = vadd.f32 0.0, %v5286
      %v5288 = vpop.f32.mrb[0].mxu0
      %v5289 = vpop.f32.mrb[0].mxu0
      %v5290 = vadd.f32 0.0, %v5289
      %v5291 = vpop.f32.mrb[0].mxu0
      %5292 = vmatprep.mubr.bf16.mxu0 0
      %5293 = vmatmul.mubr.bf16.gmra.mrb[0].mxu0 %v5193
      %v5294 = vpop.f32.mrb[0].mxu0
      %v5295 = vadd.f32 0.0, %v5294
      %v5296 = vpop.f32.mrb[0].mxu0
      %v5297 = vpop.f32.mrb[0].mxu0
      %v5298 = vadd.f32 0.0, %v5297
      %v5299 = vpop.f32.mrb[0].mxu0
      %5300 = vmatprep.mubr.bf16.mxu0 0
      %5301 = vmatmul.mubr.bf16.gmra.mrb[0].mxu0 %v5196
      %v5302 = vpop.f32.mrb[0].mxu0
      %v5303 = vadd.f32 0.0, %v5302
      %v5304 = vpop.f32.mrb[0].mxu0
      %v5305 = vpop.f32.mrb[0].mxu0
      %v5306 = vadd.f32 0.0, %v5305
      %v5307 = vpop.f32.mrb[0].mxu0
      %5308 = vmatprep.mubr.bf16.mxu0 0
      %5309 = vmatmul.mubr.bf16.gmra.mrb[0].mxu0 %v5199
      %v5310 = vpop.f32.mrb[0].mxu0
      %v5311 = vadd.f32 0.0, %v5310
      %v5312 = vpop.f32.mrb[0].mxu0
      %v5313 = vpop.f32.mrb[0].mxu0
      %v5314 = vadd.f32 0.0, %v5313
      %v5315 = vpop.f32.mrb[0].mxu0
      %5316 = vmatprep.mubr.bf16.mxu0 0
      %5317 = vmatmul.mubr.bf16.gmra.mrb[0].mxu0 %v5202
      %v5318 = vpop.f32.mrb[0].mxu0
      %v5319 = vadd.f32 0.0, %v5318
      %v5320 = vpop.f32.mrb[0].mxu0
      %v5321 = vpop.f32.mrb[0].mxu0
      %v5322 = vadd.f32 0.0, %v5321
      %v5323 = vpop.f32.mrb[0].mxu0
      %5324 = vmatprep.mubr.bf16.mxu0 0
      %5325 = vmatmul.mubr.bf16.gmra.mrb[0].mxu0 %v5205
      %v5326 = vpop.f32.mrb[0].mxu0
      %v5327 = vadd.f32 0.0, %v5326
      %v5328 = vpop.f32.mrb[0].mxu0
      %v5329 = vpop.f32.mrb[0].mxu0
      %v5330 = vadd.f32 0.0, %v5329
      %v5331 = vpop.f32.mrb[0].mxu0
      %5332 = vmatprep.mubr.bf16.mxu0 0
      %5333 = vmatmul.mubr.bf16.gmra.mrb[0].mxu0 %v5208
      %v5334 = vpop.f32.mrb[0].mxu0
      %v5335 = vadd.f32 0.0, %v5334
      %v5336 = vpop.f32.mrb[0].mxu0
      %v5337 = vpop.f32.mrb[0].mxu0
      %v5338 = vadd.f32 0.0, %v5337
      %v5339 = vpop.f32.mrb[0].mxu0
      %5340 = vmatprep.mubr.bf16.mxu0 0
      %5341 = vmatmul.mubr.bf16.gmra.mrb[0].mxu0 %v5211
      %v5342 = vpop.f32.mrb[0].mxu0
      %v5343 = vadd.f32 0.0, %v5342
      %v5344 = vpop.f32.mrb[0].mxu0
      %v5345 = vpop.f32.mrb[0].mxu0
      %v5346 = vadd.f32 0.0, %v5345
      %v5347 = vpop.f32.mrb[0].mxu0
      %5348 = vmatprep.mubr.bf16.mxu0 0
      %5349 = vmatmul.mubr.bf16.gmra.mrb[0].mxu0 %v5214
      %v5350 = vpop.f32.mrb[0].mxu0
      %v5351 = vadd.f32 0.0, %v5350
      %v5352 = vpop.f32.mrb[0].mxu0
      %v5353 = vpop.f32.mrb[0].mxu0
      %v5354 = vadd.f32 0.0, %v5353
      %v5355 = vpop.f32.mrb[0].mxu0
      %5356 = vmatprep.mubr.bf16.mxu0 0
      %5357 = vmatmul.mubr.bf16.gmra.mrb[0].mxu0 %v5217
      %v5358 = vpop.f32.mrb[0].mxu0
      %v5359 = vadd.f32 0.0, %v5358
      %v5360 = vpop.f32.mrb[0].mxu0
      %v5361 = vpop.f32.mrb[0].mxu0
      %v5362 = vadd.f32 0.0, %v5361
      %v5363 = vpop.f32.mrb[0].mxu0
      %5364 = vmatprep.mubr.bf16.mxu0 0
      %5365 = vmatmul.mubr.bf16.gmra.mrb[0].mxu0 %v5220
      %v5366 = vpop.f32.mrb[0].mxu0
      %v5367 = vadd.f32 0.0, %v5366
      %v5368 = vpop.f32.mrb[0].mxu0
      %v5369 = vpop.f32.mrb[0].mxu0
      %v5370 = vadd.f32 0.0, %v5369
      %v5371 = vpop.f32.mrb[0].mxu0
      %5372 = vmatprep.mubr.bf16.mxu0 0
      %5373 = vmatmul.mubr.bf16.gmra.mrb[0].mxu0 %v5223
      %v5374 = vpop.f32.mrb[0].mxu0
      %v5375 = vadd.f32 0.0, %v5374
      %v5376 = vpop.f32.mrb[0].mxu0
      %v5377 = vpop.f32.mrb[0].mxu0
      %v5378 = vadd.f32 0.0, %v5377
      %v5379 = vpop.f32.mrb[0].mxu0
      %5380 = vmatprep.mubr.bf16.mxu0 0
      %5381 = vmatmul.mubr.bf16.gmra.mrb[0].mxu0 %v5226
      %v5382 = vpop.f32.mrb[0].mxu0
      %v5383 = vadd.f32 0.0, %v5382
      %v5384 = vpop.f32.mrb[0].mxu0
      %v5385 = vpop.f32.mrb[0].mxu0
      %v5386 = vadd.f32 0.0, %v5385
      %v5387 = vpop.f32.mrb[0].mxu0
      %5388 = vmatprep.mubr.bf16.mxu0 0
      %5389 = vmatmul.mubr.bf16.gmra.mrb[0].mxu0 %v5229
      %v5390 = vpop.f32.mrb[0].mxu0
      %v5391 = vadd.f32 0.0, %v5390
      %v5392 = vpop.f32.mrb[0].mxu0
      %v5393 = vpop.f32.mrb[0].mxu0
      %v5394 = vadd.f32 0.0, %v5393
      %v5395 = vpop.f32.mrb[0].mxu0
      %5396 = vmatprep.mubr.bf16.mxu0 0
      %5397 = vmatmul.mubr.bf16.gmra.mrb[0].mxu0 %v5232
      %v5398 = vpop.f32.mrb[0].mxu0
      %v5399 = vadd.f32 0.0, %v5398
      %v5400 = vpop.f32.mrb[0].mxu0
      %v5401 = vpop.f32.mrb[0].mxu0
      %v5402 = vadd.f32 0.0, %v5401
      %v5403 = vpop.f32.mrb[0].mxu0
      %5404 = vmatprep.mubr.bf16.mxu0 0
      %5405 = vmatmul.mubr.bf16.gmra.mrb[0].mxu0 %v5235
      %v5406 = vpop.f32.mrb[0].mxu0
      %v5407 = vadd.f32 0.0, %v5406
      %v5408 = vpop.f32.mrb[0].mxu0
      %v5409 = vpop.f32.mrb[0].mxu0
      %v5410 = vadd.f32 0.0, %v5409
      %v5411 = vpop.f32.mrb[0].mxu0
      %5412 = vmatprep.mubr.bf16.mxu0 0
      %5413 = vmatmul.mubr.bf16.gmra.mrb[0].mxu0 %v5238
      %v5414 = vpop.f32.mrb[0].mxu0
      %v5415 = vadd.f32 0.0, %v5414
      %v5416 = vpop.f32.mrb[0].mxu0
      %v5417 = vpop.f32.mrb[0].mxu0
      %v5418 = vadd.f32 0.0, %v5417
      %v5419 = vpop.f32.mrb[0].mxu0
      %5420 = vmatprep.mubr.bf16.mxu0 0
      %5421 = vmatmul.mubr.bf16.gmra.mrb[0].mxu0 %v5241
      %v5422 = vpop.f32.mrb[0].mxu0
      %v5423 = vadd.f32 0.0, %v5422
      %v5424 = vpop.f32.mrb[0].mxu0
      %v5425 = vpop.f32.mrb[0].mxu0
      %v5426 = vadd.f32 0.0, %v5425
      %v5427 = vpop.f32.mrb[0].mxu0
      %5428 = vmatprep.mubr.bf16.mxu0 0
      %5429 = vmatmul.mubr.bf16.gmra.mrb[0].mxu0 %v5244
      %v5430 = vpop.f32.mrb[0].mxu0
      %v5431 = vadd.f32 0.0, %v5430
      %v5432 = vpop.f32.mrb[0].mxu0
      %v5433 = vpop.f32.mrb[0].mxu0
      %v5434 = vadd.f32 0.0, %v5433
      %v5435 = vpop.f32.mrb[0].mxu0
      %5436 = vmatprep.mubr.bf16.mxu0 0
      %5437 = vmatmul.mubr.bf16.gmra.mrb[0].mxu0 %v5247
      %v5438 = vpop.f32.mrb[0].mxu0
      %v5439 = vadd.f32 0.0, %v5438
      %v5440 = vpop.f32.mrb[0].mxu0
      %v5441 = vpop.f32.mrb[0].mxu0
      %v5442 = vadd.f32 0.0, %v5441
      %v5443 = vpop.f32.mrb[0].mxu0
      %5444 = vdwg.mxu0
      %v5445 = vadd.f32 %v5063, %v5287
      %v5446 = vadd.f32 %v5064, %v5290
      %v5447 = vadd.f32 %v5065, %v5295
      %v5448 = vadd.f32 %v5066, %v5298
      %v5449 = vadd.f32 %v5067, %v5303
      %v5450 = vadd.f32 %v5068, %v5306
      %v5451 = vadd.f32 %v5069, %v5311
      %v5452 = vadd.f32 %v5070, %v5314
      %v5453 = vadd.f32 %v5071, %v5319
      %v5454 = vadd.f32 %v5072, %v5322
      %v5455 = vadd.f32 %v5073, %v5327
      %v5456 = vadd.f32 %v5074, %v5330
      %v5457 = vadd.f32 %v5075, %v5335
      %v5458 = vadd.f32 %v5076, %v5338
      %v5459 = vadd.f32 %v5077, %v5343
      %v5460 = vadd.f32 %v5078, %v5346
      %v5461 = vadd.f32 %v5079, %v5351
      %v5462 = vadd.f32 %v5080, %v5354
      %v5463 = vadd.f32 %v5081, %v5359
      %v5464 = vadd.f32 %v5082, %v5362
      %v5465 = vadd.f32 %v5083, %v5367
      %v5466 = vadd.f32 %v5084, %v5370
      %v5467 = vadd.f32 %v5085, %v5375
      %v5468 = vadd.f32 %v5086, %v5378
      %v5469 = vadd.f32 %v5087, %v5383
      %v5470 = vadd.f32 %v5088, %v5386
      %v5471 = vadd.f32 %v5089, %v5391
      %v5472 = vadd.f32 %v5090, %v5394
      %v5473 = vadd.f32 %v5091, %v5399
      %v5474 = vadd.f32 %v5092, %v5402
      %v5475 = vadd.f32 %v5093, %v5407
      %v5476 = vadd.f32 %v5094, %v5410
      %v5477 = vadd.f32 %v5095, %v5415
      %v5478 = vadd.f32 %v5096, %v5418
      %v5479 = vadd.f32 %v5097, %v5423
      %v5480 = vadd.f32 %v5098, %v5426
      %v5481 = vadd.f32 %v5099, %v5431
      %v5482 = vadd.f32 %v5100, %v5434
      %v5483 = vadd.f32 %v5101, %v5439
      %v5484 = vadd.f32 %v5102, %v5442
      %s5485 = scalar_lea.vmem %s2, 28
      %v5486 = vld [vmem:[%s5485] sm:$0x3]
      %vm5487 = vcmask 1040384
      %v5488 = vrot.slane %v459, 7
      %v5489 = vrot.slane %v460, 7
      %v5490 = vsel %vm5487, %v5488, %v5489
      %v5491 = vrot.slane %v461, 7
      %v5492 = vsel %vm5487, %v5489, %v5491
      %v5493 = vrot.slane %v462, 7
      %v5494 = vsel %vm5487, %v5491, %v5493
      %v5495 = vrot.slane %v463, 7
      %v5496 = vsel %vm5487, %v5493, %v5495
      %v5497 = vrot.slane %v464, 7
      %v5498 = vsel %vm5487, %v5495, %v5497
      %v5499 = vrot.slane %v465, 7
      %v5500 = vsel %vm5487, %v5497, %v5499
      %v5501 = vrot.slane %v466, 7
      %v5502 = vsel %vm5487, %v5499, %v5501
      %v5503 = vrot.slane %v467, 7
      %v5504 = vsel %vm5487, %v5501, %v5503
      %v5505 = vrot.slane %v468, 7
      %v5506 = vsel %vm5487, %v5503, %v5505
      %v5507 = vrot.slane %v469, 7
      %v5508 = vsel %vm5487, %v5505, %v5507
      %v5509 = vrot.slane %v470, 7
      %v5510 = vsel %vm5487, %v5507, %v5509
      %v5511 = vrot.slane %v471, 7
      %v5512 = vsel %vm5487, %v5509, %v5511
      %v5513 = vrot.slane %v472, 7
      %v5514 = vsel %vm5487, %v5511, %v5513
      %v5515 = vrot.slane %v473, 7
      %v5516 = vsel %vm5487, %v5513, %v5515
      %v5517 = vrot.slane %v474, 7
      %v5518 = vsel %vm5487, %v5515, %v5517
      %v5519 = vrot.slane %v475, 7
      %v5520 = vsel %vm5487, %v5517, %v5519
      %v5521 = vrot.slane %v476, 7
      %v5522 = vsel %vm5487, %v5519, %v5521
      %v5523 = vrot.slane %v477, 7
      %v5524 = vsel %vm5487, %v5521, %v5523
      %v5525 = vrot.slane %v478, 7
      %v5526 = vsel %vm5487, %v5523, %v5525
      %v5527 = vrot.slane %v487, 7
      %v5528 = vsel %vm5487, %v5525, %v5527
      %v5530 = vsel %vm657, %v5490, 0
      %v5533 = vsel %vm657, %v5492, 0
      %v5536 = vsel %vm657, %v5494, 0
      %v5539 = vsel %vm657, %v5496, 0
      %v5542 = vsel %vm657, %v5498, 0
      %v5545 = vsel %vm657, %v5500, 0
      %v5548 = vsel %vm657, %v5502, 0
      %v5551 = vsel %vm657, %v5504, 0
      %v5554 = vsel %vm657, %v5506, 0
      %v5557 = vsel %vm657, %v5508, 0
      %v5560 = vsel %vm657, %v5510, 0
      %v5563 = vsel %vm657, %v5512, 0
      %v5566 = vsel %vm657, %v5514, 0
      %v5569 = vsel %vm657, %v5516, 0
      %v5572 = vsel %vm657, %v5518, 0
      %v5575 = vsel %vm657, %v5520, 0
      %v5578 = vsel %vm657, %v5522, 0
      %v5581 = vsel %vm657, %v5524, 0
      %v5584 = vsel %vm657, %v5526, 0
      %v5587 = vsel %vm657, %v5528, 0
      %v5590 = vsel %vm718, %v5486, 0
      %5592 = vmatprep.subr.bf16.mxu0 0
      %5593 = vmatpush1.bf16.msra.mxu0 %v5590
      %5594 = vmatprep.subr.bf16.mxu0 0
      %5595 = vmatpush1.bf16.msra.mxu0 0
      %5596 = vmatprep.subr.bf16.mxu0 0
      %5597 = vmatpush1.bf16.msra.mxu0 0
      %5598 = vmatprep.subr.bf16.mxu0 0
      %5599 = vmatpush1.bf16.msra.mxu0 0
      %5600 = vmatprep.subr.bf16.mxu0 0
      %5601 = vmatpush1.bf16.msra.mxu0 0
      %5602 = vmatprep.subr.bf16.mxu0 0
      %5603 = vmatpush1.bf16.msra.mxu0 0
      %5604 = vmatprep.subr.bf16.mxu0 0
      %5605 = vmatpush1.bf16.msra.mxu0 0
      %5606 = vmatprep.subr.bf16.mxu0 0
      %5607 = vmatpush1.bf16.msra.mxu0 0
      %5608 = vmatprep.subr.bf16.mxu0 0
      %5609 = vmatpush1.bf16.msra.mxu0 0
      %5610 = vmatprep.subr.bf16.mxu0 0
      %5611 = vmatpush1.bf16.msra.mxu0 0
      %5612 = vmatprep.subr.bf16.mxu0 0
      %5613 = vmatpush1.bf16.msra.mxu0 0
      %5614 = vmatprep.subr.bf16.mxu0 0
      %5615 = vmatpush1.bf16.msra.mxu0 0
      %5616 = vmatprep.subr.bf16.mxu0 0
      %5617 = vmatpush1.bf16.msra.mxu0 0
      %5618 = vmatprep.subr.bf16.mxu0 0
      %5619 = vmatpush1.bf16.msra.mxu0 0
      %5620 = vmatprep.subr.bf16.mxu0 0
      %5621 = vmatpush1.bf16.msra.mxu0 0
      %5622 = vmatprep.subr.bf16.mxu0 0
      %5623 = vmatpush1.bf16.msra.mxu0 0
      %5624 = vmatprep.mubr.bf16.mxu0 0
      %5625 = vmatmul.mubr.bf16.gmra.mrb[0].mxu0 %v5530
      %v5626 = vpop.f32.mrb[0].mxu0
      %v5627 = vadd.f32 0.0, %v5626
      %v5628 = vpop.f32.mrb[0].mxu0
      %v5629 = vpop.f32.mrb[0].mxu0
      %v5630 = vadd.f32 0.0, %v5629
      %v5631 = vpop.f32.mrb[0].mxu0
      %5632 = vmatprep.mubr.bf16.mxu0 0
      %5633 = vmatmul.mubr.bf16.gmra.mrb[0].mxu0 %v5533
      %v5634 = vpop.f32.mrb[0].mxu0
      %v5635 = vadd.f32 0.0, %v5634
      %v5636 = vpop.f32.mrb[0].mxu0
      %v5637 = vpop.f32.mrb[0].mxu0
      %v5638 = vadd.f32 0.0, %v5637
      %v5639 = vpop.f32.mrb[0].mxu0
      %5640 = vmatprep.mubr.bf16.mxu0 0
      %5641 = vmatmul.mubr.bf16.gmra.mrb[0].mxu0 %v5536
      %v5642 = vpop.f32.mrb[0].mxu0
      %v5643 = vadd.f32 0.0, %v5642
      %v5644 = vpop.f32.mrb[0].mxu0
      %v5645 = vpop.f32.mrb[0].mxu0
      %v5646 = vadd.f32 0.0, %v5645
      %v5647 = vpop.f32.mrb[0].mxu0
      %5648 = vmatprep.mubr.bf16.mxu0 0
      %5649 = vmatmul.mubr.bf16.gmra.mrb[0].mxu0 %v5539
      %v5650 = vpop.f32.mrb[0].mxu0
      %v5651 = vadd.f32 0.0, %v5650
      %v5652 = vpop.f32.mrb[0].mxu0
      %v5653 = vpop.f32.mrb[0].mxu0
      %v5654 = vadd.f32 0.0, %v5653
      %v5655 = vpop.f32.mrb[0].mxu0
      %5656 = vmatprep.mubr.bf16.mxu0 0
      %5657 = vmatmul.mubr.bf16.gmra.mrb[0].mxu0 %v5542
      %v5658 = vpop.f32.mrb[0].mxu0
      %v5659 = vadd.f32 0.0, %v5658
      %v5660 = vpop.f32.mrb[0].mxu0
      %v5661 = vpop.f32.mrb[0].mxu0
      %v5662 = vadd.f32 0.0, %v5661
      %v5663 = vpop.f32.mrb[0].mxu0
      %5664 = vmatprep.mubr.bf16.mxu0 0
      %5665 = vmatmul.mubr.bf16.gmra.mrb[0].mxu0 %v5545
      %v5666 = vpop.f32.mrb[0].mxu0
      %v5667 = vadd.f32 0.0, %v5666
      %v5668 = vpop.f32.mrb[0].mxu0
      %v5669 = vpop.f32.mrb[0].mxu0
      %v5670 = vadd.f32 0.0, %v5669
      %v5671 = vpop.f32.mrb[0].mxu0
      %5672 = vmatprep.mubr.bf16.mxu0 0
      %5673 = vmatmul.mubr.bf16.gmra.mrb[0].mxu0 %v5548
      %v5674 = vpop.f32.mrb[0].mxu0
      %v5675 = vadd.f32 0.0, %v5674
      %v5676 = vpop.f32.mrb[0].mxu0
      %v5677 = vpop.f32.mrb[0].mxu0
      %v5678 = vadd.f32 0.0, %v5677
      %v5679 = vpop.f32.mrb[0].mxu0
      %5680 = vmatprep.mubr.bf16.mxu0 0
      %5681 = vmatmul.mubr.bf16.gmra.mrb[0].mxu0 %v5551
      %v5682 = vpop.f32.mrb[0].mxu0
      %v5683 = vadd.f32 0.0, %v5682
      %v5684 = vpop.f32.mrb[0].mxu0
      %v5685 = vpop.f32.mrb[0].mxu0
      %v5686 = vadd.f32 0.0, %v5685
      %v5687 = vpop.f32.mrb[0].mxu0
      %5688 = vmatprep.mubr.bf16.mxu0 0
      %5689 = vmatmul.mubr.bf16.gmra.mrb[0].mxu0 %v5554
      %v5690 = vpop.f32.mrb[0].mxu0
      %v5691 = vadd.f32 0.0, %v5690
      %v5692 = vpop.f32.mrb[0].mxu0
      %v5693 = vpop.f32.mrb[0].mxu0
      %v5694 = vadd.f32 0.0, %v5693
      %v5695 = vpop.f32.mrb[0].mxu0
      %5696 = vmatprep.mubr.bf16.mxu0 0
      %5697 = vmatmul.mubr.bf16.gmra.mrb[0].mxu0 %v5557
      %v5698 = vpop.f32.mrb[0].mxu0
      %v5699 = vadd.f32 0.0, %v5698
      %v5700 = vpop.f32.mrb[0].mxu0
      %v5701 = vpop.f32.mrb[0].mxu0
      %v5702 = vadd.f32 0.0, %v5701
      %v5703 = vpop.f32.mrb[0].mxu0
      %5704 = vmatprep.mubr.bf16.mxu0 0
      %5705 = vmatmul.mubr.bf16.gmra.mrb[0].mxu0 %v5560
      %v5706 = vpop.f32.mrb[0].mxu0
      %v5707 = vadd.f32 0.0, %v5706
      %v5708 = vpop.f32.mrb[0].mxu0
      %v5709 = vpop.f32.mrb[0].mxu0
      %v5710 = vadd.f32 0.0, %v5709
      %v5711 = vpop.f32.mrb[0].mxu0
      %5712 = vmatprep.mubr.bf16.mxu0 0
      %5713 = vmatmul.mubr.bf16.gmra.mrb[0].mxu0 %v5563
      %v5714 = vpop.f32.mrb[0].mxu0
      %v5715 = vadd.f32 0.0, %v5714
      %v5716 = vpop.f32.mrb[0].mxu0
      %v5717 = vpop.f32.mrb[0].mxu0
      %v5718 = vadd.f32 0.0, %v5717
      %v5719 = vpop.f32.mrb[0].mxu0
      %5720 = vmatprep.mubr.bf16.mxu0 0
      %5721 = vmatmul.mubr.bf16.gmra.mrb[0].mxu0 %v5566
      %v5722 = vpop.f32.mrb[0].mxu0
      %v5723 = vadd.f32 0.0, %v5722
      %v5724 = vpop.f32.mrb[0].mxu0
      %v5725 = vpop.f32.mrb[0].mxu0
      %v5726 = vadd.f32 0.0, %v5725
      %v5727 = vpop.f32.mrb[0].mxu0
      %5728 = vmatprep.mubr.bf16.mxu0 0
      %5729 = vmatmul.mubr.bf16.gmra.mrb[0].mxu0 %v5569
      %v5730 = vpop.f32.mrb[0].mxu0
      %v5731 = vadd.f32 0.0, %v5730
      %v5732 = vpop.f32.mrb[0].mxu0
      %v5733 = vpop.f32.mrb[0].mxu0
      %v5734 = vadd.f32 0.0, %v5733
      %v5735 = vpop.f32.mrb[0].mxu0
      %5736 = vmatprep.mubr.bf16.mxu0 0
      %5737 = vmatmul.mubr.bf16.gmra.mrb[0].mxu0 %v5572
      %v5738 = vpop.f32.mrb[0].mxu0
      %v5739 = vadd.f32 0.0, %v5738
      %v5740 = vpop.f32.mrb[0].mxu0
      %v5741 = vpop.f32.mrb[0].mxu0
      %v5742 = vadd.f32 0.0, %v5741
      %v5743 = vpop.f32.mrb[0].mxu0
      %5744 = vmatprep.mubr.bf16.mxu0 0
      %5745 = vmatmul.mubr.bf16.gmra.mrb[0].mxu0 %v5575
      %v5746 = vpop.f32.mrb[0].mxu0
      %v5747 = vadd.f32 0.0, %v5746
      %v5748 = vpop.f32.mrb[0].mxu0
      %v5749 = vpop.f32.mrb[0].mxu0
      %v5750 = vadd.f32 0.0, %v5749
      %v5751 = vpop.f32.mrb[0].mxu0
      %5752 = vmatprep.mubr.bf16.mxu0 0
      %5753 = vmatmul.mubr.bf16.gmra.mrb[0].mxu0 %v5578
      %v5754 = vpop.f32.mrb[0].mxu0
      %v5755 = vadd.f32 0.0, %v5754
      %v5756 = vpop.f32.mrb[0].mxu0
      %v5757 = vpop.f32.mrb[0].mxu0
      %v5758 = vadd.f32 0.0, %v5757
      %v5759 = vpop.f32.mrb[0].mxu0
      %5760 = vmatprep.mubr.bf16.mxu0 0
      %5761 = vmatmul.mubr.bf16.gmra.mrb[0].mxu0 %v5581
      %v5762 = vpop.f32.mrb[0].mxu0
      %v5763 = vadd.f32 0.0, %v5762
      %v5764 = vpop.f32.mrb[0].mxu0
      %v5765 = vpop.f32.mrb[0].mxu0
      %v5766 = vadd.f32 0.0, %v5765
      %v5767 = vpop.f32.mrb[0].mxu0
      %5768 = vmatprep.mubr.bf16.mxu0 0
      %5769 = vmatmul.mubr.bf16.gmra.mrb[0].mxu0 %v5584
      %v5770 = vpop.f32.mrb[0].mxu0
      %v5771 = vadd.f32 0.0, %v5770
      %v5772 = vpop.f32.mrb[0].mxu0
      %v5773 = vpop.f32.mrb[0].mxu0
      %v5774 = vadd.f32 0.0, %v5773
      %v5775 = vpop.f32.mrb[0].mxu0
      %5776 = vmatprep.mubr.bf16.mxu0 0
      %5777 = vmatmul.mubr.bf16.gmra.mrb[0].mxu0 %v5587
      %v5778 = vpop.f32.mrb[0].mxu0
      %v5779 = vadd.f32 0.0, %v5778
      %v5780 = vpop.f32.mrb[0].mxu0
      %v5781 = vpop.f32.mrb[0].mxu0
      %v5782 = vadd.f32 0.0, %v5781
      %v5783 = vpop.f32.mrb[0].mxu0
      %5784 = vdwg.mxu0
      %v5785 = vadd.f32 %v5445, %v5627
      %v5786 = vadd.f32 %v5446, %v5630
      %v5787 = vadd.f32 %v5447, %v5635
      %v5788 = vadd.f32 %v5448, %v5638
      %v5789 = vadd.f32 %v5449, %v5643
      %v5790 = vadd.f32 %v5450, %v5646
      %v5791 = vadd.f32 %v5451, %v5651
      %v5792 = vadd.f32 %v5452, %v5654
      %v5793 = vadd.f32 %v5453, %v5659
      %v5794 = vadd.f32 %v5454, %v5662
      %v5795 = vadd.f32 %v5455, %v5667
      %v5796 = vadd.f32 %v5456, %v5670
      %v5797 = vadd.f32 %v5457, %v5675
      %v5798 = vadd.f32 %v5458, %v5678
      %v5799 = vadd.f32 %v5459, %v5683
      %v5800 = vadd.f32 %v5460, %v5686
      %v5801 = vadd.f32 %v5461, %v5691
      %v5802 = vadd.f32 %v5462, %v5694
      %v5803 = vadd.f32 %v5463, %v5699
      %v5804 = vadd.f32 %v5464, %v5702
      %v5805 = vadd.f32 %v5465, %v5707
      %v5806 = vadd.f32 %v5466, %v5710
      %v5807 = vadd.f32 %v5467, %v5715
      %v5808 = vadd.f32 %v5468, %v5718
      %v5809 = vadd.f32 %v5469, %v5723
      %v5810 = vadd.f32 %v5470, %v5726
      %v5811 = vadd.f32 %v5471, %v5731
      %v5812 = vadd.f32 %v5472, %v5734
      %v5813 = vadd.f32 %v5473, %v5739
      %v5814 = vadd.f32 %v5474, %v5742
      %v5815 = vadd.f32 %v5475, %v5747
      %v5816 = vadd.f32 %v5476, %v5750
      %v5817 = vadd.f32 %v5477, %v5755
      %v5818 = vadd.f32 %v5478, %v5758
      %v5819 = vadd.f32 %v5479, %v5763
      %v5820 = vadd.f32 %v5480, %v5766
      %v5821 = vadd.f32 %v5481, %v5771
      %v5822 = vadd.f32 %v5482, %v5774
      %v5823 = vadd.f32 %v5483, %v5779
      %v5824 = vadd.f32 %v5484, %v5782
      %s5825 = scalar_lea.vmem %s2, 30
      %v5826 = vld [vmem:[%s5825] sm:$0x3]
      %vm5827 = vsmask.f32 256
      %v5828 = vrot.slane %v494, 7
      %v5829 = vrot.slane %v505, 7
      %v5830 = vor.u32 %v5829, %v501
      %v5831 = vsel %vm5827, %v5828, %v5830
      %v5832 = vrot.slane %v513, 7
      %v5833 = vor.u32 %v5832, %v509
      %v5834 = vsel %vm5827, %v5829, %v5833
      %v5835 = vrot.slane %v521, 7
      %v5836 = vor.u32 %v5835, %v517
      %v5837 = vsel %vm5827, %v5832, %v5836
      %v5838 = vrot.slane %v529, 7
      %v5839 = vor.u32 %v5838, %v525
      %v5840 = vsel %vm5827, %v5835, %v5839
      %v5841 = vrot.slane %v537, 7
      %v5842 = vor.u32 %v5841, %v533
      %v5843 = vsel %vm5827, %v5838, %v5842
      %v5844 = vrot.slane %v545, 7
      %v5845 = vor.u32 %v5844, %v541
      %v5846 = vsel %vm5827, %v5841, %v5845
      %v5847 = vrot.slane %v553, 7
      %v5848 = vor.u32 %v5847, %v549
      %v5849 = vsel %vm5827, %v5844, %v5848
      %v5850 = vrot.slane %v561, 7
      %v5851 = vor.u32 %v5850, %v557
      %v5852 = vsel %vm5827, %v5847, %v5851
      %v5853 = vrot.slane %v569, 7
      %v5854 = vor.u32 %v5853, %v565
      %v5855 = vsel %vm5827, %v5850, %v5854
      %v5856 = vrot.slane %v577, 7
      %v5857 = vor.u32 %v5856, %v573
      %v5858 = vsel %vm5827, %v5853, %v5857
      %v5859 = vrot.slane %v585, 7
      %v5860 = vor.u32 %v5859, %v581
      %v5861 = vsel %vm5827, %v5856, %v5860
      %v5862 = vrot.slane %v593, 7
      %v5863 = vor.u32 %v5862, %v589
      %v5864 = vsel %vm5827, %v5859, %v5863
      %v5865 = vrot.slane %v601, 7
      %v5866 = vor.u32 %v5865, %v597
      %v5867 = vsel %vm5827, %v5862, %v5866
      %v5868 = vrot.slane %v609, 7
      %v5869 = vor.u32 %v5868, %v605
      %v5870 = vsel %vm5827, %v5865, %v5869
      %v5871 = vrot.slane %v617, 7
      %v5872 = vor.u32 %v5871, %v613
      %v5873 = vsel %vm5827, %v5868, %v5872
      %v5874 = vrot.slane %v625, 7
      %v5875 = vor.u32 %v5874, %v621
      %v5876 = vsel %vm5827, %v5871, %v5875
      %v5877 = vrot.slane %v633, 7
      %v5878 = vor.u32 %v5877, %v629
      %v5879 = vsel %vm5827, %v5874, %v5878
      %v5880 = vrot.slane %v641, 7
      %v5881 = vor.u32 %v5880, %v637
      %v5882 = vsel %vm5827, %v5877, %v5881
      %v5883 = vrot.slane %v649, 7
      %v5884 = vor.u32 %v5883, %v645
      %v5885 = vsel %vm5827, %v5880, %v5884
      %v5886 = vrot.slane %v1573, 7
      %v5887 = vor.u32 %v5886, %v653
      %v5888 = vsel %vm5827, %v5883, %v5887
      %v5890 = vsel %vm657, %v5831, 0
      %v5893 = vsel %vm657, %v5834, 0
      %v5896 = vsel %vm657, %v5837, 0
      %v5899 = vsel %vm657, %v5840, 0
      %v5902 = vsel %vm657, %v5843, 0
      %v5905 = vsel %vm657, %v5846, 0
      %v5908 = vsel %vm657, %v5849, 0
      %v5911 = vsel %vm657, %v5852, 0
      %v5914 = vsel %vm657, %v5855, 0
      %v5917 = vsel %vm657, %v5858, 0
      %v5920 = vsel %vm657, %v5861, 0
      %v5923 = vsel %vm657, %v5864, 0
      %v5926 = vsel %vm657, %v5867, 0
      %v5929 = vsel %vm657, %v5870, 0
      %v5932 = vsel %vm657, %v5873, 0
      %v5935 = vsel %vm657, %v5876, 0
      %v5938 = vsel %vm657, %v5879, 0
      %v5941 = vsel %vm657, %v5882, 0
      %v5944 = vsel %vm657, %v5885, 0
      %v5947 = vsel %vm657, %v5888, 0
      %v5950 = vsel %vm718, %v5826, 0
      %5952 = vmatprep.subr.bf16.mxu0 0
      %5953 = vmatpush1.bf16.msra.mxu0 %v5950
      %5954 = vmatprep.subr.bf16.mxu0 0
      %5955 = vmatpush1.bf16.msra.mxu0 0
      %5956 = vmatprep.subr.bf16.mxu0 0
      %5957 = vmatpush1.bf16.msra.mxu0 0
      %5958 = vmatprep.subr.bf16.mxu0 0
      %5959 = vmatpush1.bf16.msra.mxu0 0
      %5960 = vmatprep.subr.bf16.mxu0 0
      %5961 = vmatpush1.bf16.msra.mxu0 0
      %5962 = vmatprep.subr.bf16.mxu0 0
      %5963 = vmatpush1.bf16.msra.mxu0 0
      %5964 = vmatprep.subr.bf16.mxu0 0
      %5965 = vmatpush1.bf16.msra.mxu0 0
      %5966 = vmatprep.subr.bf16.mxu0 0
      %5967 = vmatpush1.bf16.msra.mxu0 0
      %5968 = vmatprep.subr.bf16.mxu0 0
      %5969 = vmatpush1.bf16.msra.mxu0 0
      %5970 = vmatprep.subr.bf16.mxu0 0
      %5971 = vmatpush1.bf16.msra.mxu0 0
      %5972 = vmatprep.subr.bf16.mxu0 0
      %5973 = vmatpush1.bf16.msra.mxu0 0
      %5974 = vmatprep.subr.bf16.mxu0 0
      %5975 = vmatpush1.bf16.msra.mxu0 0
      %5976 = vmatprep.subr.bf16.mxu0 0
      %5977 = vmatpush1.bf16.msra.mxu0 0
      %5978 = vmatprep.subr.bf16.mxu0 0
      %5979 = vmatpush1.bf16.msra.mxu0 0
      %5980 = vmatprep.subr.bf16.mxu0 0
      %5981 = vmatpush1.bf16.msra.mxu0 0
      %5982 = vmatprep.subr.bf16.mxu0 0
      %5983 = vmatpush1.bf16.msra.mxu0 0
      %5984 = vmatprep.mubr.bf16.mxu0 0
      %5985 = vmatmul.mubr.bf16.gmra.mrb[0].mxu0 %v5890
      %v5986 = vpop.f32.mrb[0].mxu0
      %v5987 = vadd.f32 0.0, %v5986
      %v5988 = vpop.f32.mrb[0].mxu0
      %v5989 = vpop.f32.mrb[0].mxu0
      %v5990 = vadd.f32 0.0, %v5989
      %v5991 = vpop.f32.mrb[0].mxu0
      %5992 = vmatprep.mubr.bf16.mxu0 0
      %5993 = vmatmul.mubr.bf16.gmra.mrb[0].mxu0 %v5893
      %v5994 = vpop.f32.mrb[0].mxu0
      %v5995 = vadd.f32 0.0, %v5994
      %v5996 = vpop.f32.mrb[0].mxu0
      %v5997 = vpop.f32.mrb[0].mxu0
      %v5998 = vadd.f32 0.0, %v5997
      %v5999 = vpop.f32.mrb[0].mxu0
      %6000 = vmatprep.mubr.bf16.mxu0 0
      %6001 = vmatmul.mubr.bf16.gmra.mrb[0].mxu0 %v5896
      %v6002 = vpop.f32.mrb[0].mxu0
      %v6003 = vadd.f32 0.0, %v6002
      %v6004 = vpop.f32.mrb[0].mxu0
      %v6005 = vpop.f32.mrb[0].mxu0
      %v6006 = vadd.f32 0.0, %v6005
      %v6007 = vpop.f32.mrb[0].mxu0
      %6008 = vmatprep.mubr.bf16.mxu0 0
      %6009 = vmatmul.mubr.bf16.gmra.mrb[0].mxu0 %v5899
      %v6010 = vpop.f32.mrb[0].mxu0
      %v6011 = vadd.f32 0.0, %v6010
      %v6012 = vpop.f32.mrb[0].mxu0
      %v6013 = vpop.f32.mrb[0].mxu0
      %v6014 = vadd.f32 0.0, %v6013
      %v6015 = vpop.f32.mrb[0].mxu0
      %6016 = vmatprep.mubr.bf16.mxu0 0
      %6017 = vmatmul.mubr.bf16.gmra.mrb[0].mxu0 %v5902
      %v6018 = vpop.f32.mrb[0].mxu0
      %v6019 = vadd.f32 0.0, %v6018
      %v6020 = vpop.f32.mrb[0].mxu0
      %v6021 = vpop.f32.mrb[0].mxu0
      %v6022 = vadd.f32 0.0, %v6021
      %v6023 = vpop.f32.mrb[0].mxu0
      %6024 = vmatprep.mubr.bf16.mxu0 0
      %6025 = vmatmul.mubr.bf16.gmra.mrb[0].mxu0 %v5905
      %v6026 = vpop.f32.mrb[0].mxu0
      %v6027 = vadd.f32 0.0, %v6026
      %v6028 = vpop.f32.mrb[0].mxu0
      %v6029 = vpop.f32.mrb[0].mxu0
      %v6030 = vadd.f32 0.0, %v6029
      %v6031 = vpop.f32.mrb[0].mxu0
      %6032 = vmatprep.mubr.bf16.mxu0 0
      %6033 = vmatmul.mubr.bf16.gmra.mrb[0].mxu0 %v5908
      %v6034 = vpop.f32.mrb[0].mxu0
      %v6035 = vadd.f32 0.0, %v6034
      %v6036 = vpop.f32.mrb[0].mxu0
      %v6037 = vpop.f32.mrb[0].mxu0
      %v6038 = vadd.f32 0.0, %v6037
      %v6039 = vpop.f32.mrb[0].mxu0
      %6040 = vmatprep.mubr.bf16.mxu0 0
      %6041 = vmatmul.mubr.bf16.gmra.mrb[0].mxu0 %v5911
      %v6042 = vpop.f32.mrb[0].mxu0
      %v6043 = vadd.f32 0.0, %v6042
      %v6044 = vpop.f32.mrb[0].mxu0
      %v6045 = vpop.f32.mrb[0].mxu0
      %v6046 = vadd.f32 0.0, %v6045
      %v6047 = vpop.f32.mrb[0].mxu0
      %6048 = vmatprep.mubr.bf16.mxu0 0
      %6049 = vmatmul.mubr.bf16.gmra.mrb[0].mxu0 %v5914
      %v6050 = vpop.f32.mrb[0].mxu0
      %v6051 = vadd.f32 0.0, %v6050
      %v6052 = vpop.f32.mrb[0].mxu0
      %v6053 = vpop.f32.mrb[0].mxu0
      %v6054 = vadd.f32 0.0, %v6053
      %v6055 = vpop.f32.mrb[0].mxu0
      %6056 = vmatprep.mubr.bf16.mxu0 0
      %6057 = vmatmul.mubr.bf16.gmra.mrb[0].mxu0 %v5917
      %v6058 = vpop.f32.mrb[0].mxu0
      %v6059 = vadd.f32 0.0, %v6058
      %v6060 = vpop.f32.mrb[0].mxu0
      %v6061 = vpop.f32.mrb[0].mxu0
      %v6062 = vadd.f32 0.0, %v6061
      %v6063 = vpop.f32.mrb[0].mxu0
      %6064 = vmatprep.mubr.bf16.mxu0 0
      %6065 = vmatmul.mubr.bf16.gmra.mrb[0].mxu0 %v5920
      %v6066 = vpop.f32.mrb[0].mxu0
      %v6067 = vadd.f32 0.0, %v6066
      %v6068 = vpop.f32.mrb[0].mxu0
      %v6069 = vpop.f32.mrb[0].mxu0
      %v6070 = vadd.f32 0.0, %v6069
      %v6071 = vpop.f32.mrb[0].mxu0
      %6072 = vmatprep.mubr.bf16.mxu0 0
      %6073 = vmatmul.mubr.bf16.gmra.mrb[0].mxu0 %v5923
      %v6074 = vpop.f32.mrb[0].mxu0
      %v6075 = vadd.f32 0.0, %v6074
      %v6076 = vpop.f32.mrb[0].mxu0
      %v6077 = vpop.f32.mrb[0].mxu0
      %v6078 = vadd.f32 0.0, %v6077
      %v6079 = vpop.f32.mrb[0].mxu0
      %6080 = vmatprep.mubr.bf16.mxu0 0
      %6081 = vmatmul.mubr.bf16.gmra.mrb[0].mxu0 %v5926
      %v6082 = vpop.f32.mrb[0].mxu0
      %v6083 = vadd.f32 0.0, %v6082
      %v6084 = vpop.f32.mrb[0].mxu0
      %v6085 = vpop.f32.mrb[0].mxu0
      %v6086 = vadd.f32 0.0, %v6085
      %v6087 = vpop.f32.mrb[0].mxu0
      %6088 = vmatprep.mubr.bf16.mxu0 0
      %6089 = vmatmul.mubr.bf16.gmra.mrb[0].mxu0 %v5929
      %v6090 = vpop.f32.mrb[0].mxu0
      %v6091 = vadd.f32 0.0, %v6090
      %v6092 = vpop.f32.mrb[0].mxu0
      %v6093 = vpop.f32.mrb[0].mxu0
      %v6094 = vadd.f32 0.0, %v6093
      %v6095 = vpop.f32.mrb[0].mxu0
      %6096 = vmatprep.mubr.bf16.mxu0 0
      %6097 = vmatmul.mubr.bf16.gmra.mrb[0].mxu0 %v5932
      %v6098 = vpop.f32.mrb[0].mxu0
      %v6099 = vadd.f32 0.0, %v6098
      %v6100 = vpop.f32.mrb[0].mxu0
      %v6101 = vpop.f32.mrb[0].mxu0
      %v6102 = vadd.f32 0.0, %v6101
      %v6103 = vpop.f32.mrb[0].mxu0
      %6104 = vmatprep.mubr.bf16.mxu0 0
      %6105 = vmatmul.mubr.bf16.gmra.mrb[0].mxu0 %v5935
      %v6106 = vpop.f32.mrb[0].mxu0
      %v6107 = vadd.f32 0.0, %v6106
      %v6108 = vpop.f32.mrb[0].mxu0
      %v6109 = vpop.f32.mrb[0].mxu0
      %v6110 = vadd.f32 0.0, %v6109
      %v6111 = vpop.f32.mrb[0].mxu0
      %6112 = vmatprep.mubr.bf16.mxu0 0
      %6113 = vmatmul.mubr.bf16.gmra.mrb[0].mxu0 %v5938
      %v6114 = vpop.f32.mrb[0].mxu0
      %v6115 = vadd.f32 0.0, %v6114
      %v6116 = vpop.f32.mrb[0].mxu0
      %v6117 = vpop.f32.mrb[0].mxu0
      %v6118 = vadd.f32 0.0, %v6117
      %v6119 = vpop.f32.mrb[0].mxu0
      %6120 = vmatprep.mubr.bf16.mxu0 0
      %6121 = vmatmul.mubr.bf16.gmra.mrb[0].mxu0 %v5941
      %v6122 = vpop.f32.mrb[0].mxu0
      %v6123 = vadd.f32 0.0, %v6122
      %v6124 = vpop.f32.mrb[0].mxu0
      %v6125 = vpop.f32.mrb[0].mxu0
      %v6126 = vadd.f32 0.0, %v6125
      %v6127 = vpop.f32.mrb[0].mxu0
      %6128 = vmatprep.mubr.bf16.mxu0 0
      %6129 = vmatmul.mubr.bf16.gmra.mrb[0].mxu0 %v5944
      %v6130 = vpop.f32.mrb[0].mxu0
      %v6131 = vadd.f32 0.0, %v6130
      %v6132 = vpop.f32.mrb[0].mxu0
      %v6133 = vpop.f32.mrb[0].mxu0
      %v6134 = vadd.f32 0.0, %v6133
      %v6135 = vpop.f32.mrb[0].mxu0
      %6136 = vmatprep.mubr.bf16.mxu0 0
      %6137 = vmatmul.mubr.bf16.gmra.mrb[0].mxu0 %v5947
      %v6138 = vpop.f32.mrb[0].mxu0
      %v6139 = vadd.f32 0.0, %v6138
      %v6140 = vpop.f32.mrb[0].mxu0
      %v6141 = vpop.f32.mrb[0].mxu0
      %v6142 = vadd.f32 0.0, %v6141
      %v6143 = vpop.f32.mrb[0].mxu0
      %6144 = vdwg.mxu0
      %v6145 = vadd.f32 %v5785, %v5987
      %v6146 = vadd.f32 %v5786, %v5990
      %v6147 = vadd.f32 %v5787, %v5995
      %v6148 = vadd.f32 %v5788, %v5998
      %v6149 = vadd.f32 %v5789, %v6003
      %v6150 = vadd.f32 %v5790, %v6006
      %v6151 = vadd.f32 %v5791, %v6011
      %v6152 = vadd.f32 %v5792, %v6014
      %v6153 = vadd.f32 %v5793, %v6019
      %v6154 = vadd.f32 %v5794, %v6022
      %v6155 = vadd.f32 %v5795, %v6027
      %v6156 = vadd.f32 %v5796, %v6030
      %v6157 = vadd.f32 %v5797, %v6035
      %v6158 = vadd.f32 %v5798, %v6038
      %v6159 = vadd.f32 %v5799, %v6043
      %v6160 = vadd.f32 %v5800, %v6046
      %v6161 = vadd.f32 %v5801, %v6051
      %v6162 = vadd.f32 %v5802, %v6054
      %v6163 = vadd.f32 %v5803, %v6059
      %v6164 = vadd.f32 %v5804, %v6062
      %v6165 = vadd.f32 %v5805, %v6067
      %v6166 = vadd.f32 %v5806, %v6070
      %v6167 = vadd.f32 %v5807, %v6075
      %v6168 = vadd.f32 %v5808, %v6078
      %v6169 = vadd.f32 %v5809, %v6083
      %v6170 = vadd.f32 %v5810, %v6086
      %v6171 = vadd.f32 %v5811, %v6091
      %v6172 = vadd.f32 %v5812, %v6094
      %v6173 = vadd.f32 %v5813, %v6099
      %v6174 = vadd.f32 %v5814, %v6102
      %v6175 = vadd.f32 %v5815, %v6107
      %v6176 = vadd.f32 %v5816, %v6110
      %v6177 = vadd.f32 %v5817, %v6115
      %v6178 = vadd.f32 %v5818, %v6118
      %v6179 = vadd.f32 %v5819, %v6123
      %v6180 = vadd.f32 %v5820, %v6126
      %v6181 = vadd.f32 %v5821, %v6131
      %v6182 = vadd.f32 %v5822, %v6134
      %v6183 = vadd.f32 %v5823, %v6139
      %v6184 = vadd.f32 %v5824, %v6142
      %s6185 = scalar_lea.vmem %s2, 32
      %v6186 = vld [vmem:[%s6185] sm:$0x3]
      %v6187 = vsel %vm657, %v487, 0
      %v6190 = vsel %vm718, %v6186, 0
      %6192 = vmatprep.subr.bf16.mxu0 0
      %6193 = vmatpush1.bf16.msra.mxu0 %v6190
      %6194 = vmatprep.subr.bf16.mxu0 0
      %6195 = vmatpush1.bf16.msra.mxu0 0
      %6196 = vmatprep.subr.bf16.mxu0 0
      %6197 = vmatpush1.bf16.msra.mxu0 0
      %6198 = vmatprep.subr.bf16.mxu0 0
      %6199 = vmatpush1.bf16.msra.mxu0 0
      %6200 = vmatprep.subr.bf16.mxu0 0
      %6201 = vmatpush1.bf16.msra.mxu0 0
      %6202 = vmatprep.subr.bf16.mxu0 0
      %6203 = vmatpush1.bf16.msra.mxu0 0
      %6204 = vmatprep.subr.bf16.mxu0 0
      %6205 = vmatpush1.bf16.msra.mxu0 0
      %6206 = vmatprep.subr.bf16.mxu0 0
      %6207 = vmatpush1.bf16.msra.mxu0 0
      %6208 = vmatprep.subr.bf16.mxu0 0
      %6209 = vmatpush1.bf16.msra.mxu0 0
      %6210 = vmatprep.subr.bf16.mxu0 0
      %6211 = vmatpush1.bf16.msra.mxu0 0
      %6212 = vmatprep.subr.bf16.mxu0 0
      %6213 = vmatpush1.bf16.msra.mxu0 0
      %6214 = vmatprep.subr.bf16.mxu0 0
      %6215 = vmatpush1.bf16.msra.mxu0 0
      %6216 = vmatprep.subr.bf16.mxu0 0
      %6217 = vmatpush1.bf16.msra.mxu0 0
      %6218 = vmatprep.subr.bf16.mxu0 0
      %6219 = vmatpush1.bf16.msra.mxu0 0
      %6220 = vmatprep.subr.bf16.mxu0 0
      %6221 = vmatpush1.bf16.msra.mxu0 0
      %6222 = vmatprep.subr.bf16.mxu0 0
      %6223 = vmatpush1.bf16.msra.mxu0 0
      %6224 = vmatprep.mubr.bf16.mxu0 0
      %6225 = vmatmul.mubr.bf16.gmra.mrb[0].mxu0 %v917
      %v6226 = vpop.f32.mrb[0].mxu0
      %v6227 = vadd.f32 0.0, %v6226
      %v6228 = vpop.f32.mrb[0].mxu0
      %v6229 = vpop.f32.mrb[0].mxu0
      %v6230 = vadd.f32 0.0, %v6229
      %v6231 = vpop.f32.mrb[0].mxu0
      %6232 = vmatprep.mubr.bf16.mxu0 0
      %6233 = vmatmul.mubr.bf16.gmra.mrb[0].mxu0 %v919
      %v6234 = vpop.f32.mrb[0].mxu0
      %v6235 = vadd.f32 0.0, %v6234
      %v6236 = vpop.f32.mrb[0].mxu0
      %v6237 = vpop.f32.mrb[0].mxu0
      %v6238 = vadd.f32 0.0, %v6237
      %v6239 = vpop.f32.mrb[0].mxu0
      %6240 = vmatprep.mubr.bf16.mxu0 0
      %6241 = vmatmul.mubr.bf16.gmra.mrb[0].mxu0 %v921
      %v6242 = vpop.f32.mrb[0].mxu0
      %v6243 = vadd.f32 0.0, %v6242
      %v6244 = vpop.f32.mrb[0].mxu0
      %v6245 = vpop.f32.mrb[0].mxu0
      %v6246 = vadd.f32 0.0, %v6245
      %v6247 = vpop.f32.mrb[0].mxu0
      %6248 = vmatprep.mubr.bf16.mxu0 0
      %6249 = vmatmul.mubr.bf16.gmra.mrb[0].mxu0 %v923
      %v6250 = vpop.f32.mrb[0].mxu0
      %v6251 = vadd.f32 0.0, %v6250
      %v6252 = vpop.f32.mrb[0].mxu0
      %v6253 = vpop.f32.mrb[0].mxu0
      %v6254 = vadd.f32 0.0, %v6253
      %v6255 = vpop.f32.mrb[0].mxu0
      %6256 = vmatprep.mubr.bf16.mxu0 0
      %6257 = vmatmul.mubr.bf16.gmra.mrb[0].mxu0 %v925
      %v6258 = vpop.f32.mrb[0].mxu0
      %v6259 = vadd.f32 0.0, %v6258
      %v6260 = vpop.f32.mrb[0].mxu0
      %v6261 = vpop.f32.mrb[0].mxu0
      %v6262 = vadd.f32 0.0, %v6261
      %v6263 = vpop.f32.mrb[0].mxu0
      %6264 = vmatprep.mubr.bf16.mxu0 0
      %6265 = vmatmul.mubr.bf16.gmra.mrb[0].mxu0 %v927
      %v6266 = vpop.f32.mrb[0].mxu0
      %v6267 = vadd.f32 0.0, %v6266
      %v6268 = vpop.f32.mrb[0].mxu0
      %v6269 = vpop.f32.mrb[0].mxu0
      %v6270 = vadd.f32 0.0, %v6269
      %v6271 = vpop.f32.mrb[0].mxu0
      %6272 = vmatprep.mubr.bf16.mxu0 0
      %6273 = vmatmul.mubr.bf16.gmra.mrb[0].mxu0 %v929
      %v6274 = vpop.f32.mrb[0].mxu0
      %v6275 = vadd.f32 0.0, %v6274
      %v6276 = vpop.f32.mrb[0].mxu0
      %v6277 = vpop.f32.mrb[0].mxu0
      %v6278 = vadd.f32 0.0, %v6277
      %v6279 = vpop.f32.mrb[0].mxu0
      %6280 = vmatprep.mubr.bf16.mxu0 0
      %6281 = vmatmul.mubr.bf16.gmra.mrb[0].mxu0 %v931
      %v6282 = vpop.f32.mrb[0].mxu0
      %v6283 = vadd.f32 0.0, %v6282
      %v6284 = vpop.f32.mrb[0].mxu0
      %v6285 = vpop.f32.mrb[0].mxu0
      %v6286 = vadd.f32 0.0, %v6285
      %v6287 = vpop.f32.mrb[0].mxu0
      %6288 = vmatprep.mubr.bf16.mxu0 0
      %6289 = vmatmul.mubr.bf16.gmra.mrb[0].mxu0 %v933
      %v6290 = vpop.f32.mrb[0].mxu0
      %v6291 = vadd.f32 0.0, %v6290
      %v6292 = vpop.f32.mrb[0].mxu0
      %v6293 = vpop.f32.mrb[0].mxu0
      %v6294 = vadd.f32 0.0, %v6293
      %v6295 = vpop.f32.mrb[0].mxu0
      %6296 = vmatprep.mubr.bf16.mxu0 0
      %6297 = vmatmul.mubr.bf16.gmra.mrb[0].mxu0 %v935
      %v6298 = vpop.f32.mrb[0].mxu0
      %v6299 = vadd.f32 0.0, %v6298
      %v6300 = vpop.f32.mrb[0].mxu0
      %v6301 = vpop.f32.mrb[0].mxu0
      %v6302 = vadd.f32 0.0, %v6301
      %v6303 = vpop.f32.mrb[0].mxu0
      %6304 = vmatprep.mubr.bf16.mxu0 0
      %6305 = vmatmul.mubr.bf16.gmra.mrb[0].mxu0 %v937
      %v6306 = vpop.f32.mrb[0].mxu0
      %v6307 = vadd.f32 0.0, %v6306
      %v6308 = vpop.f32.mrb[0].mxu0
      %v6309 = vpop.f32.mrb[0].mxu0
      %v6310 = vadd.f32 0.0, %v6309
      %v6311 = vpop.f32.mrb[0].mxu0
      %6312 = vmatprep.mubr.bf16.mxu0 0
      %6313 = vmatmul.mubr.bf16.gmra.mrb[0].mxu0 %v939
      %v6314 = vpop.f32.mrb[0].mxu0
      %v6315 = vadd.f32 0.0, %v6314
      %v6316 = vpop.f32.mrb[0].mxu0
      %v6317 = vpop.f32.mrb[0].mxu0
      %v6318 = vadd.f32 0.0, %v6317
      %v6319 = vpop.f32.mrb[0].mxu0
      %6320 = vmatprep.mubr.bf16.mxu0 0
      %6321 = vmatmul.mubr.bf16.gmra.mrb[0].mxu0 %v941
      %v6322 = vpop.f32.mrb[0].mxu0
      %v6323 = vadd.f32 0.0, %v6322
      %v6324 = vpop.f32.mrb[0].mxu0
      %v6325 = vpop.f32.mrb[0].mxu0
      %v6326 = vadd.f32 0.0, %v6325
      %v6327 = vpop.f32.mrb[0].mxu0
      %6328 = vmatprep.mubr.bf16.mxu0 0
      %6329 = vmatmul.mubr.bf16.gmra.mrb[0].mxu0 %v943
      %v6330 = vpop.f32.mrb[0].mxu0
      %v6331 = vadd.f32 0.0, %v6330
      %v6332 = vpop.f32.mrb[0].mxu0
      %v6333 = vpop.f32.mrb[0].mxu0
      %v6334 = vadd.f32 0.0, %v6333
      %v6335 = vpop.f32.mrb[0].mxu0
      %6336 = vmatprep.mubr.bf16.mxu0 0
      %6337 = vmatmul.mubr.bf16.gmra.mrb[0].mxu0 %v945
      %v6338 = vpop.f32.mrb[0].mxu0
      %v6339 = vadd.f32 0.0, %v6338
      %v6340 = vpop.f32.mrb[0].mxu0
      %v6341 = vpop.f32.mrb[0].mxu0
      %v6342 = vadd.f32 0.0, %v6341
      %v6343 = vpop.f32.mrb[0].mxu0
      %6344 = vmatprep.mubr.bf16.mxu0 0
      %6345 = vmatmul.mubr.bf16.gmra.mrb[0].mxu0 %v947
      %v6346 = vpop.f32.mrb[0].mxu0
      %v6347 = vadd.f32 0.0, %v6346
      %v6348 = vpop.f32.mrb[0].mxu0
      %v6349 = vpop.f32.mrb[0].mxu0
      %v6350 = vadd.f32 0.0, %v6349
      %v6351 = vpop.f32.mrb[0].mxu0
      %6352 = vmatprep.mubr.bf16.mxu0 0
      %6353 = vmatmul.mubr.bf16.gmra.mrb[0].mxu0 %v949
      %v6354 = vpop.f32.mrb[0].mxu0
      %v6355 = vadd.f32 0.0, %v6354
      %v6356 = vpop.f32.mrb[0].mxu0
      %v6357 = vpop.f32.mrb[0].mxu0
      %v6358 = vadd.f32 0.0, %v6357
      %v6359 = vpop.f32.mrb[0].mxu0
      %6360 = vmatprep.mubr.bf16.mxu0 0
      %6361 = vmatmul.mubr.bf16.gmra.mrb[0].mxu0 %v951
      %v6362 = vpop.f32.mrb[0].mxu0
      %v6363 = vadd.f32 0.0, %v6362
      %v6364 = vpop.f32.mrb[0].mxu0
      %v6365 = vpop.f32.mrb[0].mxu0
      %v6366 = vadd.f32 0.0, %v6365
      %v6367 = vpop.f32.mrb[0].mxu0
      %6368 = vmatprep.mubr.bf16.mxu0 0
      %6369 = vmatmul.mubr.bf16.gmra.mrb[0].mxu0 %v953
      %v6370 = vpop.f32.mrb[0].mxu0
      %v6371 = vadd.f32 0.0, %v6370
      %v6372 = vpop.f32.mrb[0].mxu0
      %v6373 = vpop.f32.mrb[0].mxu0
      %v6374 = vadd.f32 0.0, %v6373
      %v6375 = vpop.f32.mrb[0].mxu0
      %6376 = vmatprep.mubr.bf16.mxu0 0
      %6377 = vmatmul.mubr.bf16.gmra.mrb[0].mxu0 %v6187
      %v6378 = vpop.f32.mrb[0].mxu0
      %v6379 = vadd.f32 0.0, %v6378
      %v6380 = vpop.f32.mrb[0].mxu0
      %v6381 = vpop.f32.mrb[0].mxu0
      %v6382 = vadd.f32 0.0, %v6381
      %v6383 = vpop.f32.mrb[0].mxu0
      %6384 = vdwg.mxu0
      %v6385 = vadd.f32 %v6145, %v6227
      %v6386 = vadd.f32 %v6146, %v6230
      %v6387 = vadd.f32 %v6147, %v6235
      %v6388 = vadd.f32 %v6148, %v6238
      %v6389 = vadd.f32 %v6149, %v6243
      %v6390 = vadd.f32 %v6150, %v6246
      %v6391 = vadd.f32 %v6151, %v6251
      %v6392 = vadd.f32 %v6152, %v6254
      %v6393 = vadd.f32 %v6153, %v6259
      %v6394 = vadd.f32 %v6154, %v6262
      %v6395 = vadd.f32 %v6155, %v6267
      %v6396 = vadd.f32 %v6156, %v6270
      %v6397 = vadd.f32 %v6157, %v6275
      %v6398 = vadd.f32 %v6158, %v6278
      %v6399 = vadd.f32 %v6159, %v6283
      %v6400 = vadd.f32 %v6160, %v6286
      %v6401 = vadd.f32 %v6161, %v6291
      %v6402 = vadd.f32 %v6162, %v6294
      %v6403 = vadd.f32 %v6163, %v6299
      %v6404 = vadd.f32 %v6164, %v6302
      %v6405 = vadd.f32 %v6165, %v6307
      %v6406 = vadd.f32 %v6166, %v6310
      %v6407 = vadd.f32 %v6167, %v6315
      %v6408 = vadd.f32 %v6168, %v6318
      %v6409 = vadd.f32 %v6169, %v6323
      %v6410 = vadd.f32 %v6170, %v6326
      %v6411 = vadd.f32 %v6171, %v6331
      %v6412 = vadd.f32 %v6172, %v6334
      %v6413 = vadd.f32 %v6173, %v6339
      %v6414 = vadd.f32 %v6174, %v6342
      %v6415 = vadd.f32 %v6175, %v6347
      %v6416 = vadd.f32 %v6176, %v6350
      %v6417 = vadd.f32 %v6177, %v6355
      %v6418 = vadd.f32 %v6178, %v6358
      %v6419 = vadd.f32 %v6179, %v6363
      %v6420 = vadd.f32 %v6180, %v6366
      %v6421 = vadd.f32 %v6181, %v6371
      %v6422 = vadd.f32 %v6182, %v6374
      %v6423 = vadd.f32 %v6183, %v6379
      %v6424 = vadd.f32 %v6184, %v6382
      %s6425 = scalar_lea.vmem %s2, 34
      %v6426 = vld [vmem:[%s6425] sm:$0x3]
      %v6427 = vor.u32 %v1573, %v655
      %v6429 = vshll.u32 %v488, 16
      %v6431 = vrot.slane %v6429, 1
      %v6432 = vsel %vm492, %v6427, %v6431
      %v6434 = vsel %vm657, %v6432, 0
      %v6437 = vsel %vm718, %v6426, 0
      %6439 = vmatprep.subr.bf16.mxu0 0
      %6440 = vmatpush1.bf16.msra.mxu0 %v6437
      %6441 = vmatprep.subr.bf16.mxu0 0
      %6442 = vmatpush1.bf16.msra.mxu0 0
      %6443 = vmatprep.subr.bf16.mxu0 0
      %6444 = vmatpush1.bf16.msra.mxu0 0
      %6445 = vmatprep.subr.bf16.mxu0 0
      %6446 = vmatpush1.bf16.msra.mxu0 0
      %6447 = vmatprep.subr.bf16.mxu0 0
      %6448 = vmatpush1.bf16.msra.mxu0 0
      %6449 = vmatprep.subr.bf16.mxu0 0
      %6450 = vmatpush1.bf16.msra.mxu0 0
      %6451 = vmatprep.subr.bf16.mxu0 0
      %6452 = vmatpush1.bf16.msra.mxu0 0
      %6453 = vmatprep.subr.bf16.mxu0 0
      %6454 = vmatpush1.bf16.msra.mxu0 0
      %6455 = vmatprep.subr.bf16.mxu0 0
      %6456 = vmatpush1.bf16.msra.mxu0 0
      %6457 = vmatprep.subr.bf16.mxu0 0
      %6458 = vmatpush1.bf16.msra.mxu0 0
      %6459 = vmatprep.subr.bf16.mxu0 0
      %6460 = vmatpush1.bf16.msra.mxu0 0
      %6461 = vmatprep.subr.bf16.mxu0 0
      %6462 = vmatpush1.bf16.msra.mxu0 0
      %6463 = vmatprep.subr.bf16.mxu0 0
      %6464 = vmatpush1.bf16.msra.mxu0 0
      %6465 = vmatprep.subr.bf16.mxu0 0
      %6466 = vmatpush1.bf16.msra.mxu0 0
      %6467 = vmatprep.subr.bf16.mxu0 0
      %6468 = vmatpush1.bf16.msra.mxu0 0
      %6469 = vmatprep.subr.bf16.mxu0 0
      %6470 = vmatpush1.bf16.msra.mxu0 0
      %6471 = vmatprep.mubr.bf16.mxu0 0
      %6472 = vmatmul.mubr.bf16.gmra.mrb[0].mxu0 %v662
      %v6473 = vpop.f32.mrb[0].mxu0
      %v6474 = vadd.f32 0.0, %v6473
      %v6475 = vpop.f32.mrb[0].mxu0
      %v6476 = vpop.f32.mrb[0].mxu0
      %v6477 = vadd.f32 0.0, %v6476
      %v6478 = vpop.f32.mrb[0].mxu0
      %6479 = vmatprep.mubr.bf16.mxu0 0
      %6480 = vmatmul.mubr.bf16.gmra.mrb[0].mxu0 %v665
      %v6481 = vpop.f32.mrb[0].mxu0
      %v6482 = vadd.f32 0.0, %v6481
      %v6483 = vpop.f32.mrb[0].mxu0
      %v6484 = vpop.f32.mrb[0].mxu0
      %v6485 = vadd.f32 0.0, %v6484
      %v6486 = vpop.f32.mrb[0].mxu0
      %6487 = vmatprep.mubr.bf16.mxu0 0
      %6488 = vmatmul.mubr.bf16.gmra.mrb[0].mxu0 %v668
      %v6489 = vpop.f32.mrb[0].mxu0
      %v6490 = vadd.f32 0.0, %v6489
      %v6491 = vpop.f32.mrb[0].mxu0
      %v6492 = vpop.f32.mrb[0].mxu0
      %v6493 = vadd.f32 0.0, %v6492
      %v6494 = vpop.f32.mrb[0].mxu0
      %6495 = vmatprep.mubr.bf16.mxu0 0
      %6496 = vmatmul.mubr.bf16.gmra.mrb[0].mxu0 %v671
      %v6497 = vpop.f32.mrb[0].mxu0
      %v6498 = vadd.f32 0.0, %v6497
      %v6499 = vpop.f32.mrb[0].mxu0
      %v6500 = vpop.f32.mrb[0].mxu0
      %v6501 = vadd.f32 0.0, %v6500
      %v6502 = vpop.f32.mrb[0].mxu0
      %6503 = vmatprep.mubr.bf16.mxu0 0
      %6504 = vmatmul.mubr.bf16.gmra.mrb[0].mxu0 %v674
      %v6505 = vpop.f32.mrb[0].mxu0
      %v6506 = vadd.f32 0.0, %v6505
      %v6507 = vpop.f32.mrb[0].mxu0
      %v6508 = vpop.f32.mrb[0].mxu0
      %v6509 = vadd.f32 0.0, %v6508
      %v6510 = vpop.f32.mrb[0].mxu0
      %6511 = vmatprep.mubr.bf16.mxu0 0
      %6512 = vmatmul.mubr.bf16.gmra.mrb[0].mxu0 %v677
      %v6513 = vpop.f32.mrb[0].mxu0
      %v6514 = vadd.f32 0.0, %v6513
      %v6515 = vpop.f32.mrb[0].mxu0
      %v6516 = vpop.f32.mrb[0].mxu0
      %v6517 = vadd.f32 0.0, %v6516
      %v6518 = vpop.f32.mrb[0].mxu0
      %6519 = vmatprep.mubr.bf16.mxu0 0
      %6520 = vmatmul.mubr.bf16.gmra.mrb[0].mxu0 %v680
      %v6521 = vpop.f32.mrb[0].mxu0
      %v6522 = vadd.f32 0.0, %v6521
      %v6523 = vpop.f32.mrb[0].mxu0
      %v6524 = vpop.f32.mrb[0].mxu0
      %v6525 = vadd.f32 0.0, %v6524
      %v6526 = vpop.f32.mrb[0].mxu0
      %6527 = vmatprep.mubr.bf16.mxu0 0
      %6528 = vmatmul.mubr.bf16.gmra.mrb[0].mxu0 %v683
      %v6529 = vpop.f32.mrb[0].mxu0
      %v6530 = vadd.f32 0.0, %v6529
      %v6531 = vpop.f32.mrb[0].mxu0
      %v6532 = vpop.f32.mrb[0].mxu0
      %v6533 = vadd.f32 0.0, %v6532
      %v6534 = vpop.f32.mrb[0].mxu0
      %6535 = vmatprep.mubr.bf16.mxu0 0
      %6536 = vmatmul.mubr.bf16.gmra.mrb[0].mxu0 %v686
      %v6537 = vpop.f32.mrb[0].mxu0
      %v6538 = vadd.f32 0.0, %v6537
      %v6539 = vpop.f32.mrb[0].mxu0
      %v6540 = vpop.f32.mrb[0].mxu0
      %v6541 = vadd.f32 0.0, %v6540
      %v6542 = vpop.f32.mrb[0].mxu0
      %6543 = vmatprep.mubr.bf16.mxu0 0
      %6544 = vmatmul.mubr.bf16.gmra.mrb[0].mxu0 %v689
      %v6545 = vpop.f32.mrb[0].mxu0
      %v6546 = vadd.f32 0.0, %v6545
      %v6547 = vpop.f32.mrb[0].mxu0
      %v6548 = vpop.f32.mrb[0].mxu0
      %v6549 = vadd.f32 0.0, %v6548
      %v6550 = vpop.f32.mrb[0].mxu0
      %6551 = vmatprep.mubr.bf16.mxu0 0
      %6552 = vmatmul.mubr.bf16.gmra.mrb[0].mxu0 %v692
      %v6553 = vpop.f32.mrb[0].mxu0
      %v6554 = vadd.f32 0.0, %v6553
      %v6555 = vpop.f32.mrb[0].mxu0
      %v6556 = vpop.f32.mrb[0].mxu0
      %v6557 = vadd.f32 0.0, %v6556
      %v6558 = vpop.f32.mrb[0].mxu0
      %6559 = vmatprep.mubr.bf16.mxu0 0
      %6560 = vmatmul.mubr.bf16.gmra.mrb[0].mxu0 %v695
      %v6561 = vpop.f32.mrb[0].mxu0
      %v6562 = vadd.f32 0.0, %v6561
      %v6563 = vpop.f32.mrb[0].mxu0
      %v6564 = vpop.f32.mrb[0].mxu0
      %v6565 = vadd.f32 0.0, %v6564
      %v6566 = vpop.f32.mrb[0].mxu0
      %6567 = vmatprep.mubr.bf16.mxu0 0
      %6568 = vmatmul.mubr.bf16.gmra.mrb[0].mxu0 %v698
      %v6569 = vpop.f32.mrb[0].mxu0
      %v6570 = vadd.f32 0.0, %v6569
      %v6571 = vpop.f32.mrb[0].mxu0
      %v6572 = vpop.f32.mrb[0].mxu0
      %v6573 = vadd.f32 0.0, %v6572
      %v6574 = vpop.f32.mrb[0].mxu0
      %6575 = vmatprep.mubr.bf16.mxu0 0
      %6576 = vmatmul.mubr.bf16.gmra.mrb[0].mxu0 %v701
      %v6577 = vpop.f32.mrb[0].mxu0
      %v6578 = vadd.f32 0.0, %v6577
      %v6579 = vpop.f32.mrb[0].mxu0
      %v6580 = vpop.f32.mrb[0].mxu0
      %v6581 = vadd.f32 0.0, %v6580
      %v6582 = vpop.f32.mrb[0].mxu0
      %6583 = vmatprep.mubr.bf16.mxu0 0
      %6584 = vmatmul.mubr.bf16.gmra.mrb[0].mxu0 %v704
      %v6585 = vpop.f32.mrb[0].mxu0
      %v6586 = vadd.f32 0.0, %v6585
      %v6587 = vpop.f32.mrb[0].mxu0
      %v6588 = vpop.f32.mrb[0].mxu0
      %v6589 = vadd.f32 0.0, %v6588
      %v6590 = vpop.f32.mrb[0].mxu0
      %6591 = vmatprep.mubr.bf16.mxu0 0
      %6592 = vmatmul.mubr.bf16.gmra.mrb[0].mxu0 %v707
      %v6593 = vpop.f32.mrb[0].mxu0
      %v6594 = vadd.f32 0.0, %v6593
      %v6595 = vpop.f32.mrb[0].mxu0
      %v6596 = vpop.f32.mrb[0].mxu0
      %v6597 = vadd.f32 0.0, %v6596
      %v6598 = vpop.f32.mrb[0].mxu0
      %6599 = vmatprep.mubr.bf16.mxu0 0
      %6600 = vmatmul.mubr.bf16.gmra.mrb[0].mxu0 %v710
      %v6601 = vpop.f32.mrb[0].mxu0
      %v6602 = vadd.f32 0.0, %v6601
      %v6603 = vpop.f32.mrb[0].mxu0
      %v6604 = vpop.f32.mrb[0].mxu0
      %v6605 = vadd.f32 0.0, %v6604
      %v6606 = vpop.f32.mrb[0].mxu0
      %6607 = vmatprep.mubr.bf16.mxu0 0
      %6608 = vmatmul.mubr.bf16.gmra.mrb[0].mxu0 %v713
      %v6609 = vpop.f32.mrb[0].mxu0
      %v6610 = vadd.f32 0.0, %v6609
      %v6611 = vpop.f32.mrb[0].mxu0
      %v6612 = vpop.f32.mrb[0].mxu0
      %v6613 = vadd.f32 0.0, %v6612
      %v6614 = vpop.f32.mrb[0].mxu0
      %6615 = vmatprep.mubr.bf16.mxu0 0
      %6616 = vmatmul.mubr.bf16.gmra.mrb[0].mxu0 %v716
      %v6617 = vpop.f32.mrb[0].mxu0
      %v6618 = vadd.f32 0.0, %v6617
      %v6619 = vpop.f32.mrb[0].mxu0
      %v6620 = vpop.f32.mrb[0].mxu0
      %v6621 = vadd.f32 0.0, %v6620
      %v6622 = vpop.f32.mrb[0].mxu0
      %6623 = vmatprep.mubr.bf16.mxu0 0
      %6624 = vmatmul.mubr.bf16.gmra.mrb[0].mxu0 %v6434
      %v6625 = vpop.f32.mrb[0].mxu0
      %v6626 = vadd.f32 0.0, %v6625
      %v6627 = vpop.f32.mrb[0].mxu0
      %v6628 = vpop.f32.mrb[0].mxu0
      %v6629 = vadd.f32 0.0, %v6628
      %v6630 = vpop.f32.mrb[0].mxu0
      %6631 = vdwg.mxu0
      %v6632 = vadd.f32 %v6385, %v6474
      %v6633 = vadd.f32 %v6386, %v6477
      %v6634 = vadd.f32 %v6387, %v6482
      %v6635 = vadd.f32 %v6388, %v6485
      %v6636 = vadd.f32 %v6389, %v6490
      %v6637 = vadd.f32 %v6390, %v6493
      %v6638 = vadd.f32 %v6391, %v6498
      %v6639 = vadd.f32 %v6392, %v6501
      %v6640 = vadd.f32 %v6393, %v6506
      %v6641 = vadd.f32 %v6394, %v6509
      %v6642 = vadd.f32 %v6395, %v6514
      %v6643 = vadd.f32 %v6396, %v6517
      %v6644 = vadd.f32 %v6397, %v6522
      %v6645 = vadd.f32 %v6398, %v6525
      %v6646 = vadd.f32 %v6399, %v6530
      %v6647 = vadd.f32 %v6400, %v6533
      %v6648 = vadd.f32 %v6401, %v6538
      %v6649 = vadd.f32 %v6402, %v6541
      %v6650 = vadd.f32 %v6403, %v6546
      %v6651 = vadd.f32 %v6404, %v6549
      %v6652 = vadd.f32 %v6405, %v6554
      %v6653 = vadd.f32 %v6406, %v6557
      %v6654 = vadd.f32 %v6407, %v6562
      %v6655 = vadd.f32 %v6408, %v6565
      %v6656 = vadd.f32 %v6409, %v6570
      %v6657 = vadd.f32 %v6410, %v6573
      %v6658 = vadd.f32 %v6411, %v6578
      %v6659 = vadd.f32 %v6412, %v6581
      %v6660 = vadd.f32 %v6413, %v6586
      %v6661 = vadd.f32 %v6414, %v6589
      %v6662 = vadd.f32 %v6415, %v6594
      %v6663 = vadd.f32 %v6416, %v6597
      %v6664 = vadd.f32 %v6417, %v6602
      %v6665 = vadd.f32 %v6418, %v6605
      %v6666 = vadd.f32 %v6419, %v6610
      %v6667 = vadd.f32 %v6420, %v6613
      %v6668 = vadd.f32 %v6421, %v6618
      %v6669 = vadd.f32 %v6422, %v6621
      %v6670 = vadd.f32 %v6423, %v6626
      %v6671 = vadd.f32 %v6424, %v6629
      %s6672 = scalar_lea.vmem %s2, 36
      %v6673 = vld [vmem:[%s6672] sm:$0x3]
      %v6674 = vrot.slane %v488, 1
      %v6675 = vsel %vm1153, %v1193, %v6674
      %v6677 = vsel %vm657, %v6675, 0
      %v6680 = vsel %vm718, %v6673, 0
      %6682 = vmatprep.subr.bf16.mxu0 0
      %6683 = vmatpush1.bf16.msra.mxu0 %v6680
      %6684 = vmatprep.subr.bf16.mxu0 0
      %6685 = vmatpush1.bf16.msra.mxu0 0
      %6686 = vmatprep.subr.bf16.mxu0 0
      %6687 = vmatpush1.bf16.msra.mxu0 0
      %6688 = vmatprep.subr.bf16.mxu0 0
      %6689 = vmatpush1.bf16.msra.mxu0 0
      %6690 = vmatprep.subr.bf16.mxu0 0
      %6691 = vmatpush1.bf16.msra.mxu0 0
      %6692 = vmatprep.subr.bf16.mxu0 0
      %6693 = vmatpush1.bf16.msra.mxu0 0
      %6694 = vmatprep.subr.bf16.mxu0 0
      %6695 = vmatpush1.bf16.msra.mxu0 0
      %6696 = vmatprep.subr.bf16.mxu0 0
      %6697 = vmatpush1.bf16.msra.mxu0 0
      %6698 = vmatprep.subr.bf16.mxu0 0
      %6699 = vmatpush1.bf16.msra.mxu0 0
      %6700 = vmatprep.subr.bf16.mxu0 0
      %6701 = vmatpush1.bf16.msra.mxu0 0
      %6702 = vmatprep.subr.bf16.mxu0 0
      %6703 = vmatpush1.bf16.msra.mxu0 0
      %6704 = vmatprep.subr.bf16.mxu0 0
      %6705 = vmatpush1.bf16.msra.mxu0 0
      %6706 = vmatprep.subr.bf16.mxu0 0
      %6707 = vmatpush1.bf16.msra.mxu0 0
      %6708 = vmatprep.subr.bf16.mxu0 0
      %6709 = vmatpush1.bf16.msra.mxu0 0
      %6710 = vmatprep.subr.bf16.mxu0 0
      %6711 = vmatpush1.bf16.msra.mxu0 0
      %6712 = vmatprep.subr.bf16.mxu0 0
      %6713 = vmatpush1.bf16.msra.mxu0 0
      %6714 = vmatprep.mubr.bf16.mxu0 0
      %6715 = vmatmul.mubr.bf16.gmra.mrb[0].mxu0 %v1199
      %v6716 = vpop.f32.mrb[0].mxu0
      %v6717 = vadd.f32 0.0, %v6716
      %v6718 = vpop.f32.mrb[0].mxu0
      %v6719 = vpop.f32.mrb[0].mxu0
      %v6720 = vadd.f32 0.0, %v6719
      %v6721 = vpop.f32.mrb[0].mxu0
      %6722 = vmatprep.mubr.bf16.mxu0 0
      %6723 = vmatmul.mubr.bf16.gmra.mrb[0].mxu0 %v1202
      %v6724 = vpop.f32.mrb[0].mxu0
      %v6725 = vadd.f32 0.0, %v6724
      %v6726 = vpop.f32.mrb[0].mxu0
      %v6727 = vpop.f32.mrb[0].mxu0
      %v6728 = vadd.f32 0.0, %v6727
      %v6729 = vpop.f32.mrb[0].mxu0
      %6730 = vmatprep.mubr.bf16.mxu0 0
      %6731 = vmatmul.mubr.bf16.gmra.mrb[0].mxu0 %v1205
      %v6732 = vpop.f32.mrb[0].mxu0
      %v6733 = vadd.f32 0.0, %v6732
      %v6734 = vpop.f32.mrb[0].mxu0
      %v6735 = vpop.f32.mrb[0].mxu0
      %v6736 = vadd.f32 0.0, %v6735
      %v6737 = vpop.f32.mrb[0].mxu0
      %6738 = vmatprep.mubr.bf16.mxu0 0
      %6739 = vmatmul.mubr.bf16.gmra.mrb[0].mxu0 %v1208
      %v6740 = vpop.f32.mrb[0].mxu0
      %v6741 = vadd.f32 0.0, %v6740
      %v6742 = vpop.f32.mrb[0].mxu0
      %v6743 = vpop.f32.mrb[0].mxu0
      %v6744 = vadd.f32 0.0, %v6743
      %v6745 = vpop.f32.mrb[0].mxu0
      %6746 = vmatprep.mubr.bf16.mxu0 0
      %6747 = vmatmul.mubr.bf16.gmra.mrb[0].mxu0 %v1211
      %v6748 = vpop.f32.mrb[0].mxu0
      %v6749 = vadd.f32 0.0, %v6748
      %v6750 = vpop.f32.mrb[0].mxu0
      %v6751 = vpop.f32.mrb[0].mxu0
      %v6752 = vadd.f32 0.0, %v6751
      %v6753 = vpop.f32.mrb[0].mxu0
      %6754 = vmatprep.mubr.bf16.mxu0 0
      %6755 = vmatmul.mubr.bf16.gmra.mrb[0].mxu0 %v1214
      %v6756 = vpop.f32.mrb[0].mxu0
      %v6757 = vadd.f32 0.0, %v6756
      %v6758 = vpop.f32.mrb[0].mxu0
      %v6759 = vpop.f32.mrb[0].mxu0
      %v6760 = vadd.f32 0.0, %v6759
      %v6761 = vpop.f32.mrb[0].mxu0
      %6762 = vmatprep.mubr.bf16.mxu0 0
      %6763 = vmatmul.mubr.bf16.gmra.mrb[0].mxu0 %v1217
      %v6764 = vpop.f32.mrb[0].mxu0
      %v6765 = vadd.f32 0.0, %v6764
      %v6766 = vpop.f32.mrb[0].mxu0
      %v6767 = vpop.f32.mrb[0].mxu0
      %v6768 = vadd.f32 0.0, %v6767
      %v6769 = vpop.f32.mrb[0].mxu0
      %6770 = vmatprep.mubr.bf16.mxu0 0
      %6771 = vmatmul.mubr.bf16.gmra.mrb[0].mxu0 %v1220
      %v6772 = vpop.f32.mrb[0].mxu0
      %v6773 = vadd.f32 0.0, %v6772
      %v6774 = vpop.f32.mrb[0].mxu0
      %v6775 = vpop.f32.mrb[0].mxu0
      %v6776 = vadd.f32 0.0, %v6775
      %v6777 = vpop.f32.mrb[0].mxu0
      %6778 = vmatprep.mubr.bf16.mxu0 0
      %6779 = vmatmul.mubr.bf16.gmra.mrb[0].mxu0 %v1223
      %v6780 = vpop.f32.mrb[0].mxu0
      %v6781 = vadd.f32 0.0, %v6780
      %v6782 = vpop.f32.mrb[0].mxu0
      %v6783 = vpop.f32.mrb[0].mxu0
      %v6784 = vadd.f32 0.0, %v6783
      %v6785 = vpop.f32.mrb[0].mxu0
      %6786 = vmatprep.mubr.bf16.mxu0 0
      %6787 = vmatmul.mubr.bf16.gmra.mrb[0].mxu0 %v1226
      %v6788 = vpop.f32.mrb[0].mxu0
      %v6789 = vadd.f32 0.0, %v6788
      %v6790 = vpop.f32.mrb[0].mxu0
      %v6791 = vpop.f32.mrb[0].mxu0
      %v6792 = vadd.f32 0.0, %v6791
      %v6793 = vpop.f32.mrb[0].mxu0
      %6794 = vmatprep.mubr.bf16.mxu0 0
      %6795 = vmatmul.mubr.bf16.gmra.mrb[0].mxu0 %v1229
      %v6796 = vpop.f32.mrb[0].mxu0
      %v6797 = vadd.f32 0.0, %v6796
      %v6798 = vpop.f32.mrb[0].mxu0
      %v6799 = vpop.f32.mrb[0].mxu0
      %v6800 = vadd.f32 0.0, %v6799
      %v6801 = vpop.f32.mrb[0].mxu0
      %6802 = vmatprep.mubr.bf16.mxu0 0
      %6803 = vmatmul.mubr.bf16.gmra.mrb[0].mxu0 %v1232
      %v6804 = vpop.f32.mrb[0].mxu0
      %v6805 = vadd.f32 0.0, %v6804
      %v6806 = vpop.f32.mrb[0].mxu0
      %v6807 = vpop.f32.mrb[0].mxu0
      %v6808 = vadd.f32 0.0, %v6807
      %v6809 = vpop.f32.mrb[0].mxu0
      %6810 = vmatprep.mubr.bf16.mxu0 0
      %6811 = vmatmul.mubr.bf16.gmra.mrb[0].mxu0 %v1235
      %v6812 = vpop.f32.mrb[0].mxu0
      %v6813 = vadd.f32 0.0, %v6812
      %v6814 = vpop.f32.mrb[0].mxu0
      %v6815 = vpop.f32.mrb[0].mxu0
      %v6816 = vadd.f32 0.0, %v6815
      %v6817 = vpop.f32.mrb[0].mxu0
      %6818 = vmatprep.mubr.bf16.mxu0 0
      %6819 = vmatmul.mubr.bf16.gmra.mrb[0].mxu0 %v1238
      %v6820 = vpop.f32.mrb[0].mxu0
      %v6821 = vadd.f32 0.0, %v6820
      %v6822 = vpop.f32.mrb[0].mxu0
      %v6823 = vpop.f32.mrb[0].mxu0
      %v6824 = vadd.f32 0.0, %v6823
      %v6825 = vpop.f32.mrb[0].mxu0
      %6826 = vmatprep.mubr.bf16.mxu0 0
      %6827 = vmatmul.mubr.bf16.gmra.mrb[0].mxu0 %v1241
      %v6828 = vpop.f32.mrb[0].mxu0
      %v6829 = vadd.f32 0.0, %v6828
      %v6830 = vpop.f32.mrb[0].mxu0
      %v6831 = vpop.f32.mrb[0].mxu0
      %v6832 = vadd.f32 0.0, %v6831
      %v6833 = vpop.f32.mrb[0].mxu0
      %6834 = vmatprep.mubr.bf16.mxu0 0
      %6835 = vmatmul.mubr.bf16.gmra.mrb[0].mxu0 %v1244
      %v6836 = vpop.f32.mrb[0].mxu0
      %v6837 = vadd.f32 0.0, %v6836
      %v6838 = vpop.f32.mrb[0].mxu0
      %v6839 = vpop.f32.mrb[0].mxu0
      %v6840 = vadd.f32 0.0, %v6839
      %v6841 = vpop.f32.mrb[0].mxu0
      %6842 = vmatprep.mubr.bf16.mxu0 0
      %6843 = vmatmul.mubr.bf16.gmra.mrb[0].mxu0 %v1247
      %v6844 = vpop.f32.mrb[0].mxu0
      %v6845 = vadd.f32 0.0, %v6844
      %v6846 = vpop.f32.mrb[0].mxu0
      %v6847 = vpop.f32.mrb[0].mxu0
      %v6848 = vadd.f32 0.0, %v6847
      %v6849 = vpop.f32.mrb[0].mxu0
      %6850 = vmatprep.mubr.bf16.mxu0 0
      %6851 = vmatmul.mubr.bf16.gmra.mrb[0].mxu0 %v1250
      %v6852 = vpop.f32.mrb[0].mxu0
      %v6853 = vadd.f32 0.0, %v6852
      %v6854 = vpop.f32.mrb[0].mxu0
      %v6855 = vpop.f32.mrb[0].mxu0
      %v6856 = vadd.f32 0.0, %v6855
      %v6857 = vpop.f32.mrb[0].mxu0
      %6858 = vmatprep.mubr.bf16.mxu0 0
      %6859 = vmatmul.mubr.bf16.gmra.mrb[0].mxu0 %v1253
      %v6860 = vpop.f32.mrb[0].mxu0
      %v6861 = vadd.f32 0.0, %v6860
      %v6862 = vpop.f32.mrb[0].mxu0
      %v6863 = vpop.f32.mrb[0].mxu0
      %v6864 = vadd.f32 0.0, %v6863
      %v6865 = vpop.f32.mrb[0].mxu0
      %6866 = vmatprep.mubr.bf16.mxu0 0
      %6867 = vmatmul.mubr.bf16.gmra.mrb[0].mxu0 %v6677
      %v6868 = vpop.f32.mrb[0].mxu0
      %v6869 = vadd.f32 0.0, %v6868
      %v6870 = vpop.f32.mrb[0].mxu0
      %v6871 = vpop.f32.mrb[0].mxu0
      %v6872 = vadd.f32 0.0, %v6871
      %v6873 = vpop.f32.mrb[0].mxu0
      %6874 = vdwg.mxu0
      %v6875 = vadd.f32 %v6632, %v6717
      %v6876 = vadd.f32 %v6633, %v6720
      %v6877 = vadd.f32 %v6634, %v6725
      %v6878 = vadd.f32 %v6635, %v6728
      %v6879 = vadd.f32 %v6636, %v6733
      %v6880 = vadd.f32 %v6637, %v6736
      %v6881 = vadd.f32 %v6638, %v6741
      %v6882 = vadd.f32 %v6639, %v6744
      %v6883 = vadd.f32 %v6640, %v6749
      %v6884 = vadd.f32 %v6641, %v6752
      %v6885 = vadd.f32 %v6642, %v6757
      %v6886 = vadd.f32 %v6643, %v6760
      %v6887 = vadd.f32 %v6644, %v6765
      %v6888 = vadd.f32 %v6645, %v6768
      %v6889 = vadd.f32 %v6646, %v6773
      %v6890 = vadd.f32 %v6647, %v6776
      %v6891 = vadd.f32 %v6648, %v6781
      %v6892 = vadd.f32 %v6649, %v6784
      %v6893 = vadd.f32 %v6650, %v6789
      %v6894 = vadd.f32 %v6651, %v6792
      %v6895 = vadd.f32 %v6652, %v6797
      %v6896 = vadd.f32 %v6653, %v6800
      %v6897 = vadd.f32 %v6654, %v6805
      %v6898 = vadd.f32 %v6655, %v6808
      %v6899 = vadd.f32 %v6656, %v6813
      %v6900 = vadd.f32 %v6657, %v6816
      %v6901 = vadd.f32 %v6658, %v6821
      %v6902 = vadd.f32 %v6659, %v6824
      %v6903 = vadd.f32 %v6660, %v6829
      %v6904 = vadd.f32 %v6661, %v6832
      %v6905 = vadd.f32 %v6662, %v6837
      %v6906 = vadd.f32 %v6663, %v6840
      %v6907 = vadd.f32 %v6664, %v6845
      %v6908 = vadd.f32 %v6665, %v6848
      %v6909 = vadd.f32 %v6666, %v6853
      %v6910 = vadd.f32 %v6667, %v6856
      %v6911 = vadd.f32 %v6668, %v6861
      %v6912 = vadd.f32 %v6669, %v6864
      %v6913 = vadd.f32 %v6670, %v6869
      %v6914 = vadd.f32 %v6671, %v6872
      %s6915 = scalar_lea.vmem %s2, 38
      %v6916 = vld [vmem:[%s6915] sm:$0x3]
      %v6917 = vshrl.u32 %v488, 16
      %v6919 = vrot.slane %v6917, 1
      %v6920 = vrot.slane %v6429, 2
      %v6921 = vor.u32 %v6919, %v6920
      %v6922 = vsel %vm1493, %v1577, %v6921
      %v6924 = vsel %vm657, %v6922, 0
      %v6927 = vsel %vm718, %v6916, 0
      %6929 = vmatprep.subr.bf16.mxu0 0
      %6930 = vmatpush1.bf16.msra.mxu0 %v6927
      %6931 = vmatprep.subr.bf16.mxu0 0
      %6932 = vmatpush1.bf16.msra.mxu0 0
      %6933 = vmatprep.subr.bf16.mxu0 0
      %6934 = vmatpush1.bf16.msra.mxu0 0
      %6935 = vmatprep.subr.bf16.mxu0 0
      %6936 = vmatpush1.bf16.msra.mxu0 0
      %6937 = vmatprep.subr.bf16.mxu0 0
      %6938 = vmatpush1.bf16.msra.mxu0 0
      %6939 = vmatprep.subr.bf16.mxu0 0
      %6940 = vmatpush1.bf16.msra.mxu0 0
      %6941 = vmatprep.subr.bf16.mxu0 0
      %6942 = vmatpush1.bf16.msra.mxu0 0
      %6943 = vmatprep.subr.bf16.mxu0 0
      %6944 = vmatpush1.bf16.msra.mxu0 0
      %6945 = vmatprep.subr.bf16.mxu0 0
      %6946 = vmatpush1.bf16.msra.mxu0 0
      %6947 = vmatprep.subr.bf16.mxu0 0
      %6948 = vmatpush1.bf16.msra.mxu0 0
      %6949 = vmatprep.subr.bf16.mxu0 0
      %6950 = vmatpush1.bf16.msra.mxu0 0
      %6951 = vmatprep.subr.bf16.mxu0 0
      %6952 = vmatpush1.bf16.msra.mxu0 0
      %6953 = vmatprep.subr.bf16.mxu0 0
      %6954 = vmatpush1.bf16.msra.mxu0 0
      %6955 = vmatprep.subr.bf16.mxu0 0
      %6956 = vmatpush1.bf16.msra.mxu0 0
      %6957 = vmatprep.subr.bf16.mxu0 0
      %6958 = vmatpush1.bf16.msra.mxu0 0
      %6959 = vmatprep.subr.bf16.mxu0 0
      %6960 = vmatpush1.bf16.msra.mxu0 0
      %6961 = vmatprep.mubr.bf16.mxu0 0
      %6962 = vmatmul.mubr.bf16.gmra.mrb[0].mxu0 %v1583
      %v6963 = vpop.f32.mrb[0].mxu0
      %v6964 = vadd.f32 0.0, %v6963
      %v6965 = vpop.f32.mrb[0].mxu0
      %v6966 = vpop.f32.mrb[0].mxu0
      %v6967 = vadd.f32 0.0, %v6966
      %v6968 = vpop.f32.mrb[0].mxu0
      %6969 = vmatprep.mubr.bf16.mxu0 0
      %6970 = vmatmul.mubr.bf16.gmra.mrb[0].mxu0 %v1586
      %v6971 = vpop.f32.mrb[0].mxu0
      %v6972 = vadd.f32 0.0, %v6971
      %v6973 = vpop.f32.mrb[0].mxu0
      %v6974 = vpop.f32.mrb[0].mxu0
      %v6975 = vadd.f32 0.0, %v6974
      %v6976 = vpop.f32.mrb[0].mxu0
      %6977 = vmatprep.mubr.bf16.mxu0 0
      %6978 = vmatmul.mubr.bf16.gmra.mrb[0].mxu0 %v1589
      %v6979 = vpop.f32.mrb[0].mxu0
      %v6980 = vadd.f32 0.0, %v6979
      %v6981 = vpop.f32.mrb[0].mxu0
      %v6982 = vpop.f32.mrb[0].mxu0
      %v6983 = vadd.f32 0.0, %v6982
      %v6984 = vpop.f32.mrb[0].mxu0
      %6985 = vmatprep.mubr.bf16.mxu0 0
      %6986 = vmatmul.mubr.bf16.gmra.mrb[0].mxu0 %v1592
      %v6987 = vpop.f32.mrb[0].mxu0
      %v6988 = vadd.f32 0.0, %v6987
      %v6989 = vpop.f32.mrb[0].mxu0
      %v6990 = vpop.f32.mrb[0].mxu0
      %v6991 = vadd.f32 0.0, %v6990
      %v6992 = vpop.f32.mrb[0].mxu0
      %6993 = vmatprep.mubr.bf16.mxu0 0
      %6994 = vmatmul.mubr.bf16.gmra.mrb[0].mxu0 %v1595
      %v6995 = vpop.f32.mrb[0].mxu0
      %v6996 = vadd.f32 0.0, %v6995
      %v6997 = vpop.f32.mrb[0].mxu0
      %v6998 = vpop.f32.mrb[0].mxu0
      %v6999 = vadd.f32 0.0, %v6998
      %v7000 = vpop.f32.mrb[0].mxu0
      %7001 = vmatprep.mubr.bf16.mxu0 0
      %7002 = vmatmul.mubr.bf16.gmra.mrb[0].mxu0 %v1598
      %v7003 = vpop.f32.mrb[0].mxu0
      %v7004 = vadd.f32 0.0, %v7003
      %v7005 = vpop.f32.mrb[0].mxu0
      %v7006 = vpop.f32.mrb[0].mxu0
      %v7007 = vadd.f32 0.0, %v7006
      %v7008 = vpop.f32.mrb[0].mxu0
      %7009 = vmatprep.mubr.bf16.mxu0 0
      %7010 = vmatmul.mubr.bf16.gmra.mrb[0].mxu0 %v1601
      %v7011 = vpop.f32.mrb[0].mxu0
      %v7012 = vadd.f32 0.0, %v7011
      %v7013 = vpop.f32.mrb[0].mxu0
      %v7014 = vpop.f32.mrb[0].mxu0
      %v7015 = vadd.f32 0.0, %v7014
      %v7016 = vpop.f32.mrb[0].mxu0
      %7017 = vmatprep.mubr.bf16.mxu0 0
      %7018 = vmatmul.mubr.bf16.gmra.mrb[0].mxu0 %v1604
      %v7019 = vpop.f32.mrb[0].mxu0
      %v7020 = vadd.f32 0.0, %v7019
      %v7021 = vpop.f32.mrb[0].mxu0
      %v7022 = vpop.f32.mrb[0].mxu0
      %v7023 = vadd.f32 0.0, %v7022
      %v7024 = vpop.f32.mrb[0].mxu0
      %7025 = vmatprep.mubr.bf16.mxu0 0
      %7026 = vmatmul.mubr.bf16.gmra.mrb[0].mxu0 %v1607
      %v7027 = vpop.f32.mrb[0].mxu0
      %v7028 = vadd.f32 0.0, %v7027
      %v7029 = vpop.f32.mrb[0].mxu0
      %v7030 = vpop.f32.mrb[0].mxu0
      %v7031 = vadd.f32 0.0, %v7030
      %v7032 = vpop.f32.mrb[0].mxu0
      %7033 = vmatprep.mubr.bf16.mxu0 0
      %7034 = vmatmul.mubr.bf16.gmra.mrb[0].mxu0 %v1610
      %v7035 = vpop.f32.mrb[0].mxu0
      %v7036 = vadd.f32 0.0, %v7035
      %v7037 = vpop.f32.mrb[0].mxu0
      %v7038 = vpop.f32.mrb[0].mxu0
      %v7039 = vadd.f32 0.0, %v7038
      %v7040 = vpop.f32.mrb[0].mxu0
      %7041 = vmatprep.mubr.bf16.mxu0 0
      %7042 = vmatmul.mubr.bf16.gmra.mrb[0].mxu0 %v1613
      %v7043 = vpop.f32.mrb[0].mxu0
      %v7044 = vadd.f32 0.0, %v7043
      %v7045 = vpop.f32.mrb[0].mxu0
      %v7046 = vpop.f32.mrb[0].mxu0
      %v7047 = vadd.f32 0.0, %v7046
      %v7048 = vpop.f32.mrb[0].mxu0
      %7049 = vmatprep.mubr.bf16.mxu0 0
      %7050 = vmatmul.mubr.bf16.gmra.mrb[0].mxu0 %v1616
      %v7051 = vpop.f32.mrb[0].mxu0
      %v7052 = vadd.f32 0.0, %v7051
      %v7053 = vpop.f32.mrb[0].mxu0
      %v7054 = vpop.f32.mrb[0].mxu0
      %v7055 = vadd.f32 0.0, %v7054
      %v7056 = vpop.f32.mrb[0].mxu0
      %7057 = vmatprep.mubr.bf16.mxu0 0
      %7058 = vmatmul.mubr.bf16.gmra.mrb[0].mxu0 %v1619
      %v7059 = vpop.f32.mrb[0].mxu0
      %v7060 = vadd.f32 0.0, %v7059
      %v7061 = vpop.f32.mrb[0].mxu0
      %v7062 = vpop.f32.mrb[0].mxu0
      %v7063 = vadd.f32 0.0, %v7062
      %v7064 = vpop.f32.mrb[0].mxu0
      %7065 = vmatprep.mubr.bf16.mxu0 0
      %7066 = vmatmul.mubr.bf16.gmra.mrb[0].mxu0 %v1622
      %v7067 = vpop.f32.mrb[0].mxu0
      %v7068 = vadd.f32 0.0, %v7067
      %v7069 = vpop.f32.mrb[0].mxu0
      %v7070 = vpop.f32.mrb[0].mxu0
      %v7071 = vadd.f32 0.0, %v7070
      %v7072 = vpop.f32.mrb[0].mxu0
      %7073 = vmatprep.mubr.bf16.mxu0 0
      %7074 = vmatmul.mubr.bf16.gmra.mrb[0].mxu0 %v1625
      %v7075 = vpop.f32.mrb[0].mxu0
      %v7076 = vadd.f32 0.0, %v7075
      %v7077 = vpop.f32.mrb[0].mxu0
      %v7078 = vpop.f32.mrb[0].mxu0
      %v7079 = vadd.f32 0.0, %v7078
      %v7080 = vpop.f32.mrb[0].mxu0
      %7081 = vmatprep.mubr.bf16.mxu0 0
      %7082 = vmatmul.mubr.bf16.gmra.mrb[0].mxu0 %v1628
      %v7083 = vpop.f32.mrb[0].mxu0
      %v7084 = vadd.f32 0.0, %v7083
      %v7085 = vpop.f32.mrb[0].mxu0
      %v7086 = vpop.f32.mrb[0].mxu0
      %v7087 = vadd.f32 0.0, %v7086
      %v7088 = vpop.f32.mrb[0].mxu0
      %7089 = vmatprep.mubr.bf16.mxu0 0
      %7090 = vmatmul.mubr.bf16.gmra.mrb[0].mxu0 %v1631
      %v7091 = vpop.f32.mrb[0].mxu0
      %v7092 = vadd.f32 0.0, %v7091
      %v7093 = vpop.f32.mrb[0].mxu0
      %v7094 = vpop.f32.mrb[0].mxu0
      %v7095 = vadd.f32 0.0, %v7094
      %v7096 = vpop.f32.mrb[0].mxu0
      %7097 = vmatprep.mubr.bf16.mxu0 0
      %7098 = vmatmul.mubr.bf16.gmra.mrb[0].mxu0 %v1634
      %v7099 = vpop.f32.mrb[0].mxu0
      %v7100 = vadd.f32 0.0, %v7099
      %v7101 = vpop.f32.mrb[0].mxu0
      %v7102 = vpop.f32.mrb[0].mxu0
      %v7103 = vadd.f32 0.0, %v7102
      %v7104 = vpop.f32.mrb[0].mxu0
      %7105 = vmatprep.mubr.bf16.mxu0 0
      %7106 = vmatmul.mubr.bf16.gmra.mrb[0].mxu0 %v1637
      %v7107 = vpop.f32.mrb[0].mxu0
      %v7108 = vadd.f32 0.0, %v7107
      %v7109 = vpop.f32.mrb[0].mxu0
      %v7110 = vpop.f32.mrb[0].mxu0
      %v7111 = vadd.f32 0.0, %v7110
      %v7112 = vpop.f32.mrb[0].mxu0
      %7113 = vmatprep.mubr.bf16.mxu0 0
      %7114 = vmatmul.mubr.bf16.gmra.mrb[0].mxu0 %v6924
      %v7115 = vpop.f32.mrb[0].mxu0
      %v7116 = vadd.f32 0.0, %v7115
      %v7117 = vpop.f32.mrb[0].mxu0
      %v7118 = vpop.f32.mrb[0].mxu0
      %v7119 = vadd.f32 0.0, %v7118
      %v7120 = vpop.f32.mrb[0].mxu0
      %7121 = vdwg.mxu0
      %v7122 = vadd.f32 %v6875, %v6964
      %v7123 = vadd.f32 %v6876, %v6967
      %v7124 = vadd.f32 %v6877, %v6972
      %v7125 = vadd.f32 %v6878, %v6975
      %v7126 = vadd.f32 %v6879, %v6980
      %v7127 = vadd.f32 %v6880, %v6983
      %v7128 = vadd.f32 %v6881, %v6988
      %v7129 = vadd.f32 %v6882, %v6991
      %v7130 = vadd.f32 %v6883, %v6996
      %v7131 = vadd.f32 %v6884, %v6999
      %v7132 = vadd.f32 %v6885, %v7004
      %v7133 = vadd.f32 %v6886, %v7007
      %v7134 = vadd.f32 %v6887, %v7012
      %v7135 = vadd.f32 %v6888, %v7015
      %v7136 = vadd.f32 %v6889, %v7020
      %v7137 = vadd.f32 %v6890, %v7023
      %v7138 = vadd.f32 %v6891, %v7028
      %v7139 = vadd.f32 %v6892, %v7031
      %v7140 = vadd.f32 %v6893, %v7036
      %v7141 = vadd.f32 %v6894, %v7039
      %v7142 = vadd.f32 %v6895, %v7044
      %v7143 = vadd.f32 %v6896, %v7047
      %v7144 = vadd.f32 %v6897, %v7052
      %v7145 = vadd.f32 %v6898, %v7055
      %v7146 = vadd.f32 %v6899, %v7060
      %v7147 = vadd.f32 %v6900, %v7063
      %v7148 = vadd.f32 %v6901, %v7068
      %v7149 = vadd.f32 %v6902, %v7071
      %v7150 = vadd.f32 %v6903, %v7076
      %v7151 = vadd.f32 %v6904, %v7079
      %v7152 = vadd.f32 %v6905, %v7084
      %v7153 = vadd.f32 %v6906, %v7087
      %v7154 = vadd.f32 %v6907, %v7092
      %v7155 = vadd.f32 %v6908, %v7095
      %v7156 = vadd.f32 %v6909, %v7100
      %v7157 = vadd.f32 %v6910, %v7103
      %v7158 = vadd.f32 %v6911, %v7108
      %v7159 = vadd.f32 %v6912, %v7111
      %v7160 = vadd.f32 %v6913, %v7116
      %v7161 = vadd.f32 %v6914, %v7119
      %v7162 = vld [vmem:[%s3] sm:$0x1]
      %v7164 = vlaneseq
      %v7165 = vshrl.u32 %v7164, 7
      %v7166 = vsub.s32 0, %v7165
      %v7167 = vrot.slane %v7162, %v7166
      %v7169 = vmul.f32 %v7122, %v7167
      %v7170 = vmul.f32 %v7123, %v7167
      %v7171 = vmul.f32 %v7124, %v7167
      %v7172 = vmul.f32 %v7125, %v7167
      %v7173 = vmul.f32 %v7126, %v7167
      %v7174 = vmul.f32 %v7127, %v7167
      %v7175 = vmul.f32 %v7128, %v7167
      %v7176 = vmul.f32 %v7129, %v7167
      %v7177 = vmul.f32 %v7130, %v7167
      %v7178 = vmul.f32 %v7131, %v7167
      %v7179 = vmul.f32 %v7132, %v7167
      %v7180 = vmul.f32 %v7133, %v7167
      %v7181 = vmul.f32 %v7134, %v7167
      %v7182 = vmul.f32 %v7135, %v7167
      %v7183 = vmul.f32 %v7136, %v7167
      %v7184 = vmul.f32 %v7137, %v7167
      %v7185 = vmul.f32 %v7138, %v7167
      %v7186 = vmul.f32 %v7139, %v7167
      %v7187 = vmul.f32 %v7140, %v7167
      %v7188 = vmul.f32 %v7141, %v7167
      %v7189 = vmul.f32 %v7142, %v7167
      %v7190 = vmul.f32 %v7143, %v7167
      %v7191 = vmul.f32 %v7144, %v7167
      %v7192 = vmul.f32 %v7145, %v7167
      %v7193 = vmul.f32 %v7146, %v7167
      %v7194 = vmul.f32 %v7147, %v7167
      %v7195 = vmul.f32 %v7148, %v7167
      %v7196 = vmul.f32 %v7149, %v7167
      %v7197 = vmul.f32 %v7150, %v7167
      %v7198 = vmul.f32 %v7151, %v7167
      %v7199 = vmul.f32 %v7152, %v7167
      %v7200 = vmul.f32 %v7153, %v7167
      %v7201 = vmul.f32 %v7154, %v7167
      %v7202 = vmul.f32 %v7155, %v7167
      %v7203 = vmul.f32 %v7156, %v7167
      %v7204 = vmul.f32 %v7157, %v7167
      %v7205 = vmul.f32 %v7158, %v7167
      %v7206 = vmul.f32 %v7159, %v7167
      %v7207 = vmul.f32 %v7160, %v7167
      %v7208 = vmul.f32 %v7161, %v7167
      %v7209 = vld [vmem:[%s4] sm:$0x1]
      %v7211 = vlaneseq
      %v7212 = vshrl.u32 %v7211, 7
      %v7213 = vsub.s32 0, %v7212
      %v7214 = vrot.slane %v7209, %v7213
      %v7216 = vadd.f32 %v7169, %v7214
      %v7217 = vadd.f32 %v7170, %v7214
      %v7218 = vadd.f32 %v7171, %v7214
      %v7219 = vadd.f32 %v7172, %v7214
      %v7220 = vadd.f32 %v7173, %v7214
      %v7221 = vadd.f32 %v7174, %v7214
      %v7222 = vadd.f32 %v7175, %v7214
      %v7223 = vadd.f32 %v7176, %v7214
      %v7224 = vadd.f32 %v7177, %v7214
      %v7225 = vadd.f32 %v7178, %v7214
      %v7226 = vadd.f32 %v7179, %v7214
      %v7227 = vadd.f32 %v7180, %v7214
      %v7228 = vadd.f32 %v7181, %v7214
      %v7229 = vadd.f32 %v7182, %v7214
      %v7230 = vadd.f32 %v7183, %v7214
      %v7231 = vadd.f32 %v7184, %v7214
      %v7232 = vadd.f32 %v7185, %v7214
      %v7233 = vadd.f32 %v7186, %v7214
      %v7234 = vadd.f32 %v7187, %v7214
      %v7235 = vadd.f32 %v7188, %v7214
      %v7236 = vadd.f32 %v7189, %v7214
      %v7237 = vadd.f32 %v7190, %v7214
      %v7238 = vadd.f32 %v7191, %v7214
      %v7239 = vadd.f32 %v7192, %v7214
      %v7240 = vadd.f32 %v7193, %v7214
      %v7241 = vadd.f32 %v7194, %v7214
      %v7242 = vadd.f32 %v7195, %v7214
      %v7243 = vadd.f32 %v7196, %v7214
      %v7244 = vadd.f32 %v7197, %v7214
      %v7245 = vadd.f32 %v7198, %v7214
      %v7246 = vadd.f32 %v7199, %v7214
      %v7247 = vadd.f32 %v7200, %v7214
      %v7248 = vadd.f32 %v7201, %v7214
      %v7249 = vadd.f32 %v7202, %v7214
      %v7250 = vadd.f32 %v7203, %v7214
      %v7251 = vadd.f32 %v7204, %v7214
      %v7252 = vadd.f32 %v7205, %v7214
      %v7253 = vadd.f32 %v7206, %v7214
      %v7254 = vadd.f32 %v7207, %v7214
      %v7255 = vadd.f32 %v7208, %v7214
      %v7256 = vxor.u32 %v7216, 2147483648
      %v7257 = vxor.u32 %v7217, 2147483648
      %v7258 = vxor.u32 %v7218, 2147483648
      %v7259 = vxor.u32 %v7219, 2147483648
      %v7260 = vxor.u32 %v7220, 2147483648
      %v7261 = vxor.u32 %v7221, 2147483648
      %v7262 = vxor.u32 %v7222, 2147483648
      %v7263 = vxor.u32 %v7223, 2147483648
      %v7264 = vxor.u32 %v7224, 2147483648
      %v7265 = vxor.u32 %v7225, 2147483648
      %v7266 = vxor.u32 %v7226, 2147483648
      %v7267 = vxor.u32 %v7227, 2147483648
      %v7268 = vxor.u32 %v7228, 2147483648
      %v7269 = vxor.u32 %v7229, 2147483648
      %v7270 = vxor.u32 %v7230, 2147483648
      %v7271 = vxor.u32 %v7231, 2147483648
      %v7272 = vxor.u32 %v7232, 2147483648
      %v7273 = vxor.u32 %v7233, 2147483648
      %v7274 = vxor.u32 %v7234, 2147483648
      %v7275 = vxor.u32 %v7235, 2147483648
      %v7276 = vxor.u32 %v7236, 2147483648
      %v7277 = vxor.u32 %v7237, 2147483648
      %v7278 = vxor.u32 %v7238, 2147483648
      %v7279 = vxor.u32 %v7239, 2147483648
      %v7280 = vxor.u32 %v7240, 2147483648
      %v7281 = vxor.u32 %v7241, 2147483648
      %v7282 = vxor.u32 %v7242, 2147483648
      %v7283 = vxor.u32 %v7243, 2147483648
      %v7284 = vxor.u32 %v7244, 2147483648
      %v7285 = vxor.u32 %v7245, 2147483648
      %v7286 = vxor.u32 %v7246, 2147483648
      %v7287 = vxor.u32 %v7247, 2147483648
      %v7288 = vxor.u32 %v7248, 2147483648
      %v7289 = vxor.u32 %v7249, 2147483648
      %v7290 = vxor.u32 %v7250, 2147483648
      %v7291 = vxor.u32 %v7251, 2147483648
      %v7292 = vxor.u32 %v7252, 2147483648
      %v7293 = vxor.u32 %v7253, 2147483648
      %v7294 = vxor.u32 %v7254, 2147483648
      %v7295 = vxor.u32 %v7255, 2147483648
      %v7296 = vmul.f32 %v7256, 1.442695
      %v7297 = vpow.pop %v7296
      %v7298 = vmul.f32 %v7257, 1.442695
      %v7299 = vpow.pop %v7298
      %v7300 = vmul.f32 %v7258, 1.442695
      %v7301 = vpow.pop %v7300
      %v7302 = vmul.f32 %v7259, 1.442695
      %v7303 = vpow.pop %v7302
      %v7304 = vmul.f32 %v7260, 1.442695
      %v7305 = vpow.pop %v7304
      %v7306 = vmul.f32 %v7261, 1.442695
      %v7307 = vpow.pop %v7306
      %v7308 = vmul.f32 %v7262, 1.442695
      %v7309 = vpow.pop %v7308
      %v7310 = vmul.f32 %v7263, 1.442695
      %v7311 = vpow.pop %v7310
      %v7312 = vmul.f32 %v7264, 1.442695
      %v7313 = vpow.pop %v7312
      %v7314 = vmul.f32 %v7265, 1.442695
      %v7315 = vpow.pop %v7314
      %v7316 = vmul.f32 %v7266, 1.442695
      %v7317 = vpow.pop %v7316
      %v7318 = vmul.f32 %v7267, 1.442695
      %v7319 = vpow.pop %v7318
      %v7320 = vmul.f32 %v7268, 1.442695
      %v7321 = vpow.pop %v7320
      %v7322 = vmul.f32 %v7269, 1.442695
      %v7323 = vpow.pop %v7322
      %v7324 = vmul.f32 %v7270, 1.442695
      %v7325 = vpow.pop %v7324
      %v7326 = vmul.f32 %v7271, 1.442695
      %v7327 = vpow.pop %v7326
      %v7328 = vmul.f32 %v7272, 1.442695
      %v7329 = vpow.pop %v7328
      %v7330 = vmul.f32 %v7273, 1.442695
      %v7331 = vpow.pop %v7330
      %v7332 = vmul.f32 %v7274, 1.442695
      %v7333 = vpow.pop %v7332
      %v7334 = vmul.f32 %v7275, 1.442695
      %v7335 = vpow.pop %v7334
      %v7336 = vmul.f32 %v7276, 1.442695
      %v7337 = vpow.pop %v7336
      %v7338 = vmul.f32 %v7277, 1.442695
      %v7339 = vpow.pop %v7338
      %v7340 = vmul.f32 %v7278, 1.442695
      %v7341 = vpow.pop %v7340
      %v7342 = vmul.f32 %v7279, 1.442695
      %v7343 = vpow.pop %v7342
      %v7344 = vmul.f32 %v7280, 1.442695
      %v7345 = vpow.pop %v7344
      %v7346 = vmul.f32 %v7281, 1.442695
      %v7347 = vpow.pop %v7346
      %v7348 = vmul.f32 %v7282, 1.442695
      %v7349 = vpow.pop %v7348
      %v7350 = vmul.f32 %v7283, 1.442695
      %v7351 = vpow.pop %v7350
      %v7352 = vmul.f32 %v7284, 1.442695
      %v7353 = vpow.pop %v7352
      %v7354 = vmul.f32 %v7285, 1.442695
      %v7355 = vpow.pop %v7354
      %v7356 = vmul.f32 %v7286, 1.442695
      %v7357 = vpow.pop %v7356
      %v7358 = vmul.f32 %v7287, 1.442695
      %v7359 = vpow.pop %v7358
      %v7360 = vmul.f32 %v7288, 1.442695
      %v7361 = vpow.pop %v7360
      %v7362 = vmul.f32 %v7289, 1.442695
      %v7363 = vpow.pop %v7362
      %v7364 = vmul.f32 %v7290, 1.442695
      %v7365 = vpow.pop %v7364
      %v7366 = vmul.f32 %v7291, 1.442695
      %v7367 = vpow.pop %v7366
      %v7368 = vmul.f32 %v7292, 1.442695
      %v7369 = vpow.pop %v7368
      %v7370 = vmul.f32 %v7293, 1.442695
      %v7371 = vpow.pop %v7370
      %v7372 = vmul.f32 %v7294, 1.442695
      %v7373 = vpow.pop %v7372
      %v7374 = vmul.f32 %v7295, 1.442695
      %v7375 = vpow.pop %v7374
      %v7376 = vadd.f32 %v7297, 1.0
      %v7377 = vadd.f32 %v7299, 1.0
      %v7378 = vadd.f32 %v7301, 1.0
      %v7379 = vadd.f32 %v7303, 1.0
      %v7380 = vadd.f32 %v7305, 1.0
      %v7381 = vadd.f32 %v7307, 1.0
      %v7382 = vadd.f32 %v7309, 1.0
      %v7383 = vadd.f32 %v7311, 1.0
      %v7384 = vadd.f32 %v7313, 1.0
      %v7385 = vadd.f32 %v7315, 1.0
      %v7386 = vadd.f32 %v7317, 1.0
      %v7387 = vadd.f32 %v7319, 1.0
      %v7388 = vadd.f32 %v7321, 1.0
      %v7389 = vadd.f32 %v7323, 1.0
      %v7390 = vadd.f32 %v7325, 1.0
      %v7391 = vadd.f32 %v7327, 1.0
      %v7392 = vadd.f32 %v7329, 1.0
      %v7393 = vadd.f32 %v7331, 1.0
      %v7394 = vadd.f32 %v7333, 1.0
      %v7395 = vadd.f32 %v7335, 1.0
      %v7396 = vadd.f32 %v7337, 1.0
      %v7397 = vadd.f32 %v7339, 1.0
      %v7398 = vadd.f32 %v7341, 1.0
      %v7399 = vadd.f32 %v7343, 1.0
      %v7400 = vadd.f32 %v7345, 1.0
      %v7401 = vadd.f32 %v7347, 1.0
      %v7402 = vadd.f32 %v7349, 1.0
      %v7403 = vadd.f32 %v7351, 1.0
      %v7404 = vadd.f32 %v7353, 1.0
      %v7405 = vadd.f32 %v7355, 1.0
      %v7406 = vadd.f32 %v7357, 1.0
      %v7407 = vadd.f32 %v7359, 1.0
      %v7408 = vadd.f32 %v7361, 1.0
      %v7409 = vadd.f32 %v7363, 1.0
      %v7410 = vadd.f32 %v7365, 1.0
      %v7411 = vadd.f32 %v7367, 1.0
      %v7412 = vadd.f32 %v7369, 1.0
      %v7413 = vadd.f32 %v7371, 1.0
      %v7414 = vadd.f32 %v7373, 1.0
      %v7415 = vadd.f32 %v7375, 1.0
      %v7416 = vrcp.pop %v7376
      %v7417 = vmul.f32 1.0, %v7416
      %v7418 = vrcp.pop %v7377
      %v7419 = vmul.f32 1.0, %v7418
      %v7420 = vrcp.pop %v7378
      %v7421 = vmul.f32 1.0, %v7420
      %v7422 = vrcp.pop %v7379
      %v7423 = vmul.f32 1.0, %v7422
      %v7424 = vrcp.pop %v7380
      %v7425 = vmul.f32 1.0, %v7424
      %v7426 = vrcp.pop %v7381
      %v7427 = vmul.f32 1.0, %v7426
      %v7428 = vrcp.pop %v7382
      %v7429 = vmul.f32 1.0, %v7428
      %v7430 = vrcp.pop %v7383
      %v7431 = vmul.f32 1.0, %v7430
      %v7432 = vrcp.pop %v7384
      %v7433 = vmul.f32 1.0, %v7432
      %v7434 = vrcp.pop %v7385
      %v7435 = vmul.f32 1.0, %v7434
      %v7436 = vrcp.pop %v7386
      %v7437 = vmul.f32 1.0, %v7436
      %v7438 = vrcp.pop %v7387
      %v7439 = vmul.f32 1.0, %v7438
      %v7440 = vrcp.pop %v7388
      %v7441 = vmul.f32 1.0, %v7440
      %v7442 = vrcp.pop %v7389
      %v7443 = vmul.f32 1.0, %v7442
      %v7444 = vrcp.pop %v7390
      %v7445 = vmul.f32 1.0, %v7444
      %v7446 = vrcp.pop %v7391
      %v7447 = vmul.f32 1.0, %v7446
      %v7448 = vrcp.pop %v7392
      %v7449 = vmul.f32 1.0, %v7448
      %v7450 = vrcp.pop %v7393
      %v7451 = vmul.f32 1.0, %v7450
      %v7452 = vrcp.pop %v7394
      %v7453 = vmul.f32 1.0, %v7452
      %v7454 = vrcp.pop %v7395
      %v7455 = vmul.f32 1.0, %v7454
      %v7456 = vrcp.pop %v7396
      %v7457 = vmul.f32 1.0, %v7456
      %v7458 = vrcp.pop %v7397
      %v7459 = vmul.f32 1.0, %v7458
      %v7460 = vrcp.pop %v7398
      %v7461 = vmul.f32 1.0, %v7460
      %v7462 = vrcp.pop %v7399
      %v7463 = vmul.f32 1.0, %v7462
      %v7464 = vrcp.pop %v7400
      %v7465 = vmul.f32 1.0, %v7464
      %v7466 = vrcp.pop %v7401
      %v7467 = vmul.f32 1.0, %v7466
      %v7468 = vrcp.pop %v7402
      %v7469 = vmul.f32 1.0, %v7468
      %v7470 = vrcp.pop %v7403
      %v7471 = vmul.f32 1.0, %v7470
      %v7472 = vrcp.pop %v7404
      %v7473 = vmul.f32 1.0, %v7472
      %v7474 = vrcp.pop %v7405
      %v7475 = vmul.f32 1.0, %v7474
      %v7476 = vrcp.pop %v7406
      %v7477 = vmul.f32 1.0, %v7476
      %v7478 = vrcp.pop %v7407
      %v7479 = vmul.f32 1.0, %v7478
      %v7480 = vrcp.pop %v7408
      %v7481 = vmul.f32 1.0, %v7480
      %v7482 = vrcp.pop %v7409
      %v7483 = vmul.f32 1.0, %v7482
      %v7484 = vrcp.pop %v7410
      %v7485 = vmul.f32 1.0, %v7484
      %v7486 = vrcp.pop %v7411
      %v7487 = vmul.f32 1.0, %v7486
      %v7488 = vrcp.pop %v7412
      %v7489 = vmul.f32 1.0, %v7488
      %v7490 = vrcp.pop %v7413
      %v7491 = vmul.f32 1.0, %v7490
      %v7492 = vrcp.pop %v7414
      %v7493 = vmul.f32 1.0, %v7492
      %v7494 = vrcp.pop %v7415
      %v7495 = vmul.f32 1.0, %v7494
      %v7496 = vmul.f32 %v7216, %v7417
      %v7497 = vmul.f32 %v7217, %v7419
      %v7498 = vmul.f32 %v7218, %v7421
      %v7499 = vmul.f32 %v7219, %v7423
      %v7500 = vmul.f32 %v7220, %v7425
      %v7501 = vmul.f32 %v7221, %v7427
      %v7502 = vmul.f32 %v7222, %v7429
      %v7503 = vmul.f32 %v7223, %v7431
      %v7504 = vmul.f32 %v7224, %v7433
      %v7505 = vmul.f32 %v7225, %v7435
      %v7506 = vmul.f32 %v7226, %v7437
      %v7507 = vmul.f32 %v7227, %v7439
      %v7508 = vmul.f32 %v7228, %v7441
      %v7509 = vmul.f32 %v7229, %v7443
      %v7510 = vmul.f32 %v7230, %v7445
      %v7511 = vmul.f32 %v7231, %v7447
      %v7512 = vmul.f32 %v7232, %v7449
      %v7513 = vmul.f32 %v7233, %v7451
      %v7514 = vmul.f32 %v7234, %v7453
      %v7515 = vmul.f32 %v7235, %v7455
      %v7516 = vmul.f32 %v7236, %v7457
      %v7517 = vmul.f32 %v7237, %v7459
      %v7518 = vmul.f32 %v7238, %v7461
      %v7519 = vmul.f32 %v7239, %v7463
      %v7520 = vmul.f32 %v7240, %v7465
      %v7521 = vmul.f32 %v7241, %v7467
      %v7522 = vmul.f32 %v7242, %v7469
      %v7523 = vmul.f32 %v7243, %v7471
      %v7524 = vmul.f32 %v7244, %v7473
      %v7525 = vmul.f32 %v7245, %v7475
      %v7526 = vmul.f32 %v7246, %v7477
      %v7527 = vmul.f32 %v7247, %v7479
      %v7528 = vmul.f32 %v7248, %v7481
      %v7529 = vmul.f32 %v7249, %v7483
      %v7530 = vmul.f32 %v7250, %v7485
      %v7531 = vmul.f32 %v7251, %v7487
      %v7532 = vmul.f32 %v7252, %v7489
      %v7533 = vmul.f32 %v7253, %v7491
      %v7534 = vmul.f32 %v7254, %v7493
      %v7535 = vmul.f32 %v7255, %v7495
      %v7536 = vpack.c.bf16 %v7497, %v7496
      %v7537 = vpack.c.bf16 %v7499, %v7498
      %v7538 = vpack.c.bf16 %v7501, %v7500
      %v7539 = vpack.c.bf16 %v7503, %v7502
      %v7540 = vpack.c.bf16 %v7505, %v7504
      %v7541 = vpack.c.bf16 %v7507, %v7506
      %v7542 = vpack.c.bf16 %v7509, %v7508
      %v7543 = vpack.c.bf16 %v7511, %v7510
      %v7544 = vpack.c.bf16 %v7513, %v7512
      %v7545 = vpack.c.bf16 %v7515, %v7514
      %v7546 = vpack.c.bf16 %v7517, %v7516
      %v7547 = vpack.c.bf16 %v7519, %v7518
      %v7548 = vpack.c.bf16 %v7521, %v7520
      %v7549 = vpack.c.bf16 %v7523, %v7522
      %v7550 = vpack.c.bf16 %v7525, %v7524
      %v7551 = vpack.c.bf16 %v7527, %v7526
      %v7552 = vpack.c.bf16 %v7529, %v7528
      %v7553 = vpack.c.bf16 %v7531, %v7530
      %v7554 = vpack.c.bf16 %v7533, %v7532
      %v7555 = vpack.c.bf16 %v7535, %v7534
      %v7576 = vunpack.c.l.b16 %v7536
      %v7577 = vunpack.c.h.b16 %v7536
      %v7578 = vunpack.c.l.b16 %v7537
      %v7579 = vunpack.c.h.b16 %v7537
      %v7580 = vunpack.c.l.b16 %v7538
      %v7581 = vunpack.c.h.b16 %v7538
      %v7582 = vunpack.c.l.b16 %v7539
      %v7583 = vunpack.c.h.b16 %v7539
      %v7584 = vunpack.c.l.b16 %v7540
      %v7585 = vunpack.c.h.b16 %v7540
      %v7586 = vunpack.c.l.b16 %v7541
      %v7587 = vunpack.c.h.b16 %v7541
      %v7588 = vunpack.c.l.b16 %v7542
      %v7589 = vunpack.c.h.b16 %v7542
      %v7590 = vunpack.c.l.b16 %v7543
      %v7591 = vunpack.c.h.b16 %v7543
      %v7592 = vunpack.c.l.b16 %v7544
      %v7593 = vunpack.c.h.b16 %v7544
      %v7594 = vunpack.c.l.b16 %v7545
      %v7595 = vunpack.c.h.b16 %v7545
      %v7596 = vunpack.c.l.b16 %v7546
      %v7597 = vunpack.c.h.b16 %v7546
      %v7598 = vunpack.c.l.b16 %v7547
      %v7599 = vunpack.c.h.b16 %v7547
      %v7600 = vunpack.c.l.b16 %v7548
      %v7601 = vunpack.c.h.b16 %v7548
      %v7602 = vunpack.c.l.b16 %v7549
      %v7603 = vunpack.c.h.b16 %v7549
      %v7604 = vunpack.c.l.b16 %v7550
      %v7605 = vunpack.c.h.b16 %v7550
      %v7606 = vunpack.c.l.b16 %v7551
      %v7607 = vunpack.c.h.b16 %v7551
      %v7608 = vunpack.c.l.b16 %v7552
      %v7609 = vunpack.c.h.b16 %v7552
      %v7610 = vunpack.c.l.b16 %v7553
      %v7611 = vunpack.c.h.b16 %v7553
      %v7612 = vunpack.c.l.b16 %v7554
      %v7613 = vunpack.c.h.b16 %v7554
      %v7614 = vunpack.c.l.b16 %v7555
      %v7615 = vunpack.c.h.b16 %v7555
      %v7616 = vpack.c.b16 %v7576, %v7576
      %v7617 = vpack.c.b16 %v7577, %v7577
      %v7618 = vpack.c.b16 %v7578, %v7578
      %v7619 = vpack.c.b16 %v7579, %v7579
      %v7620 = vpack.c.b16 %v7580, %v7580
      %v7621 = vpack.c.b16 %v7581, %v7581
      %v7622 = vpack.c.b16 %v7582, %v7582
      %v7623 = vpack.c.b16 %v7583, %v7583
      %v7624 = vpack.c.b16 %v7584, %v7584
      %v7625 = vpack.c.b16 %v7585, %v7585
      %v7626 = vpack.c.b16 %v7586, %v7586
      %v7627 = vpack.c.b16 %v7587, %v7587
      %v7628 = vpack.c.b16 %v7588, %v7588
      %v7629 = vpack.c.b16 %v7589, %v7589
      %v7630 = vpack.c.b16 %v7590, %v7590
      %v7631 = vpack.c.b16 %v7591, %v7591
      %v7632 = vpack.c.b16 %v7592, %v7592
      %v7633 = vpack.c.b16 %v7593, %v7593
      %v7634 = vpack.c.b16 %v7594, %v7594
      %v7635 = vpack.c.b16 %v7595, %v7595
      %v7636 = vpack.c.b16 %v7596, %v7596
      %v7637 = vpack.c.b16 %v7597, %v7597
      %v7638 = vpack.c.b16 %v7598, %v7598
      %v7639 = vpack.c.b16 %v7599, %v7599
      %v7640 = vpack.c.b16 %v7600, %v7600
      %v7641 = vpack.c.b16 %v7601, %v7601
      %v7642 = vpack.c.b16 %v7602, %v7602
      %v7643 = vpack.c.b16 %v7603, %v7603
      %v7644 = vpack.c.b16 %v7604, %v7604
      %v7645 = vpack.c.b16 %v7605, %v7605
      %v7646 = vpack.c.b16 %v7606, %v7606
      %v7647 = vpack.c.b16 %v7607, %v7607
      %v7648 = vpack.c.b16 %v7608, %v7608
      %v7649 = vpack.c.b16 %v7609, %v7609
      %v7650 = vpack.c.b16 %v7610, %v7610
      %v7651 = vpack.c.b16 %v7611, %v7611
      %v7652 = vpack.c.b16 %v7612, %v7612
      %v7653 = vpack.c.b16 %v7613, %v7613
      %v7654 = vpack.c.b16 %v7614, %v7614
      %v7655 = vpack.c.b16 %v7615, %v7615
      %vm7696 = vcmask 519168
      %7697 = vst.msk [vmem:[%s332] sm:$0xf] %vm7696, %v7616
      %7698 = vst.msk [vmem:[%s332 + $0x4] sm:$0xf] %vm7696, %v7617
      %7699 = vst.msk [vmem:[%s332 + $0x8] sm:$0xf] %vm7696, %v7618
      %7700 = vst.msk [vmem:[%s332 + $0xc] sm:$0xf] %vm7696, %v7619
      %7701 = vst.msk [vmem:[%s332 + $0x10] sm:$0xf] %vm7696, %v7620
      %7702 = vst.msk [vmem:[%s332 + $0x14] sm:$0xf] %vm7696, %v7621
      %7703 = vst.msk [vmem:[%s332 + $0x18] sm:$0xf] %vm7696, %v7622
      %7704 = vst.msk [vmem:[%s332 + $0x1c] sm:$0xf] %vm7696, %v7623
      %7705 = vst.msk [vmem:[%s332 + $0x20] sm:$0xf] %vm7696, %v7624
      %7706 = vst.msk [vmem:[%s332 + $0x24] sm:$0xf] %vm7696, %v7625
      %7707 = vst.msk [vmem:[%s332 + $0x28] sm:$0xf] %vm7696, %v7626
      %7708 = vst.msk [vmem:[%s332 + $0x2c] sm:$0xf] %vm7696, %v7627
      %7709 = vst.msk [vmem:[%s332 + $0x30] sm:$0xf] %vm7696, %v7628
      %7710 = vst.msk [vmem:[%s332 + $0x34] sm:$0xf] %vm7696, %v7629
      %7711 = vst.msk [vmem:[%s332 + $0x38] sm:$0xf] %vm7696, %v7630
      %7712 = vst.msk [vmem:[%s332 + $0x3c] sm:$0xf] %vm7696, %v7631
      %7713 = vst.msk [vmem:[%s332 + $0x40] sm:$0xf] %vm7696, %v7632
      %7714 = vst.msk [vmem:[%s332 + $0x44] sm:$0xf] %vm7696, %v7633
      %7715 = vst.msk [vmem:[%s332 + $0x48] sm:$0xf] %vm7696, %v7634
      %7716 = vst.msk [vmem:[%s332 + $0x4c] sm:$0xf] %vm7696, %v7635
      %7717 = vst.msk [vmem:[%s332 + $0x50] sm:$0xf] %vm7696, %v7636
      %7718 = vst.msk [vmem:[%s332 + $0x54] sm:$0xf] %vm7696, %v7637
      %7719 = vst.msk [vmem:[%s332 + $0x58] sm:$0xf] %vm7696, %v7638
      %7720 = vst.msk [vmem:[%s332 + $0x5c] sm:$0xf] %vm7696, %v7639
      %7721 = vst.msk [vmem:[%s332 + $0x60] sm:$0xf] %vm7696, %v7640
      %7722 = vst.msk [vmem:[%s332 + $0x64] sm:$0xf] %vm7696, %v7641
      %7723 = vst.msk [vmem:[%s332 + $0x68] sm:$0xf] %vm7696, %v7642
      %7724 = vst.msk [vmem:[%s332 + $0x6c] sm:$0xf] %vm7696, %v7643
      %7725 = vst.msk [vmem:[%s332 + $0x70] sm:$0xf] %vm7696, %v7644
      %7726 = vst.msk [vmem:[%s332 + $0x74] sm:$0xf] %vm7696, %v7645
      %7727 = vst.msk [vmem:[%s332 + $0x78] sm:$0xf] %vm7696, %v7646
      %7728 = vst.msk [vmem:[%s332 + $0x7c] sm:$0xf] %vm7696, %v7647
      %7729 = vst.msk [vmem:[%s332 + $0x80] sm:$0xf] %vm7696, %v7648
      %7730 = vst.msk [vmem:[%s332 + $0x84] sm:$0xf] %vm7696, %v7649
      %7731 = vst.msk [vmem:[%s332 + $0x88] sm:$0xf] %vm7696, %v7650
      %7732 = vst.msk [vmem:[%s332 + $0x8c] sm:$0xf] %vm7696, %v7651
      %7733 = vst.msk [vmem:[%s332 + $0x90] sm:$0xf] %vm7696, %v7652
      %7734 = vst.msk [vmem:[%s332 + $0x94] sm:$0xf] %vm7696, %v7653
      %7735 = vst.msk [vmem:[%s332 + $0x98] sm:$0xf] %vm7696, %v7654
      %7736 = vst.msk [vmem:[%s332 + $0x9c] sm:$0xf] %vm7696, %v7655
      %s7737 = smul.u32 40, %s21
      %p7738 = scmp.lt.s32.totalorder %s20, 1
      %s7739 = scalar_select %p7738, %s20, 1
      %p7740 = scmp.lt.s32.totalorder %s7737, 39
      %s7741 = scalar_select %p7740, %s7737, 39
      %s7742 = smul.addr %s7739, 40
      %s7743 = sadd.s32 %s7741, %s7742
      %s7744 = smul.addr %s7743, 4
      %s7745 = scalar_lea.vmem %s5, %s7744
      // Predicated region
      $region41: #{tpu_custom_call.1} parent=39 // pred_check
        %p7746 = pneg %p171
      $region42: #{tpu_custom_call.1} parent=39 // pred_check_branch
        %7748 = sbr.rel (%p7746) target = $region44
      $region43: #{tpu_custom_call.1} parent=39 // pred_region
        %s7749 = smul.u32 40, %s21
      $region44: #{tpu_custom_call.1} parent=39 // pred_fallthru
        _
    $region40: #{tpu_custom_call.1} parent=5 // pred_fallthru
      _
    %p7750 = scmp.le.s32.totalorder 2, %s11
    // Predicated region
    $region45: #{tpu_custom_call.1} parent=5 // pred_check
      %p7751 = pneg %p7750
    $region46: #{tpu_custom_call.1} parent=5 // pred_check_branch
      %7753 = sbr.rel (%p7751) target = $region48
    $region47: #{tpu_custom_call.1} parent=5 // pred_region
      %s7754 = ssub.s32 %s11, 2
      // Predicated region
      $region49: #{tpu_custom_call.1} parent=47 // pred_check
        %p7755 = pneg %p177
      $region50: #{tpu_custom_call.1} parent=47 // pred_check_branch
        %7757 = sbr.rel (%p7755) target = $region52
      $region51: #{tpu_custom_call.1} parent=47 // pred_region
        %s7758 = smul.u32 40, %s23
        %p7759 = scmp.lt.s32.totalorder %s22, 1
        %s7760 = scalar_select %p7759, %s22, 1
        %p7761 = scmp.lt.s32.totalorder %s7758, 39
        %s7762 = scalar_select %p7761, %s7758, 39
        %s7763 = smul.addr %s7760, 40
        %s7764 = sadd.s32 %s7762, %s7763
        %s7765 = smul.addr %s7764, 4
        %s7766 = scalar_lea.vmem %s5, %s7765
      $region52: #{tpu_custom_call.1} parent=47 // pred_fallthru
        _
    $region48: #{tpu_custom_call.1} parent=5 // pred_fallthru
      _
  $region6: #{tpu_custom_call.1} parent=0 // loop_footer
    %s15 = sadd.s32 1, %s11
  $region7: #{tpu_custom_call.1} parent=0 // loop_footer_branch
    %10 = sbr.rel target = $region3
  $region8: #{tpu_custom_call.1} parent=0 // loop_exit
    _

</llo_original>
